<compile_context>
chip_gen: v5e
topology: v5e:2x2
jax: 0.10.0
libtpu: 0.0.40
codegen_flags: <defaults>
</compile_context>

<pallas_src>
import jax
import jax.numpy as jnp
from jax.experimental import pallas as pl
from jax.experimental.pallas import tpu as pltpu


# ------------------------------- constants ----------------------------------

DIM = 32                 # GIN hidden width
NUM_FEATURES_XD = 78
NUM_FEATURES_XT = 25
N_FILTERS = 32
EMBED_DIM = 128
OUTPUT_DIM = 128
SEQ_LEN = 1000           # Conv1d in_channels (GraphDTA layout quirk)
KERNEL_SIZE = 8
CONV_OUT_LEN = EMBED_DIM - KERNEL_SIZE + 1   # 121
VOCAB_PAD = 32           # 26-entry embedding table padded to 32 rows


def _round_up(x, m):
    return (x + m - 1) // m * m


def _pick_vmem_limit():
    """Generation-aware scoped-VMEM cap: ~half of per-core VMEM, clamped to
    [32 MiB, 96 MiB].  (Per-call footprints here are < 10 MiB anyway since the
    graph branch is per-graph tiled.)"""
    try:
        cap = int(pltpu.get_tpu_info().vmem_capacity_bytes)
    except Exception:
        cap = 64 * 1024 * 1024
    return max(32 * 1024 * 1024, min(cap // 2, 96 * 1024 * 1024))


_VMEM_LIMIT_BYTES = _pick_vmem_limit()


# ----------------------------- Pallas kernels -------------------------------

def graph_branch_kernel(adj_ref, x_ref, msk_ref,
                        w1a_ref, b1a_ref, w2a_ref, b2a_ref,
                        w1s_ref, b1s_ref, w2s_ref, b2s_ref,
                        bns_ref, bnb_ref, wxd_ref, bxd_ref, out_ref):
    """One graph: 5x (GINConv -> ReLU -> BN) + add-pool + fc1_xd + ReLU."""
    adj = adj_ref[0].astype(jnp.float32)                 # [T, T], exact 0/1 (+I)

    # Layer 1, reassociated:  ((A+I) @ x) @ W1 == (A+I) @ (x @ W1)
    xw = jnp.dot(x_ref[0], w1a_ref[...], preferred_element_type=jnp.float32)
    h = jnp.dot(adj, xw, preferred_element_type=jnp.float32) + b1a_ref[...]
    h = jnp.maximum(h, 0.0)
    h = jnp.dot(h.astype(jnp.bfloat16), w2a_ref[...],
                preferred_element_type=jnp.float32) + b2a_ref[...]
    h = jnp.maximum(h, 0.0)                              # F.relu(conv1)
    h = h * bns_ref[0] + bnb_ref[0]                      # bn1 (eval-mode)

    # Layers 2..5 (weights stacked as [4, 32, 32]); aggregation kept in f32.
    for i in range(4):
        agg = jnp.dot(adj, h, preferred_element_type=jnp.float32)    # (A+I) @ h
        t = jnp.dot(agg.astype(jnp.bfloat16), w1s_ref[i],
                    preferred_element_type=jnp.float32) + b1s_ref[i]
        t = jnp.maximum(t, 0.0)
        t = jnp.dot(t.astype(jnp.bfloat16), w2s_ref[i],
                    preferred_element_type=jnp.float32) + b2s_ref[i]
        t = jnp.maximum(t, 0.0)
        h = t * bns_ref[i + 1] + bnb_ref[i + 1]

    # global_add_pool over valid nodes + fc1_xd + ReLU
    pooled = jnp.dot(msk_ref[0], h, preferred_element_type=jnp.float32)  # [1, 32]
    xd = jnp.dot(pooled.astype(jnp.bfloat16), wxd_ref[...],
                 preferred_element_type=jnp.float32) + bxd_ref[...]
    # TODO(synk): dropout after fc1_xd is identity in eval mode.
    out_ref[0] = jnp.maximum(xd, 0.0).astype(out_ref.dtype)             # [1, 128]


def protein_conv_kernel(tok_ref, wallT_ref, esT_ref, out_ref):
    """Embedding + Conv1d(1000 -> 32, k=8) for one sample, fully fused.

    one-hot(tokens) [32v, 1000p]  @  wallT [1000p, 256(k,o)]  ->  z [32v, 256]
    coT[l, o] = sum_k esT[k][l, v] @ z[v, k*32+o]      (esT = shifted embed)
    """
    tok = tok_ref[0]                                                    # [1, 1000]
    vocab = jax.lax.broadcasted_iota(jnp.int32, (VOCAB_PAD, SEQ_LEN), 0)
    onehot_t = jnp.where(vocab == tok, 1.0, 0.0).astype(jnp.bfloat16)   # [32, 1000]

    # z[v, k*32+o] = sum over positions with token v of W[o, pos, k]
    z = jnp.dot(onehot_t, wallT_ref[...],
                preferred_element_type=jnp.float32)                     # [32, 256]

    co = jnp.zeros((EMBED_DIM, N_FILTERS), jnp.float32)                 # [128l, 32o]
    for k in range(KERNEL_SIZE):
        zk = z[:, k * N_FILTERS:(k + 1) * N_FILTERS].astype(jnp.bfloat16)
        co = co + jnp.dot(esT_ref[k], zk, preferred_element_type=jnp.float32)
    # co[l, o] = conv output (bias folded into the head's fc1_xt bias);
    # rows l >= 121 are exactly zero.
    out_ref[0] = co.astype(out_ref.dtype)


def head_kernel(xd_ref, cf_ref, wxt_ref, bxt_ref, w1a_ref, w1b_ref, b1_ref,
                w2_ref, b2_ref, w3_ref, b3_ref, out_ref):
    """fc1_xt + concat + fc1 -> ReLU -> fc2 -> ReLU -> out, fused per row tile."""
    # fc1_xt (conv bias already folded into bxt); no ReLU in the reference model.
    xt = jnp.dot(cf_ref[...], wxt_ref[...],
                 preferred_element_type=jnp.float32) + bxt_ref[...]     # [TB, 128]
    # fc1 over concat([xd, xt]) realized as two half-weight matmuls.
    h = jnp.dot(xd_ref[...], w1a_ref[...], preferred_element_type=jnp.float32)
    h = h + jnp.dot(xt.astype(jnp.bfloat16), w1b_ref[...],
                    preferred_element_type=jnp.float32)
    h = jnp.maximum(h + b1_ref[...], 0.0)                               # [TB, 1024]
    # TODO(synk): Dropout (p=0.2) is identity in eval mode.
    h = jnp.dot(h.astype(jnp.bfloat16), w2_ref[...],
                preferred_element_type=jnp.float32) + b2_ref[...]
    h = jnp.maximum(h, 0.0)                                             # [TB, 256]
    # Final Linear(256 -> 1) as a VPU/XLU lane reduction (no 1-lane MXU matmul).
    w3 = w3_ref[...].astype(jnp.float32)                                # [1, 256]
    out_ref[...] = jnp.sum(h * w3, axis=-1, keepdims=True) + b3_ref[...]


# ------------------------------ Pallas wrappers ------------------------------

def graph_branch(p, adj_g, x_g, node_mask):
    bsz, t, _ = adj_g.shape
    out = pl.pallas_call(
        graph_branch_kernel,
        out_shape=jax.ShapeDtypeStruct((bsz, 1, OUTPUT_DIM), jnp.bfloat16),
        grid=(bsz,),
        in_specs=[
            pl.BlockSpec((1, t, t), lambda b: (b, 0, 0)),
            pl.BlockSpec((1, t, NUM_FEATURES_XD), lambda b: (b, 0, 0)),
            pl.BlockSpec((1, 1, t), lambda b: (b, 0, 0)),
            pl.BlockSpec((NUM_FEATURES_XD, DIM), lambda b: (0, 0)),
            pl.BlockSpec((1, DIM), lambda b: (0, 0)),
            pl.BlockSpec((DIM, DIM), lambda b: (0, 0)),
            pl.BlockSpec((1, DIM), lambda b: (0, 0)),
            pl.BlockSpec((4, DIM, DIM), lambda b: (0, 0, 0)),
            pl.BlockSpec((4, 1, DIM), lambda b: (0, 0, 0)),
            pl.BlockSpec((4, DIM, DIM), lambda b: (0, 0, 0)),
            pl.BlockSpec((4, 1, DIM), lambda b: (0, 0, 0)),
            pl.BlockSpec((5, 1, DIM), lambda b: (0, 0, 0)),
            pl.BlockSpec((5, 1, DIM), lambda b: (0, 0, 0)),
            pl.BlockSpec((DIM, OUTPUT_DIM), lambda b: (0, 0)),
            pl.BlockSpec((1, OUTPUT_DIM), lambda b: (0, 0)),
        ],
        out_specs=pl.BlockSpec((1, 1, OUTPUT_DIM), lambda b: (b, 0, 0)),
        compiler_params=pltpu.CompilerParams(
            dimension_semantics=("parallel",),
            vmem_limit_bytes=_VMEM_LIMIT_BYTES),
    )(adj_g, x_g, node_mask,
      p["gin_w1a"], p["gin_b1a"], p["gin_w2a"], p["gin_b2a"],
      p["gin_w1s"], p["gin_b1s"], p["gin_w2s"], p["gin_b2s"],
      p["bn_scale"], p["bn_shift"], p["fc1_xd_w"], p["fc1_xd_b"])
    return out.reshape(bsz, OUTPUT_DIM)


def protein_conv(p, tokens):
    bsz = tokens.shape[0]
    tok3 = tokens.astype(jnp.int32).reshape(bsz, 1, SEQ_LEN)
    return pl.pallas_call(
        protein_conv_kernel,
        out_shape=jax.ShapeDtypeStruct((bsz, EMBED_DIM, N_FILTERS), jnp.bfloat16),
        grid=(bsz,),
        in_specs=[
            pl.BlockSpec((1, 1, SEQ_LEN), lambda b: (b, 0, 0)),
            pl.BlockSpec((SEQ_LEN, KERNEL_SIZE * N_FILTERS), lambda b: (0, 0)),
            pl.BlockSpec((KERNEL_SIZE, EMBED_DIM, N_FILTERS), lambda b: (0, 0, 0)),
        ],
        out_specs=pl.BlockSpec((1, EMBED_DIM, N_FILTERS), lambda b: (b, 0, 0)),
        compiler_params=pltpu.CompilerParams(
            dimension_semantics=("parallel",),      # independent samples -> megacore
            vmem_limit_bytes=_VMEM_LIMIT_BYTES),
    )(tok3, p["conv_wallT"], p["esT"])


def head(p, xd, co_flat):
    b = xd.shape[0]
    if b <= 8:
        tb = 8
    else:
        # >= 2 row tiles so both v7x TensorCores get work; cap at 256 rows.
        tb = min(256, _round_up(-(-b // 2), 8))
    b_pad = _round_up(b, tb)
    if b_pad != b:
        xd = jnp.pad(xd, ((0, b_pad - b), (0, 0)))
        co_flat = jnp.pad(co_flat, ((0, b_pad - b), (0, 0)))
    cdim = N_FILTERS * EMBED_DIM                    # 4096 (lane-dense conv features)
    out = pl.pallas_call(
        head_kernel,
        out_shape=jax.ShapeDtypeStruct((b_pad, 1), jnp.float32),
        grid=(b_pad // tb,),
        in_specs=[
            pl.BlockSpec((tb, OUTPUT_DIM), lambda i: (i, 0)),
            pl.BlockSpec((tb, cdim), lambda i: (i, 0)),
            pl.BlockSpec((cdim, OUTPUT_DIM), lambda i: (0, 0)),
            pl.BlockSpec((1, OUTPUT_DIM), lambda i: (0, 0)),
            pl.BlockSpec((OUTPUT_DIM, 1024), lambda i: (0, 0)),
            pl.BlockSpec((OUTPUT_DIM, 1024), lambda i: (0, 0)),
            pl.BlockSpec((1, 1024), lambda i: (0, 0)),
            pl.BlockSpec((1024, 256), lambda i: (0, 0)),
            pl.BlockSpec((1, 256), lambda i: (0, 0)),
            pl.BlockSpec((1, 256), lambda i: (0, 0)),
            pl.BlockSpec((1, 1), lambda i: (0, 0)),
        ],
        out_specs=pl.BlockSpec((tb, 1), lambda i: (i, 0)),
        compiler_params=pltpu.CompilerParams(
            dimension_semantics=("parallel",),
            vmem_limit_bytes=_VMEM_LIMIT_BYTES),
    )(xd, co_flat, p["wxt_lane"], p["b_eff"], p["fc1_w_xd"], p["fc1_w_xt"],
      p["fc1_b"], p["fc2_w"], p["fc2_b"], p["out_w_row"], p["out_b"])
    return out[:b]


# ------------------------------ model / forward ------------------------------

def init_linear(key, fan_in, fan_out):
    kw, kb = jax.random.split(key)
    bound = 1.0 / jnp.sqrt(jnp.float32(fan_in))
    w_t = jax.random.uniform(kw, (fan_in, fan_out), jnp.float32, -bound, bound)
    b = jax.random.uniform(kb, (fan_out,), jnp.float32, -bound, bound)
    return w_t, b


def init_raw_params(key):
    """PyTorch-equivalent parameters in natural (pre-transposed [in,out]) layout."""
    keys = jax.random.split(key, 16)
    raw = {}
    gin = []
    in_dim = NUM_FEATURES_XD
    for layer in range(5):
        k1, k2 = jax.random.split(keys[layer])
        w1_t, b1 = init_linear(k1, in_dim, DIM)
        w2_t, b2 = init_linear(k2, DIM, DIM)
        gin.append((w1_t, b1, w2_t, b2))
        in_dim = DIM
    raw["gin"] = gin
    raw["fc1_xd_wt"], raw["fc1_xd_b"] = init_linear(keys[5], DIM, OUTPUT_DIM)
    raw["embed"] = jax.random.normal(keys[6], (NUM_FEATURES_XT + 1, EMBED_DIM),
                                     jnp.float32)
    cbound = 1.0 / jnp.sqrt(jnp.float32(SEQ_LEN * KERNEL_SIZE))
    raw["conv_w"] = jax.random.uniform(keys[7], (N_FILTERS, SEQ_LEN, KERNEL_SIZE),
                                       jnp.float32, -cbound, cbound)
    raw["conv_b"] = jax.random.uniform(keys[8], (N_FILTERS,), jnp.float32,
                                       -cbound, cbound)
    raw["fc1_xt_wt"], raw["fc1_xt_b"] = init_linear(
        keys[9], N_FILTERS * CONV_OUT_LEN, OUTPUT_DIM)
    raw["fc1_wt"], raw["fc1_b"] = init_linear(keys[10], 2 * OUTPUT_DIM, 1024)
    raw["fc2_wt"], raw["fc2_b"] = init_linear(keys[11], 1024, 256)
    raw["out_wt"], raw["out_b"] = init_linear(keys[12], 256, 1)
    return raw


def prepare_params(raw):
    """Kernel-layout parameters: bf16 matmul operands, stacked GIN layers,
    tap-stacked conv weight, shifted-embedding tables, lane-reordered fc1_xt."""
    bf16 = jnp.bfloat16
    p = {}

    g = raw["gin"]
    p["gin_w1a"] = g[0][0].astype(bf16)                       # [78, 32]
    p["gin_b1a"] = g[0][1].reshape(1, DIM)
    p["gin_w2a"] = g[0][2].astype(bf16)                       # [32, 32]
    p["gin_b2a"] = g[0][3].reshape(1, DIM)
    p["gin_w1s"] = jnp.stack([g[i][0] for i in range(1, 5)]).astype(bf16)
    p["gin_b1s"] = jnp.stack([g[i][1] for i in range(1, 5)]).reshape(4, 1, DIM)
    p["gin_w2s"] = jnp.stack([g[i][2] for i in range(1, 5)]).astype(bf16)
    p["gin_b2s"] = jnp.stack([g[i][3] for i in range(1, 5)]).reshape(4, 1, DIM)
    # TODO(synk): for a trained checkpoint, fold the real BatchNorm running
    # stats / affine params into bn_scale / bn_shift (fresh-init eval stats here).
    p["bn_scale"] = jnp.full((5, 1, DIM), 1.0 / jnp.sqrt(1.0 + 1e-5), jnp.float32)
    p["bn_shift"] = jnp.zeros((5, 1, DIM), jnp.float32)
    p["fc1_xd_w"] = raw["fc1_xd_wt"].astype(bf16)             # [32, 128]
    p["fc1_xd_b"] = raw["fc1_xd_b"].reshape(1, OUTPUT_DIM)

    # protein branch: taps stacked along N, embedding folded into shifted tables
    convw = raw["conv_w"].astype(bf16)                        # [32o, 1000c, 8k]
    p["conv_wallT"] = jnp.transpose(convw, (1, 2, 0)).reshape(
        SEQ_LEN, KERNEL_SIZE * N_FILTERS)                     # col k*32+o = W[o,:,k]
    emb_pad = jnp.pad(raw["embed"].astype(bf16),
                      ((0, VOCAB_PAD - (NUM_FEATURES_XT + 1)), (0, 0)))  # [32v, 128m]
    emb_t = emb_pad.T                                         # [128m, 32v]
    lane = jnp.arange(EMBED_DIM)[:, None]
    es = []
    for k in range(KERNEL_SIZE):
        shifted = jnp.concatenate(
            [emb_t[k:], jnp.zeros((k, VOCAB_PAD), bf16)], axis=0)  # row l -> emb_t[l+k]
        es.append(jnp.where(lane < CONV_OUT_LEN, shifted, 0).astype(bf16))
    p["esT"] = jnp.stack(es)                                  # [8, 128, 32]

    # fc1_xt remapped to the [128(l), 32(o)] conv-feature layout; conv bias folded in.
    wxt3 = raw["fc1_xt_wt"].astype(bf16).reshape(N_FILTERS, CONV_OUT_LEN, OUTPUT_DIM)
    wxt_pad = jnp.pad(wxt3, ((0, 0), (0, EMBED_DIM - CONV_OUT_LEN), (0, 0)))
    p["wxt_lane"] = jnp.transpose(wxt_pad, (1, 0, 2)).reshape(
        EMBED_DIM * N_FILTERS, OUTPUT_DIM)                    # [4096, 128]
    p["b_eff"] = (raw["fc1_xt_b"] + jnp.einsum(
        "olf,o->f", wxt3.astype(jnp.float32), raw["conv_b"])).reshape(1, OUTPUT_DIM)

    # head (fc1 weight split into the xd / xt halves of the concat)
    w1 = raw["fc1_wt"].astype(bf16)                           # [256, 1024]
    p["fc1_w_xd"] = w1[:OUTPUT_DIM]
    p["fc1_w_xt"] = w1[OUTPUT_DIM:]
    p["fc1_b"] = raw["fc1_b"].reshape(1, 1024)
    p["fc2_w"] = raw["fc2_wt"].astype(bf16)                   # [1024, 256]
    p["fc2_b"] = raw["fc2_b"].reshape(1, 256)
    p["out_w_row"] = raw["out_wt"].reshape(1, 256).astype(bf16)
    p["out_b"] = raw["out_b"].reshape(1, 1)
    return p


@jax.jit
def gin_convnet_forward(params, adj_g, x_g, node_mask, target_tokens):
    bf16 = jnp.bfloat16
    # drug (graph) branch: per-graph fused GIN x5 + pool + fc1_xd + ReLU
    xd = graph_branch(params, adj_g.astype(bf16), x_g.astype(bf16),
                      node_mask.astype(jnp.float32))          # [B, 128] bf16
    # target (protein) branch: embedding + Conv1d fused (tokens only cross HBM)
    conv_feat = protein_conv(params, target_tokens)           # [B, 128, 32] bf16
    co_flat = conv_feat.reshape(conv_feat.shape[0], N_FILTERS * EMBED_DIM)
    # fused head (fc1_xt + fc1 -> ReLU -> fc2 -> ReLU -> out)
    return head(params, xd, co_flat)                          # [B, 1] f32


# ------------------------- pure-JAX reference check --------------------------

def reference_forward(raw, drug_x, adj_eps, pool_mat, target_tokens):
    """Straightforward JAX implementation (no layout tricks) to cross-check the
    kernels; weights are bf16-rounded to match what the kernels consume."""
    hp = jax.lax.Precision.HIGHEST
    f32 = jnp.float32
    q = lambda w: w.astype(jnp.bfloat16).astype(f32)

    bn_scale = 1.0 / jnp.sqrt(1.0 + 1e-5)
    h = drug_x.astype(jnp.bfloat16).astype(f32)
    adj = adj_eps.astype(f32)
    for (w1, b1, w2, b2) in raw["gin"]:
        agg = jnp.dot(adj, h, precision=hp)
        z = jnp.maximum(jnp.dot(agg, q(w1), precision=hp) + b1, 0.0)
        z = jnp.dot(z, q(w2), precision=hp) + b2
        h = jnp.maximum(z, 0.0) * bn_scale
    pooled = jnp.dot(pool_mat.astype(f32), h, precision=hp)
    xd = jnp.maximum(jnp.dot(pooled, q(raw["fc1_xd_wt"]), precision=hp)
                     + raw["fc1_xd_b"], 0.0)

    emb = q(raw["embed"])[target_tokens]                      # [B, 1000, 128]
    w_conv = q(raw["conv_w"])                                 # [32, 1000, 8]
    co = sum(jnp.einsum("oc,bcl->bol", w_conv[:, :, k],
                        emb[:, :, k:k + CONV_OUT_LEN], precision=hp)
             for k in range(KERNEL_SIZE))
    co = co + raw["conv_b"][None, :, None]                    # [B, 32, 121]
    xt = jnp.dot(co.reshape(co.shape[0], N_FILTERS * CONV_OUT_LEN),
                 q(raw["fc1_xt_wt"]), precision=hp) + raw["fc1_xt_b"]

    xc = jnp.concatenate([xd, xt], axis=1)
    h1 = jnp.maximum(jnp.dot(xc, q(raw["fc1_wt"]), precision=hp) + raw["fc1_b"], 0.0)
    h2 = jnp.maximum(jnp.dot(h1, q(raw["fc2_wt"]), precision=hp) + raw["fc2_b"], 0.0)
    return jnp.dot(h2, q(raw["out_wt"]), precision=hp) + raw["out_b"]


# --------------------------------- example -----------------------------------

def build_graph(num_graphs, nodes_per_graph):
    """Small synthetic batched graph: a bidirectional ring per graph."""
    n = num_graphs * nodes_per_graph
    src, dst = [], []
    for g in range(num_graphs):
        off = g * nodes_per_graph
        for i in range(nodes_per_graph):
            a = off + i
            b = off + (i + 1) % nodes_per_graph
            src += [a, b]
            dst += [b, a]
    edge_index = jnp.array([src, dst], dtype=jnp.int32)
    batch = jnp.repeat(jnp.arange(num_graphs, dtype=jnp.int32), nodes_per_graph)
    # dense adjacency with the GIN (1+eps)*I term folded in (eps = 0)
    adj = jnp.zeros((n, n), jnp.float32).at[edge_index[1], edge_index[0]].add(1.0)
    adj_eps = adj + jnp.eye(n, dtype=jnp.float32)
    # global_add_pool matrix: pool[b, i] = 1 iff batch[i] == b
    pool_mat = jnp.zeros((num_graphs, n), jnp.float32).at[
        batch, jnp.arange(n)].set(1.0)
    return adj_eps, pool_mat


def pack_per_graph(adj_eps, drug_x, num_graphs, nodes_per_graph):
    """Per-graph padded tiles for the per-graph-parallel graph_branch kernel."""
    t = max(8, _round_up(nodes_per_graph, 8))
    adj_g = jnp.zeros((num_graphs, t, t), jnp.float32)
    x_g = jnp.zeros((num_graphs, t, NUM_FEATURES_XD), jnp.float32)
    msk = jnp.zeros((num_graphs, 1, t), jnp.float32)
    for b in range(num_graphs):
        s = b * nodes_per_graph
        adj_g = adj_g.at[b, :nodes_per_graph, :nodes_per_graph].set(
            adj_eps[s:s + nodes_per_graph, s:s + nodes_per_graph])
        x_g = x_g.at[b, :nodes_per_graph].set(drug_x[s:s + nodes_per_graph])
        msk = msk.at[b, 0, :nodes_per_graph].set(1.0)
    return adj_g, x_g, msk


if __name__ == "__main__":
    key = jax.random.PRNGKey(0)
    kp, kx, kt = jax.random.split(key, 3)

    raw = init_raw_params(kp)
    params = prepare_params(raw)

    num_graphs, nodes_per_graph = 2, 8
    n_nodes = num_graphs * nodes_per_graph
    adj_eps, pool_mat = build_graph(num_graphs, nodes_per_graph)

    drug_x = jax.random.normal(kx, (n_nodes, NUM_FEATURES_XD), jnp.float32)
    adj_g, x_g, node_mask = pack_per_graph(adj_eps, drug_x,
                                           num_graphs, nodes_per_graph)
    target_tokens = jax.random.randint(kt, (num_graphs, SEQ_LEN), 0,
                                       NUM_FEATURES_XT + 1, dtype=jnp.int32)

    out = gin_convnet_forward(params, adj_g, x_g, node_mask, target_tokens)
    out = jax.block_until_ready(out)
    assert out.shape == (num_graphs, 1)

    ref = jax.block_until_ready(
        reference_forward(raw, drug_x, adj_eps, pool_mat, target_tokens))
    err = float(jnp.max(jnp.abs(out - ref)))
    scale = float(jnp.max(jnp.abs(ref))) + 1.0
    if not (jnp.isfinite(err) and err <= 5e-2 * scale):
        raise SystemExit(f"numerical mismatch: max|err|={err:.4e}, ref scale={scale:.3f}")

    print("KERNEL_OK")
</pallas_src>

<mosaic_0001>
module attributes {stable_mosaic.version = 11 : i64} {
  func.func @protein_conv_kernel(%arg0: i32, %arg1: memref<1x1x1000xi32, #tpu.memory_space<vmem>>, %arg2: memref<1000x256xbf16, #tpu.memory_space<vmem>>, %arg3: memref<8x128x32xbf16, #tpu.memory_space<vmem>>, %arg4: memref<1x128x32xbf16, #tpu.memory_space<vmem>>) attributes {dimension_semantics = [#tpu.dimension_semantics<parallel>], iteration_bounds = array<i64: 2>, scalar_prefetch = 0 : i64, scratch_operands = 0 : i64, tpu.core_type = #tpu.core_type<tc>, window_params = [{transform_indices = @transform_0, window_bounds = array<i64: 1, 1, 1000>}, {pipeline_mode = #tpu.pipeline_mode<synchronous>, transform_indices = @transform_1, window_bounds = array<i64: 1000, 256>}, {pipeline_mode = #tpu.pipeline_mode<synchronous>, transform_indices = @transform_2, window_bounds = array<i64: 8, 128, 32>}, {transform_indices = @transform_3, window_bounds = array<i64: 1, 128, 32>}]} {
    %c0 = arith.constant 0 : index
    %c0_0 = arith.constant 0 : index
    %c0_1 = arith.constant 0 : index
    %0 = vector.load %arg1[%c0, %c0_0, %c0_1] : memref<1x1x1000xi32, #tpu.memory_space<vmem>>, vector<1x1x1000xi32>
    %1 = vector.shape_cast %0 : vector<1x1x1000xi32> to vector<1x1000xi32>
    %2 = tpu.iota {dimensions = array<i32: 0>} : vector<32x1000xi32>
    %3 = vector.broadcast %1 : vector<1x1000xi32> to vector<32x1000xi32>
    %4 = arith.cmpi eq, %2, %3 : vector<32x1000xi32>
    %cst = arith.constant 1.000000e+00 : f32
    %cst_2 = arith.constant 0.000000e+00 : f32
    %5 = vector.broadcast %cst : f32 to vector<32x1000xf32>
    %6 = vector.broadcast %cst_2 : f32 to vector<32x1000xf32>
    %7 = arith.select %4, %5, %6 : vector<32x1000xi1>, vector<32x1000xf32>
    %8 = arith.truncf %7 : vector<32x1000xf32> to vector<32x1000xbf16>
    %c0_3 = arith.constant 0 : index
    %c0_4 = arith.constant 0 : index
    %9 = vector.load %arg2[%c0_3, %c0_4] : memref<1000x256xbf16, #tpu.memory_space<vmem>>, vector<1000x256xbf16>
    %cst_5 = arith.constant dense<0.000000e+00> : vector<32x256xf32>
    %10 = tpu.matmul %8, %9, %cst_5 {dimension_numbers = #tpu.dot_dimension_numbers<[1], [0], [0], [1], [0, 0, 1, 1], [], []>} : vector<32x1000xbf16>, vector<1000x256xbf16>, vector<32x256xf32> -> vector<32x256xf32>
    %cst_6 = arith.constant 0.000000e+00 : f32
    %11 = vector.broadcast %cst_6 : f32 to vector<128x32xf32>
    %12 = vector.extract_strided_slice %10 {offsets = [0, 0], sizes = [32, 32], strides = [1, 1]} : vector<32x256xf32> to vector<32x32xf32>
    %13 = arith.truncf %12 : vector<32x32xf32> to vector<32x32xbf16>
    %c0_7 = arith.constant 0 : index
    %c0_8 = arith.constant 0 : index
    %c0_9 = arith.constant 0 : index
    %14 = vector.load %arg3[%c0_7, %c0_8, %c0_9] : memref<8x128x32xbf16, #tpu.memory_space<vmem>>, vector<1x128x32xbf16>
    %15 = vector.shape_cast %14 : vector<1x128x32xbf16> to vector<128x32xbf16>
    %cst_10 = arith.constant dense<0.000000e+00> : vector<128x32xf32>
    %16 = tpu.matmul %15, %13, %cst_10 {dimension_numbers = #tpu.dot_dimension_numbers<[1], [0], [0], [1], [0, 0, 1, 1], [], []>} : vector<128x32xbf16>, vector<32x32xbf16>, vector<128x32xf32> -> vector<128x32xf32>
    %17 = arith.addf %11, %16 : vector<128x32xf32>
    %18 = vector.extract_strided_slice %10 {offsets = [0, 32], sizes = [32, 32], strides = [1, 1]} : vector<32x256xf32> to vector<32x32xf32>
    %19 = arith.truncf %18 : vector<32x32xf32> to vector<32x32xbf16>
    %c1 = arith.constant 1 : index
    %c0_11 = arith.constant 0 : index
    %c0_12 = arith.constant 0 : index
    %20 = vector.load %arg3[%c1, %c0_11, %c0_12] : memref<8x128x32xbf16, #tpu.memory_space<vmem>>, vector<1x128x32xbf16>
    %21 = vector.shape_cast %20 : vector<1x128x32xbf16> to vector<128x32xbf16>
    %cst_13 = arith.constant dense<0.000000e+00> : vector<128x32xf32>
    %22 = tpu.matmul %21, %19, %cst_13 {dimension_numbers = #tpu.dot_dimension_numbers<[1], [0], [0], [1], [0, 0, 1, 1], [], []>} : vector<128x32xbf16>, vector<32x32xbf16>, vector<128x32xf32> -> vector<128x32xf32>
    %23 = arith.addf %17, %22 : vector<128x32xf32>
    %24 = vector.extract_strided_slice %10 {offsets = [0, 64], sizes = [32, 32], strides = [1, 1]} : vector<32x256xf32> to vector<32x32xf32>
    %25 = arith.truncf %24 : vector<32x32xf32> to vector<32x32xbf16>
    %c2 = arith.constant 2 : index
    %c0_14 = arith.constant 0 : index
    %c0_15 = arith.constant 0 : index
    %26 = vector.load %arg3[%c2, %c0_14, %c0_15] : memref<8x128x32xbf16, #tpu.memory_space<vmem>>, vector<1x128x32xbf16>
    %27 = vector.shape_cast %26 : vector<1x128x32xbf16> to vector<128x32xbf16>
    %cst_16 = arith.constant dense<0.000000e+00> : vector<128x32xf32>
    %28 = tpu.matmul %27, %25, %cst_16 {dimension_numbers = #tpu.dot_dimension_numbers<[1], [0], [0], [1], [0, 0, 1, 1], [], []>} : vector<128x32xbf16>, vector<32x32xbf16>, vector<128x32xf32> -> vector<128x32xf32>
    %29 = arith.addf %23, %28 : vector<128x32xf32>
    %30 = vector.extract_strided_slice %10 {offsets = [0, 96], sizes = [32, 32], strides = [1, 1]} : vector<32x256xf32> to vector<32x32xf32>
    %31 = arith.truncf %30 : vector<32x32xf32> to vector<32x32xbf16>
    %c3 = arith.constant 3 : index
    %c0_17 = arith.constant 0 : index
    %c0_18 = arith.constant 0 : index
    %32 = vector.load %arg3[%c3, %c0_17, %c0_18] : memref<8x128x32xbf16, #tpu.memory_space<vmem>>, vector<1x128x32xbf16>
    %33 = vector.shape_cast %32 : vector<1x128x32xbf16> to vector<128x32xbf16>
    %cst_19 = arith.constant dense<0.000000e+00> : vector<128x32xf32>
    %34 = tpu.matmul %33, %31, %cst_19 {dimension_numbers = #tpu.dot_dimension_numbers<[1], [0], [0], [1], [0, 0, 1, 1], [], []>} : vector<128x32xbf16>, vector<32x32xbf16>, vector<128x32xf32> -> vector<128x32xf32>
    %35 = arith.addf %29, %34 : vector<128x32xf32>
    %36 = vector.extract_strided_slice %10 {offsets = [0, 128], sizes = [32, 32], strides = [1, 1]} : vector<32x256xf32> to vector<32x32xf32>
    %37 = arith.truncf %36 : vector<32x32xf32> to vector<32x32xbf16>
    %c4 = arith.constant 4 : index
    %c0_20 = arith.constant 0 : index
    %c0_21 = arith.constant 0 : index
    %38 = vector.load %arg3[%c4, %c0_20, %c0_21] : memref<8x128x32xbf16, #tpu.memory_space<vmem>>, vector<1x128x32xbf16>
    %39 = vector.shape_cast %38 : vector<1x128x32xbf16> to vector<128x32xbf16>
    %cst_22 = arith.constant dense<0.000000e+00> : vector<128x32xf32>
    %40 = tpu.matmul %39, %37, %cst_22 {dimension_numbers = #tpu.dot_dimension_numbers<[1], [0], [0], [1], [0, 0, 1, 1], [], []>} : vector<128x32xbf16>, vector<32x32xbf16>, vector<128x32xf32> -> vector<128x32xf32>
    %41 = arith.addf %35, %40 : vector<128x32xf32>
    %42 = vector.extract_strided_slice %10 {offsets = [0, 160], sizes = [32, 32], strides = [1, 1]} : vector<32x256xf32> to vector<32x32xf32>
    %43 = arith.truncf %42 : vector<32x32xf32> to vector<32x32xbf16>
    %c5 = arith.constant 5 : index
    %c0_23 = arith.constant 0 : index
    %c0_24 = arith.constant 0 : index
    %44 = vector.load %arg3[%c5, %c0_23, %c0_24] : memref<8x128x32xbf16, #tpu.memory_space<vmem>>, vector<1x128x32xbf16>
    %45 = vector.shape_cast %44 : vector<1x128x32xbf16> to vector<128x32xbf16>
    %cst_25 = arith.constant dense<0.000000e+00> : vector<128x32xf32>
    %46 = tpu.matmul %45, %43, %cst_25 {dimension_numbers = #tpu.dot_dimension_numbers<[1], [0], [0], [1], [0, 0, 1, 1], [], []>} : vector<128x32xbf16>, vector<32x32xbf16>, vector<128x32xf32> -> vector<128x32xf32>
    %47 = arith.addf %41, %46 : vector<128x32xf32>
    %48 = vector.extract_strided_slice %10 {offsets = [0, 192], sizes = [32, 32], strides = [1, 1]} : vector<32x256xf32> to vector<32x32xf32>
    %49 = arith.truncf %48 : vector<32x32xf32> to vector<32x32xbf16>
    %c6 = arith.constant 6 : index
    %c0_26 = arith.constant 0 : index
    %c0_27 = arith.constant 0 : index
    %50 = vector.load %arg3[%c6, %c0_26, %c0_27] : memref<8x128x32xbf16, #tpu.memory_space<vmem>>, vector<1x128x32xbf16>
    %51 = vector.shape_cast %50 : vector<1x128x32xbf16> to vector<128x32xbf16>
    %cst_28 = arith.constant dense<0.000000e+00> : vector<128x32xf32>
    %52 = tpu.matmul %51, %49, %cst_28 {dimension_numbers = #tpu.dot_dimension_numbers<[1], [0], [0], [1], [0, 0, 1, 1], [], []>} : vector<128x32xbf16>, vector<32x32xbf16>, vector<128x32xf32> -> vector<128x32xf32>
    %53 = arith.addf %47, %52 : vector<128x32xf32>
    %54 = vector.extract_strided_slice %10 {offsets = [0, 224], sizes = [32, 32], strides = [1, 1]} : vector<32x256xf32> to vector<32x32xf32>
    %55 = arith.truncf %54 : vector<32x32xf32> to vector<32x32xbf16>
    %c7 = arith.constant 7 : index
    %c0_29 = arith.constant 0 : index
    %c0_30 = arith.constant 0 : index
    %56 = vector.load %arg3[%c7, %c0_29, %c0_30] : memref<8x128x32xbf16, #tpu.memory_space<vmem>>, vector<1x128x32xbf16>
    %57 = vector.shape_cast %56 : vector<1x128x32xbf16> to vector<128x32xbf16>
    %cst_31 = arith.constant dense<0.000000e+00> : vector<128x32xf32>
    %58 = tpu.matmul %57, %55, %cst_31 {dimension_numbers = #tpu.dot_dimension_numbers<[1], [0], [0], [1], [0, 0, 1, 1], [], []>} : vector<128x32xbf16>, vector<32x32xbf16>, vector<128x32xf32> -> vector<128x32xf32>
    %59 = arith.addf %53, %58 : vector<128x32xf32>
    %60 = arith.truncf %59 : vector<128x32xf32> to vector<128x32xbf16>
    %c0_32 = arith.constant 0 : index
    %c0_33 = arith.constant 0 : index
    %c0_34 = arith.constant 0 : index
    %61 = vector.load %arg4[%c0_32, %c0_33, %c0_34] : memref<1x128x32xbf16, #tpu.memory_space<vmem>>, vector<1x128x32xbf16>
    %62 = vector.shape_cast %61 : vector<1x128x32xbf16> to vector<128x32xbf16>
    %63 = vector.shape_cast %60 : vector<128x32xbf16> to vector<1x128x32xbf16>
    tpu.vector_store %arg4[%c0_32, %c0_33, %c0_34], %63 {strides = array<i32>} : memref<1x128x32xbf16, #tpu.memory_space<vmem>>, vector<1x128x32xbf16>,
    return
  }
  func.func @transform_0(%arg0: i32) -> (i32, i32, i32) {
    %c0_i32 = arith.constant 0 : i32
    %c0_i32_0 = arith.constant 0 : i32
    %c0_i32_1 = arith.constant 0 : i32
    return %arg0, %c0_i32, %c0_i32_0 : i32, i32, i32
  }
  func.func @transform_1(%arg0: i32) -> (i32, i32) {
    %c0_i32 = arith.constant 0 : i32
    %c0_i32_0 = arith.constant 0 : i32
    %c0_i32_1 = arith.constant 0 : i32
    return %c0_i32, %c0_i32_0 : i32, i32
  }
  func.func @transform_2(%arg0: i32) -> (i32, i32, i32) {
    %c0_i32 = arith.constant 0 : i32
    %c0_i32_0 = arith.constant 0 : i32
    %c0_i32_1 = arith.constant 0 : i32
    %c0_i32_2 = arith.constant 0 : i32
    return %c0_i32, %c0_i32_0, %c0_i32_1 : i32, i32, i32
  }
  func.func @transform_3(%arg0: i32) -> (i32, i32, i32) {
    %c0_i32 = arith.constant 0 : i32
    %c0_i32_0 = arith.constant 0 : i32
    %c0_i32_1 = arith.constant 0 : i32
    return %arg0, %c0_i32, %c0_i32_0 : i32, i32, i32
  }
}

module attributes {stable_mosaic.version = 11 : i64} {
  func.func @graph_branch_kernel(%arg0: i32, %arg1: memref<1x8x8xbf16, #tpu.memory_space<vmem>>, %arg2: memref<1x8x78xbf16, #tpu.memory_space<vmem>>, %arg3: memref<1x1x8xf32, #tpu.memory_space<vmem>>, %arg4: memref<78x32xbf16, #tpu.memory_space<vmem>>, %arg5: memref<1x32xf32, #tpu.memory_space<vmem>>, %arg6: memref<32x32xbf16, #tpu.memory_space<vmem>>, %arg7: memref<1x32xf32, #tpu.memory_space<vmem>>, %arg8: memref<4x32x32xbf16, #tpu.memory_space<vmem>>, %arg9: memref<4x1x32xf32, #tpu.memory_space<vmem>>, %arg10: memref<4x32x32xbf16, #tpu.memory_space<vmem>>, %arg11: memref<4x1x32xf32, #tpu.memory_space<vmem>>, %arg12: memref<5x1x32xf32, #tpu.memory_space<vmem>>, %arg13: memref<5x1x32xf32, #tpu.memory_space<vmem>>, %arg14: memref<32x128xbf16, #tpu.memory_space<vmem>>, %arg15: memref<1x128xf32, #tpu.memory_space<vmem>>, %arg16: memref<1x1x128xbf16, #tpu.memory_space<vmem>>) attributes {dimension_semantics = [#tpu.dimension_semantics<parallel>], iteration_bounds = array<i64: 2>, scalar_prefetch = 0 : i64, scratch_operands = 0 : i64, tpu.core_type = #tpu.core_type<tc>, window_params = [{transform_indices = @transform_0, window_bounds = array<i64: 1, 8, 8>}, {transform_indices = @transform_1, window_bounds = array<i64: 1, 8, 78>}, {transform_indices = @transform_2, window_bounds = array<i64: 1, 1, 8>}, {pipeline_mode = #tpu.pipeline_mode<synchronous>, transform_indices = @transform_3, window_bounds = array<i64: 78, 32>}, {pipeline_mode = #tpu.pipeline_mode<synchronous>, transform_indices = @transform_4, window_bounds = array<i64: 1, 32>}, {pipeline_mode = #tpu.pipeline_mode<synchronous>, transform_indices = @transform_5, window_bounds = array<i64: 32, 32>}, {pipeline_mode = #tpu.pipeline_mode<synchronous>, transform_indices = @transform_6, window_bounds = array<i64: 1, 32>}, {pipeline_mode = #tpu.pipeline_mode<synchronous>, transform_indices = @transform_7, window_bounds = array<i64: 4, 32, 32>}, {pipeline_mode = #tpu.pipeline_mode<synchronous>, transform_indices = @transform_8, window_bounds = array<i64: 4, 1, 32>}, {pipeline_mode = #tpu.pipeline_mode<synchronous>, transform_indices = @transform_9, window_bounds = array<i64: 4, 32, 32>}, {pipeline_mode = #tpu.pipeline_mode<synchronous>, transform_indices = @transform_10, window_bounds = array<i64: 4, 1, 32>}, {pipeline_mode = #tpu.pipeline_mode<synchronous>, transform_indices = @transform_11, window_bounds = array<i64: 5, 1, 32>}, {pipeline_mode = #tpu.pipeline_mode<synchronous>, transform_indices = @transform_12, window_bounds = array<i64: 5, 1, 32>}, {pipeline_mode = #tpu.pipeline_mode<synchronous>, transform_indices = @transform_13, window_bounds = array<i64: 32, 128>}, {pipeline_mode = #tpu.pipeline_mode<synchronous>, transform_indices = @transform_14, window_bounds = array<i64: 1, 128>}, {transform_indices = @transform_15, window_bounds = array<i64: 1, 1, 128>}]} {
    %c0 = arith.constant 0 : index
    %c0_0 = arith.constant 0 : index
    %c0_1 = arith.constant 0 : index
    %0 = vector.load %arg1[%c0, %c0_0, %c0_1] : memref<1x8x8xbf16, #tpu.memory_space<vmem>>, vector<1x8x8xbf16>
    %1 = vector.shape_cast %0 : vector<1x8x8xbf16> to vector<8x8xbf16>
    %2 = arith.extf %1 : vector<8x8xbf16> to vector<8x8xf32>
    %c0_2 = arith.constant 0 : index
    %c0_3 = arith.constant 0 : index
    %c0_4 = arith.constant 0 : index
    %3 = vector.load %arg2[%c0_2, %c0_3, %c0_4] : memref<1x8x78xbf16, #tpu.memory_space<vmem>>, vector<1x8x78xbf16>
    %4 = vector.shape_cast %3 : vector<1x8x78xbf16> to vector<8x78xbf16>
    %c0_5 = arith.constant 0 : index
    %c0_6 = arith.constant 0 : index
    %5 = vector.load %arg4[%c0_5, %c0_6] : memref<78x32xbf16, #tpu.memory_space<vmem>>, vector<78x32xbf16>
    %cst = arith.constant dense<0.000000e+00> : vector<8x32xf32>
    %6 = tpu.matmul %4, %5, %cst {dimension_numbers = #tpu.dot_dimension_numbers<[1], [0], [0], [1], [0, 0, 1, 1], [], []>} : vector<8x78xbf16>, vector<78x32xbf16>, vector<8x32xf32> -> vector<8x32xf32>
    %cst_7 = arith.constant dense<0.000000e+00> : vector<8x32xf32>
    %7 = tpu.matmul %2, %6, %cst_7 {dimension_numbers = #tpu.dot_dimension_numbers<[1], [0], [0], [1], [0, 0, 1, 1], [], []>} : vector<8x8xf32>, vector<8x32xf32>, vector<8x32xf32> -> vector<8x32xf32>
    %c0_8 = arith.constant 0 : index
    %c0_9 = arith.constant 0 : index
    %8 = vector.load %arg5[%c0_8, %c0_9] : memref<1x32xf32, #tpu.memory_space<vmem>>, vector<1x32xf32>
    %9 = vector.broadcast %8 : vector<1x32xf32> to vector<8x32xf32>
    %10 = arith.addf %7, %9 : vector<8x32xf32>
    %cst_10 = arith.constant 0.000000e+00 : f32
    %11 = vector.broadcast %cst_10 : f32 to vector<8x32xf32>
    %12 = arith.maximumf %10, %11 : vector<8x32xf32>
    %13 = arith.truncf %12 : vector<8x32xf32> to vector<8x32xbf16>
    %c0_11 = arith.constant 0 : index
    %c0_12 = arith.constant 0 : index
    %14 = vector.load %arg6[%c0_11, %c0_12] : memref<32x32xbf16, #tpu.memory_space<vmem>>, vector<32x32xbf16>
    %cst_13 = arith.constant dense<0.000000e+00> : vector<8x32xf32>
    %15 = tpu.matmul %13, %14, %cst_13 {dimension_numbers = #tpu.dot_dimension_numbers<[1], [0], [0], [1], [0, 0, 1, 1], [], []>} : vector<8x32xbf16>, vector<32x32xbf16>, vector<8x32xf32> -> vector<8x32xf32>
    %c0_14 = arith.constant 0 : index
    %c0_15 = arith.constant 0 : index
    %16 = vector.load %arg7[%c0_14, %c0_15] : memref<1x32xf32, #tpu.memory_space<vmem>>, vector<1x32xf32>
    %17 = vector.broadcast %16 : vector<1x32xf32> to vector<8x32xf32>
    %18 = arith.addf %15, %17 : vector<8x32xf32>
    %cst_16 = arith.constant 0.000000e+00 : f32
    %19 = vector.broadcast %cst_16 : f32 to vector<8x32xf32>
    %20 = arith.maximumf %18, %19 : vector<8x32xf32>
    %c0_17 = arith.constant 0 : index
    %c0_18 = arith.constant 0 : index
    %c0_19 = arith.constant 0 : index
    %21 = vector.load %arg12[%c0_17, %c0_18, %c0_19] : memref<5x1x32xf32, #tpu.memory_space<vmem>>, vector<1x1x32xf32>
    %22 = vector.shape_cast %21 : vector<1x1x32xf32> to vector<1x32xf32>
    %23 = vector.broadcast %22 : vector<1x32xf32> to vector<8x32xf32>
    %24 = arith.mulf %20, %23 : vector<8x32xf32>
    %c0_20 = arith.constant 0 : index
    %c0_21 = arith.constant 0 : index
    %c0_22 = arith.constant 0 : index
    %25 = vector.load %arg13[%c0_20, %c0_21, %c0_22] : memref<5x1x32xf32, #tpu.memory_space<vmem>>, vector<1x1x32xf32>
    %26 = vector.shape_cast %25 : vector<1x1x32xf32> to vector<1x32xf32>
    %27 = vector.broadcast %26 : vector<1x32xf32> to vector<8x32xf32>
    %28 = arith.addf %24, %27 : vector<8x32xf32>
    %cst_23 = arith.constant dense<0.000000e+00> : vector<8x32xf32>
    %29 = tpu.matmul %2, %28, %cst_23 {dimension_numbers = #tpu.dot_dimension_numbers<[1], [0], [0], [1], [0, 0, 1, 1], [], []>} : vector<8x8xf32>, vector<8x32xf32>, vector<8x32xf32> -> vector<8x32xf32>
    %30 = arith.truncf %29 : vector<8x32xf32> to vector<8x32xbf16>
    %c0_24 = arith.constant 0 : index
    %c0_25 = arith.constant 0 : index
    %c0_26 = arith.constant 0 : index
    %31 = vector.load %arg8[%c0_24, %c0_25, %c0_26] : memref<4x32x32xbf16, #tpu.memory_space<vmem>>, vector<1x32x32xbf16>
    %32 = vector.shape_cast %31 : vector<1x32x32xbf16> to vector<32x32xbf16>
    %cst_27 = arith.constant dense<0.000000e+00> : vector<8x32xf32>
    %33 = tpu.matmul %30, %32, %cst_27 {dimension_numbers = #tpu.dot_dimension_numbers<[1], [0], [0], [1], [0, 0, 1, 1], [], []>} : vector<8x32xbf16>, vector<32x32xbf16>, vector<8x32xf32> -> vector<8x32xf32>
    %c0_28 = arith.constant 0 : index
    %c0_29 = arith.constant 0 : index
    %c0_30 = arith.constant 0 : index
    %34 = vector.load %arg9[%c0_28, %c0_29, %c0_30] : memref<4x1x32xf32, #tpu.memory_space<vmem>>, vector<1x1x32xf32>
    %35 = vector.shape_cast %34 : vector<1x1x32xf32> to vector<1x32xf32>
    %36 = vector.broadcast %35 : vector<1x32xf32> to vector<8x32xf32>
    %37 = arith.addf %33, %36 : vector<8x32xf32>
    %cst_31 = arith.constant 0.000000e+00 : f32
    %38 = vector.broadcast %cst_31 : f32 to vector<8x32xf32>
    %39 = arith.maximumf %37, %38 : vector<8x32xf32>
    %40 = arith.truncf %39 : vector<8x32xf32> to vector<8x32xbf16>
    %c0_32 = arith.constant 0 : index
    %c0_33 = arith.constant 0 : index
    %c0_34 = arith.constant 0 : index
    %41 = vector.load %arg10[%c0_32, %c0_33, %c0_34] : memref<4x32x32xbf16, #tpu.memory_space<vmem>>, vector<1x32x32xbf16>
    %42 = vector.shape_cast %41 : vector<1x32x32xbf16> to vector<32x32xbf16>
    %cst_35 = arith.constant dense<0.000000e+00> : vector<8x32xf32>
    %43 = tpu.matmul %40, %42, %cst_35 {dimension_numbers = #tpu.dot_dimension_numbers<[1], [0], [0], [1], [0, 0, 1, 1], [], []>} : vector<8x32xbf16>, vector<32x32xbf16>, vector<8x32xf32> -> vector<8x32xf32>
    %c0_36 = arith.constant 0 : index
    %c0_37 = arith.constant 0 : index
    %c0_38 = arith.constant 0 : index
    %44 = vector.load %arg11[%c0_36, %c0_37, %c0_38] : memref<4x1x32xf32, #tpu.memory_space<vmem>>, vector<1x1x32xf32>
    %45 = vector.shape_cast %44 : vector<1x1x32xf32> to vector<1x32xf32>
    %46 = vector.broadcast %45 : vector<1x32xf32> to vector<8x32xf32>
    %47 = arith.addf %43, %46 : vector<8x32xf32>
    %cst_39 = arith.constant 0.000000e+00 : f32
    %48 = vector.broadcast %cst_39 : f32 to vector<8x32xf32>
    %49 = arith.maximumf %47, %48 : vector<8x32xf32>
    %c1 = arith.constant 1 : index
    %c0_40 = arith.constant 0 : index
    %c0_41 = arith.constant 0 : index
    %50 = vector.load %arg12[%c1, %c0_40, %c0_41] : memref<5x1x32xf32, #tpu.memory_space<vmem>>, vector<1x1x32xf32>
    %51 = vector.shape_cast %50 : vector<1x1x32xf32> to vector<1x32xf32>
    %52 = vector.broadcast %51 : vector<1x32xf32> to vector<8x32xf32>
    %53 = arith.mulf %49, %52 : vector<8x32xf32>
    %c1_42 = arith.constant 1 : index
    %c0_43 = arith.constant 0 : index
    %c0_44 = arith.constant 0 : index
    %54 = vector.load %arg13[%c1_42, %c0_43, %c0_44] : memref<5x1x32xf32, #tpu.memory_space<vmem>>, vector<1x1x32xf32>
    %55 = vector.shape_cast %54 : vector<1x1x32xf32> to vector<1x32xf32>
    %56 = vector.broadcast %55 : vector<1x32xf32> to vector<8x32xf32>
    %57 = arith.addf %53, %56 : vector<8x32xf32>
    %cst_45 = arith.constant dense<0.000000e+00> : vector<8x32xf32>
    %58 = tpu.matmul %2, %57, %cst_45 {dimension_numbers = #tpu.dot_dimension_numbers<[1], [0], [0], [1], [0, 0, 1, 1], [], []>} : vector<8x8xf32>, vector<8x32xf32>, vector<8x32xf32> -> vector<8x32xf32>
    %59 = arith.truncf %58 : vector<8x32xf32> to vector<8x32xbf16>
    %c1_46 = arith.constant 1 : index
    %c0_47 = arith.constant 0 : index
    %c0_48 = arith.constant 0 : index
    %60 = vector.load %arg8[%c1_46, %c0_47, %c0_48] : memref<4x32x32xbf16, #tpu.memory_space<vmem>>, vector<1x32x32xbf16>
    %61 = vector.shape_cast %60 : vector<1x32x32xbf16> to vector<32x32xbf16>
    %cst_49 = arith.constant dense<0.000000e+00> : vector<8x32xf32>
    %62 = tpu.matmul %59, %61, %cst_49 {dimension_numbers = #tpu.dot_dimension_numbers<[1], [0], [0], [1], [0, 0, 1, 1], [], []>} : vector<8x32xbf16>, vector<32x32xbf16>, vector<8x32xf32> -> vector<8x32xf32>
    %c1_50 = arith.constant 1 : index
    %c0_51 = arith.constant 0 : index
    %c0_52 = arith.constant 0 : index
    %63 = vector.load %arg9[%c1_50, %c0_51, %c0_52] : memref<4x1x32xf32, #tpu.memory_space<vmem>>, vector<1x1x32xf32>
    %64 = vector.shape_cast %63 : vector<1x1x32xf32> to vector<1x32xf32>
    %65 = vector.broadcast %64 : vector<1x32xf32> to vector<8x32xf32>
    %66 = arith.addf %62, %65 : vector<8x32xf32>
    %cst_53 = arith.constant 0.000000e+00 : f32
    %67 = vector.broadcast %cst_53 : f32 to vector<8x32xf32>
    %68 = arith.maximumf %66, %67 : vector<8x32xf32>
    %69 = arith.truncf %68 : vector<8x32xf32> to vector<8x32xbf16>
    %c1_54 = arith.constant 1 : index
    %c0_55 = arith.constant 0 : index
    %c0_56 = arith.constant 0 : index
    %70 = vector.load %arg10[%c1_54, %c0_55, %c0_56] : memref<4x32x32xbf16, #tpu.memory_space<vmem>>, vector<1x32x32xbf16>
    %71 = vector.shape_cast %70 : vector<1x32x32xbf16> to vector<32x32xbf16>
    %cst_57 = arith.constant dense<0.000000e+00> : vector<8x32xf32>
    %72 = tpu.matmul %69, %71, %cst_57 {dimension_numbers = #tpu.dot_dimension_numbers<[1], [0], [0], [1], [0, 0, 1, 1], [], []>} : vector<8x32xbf16>, vector<32x32xbf16>, vector<8x32xf32> -> vector<8x32xf32>
    %c1_58 = arith.constant 1 : index
    %c0_59 = arith.constant 0 : index
    %c0_60 = arith.constant 0 : index
    %73 = vector.load %arg11[%c1_58, %c0_59, %c0_60] : memref<4x1x32xf32, #tpu.memory_space<vmem>>, vector<1x1x32xf32>
    %74 = vector.shape_cast %73 : vector<1x1x32xf32> to vector<1x32xf32>
    %75 = vector.broadcast %74 : vector<1x32xf32> to vector<8x32xf32>
    %76 = arith.addf %72, %75 : vector<8x32xf32>
    %cst_61 = arith.constant 0.000000e+00 : f32
    %77 = vector.broadcast %cst_61 : f32 to vector<8x32xf32>
    %78 = arith.maximumf %76, %77 : vector<8x32xf32>
    %c2 = arith.constant 2 : index
    %c0_62 = arith.constant 0 : index
    %c0_63 = arith.constant 0 : index
    %79 = vector.load %arg12[%c2, %c0_62, %c0_63] : memref<5x1x32xf32, #tpu.memory_space<vmem>>, vector<1x1x32xf32>
    %80 = vector.shape_cast %79 : vector<1x1x32xf32> to vector<1x32xf32>
    %81 = vector.broadcast %80 : vector<1x32xf32> to vector<8x32xf32>
    %82 = arith.mulf %78, %81 : vector<8x32xf32>
    %c2_64 = arith.constant 2 : index
    %c0_65 = arith.constant 0 : index
    %c0_66 = arith.constant 0 : index
    %83 = vector.load %arg13[%c2_64, %c0_65, %c0_66] : memref<5x1x32xf32, #tpu.memory_space<vmem>>, vector<1x1x32xf32>
    %84 = vector.shape_cast %83 : vector<1x1x32xf32> to vector<1x32xf32>
    %85 = vector.broadcast %84 : vector<1x32xf32> to vector<8x32xf32>
    %86 = arith.addf %82, %85 : vector<8x32xf32>
    %cst_67 = arith.constant dense<0.000000e+00> : vector<8x32xf32>
    %87 = tpu.matmul %2, %86, %cst_67 {dimension_numbers = #tpu.dot_dimension_numbers<[1], [0], [0], [1], [0, 0, 1, 1], [], []>} : vector<8x8xf32>, vector<8x32xf32>, vector<8x32xf32> -> vector<8x32xf32>
    %88 = arith.truncf %87 : vector<8x32xf32> to vector<8x32xbf16>
    %c2_68 = arith.constant 2 : index
    %c0_69 = arith.constant 0 : index
    %c0_70 = arith.constant 0 : index
    %89 = vector.load %arg8[%c2_68, %c0_69, %c0_70] : memref<4x32x32xbf16, #tpu.memory_space<vmem>>, vector<1x32x32xbf16>
    %90 = vector.shape_cast %89 : vector<1x32x32xbf16> to vector<32x32xbf16>
    %cst_71 = arith.constant dense<0.000000e+00> : vector<8x32xf32>
    %91 = tpu.matmul %88, %90, %cst_71 {dimension_numbers = #tpu.dot_dimension_numbers<[1], [0], [0], [1], [0, 0, 1, 1], [], []>} : vector<8x32xbf16>, vector<32x32xbf16>, vector<8x32xf32> -> vector<8x32xf32>
    %c2_72 = arith.constant 2 : index
    %c0_73 = arith.constant 0 : index
    %c0_74 = arith.constant 0 : index
    %92 = vector.load %arg9[%c2_72, %c0_73, %c0_74] : memref<4x1x32xf32, #tpu.memory_space<vmem>>, vector<1x1x32xf32>
    %93 = vector.shape_cast %92 : vector<1x1x32xf32> to vector<1x32xf32>
    %94 = vector.broadcast %93 : vector<1x32xf32> to vector<8x32xf32>
    %95 = arith.addf %91, %94 : vector<8x32xf32>
    %cst_75 = arith.constant 0.000000e+00 : f32
    %96 = vector.broadcast %cst_75 : f32 to vector<8x32xf32>
    %97 = arith.maximumf %95, %96 : vector<8x32xf32>
    %98 = arith.truncf %97 : vector<8x32xf32> to vector<8x32xbf16>
    %c2_76 = arith.constant 2 : index
    %c0_77 = arith.constant 0 : index
    %c0_78 = arith.constant 0 : index
    %99 = vector.load %arg10[%c2_76, %c0_77, %c0_78] : memref<4x32x32xbf16, #tpu.memory_space<vmem>>, vector<1x32x32xbf16>
    %100 = vector.shape_cast %99 : vector<1x32x32xbf16> to vector<32x32xbf16>
    %cst_79 = arith.constant dense<0.000000e+00> : vector<8x32xf32>
    %101 = tpu.matmul %98, %100, %cst_79 {dimension_numbers = #tpu.dot_dimension_numbers<[1], [0], [0], [1], [0, 0, 1, 1], [], []>} : vector<8x32xbf16>, vector<32x32xbf16>, vector<8x32xf32> -> vector<8x32xf32>
    %c2_80 = arith.constant 2 : index
    %c0_81 = arith.constant 0 : index
    %c0_82 = arith.constant 0 : index
    %102 = vector.load %arg11[%c2_80, %c0_81, %c0_82] : memref<4x1x32xf32, #tpu.memory_space<vmem>>, vector<1x1x32xf32>
    %103 = vector.shape_cast %102 : vector<1x1x32xf32> to vector<1x32xf32>
    %104 = vector.broadcast %103 : vector<1x32xf32> to vector<8x32xf32>
    %105 = arith.addf %101, %104 : vector<8x32xf32>
    %cst_83 = arith.constant 0.000000e+00 : f32
    %106 = vector.broadcast %cst_83 : f32 to vector<8x32xf32>
    %107 = arith.maximumf %105, %106 : vector<8x32xf32>
    %c3 = arith.constant 3 : index
    %c0_84 = arith.constant 0 : index
    %c0_85 = arith.constant 0 : index
    %108 = vector.load %arg12[%c3, %c0_84, %c0_85] : memref<5x1x32xf32, #tpu.memory_space<vmem>>, vector<1x1x32xf32>
    %109 = vector.shape_cast %108 : vector<1x1x32xf32> to vector<1x32xf32>
    %110 = vector.broadcast %109 : vector<1x32xf32> to vector<8x32xf32>
    %111 = arith.mulf %107, %110 : vector<8x32xf32>
    %c3_86 = arith.constant 3 : index
    %c0_87 = arith.constant 0 : index
    %c0_88 = arith.constant 0 : index
    %112 = vector.load %arg13[%c3_86, %c0_87, %c0_88] : memref<5x1x32xf32, #tpu.memory_space<vmem>>, vector<1x1x32xf32>
    %113 = vector.shape_cast %112 : vector<1x1x32xf32> to vector<1x32xf32>
    %114 = vector.broadcast %113 : vector<1x32xf32> to vector<8x32xf32>
    %115 = arith.addf %111, %114 : vector<8x32xf32>
    %cst_89 = arith.constant dense<0.000000e+00> : vector<8x32xf32>
    %116 = tpu.matmul %2, %115, %cst_89 {dimension_numbers = #tpu.dot_dimension_numbers<[1], [0], [0], [1], [0, 0, 1, 1], [], []>} : vector<8x8xf32>, vector<8x32xf32>, vector<8x32xf32> -> vector<8x32xf32>
    %117 = arith.truncf %116 : vector<8x32xf32> to vector<8x32xbf16>
    %c3_90 = arith.constant 3 : index
    %c0_91 = arith.constant 0 : index
    %c0_92 = arith.constant 0 : index
    %118 = vector.load %arg8[%c3_90, %c0_91, %c0_92] : memref<4x32x32xbf16, #tpu.memory_space<vmem>>, vector<1x32x32xbf16>
    %119 = vector.shape_cast %118 : vector<1x32x32xbf16> to vector<32x32xbf16>
    %cst_93 = arith.constant dense<0.000000e+00> : vector<8x32xf32>
    %120 = tpu.matmul %117, %119, %cst_93 {dimension_numbers = #tpu.dot_dimension_numbers<[1], [0], [0], [1], [0, 0, 1, 1], [], []>} : vector<8x32xbf16>, vector<32x32xbf16>, vector<8x32xf32> -> vector<8x32xf32>
    %c3_94 = arith.constant 3 : index
    %c0_95 = arith.constant 0 : index
    %c0_96 = arith.constant 0 : index
    %121 = vector.load %arg9[%c3_94, %c0_95, %c0_96] : memref<4x1x32xf32, #tpu.memory_space<vmem>>, vector<1x1x32xf32>
    %122 = vector.shape_cast %121 : vector<1x1x32xf32> to vector<1x32xf32>
    %123 = vector.broadcast %122 : vector<1x32xf32> to vector<8x32xf32>
    %124 = arith.addf %120, %123 : vector<8x32xf32>
    %cst_97 = arith.constant 0.000000e+00 : f32
    %125 = vector.broadcast %cst_97 : f32 to vector<8x32xf32>
    %126 = arith.maximumf %124, %125 : vector<8x32xf32>
    %127 = arith.truncf %126 : vector<8x32xf32> to vector<8x32xbf16>
    %c3_98 = arith.constant 3 : index
    %c0_99 = arith.constant 0 : index
    %c0_100 = arith.constant 0 : index
    %128 = vector.load %arg10[%c3_98, %c0_99, %c0_100] : memref<4x32x32xbf16, #tpu.memory_space<vmem>>, vector<1x32x32xbf16>
    %129 = vector.shape_cast %128 : vector<1x32x32xbf16> to vector<32x32xbf16>
    %cst_101 = arith.constant dense<0.000000e+00> : vector<8x32xf32>
    %130 = tpu.matmul %127, %129, %cst_101 {dimension_numbers = #tpu.dot_dimension_numbers<[1], [0], [0], [1], [0, 0, 1, 1], [], []>} : vector<8x32xbf16>, vector<32x32xbf16>, vector<8x32xf32> -> vector<8x32xf32>
    %c3_102 = arith.constant 3 : index
    %c0_103 = arith.constant 0 : index
    %c0_104 = arith.constant 0 : index
    %131 = vector.load %arg11[%c3_102, %c0_103, %c0_104] : memref<4x1x32xf32, #tpu.memory_space<vmem>>, vector<1x1x32xf32>
    %132 = vector.shape_cast %131 : vector<1x1x32xf32> to vector<1x32xf32>
    %133 = vector.broadcast %132 : vector<1x32xf32> to vector<8x32xf32>
    %134 = arith.addf %130, %133 : vector<8x32xf32>
    %cst_105 = arith.constant 0.000000e+00 : f32
    %135 = vector.broadcast %cst_105 : f32 to vector<8x32xf32>
    %136 = arith.maximumf %134, %135 : vector<8x32xf32>
    %c4 = arith.constant 4 : index
    %c0_106 = arith.constant 0 : index
    %c0_107 = arith.constant 0 : index
    %137 = vector.load %arg12[%c4, %c0_106, %c0_107] : memref<5x1x32xf32, #tpu.memory_space<vmem>>, vector<1x1x32xf32>
    %138 = vector.shape_cast %137 : vector<1x1x32xf32> to vector<1x32xf32>
    %139 = vector.broadcast %138 : vector<1x32xf32> to vector<8x32xf32>
    %140 = arith.mulf %136, %139 : vector<8x32xf32>
    %c4_108 = arith.constant 4 : index
    %c0_109 = arith.constant 0 : index
    %c0_110 = arith.constant 0 : index
    %141 = vector.load %arg13[%c4_108, %c0_109, %c0_110] : memref<5x1x32xf32, #tpu.memory_space<vmem>>, vector<1x1x32xf32>
    %142 = vector.shape_cast %141 : vector<1x1x32xf32> to vector<1x32xf32>
    %143 = vector.broadcast %142 : vector<1x32xf32> to vector<8x32xf32>
    %144 = arith.addf %140, %143 : vector<8x32xf32>
    %c0_111 = arith.constant 0 : index
    %c0_112 = arith.constant 0 : index
    %c0_113 = arith.constant 0 : index
    %145 = vector.load %arg3[%c0_111, %c0_112, %c0_113] : memref<1x1x8xf32, #tpu.memory_space<vmem>>, vector<1x1x8xf32>
    %146 = vector.shape_cast %145 : vector<1x1x8xf32> to vector<1x8xf32>
    %cst_114 = arith.constant dense<0.000000e+00> : vector<1x32xf32>
    %147 = tpu.matmul %146, %144, %cst_114 {dimension_numbers = #tpu.dot_dimension_numbers<[1], [0], [0], [1], [0, 0, 1, 1], [], []>} : vector<1x8xf32>, vector<8x32xf32>, vector<1x32xf32> -> vector<1x32xf32>
    %148 = arith.truncf %147 : vector<1x32xf32> to vector<1x32xbf16>
    %c0_115 = arith.constant 0 : index
    %c0_116 = arith.constant 0 : index
    %149 = vector.load %arg14[%c0_115, %c0_116] : memref<32x128xbf16, #tpu.memory_space<vmem>>, vector<32x128xbf16>
    %cst_117 = arith.constant dense<0.000000e+00> : vector<1x128xf32>
    %150 = tpu.matmul %148, %149, %cst_117 {dimension_numbers = #tpu.dot_dimension_numbers<[1], [0], [0], [1], [0, 0, 1, 1], [], []>} : vector<1x32xbf16>, vector<32x128xbf16>, vector<1x128xf32> -> vector<1x128xf32>
    %c0_118 = arith.constant 0 : index
    %c0_119 = arith.constant 0 : index
    %151 = vector.load %arg15[%c0_118, %c0_119] : memref<1x128xf32, #tpu.memory_space<vmem>>, vector<1x128xf32>
    %152 = arith.addf %150, %151 : vector<1x128xf32>
    %cst_120 = arith.constant 0.000000e+00 : f32
    %153 = vector.broadcast %cst_120 : f32 to vector<1x128xf32>
    %154 = arith.maximumf %152, %153 : vector<1x128xf32>
    %155 = arith.truncf %154 : vector<1x128xf32> to vector<1x128xbf16>
    %c0_121 = arith.constant 0 : index
    %c0_122 = arith.constant 0 : index
    %c0_123 = arith.constant 0 : index
    %156 = vector.load %arg16[%c0_121, %c0_122, %c0_123] : memref<1x1x128xbf16, #tpu.memory_space<vmem>>, vector<1x1x128xbf16>
    %157 = vector.shape_cast %156 : vector<1x1x128xbf16> to vector<1x128xbf16>
    %158 = vector.shape_cast %155 : vector<1x128xbf16> to vector<1x1x128xbf16>
    tpu.vector_store %arg16[%c0_121, %c0_122, %c0_123], %158 {strides = array<i32>} : memref<1x1x128xbf16, #tpu.memory_space<vmem>>, vector<1x1x128xbf16>,
    return
  }
  func.func @transform_0(%arg0: i32) -> (i32, i32, i32) {
    %c0_i32 = arith.constant 0 : i32
    %c0_i32_0 = arith.constant 0 : i32
    %c0_i32_1 = arith.constant 0 : i32
    return %arg0, %c0_i32, %c0_i32_0 : i32, i32, i32
  }
  func.func @transform_1(%arg0: i32) -> (i32, i32, i32) {
    %c0_i32 = arith.constant 0 : i32
    %c0_i32_0 = arith.constant 0 : i32
    %c0_i32_1 = arith.constant 0 : i32
    return %arg0, %c0_i32, %c0_i32_0 : i32, i32, i32
  }
  func.func @transform_2(%arg0: i32) -> (i32, i32, i32) {
    %c0_i32 = arith.constant 0 : i32
    %c0_i32_0 = arith.constant 0 : i32
    %c0_i32_1 = arith.constant 0 : i32
    return %arg0, %c0_i32, %c0_i32_0 : i32, i32, i32
  }
  func.func @transform_3(%arg0: i32) -> (i32, i32) {
    %c0_i32 = arith.constant 0 : i32
    %c0_i32_0 = arith.constant 0 : i32
    %c0_i32_1 = arith.constant 0 : i32
    return %c0_i32, %c0_i32_0 : i32, i32
  }
  func.func @transform_4(%arg0: i32) -> (i32, i32) {
    %c0_i32 = arith.constant 0 : i32
    %c0_i32_0 = arith.constant 0 : i32
    %c0_i32_1 = arith.constant 0 : i32
    return %c0_i32, %c0_i32_0 : i32, i32
  }
  func.func @transform_5(%arg0: i32) -> (i32, i32) {
    %c0_i32 = arith.constant 0 : i32
    %c0_i32_0 = arith.constant 0 : i32
    %c0_i32_1 = arith.constant 0 : i32
    return %c0_i32, %c0_i32_0 : i32, i32
  }
  func.func @transform_6(%arg0: i32) -> (i32, i32) {
    %c0_i32 = arith.constant 0 : i32
    %c0_i32_0 = arith.constant 0 : i32
    %c0_i32_1 = arith.constant 0 : i32
    return %c0_i32, %c0_i32_0 : i32, i32
  }
  func.func @transform_7(%arg0: i32) -> (i32, i32, i32) {
    %c0_i32 = arith.constant 0 : i32
    %c0_i32_0 = arith.constant 0 : i32
    %c0_i32_1 = arith.constant 0 : i32
    %c0_i32_2 = arith.constant 0 : i32
    return %c0_i32, %c0_i32_0, %c0_i32_1 : i32, i32, i32
  }
  func.func @transform_8(%arg0: i32) -> (i32, i32, i32) {
    %c0_i32 = arith.constant 0 : i32
    %c0_i32_0 = arith.constant 0 : i32
    %c0_i32_1 = arith.constant 0 : i32
    %c0_i32_2 = arith.constant 0 : i32
    return %c0_i32, %c0_i32_0, %c0_i32_1 : i32, i32, i32
  }
  func.func @transform_9(%arg0: i32) -> (i32, i32, i32) {
    %c0_i32 = arith.constant 0 : i32
    %c0_i32_0 = arith.constant 0 : i32
    %c0_i32_1 = arith.constant 0 : i32
    %c0_i32_2 = arith.constant 0 : i32
    return %c0_i32, %c0_i32_0, %c0_i32_1 : i32, i32, i32
  }
  func.func @transform_10(%arg0: i32) -> (i32, i32, i32) {
    %c0_i32 = arith.constant 0 : i32
    %c0_i32_0 = arith.constant 0 : i32
    %c0_i32_1 = arith.constant 0 : i32
    %c0_i32_2 = arith.constant 0 : i32
    return %c0_i32, %c0_i32_0, %c0_i32_1 : i32, i32, i32
  }
  func.func @transform_11(%arg0: i32) -> (i32, i32, i32) {
    %c0_i32 = arith.constant 0 : i32
    %c0_i32_0 = arith.constant 0 : i32
    %c0_i32_1 = arith.constant 0 : i32
    %c0_i32_2 = arith.constant 0 : i32
    return %c0_i32, %c0_i32_0, %c0_i32_1 : i32, i32, i32
  }
  func.func @transform_12(%arg0: i32) -> (i32, i32, i32) {
    %c0_i32 = arith.constant 0 : i32
    %c0_i32_0 = arith.constant 0 : i32
    %c0_i32_1 = arith.constant 0 : i32
    %c0_i32_2 = arith.constant 0 : i32
    return %c0_i32, %c0_i32_0, %c0_i32_1 : i32, i32, i32
  }
  func.func @transform_13(%arg0: i32) -> (i32, i32) {
    %c0_i32 = arith.constant 0 : i32
    %c0_i32_0 = arith.constant 0 : i32
    %c0_i32_1 = arith.constant 0 : i32
    return %c0_i32, %c0_i32_0 : i32, i32
  }
  func.func @transform_14(%arg0: i32) -> (i32, i32) {
    %c0_i32 = arith.constant 0 : i32
    %c0_i32_0 = arith.constant 0 : i32
    %c0_i32_1 = arith.constant 0 : i32
    return %c0_i32, %c0_i32_0 : i32, i32
  }
  func.func @transform_15(%arg0: i32) -> (i32, i32, i32) {
    %c0_i32 = arith.constant 0 : i32
    %c0_i32_0 = arith.constant 0 : i32
    %c0_i32_1 = arith.constant 0 : i32
    return %arg0, %c0_i32, %c0_i32_0 : i32, i32, i32
  }
}

module attributes {stable_mosaic.version = 11 : i64} {
  func.func @head_kernel(%arg0: i32, %arg1: memref<8x128xbf16, #tpu.memory_space<vmem>>, %arg2: memref<8x4096xbf16, #tpu.memory_space<vmem>>, %arg3: memref<4096x128xbf16, #tpu.memory_space<vmem>>, %arg4: memref<1x128xf32, #tpu.memory_space<vmem>>, %arg5: memref<128x1024xbf16, #tpu.memory_space<vmem>>, %arg6: memref<128x1024xbf16, #tpu.memory_space<vmem>>, %arg7: memref<1x1024xf32, #tpu.memory_space<vmem>>, %arg8: memref<1024x256xbf16, #tpu.memory_space<vmem>>, %arg9: memref<1x256xf32, #tpu.memory_space<vmem>>, %arg10: memref<1x256xbf16, #tpu.memory_space<vmem>>, %arg11: memref<1x1xf32, #tpu.memory_space<vmem>>, %arg12: memref<8x1xf32, #tpu.memory_space<vmem>>) attributes {dimension_semantics = [#tpu.dimension_semantics<parallel>], iteration_bounds = array<i64: 1>, scalar_prefetch = 0 : i64, scratch_operands = 0 : i64, tpu.core_type = #tpu.core_type<tc>, window_params = [{transform_indices = @transform_0, window_bounds = array<i64: 8, 128>}, {transform_indices = @transform_1, window_bounds = array<i64: 8, 4096>}, {pipeline_mode = #tpu.pipeline_mode<synchronous>, transform_indices = @transform_2, window_bounds = array<i64: 4096, 128>}, {pipeline_mode = #tpu.pipeline_mode<synchronous>, transform_indices = @transform_3, window_bounds = array<i64: 1, 128>}, {pipeline_mode = #tpu.pipeline_mode<synchronous>, transform_indices = @transform_4, window_bounds = array<i64: 128, 1024>}, {pipeline_mode = #tpu.pipeline_mode<synchronous>, transform_indices = @transform_5, window_bounds = array<i64: 128, 1024>}, {pipeline_mode = #tpu.pipeline_mode<synchronous>, transform_indices = @transform_6, window_bounds = array<i64: 1, 1024>}, {pipeline_mode = #tpu.pipeline_mode<synchronous>, transform_indices = @transform_7, window_bounds = array<i64: 1024, 256>}, {pipeline_mode = #tpu.pipeline_mode<synchronous>, transform_indices = @transform_8, window_bounds = array<i64: 1, 256>}, {pipeline_mode = #tpu.pipeline_mode<synchronous>, transform_indices = @transform_9, window_bounds = array<i64: 1, 256>}, {pipeline_mode = #tpu.pipeline_mode<synchronous>, transform_indices = @transform_10, window_bounds = array<i64: 1, 1>}, {transform_indices = @transform_11, window_bounds = array<i64: 8, 1>}]} {
    %c0 = arith.constant 0 : index
    %c0_0 = arith.constant 0 : index
    %0 = vector.load %arg2[%c0, %c0_0] : memref<8x4096xbf16, #tpu.memory_space<vmem>>, vector<8x4096xbf16>
    %c0_1 = arith.constant 0 : index
    %c0_2 = arith.constant 0 : index
    %1 = vector.load %arg3[%c0_1, %c0_2] : memref<4096x128xbf16, #tpu.memory_space<vmem>>, vector<4096x128xbf16>
    %cst = arith.constant dense<0.000000e+00> : vector<8x128xf32>
    %2 = tpu.matmul %0, %1, %cst {dimension_numbers = #tpu.dot_dimension_numbers<[1], [0], [0], [1], [0, 0, 1, 1], [], []>} : vector<8x4096xbf16>, vector<4096x128xbf16>, vector<8x128xf32> -> vector<8x128xf32>
    %c0_3 = arith.constant 0 : index
    %c0_4 = arith.constant 0 : index
    %3 = vector.load %arg4[%c0_3, %c0_4] : memref<1x128xf32, #tpu.memory_space<vmem>>, vector<1x128xf32>
    %4 = vector.broadcast %3 : vector<1x128xf32> to vector<8x128xf32>
    %5 = arith.addf %2, %4 : vector<8x128xf32>
    %c0_5 = arith.constant 0 : index
    %c0_6 = arith.constant 0 : index
    %6 = vector.load %arg1[%c0_5, %c0_6] : memref<8x128xbf16, #tpu.memory_space<vmem>>, vector<8x128xbf16>
    %c0_7 = arith.constant 0 : index
    %c0_8 = arith.constant 0 : index
    %7 = vector.load %arg5[%c0_7, %c0_8] : memref<128x1024xbf16, #tpu.memory_space<vmem>>, vector<128x1024xbf16>
    %cst_9 = arith.constant dense<0.000000e+00> : vector<8x1024xf32>
    %8 = tpu.matmul %6, %7, %cst_9 {dimension_numbers = #tpu.dot_dimension_numbers<[1], [0], [0], [1], [0, 0, 1, 1], [], []>} : vector<8x128xbf16>, vector<128x1024xbf16>, vector<8x1024xf32> -> vector<8x1024xf32>
    %9 = arith.truncf %5 : vector<8x128xf32> to vector<8x128xbf16>
    %c0_10 = arith.constant 0 : index
    %c0_11 = arith.constant 0 : index
    %10 = vector.load %arg6[%c0_10, %c0_11] : memref<128x1024xbf16, #tpu.memory_space<vmem>>, vector<128x1024xbf16>
    %cst_12 = arith.constant dense<0.000000e+00> : vector<8x1024xf32>
    %11 = tpu.matmul %9, %10, %cst_12 {dimension_numbers = #tpu.dot_dimension_numbers<[1], [0], [0], [1], [0, 0, 1, 1], [], []>} : vector<8x128xbf16>, vector<128x1024xbf16>, vector<8x1024xf32> -> vector<8x1024xf32>
    %12 = arith.addf %8, %11 : vector<8x1024xf32>
    %c0_13 = arith.constant 0 : index
    %c0_14 = arith.constant 0 : index
    %13 = vector.load %arg7[%c0_13, %c0_14] : memref<1x1024xf32, #tpu.memory_space<vmem>>, vector<1x1024xf32>
    %14 = vector.broadcast %13 : vector<1x1024xf32> to vector<8x1024xf32>
    %15 = arith.addf %12, %14 : vector<8x1024xf32>
    %cst_15 = arith.constant 0.000000e+00 : f32
    %16 = vector.broadcast %cst_15 : f32 to vector<8x1024xf32>
    %17 = arith.maximumf %15, %16 : vector<8x1024xf32>
    %18 = arith.truncf %17 : vector<8x1024xf32> to vector<8x1024xbf16>
    %c0_16 = arith.constant 0 : index
    %c0_17 = arith.constant 0 : index
    %19 = vector.load %arg8[%c0_16, %c0_17] : memref<1024x256xbf16, #tpu.memory_space<vmem>>, vector<1024x256xbf16>
    %cst_18 = arith.constant dense<0.000000e+00> : vector<8x256xf32>
    %20 = tpu.matmul %18, %19, %cst_18 {dimension_numbers = #tpu.dot_dimension_numbers<[1], [0], [0], [1], [0, 0, 1, 1], [], []>} : vector<8x1024xbf16>, vector<1024x256xbf16>, vector<8x256xf32> -> vector<8x256xf32>
    %c0_19 = arith.constant 0 : index
    %c0_20 = arith.constant 0 : index
    %21 = vector.load %arg9[%c0_19, %c0_20] : memref<1x256xf32, #tpu.memory_space<vmem>>, vector<1x256xf32>
    %22 = vector.broadcast %21 : vector<1x256xf32> to vector<8x256xf32>
    %23 = arith.addf %20, %22 : vector<8x256xf32>
    %cst_21 = arith.constant 0.000000e+00 : f32
    %24 = vector.broadcast %cst_21 : f32 to vector<8x256xf32>
    %25 = arith.maximumf %23, %24 : vector<8x256xf32>
    %c0_22 = arith.constant 0 : index
    %c0_23 = arith.constant 0 : index
    %26 = vector.load %arg10[%c0_22, %c0_23] : memref<1x256xbf16, #tpu.memory_space<vmem>>, vector<1x256xbf16>
    %27 = arith.extf %26 : vector<1x256xbf16> to vector<1x256xf32>
    %28 = vector.broadcast %27 : vector<1x256xf32> to vector<8x256xf32>
    %29 = arith.mulf %25, %28 : vector<8x256xf32>
    %cst_24 = arith.constant dense<0.000000e+00> : vector<8xf32>
    %30 = vector.multi_reduction <add>, %29, %cst_24 [1] : vector<8x256xf32> to vector<8xf32>
    %31 = vector.shape_cast %30 : vector<8xf32> to vector<8x1xf32>
    %c0_25 = arith.constant 0 : index
    %c0_26 = arith.constant 0 : index
    %32 = vector.load %arg11[%c0_25, %c0_26] : memref<1x1xf32, #tpu.memory_space<vmem>>, vector<1x1xf32>
    %33 = vector.broadcast %32 : vector<1x1xf32> to vector<8x1xf32>
    %34 = arith.addf %31, %33 : vector<8x1xf32>
    %c0_27 = arith.constant 0 : index
    %c0_28 = arith.constant 0 : index
    %35 = vector.load %arg12[%c0_27, %c0_28] : memref<8x1xf32, #tpu.memory_space<vmem>>, vector<8x1xf32>
    tpu.vector_store %arg12[%c0_27, %c0_28], %34 {strides = array<i32>} : memref<8x1xf32, #tpu.memory_space<vmem>>, vector<8x1xf32>,
    return
  }
  func.func @transform_0(%arg0: i32) -> (i32, i32) {
    %c0_i32 = arith.constant 0 : i32
    %c0_i32_0 = arith.constant 0 : i32
    return %arg0, %c0_i32 : i32, i32
  }
  func.func @transform_1(%arg0: i32) -> (i32, i32) {
    %c0_i32 = arith.constant 0 : i32
    %c0_i32_0 = arith.constant 0 : i32
    return %arg0, %c0_i32 : i32, i32
  }
  func.func @transform_2(%arg0: i32) -> (i32, i32) {
    %c0_i32 = arith.constant 0 : i32
    %c0_i32_0 = arith.constant 0 : i32
    %c0_i32_1 = arith.constant 0 : i32
    return %c0_i32, %c0_i32_0 : i32, i32
  }
  func.func @transform_3(%arg0: i32) -> (i32, i32) {
    %c0_i32 = arith.constant 0 : i32
    %c0_i32_0 = arith.constant 0 : i32
    %c0_i32_1 = arith.constant 0 : i32
    return %c0_i32, %c0_i32_0 : i32, i32
  }
  func.func @transform_4(%arg0: i32) -> (i32, i32) {
    %c0_i32 = arith.constant 0 : i32
    %c0_i32_0 = arith.constant 0 : i32
    %c0_i32_1 = arith.constant 0 : i32
    return %c0_i32, %c0_i32_0 : i32, i32
  }
  func.func @transform_5(%arg0: i32) -> (i32, i32) {
    %c0_i32 = arith.constant 0 : i32
    %c0_i32_0 = arith.constant 0 : i32
    %c0_i32_1 = arith.constant 0 : i32
    return %c0_i32, %c0_i32_0 : i32, i32
  }
  func.func @transform_6(%arg0: i32) -> (i32, i32) {
    %c0_i32 = arith.constant 0 : i32
    %c0_i32_0 = arith.constant 0 : i32
    %c0_i32_1 = arith.constant 0 : i32
    return %c0_i32, %c0_i32_0 : i32, i32
  }
  func.func @transform_7(%arg0: i32) -> (i32, i32) {
    %c0_i32 = arith.constant 0 : i32
    %c0_i32_0 = arith.constant 0 : i32
    %c0_i32_1 = arith.constant 0 : i32
    return %c0_i32, %c0_i32_0 : i32, i32
  }
  func.func @transform_8(%arg0: i32) -> (i32, i32) {
    %c0_i32 = arith.constant 0 : i32
    %c0_i32_0 = arith.constant 0 : i32
    %c0_i32_1 = arith.constant 0 : i32
    return %c0_i32, %c0_i32_0 : i32, i32
  }
  func.func @transform_9(%arg0: i32) -> (i32, i32) {
    %c0_i32 = arith.constant 0 : i32
    %c0_i32_0 = arith.constant 0 : i32
    %c0_i32_1 = arith.constant 0 : i32
    return %c0_i32, %c0_i32_0 : i32, i32
  }
  func.func @transform_10(%arg0: i32) -> (i32, i32) {
    %c0_i32 = arith.constant 0 : i32
    %c0_i32_0 = arith.constant 0 : i32
    %c0_i32_1 = arith.constant 0 : i32
    return %c0_i32, %c0_i32_0 : i32, i32
  }
  func.func @transform_11(%arg0: i32) -> (i32, i32) {
    %c0_i32 = arith.constant 0 : i32
    %c0_i32_0 = arith.constant 0 : i32
    return %arg0, %c0_i32 : i32, i32
  }
}

</mosaic_0001>

<llo_original>
// kernel: gin_convnet_forward.3
$region0: #{gin_convnet_forward.3}
  #allocation0 [shape = 'u32[]', space=smem, size = 0x4, offset = 0x4, fixed_abs, tag = 'smem constant byte address 0x4 - core index']
  #allocation1 [shape = 'u32[72,128]{1,0:T(1,128)}', space=vmem, size = 0x9000, scoped, tag = 'internal scratch']
  %s0 = inlined_call_operand.vmem [shape: bf16[2,8,8], index: 0, kind: input, shape index: {}]
  %s1 = inlined_call_operand.vmem [shape: bf16[2,8,78], index: 1, kind: input, shape index: {}]
  %s2 = inlined_call_operand.vmem [shape: f32[2,1,8], index: 2, kind: input, shape index: {}]
  %s3 = inlined_call_operand.vmem [shape: bf16[78,32], index: 3, kind: input, shape index: {}]
  %s4 = inlined_call_operand.vmem [shape: f32[1,32], index: 4, kind: input, shape index: {}]
  %s5 = inlined_call_operand.vmem [shape: bf16[32,32], index: 5, kind: input, shape index: {}]
  %s6 = inlined_call_operand.vmem [shape: f32[1,32], index: 6, kind: input, shape index: {}]
  %s7 = inlined_call_operand.vmem [shape: bf16[4,32,32], index: 7, kind: input, shape index: {}]
  %s8 = inlined_call_operand.vmem [shape: f32[4,1,32], index: 8, kind: input, shape index: {}]
  %s9 = inlined_call_operand.vmem [shape: bf16[4,32,32], index: 9, kind: input, shape index: {}]
  %s10 = inlined_call_operand.vmem [shape: f32[4,1,32], index: 10, kind: input, shape index: {}]
  %s11 = inlined_call_operand.vmem [shape: f32[5,1,32], index: 11, kind: input, shape index: {}]
  %s12 = inlined_call_operand.vmem [shape: f32[5,1,32], index: 12, kind: input, shape index: {}]
  %s13 = inlined_call_operand.vmem [shape: bf16[32,128], index: 13, kind: input, shape index: {}]
  %s14 = inlined_call_operand.vmem [shape: f32[1,128], index: 14, kind: input, shape index: {}]
  %s15 = inlined_call_operand.vmem [shape: bf16[2,1,128], index: 15, kind: output, shape index: {}]
  %s16 = sld [smem:[#allocation0]]
  $region93: #{gin_convnet_forward.3} parent=0
    _
  %s18 = ssub.s32 1, %s16
  %s19 = scalar_select 0, %s18, %s16
  loop: start=0, step=1, limit=4
  $region2: #{gin_convnet_forward.3} parent=0 // loop_pre_header
    _
  $region3: #{gin_convnet_forward.3} parent=0 // loop_header
    %s21 = sphi 0, %s25
    %p22 = scmp.ge.s32.totalorder %s21, 4
    %s31 = sphi 0, %s33
    %s34 = sphi 0, %s31
    %s35 = sphi 0, %s34
    %s51 = sphi 0, %s35
    %s57 = sphi 0, %s59
    %s60 = sphi 0, %s57
    %s61 = sphi 0, %s60
    %s77 = sphi 0, %s61
    %s83 = sphi 0, %s85
    %s86 = sphi 0, %s83
    %s87 = sphi 0, %s86
    %s103 = sphi 0, %s87
    %s107 = sphi 0, %s107
    %s109 = sphi 0, %s107
    %s110 = sphi 0, %s109
    %s124 = sphi 0, %s110
    %s128 = sphi 0, %s128
    %s130 = sphi 0, %s128
    %s131 = sphi 0, %s130
    %s145 = sphi 0, %s131
    %s149 = sphi 0, %s149
    %s151 = sphi 0, %s149
    %s152 = sphi 0, %s151
    %s166 = sphi 0, %s152
    %s170 = sphi 0, %s170
    %s172 = sphi 0, %s170
    %s173 = sphi 0, %s172
    %s187 = sphi 0, %s173
    %s191 = sphi 0, %s191
    %s193 = sphi 0, %s191
    %s194 = sphi 0, %s193
    %s208 = sphi 0, %s194
    %s212 = sphi 0, %s212
    %s214 = sphi 0, %s212
    %s215 = sphi 0, %s214
    %s229 = sphi 0, %s215
    %s233 = sphi 0, %s233
    %s235 = sphi 0, %s233
    %s236 = sphi 0, %s235
    %s250 = sphi 0, %s236
    %s254 = sphi 0, %s254
    %s256 = sphi 0, %s254
    %s257 = sphi 0, %s256
    %s271 = sphi 0, %s257
    %s275 = sphi 0, %s275
    %s277 = sphi 0, %s275
    %s278 = sphi 0, %s277
    %s292 = sphi 0, %s278
    %s296 = sphi 0, %s296
    %s298 = sphi 0, %s296
    %s299 = sphi 0, %s298
    %s313 = sphi 0, %s299
    %s317 = sphi 0, %s317
    %s319 = sphi 0, %s317
    %s320 = sphi 0, %s319
    %s334 = sphi 0, %s320
    %s338 = sphi 0, %s338
    %s340 = sphi 0, %s338
    %s341 = sphi 0, %s340
    %s355 = sphi 0, %s341
    %s361 = sphi 0, %s363
    %s364 = sphi 0, %s361
    %s365 = sphi 0, %s364
    %s381 = sphi 0, %s365
  $region4: #{gin_convnet_forward.3} parent=0 // loop_header_branch
    %24 = sbr.rel (%p22) target = $region8
  $region5: #{gin_convnet_forward.3} parent=0 // loop_body
    %s26 = ssub.s32 %s21, 1
    %s27 = ssub.s32 %s21, 2
    %s28 = sadd.s32 %s21, 1
    %s29 = ssub.s32 %s21, %s28
    %p30 = scmp.eq.s32.totalorder %s29, 0
    %s32 = sadd.s32 %s31, 1
    %s33 = scalar_select %p30, %s31, %s32
    %p36 = pneg %p30
    %p37 = scmp.eq.s32.totalorder %s21, 1
    %p38 = por %p36, %p37
    %p39 = scmp.ne.s32.totalorder %s31, %s34
    %p40 = scmp.eq.s32.totalorder %s21, 0
    %p41 = por %p39, %p40
    %p42 = scmp.ne.s32.totalorder %s31, %s34
    %p43 = scmp.eq.s32.totalorder %s26, 1
    %p44 = por %p42, %p43
    %p45 = scmp.ne.s32.totalorder %s34, %s35
    %p46 = scmp.eq.s32.totalorder %s26, 0
    %p47 = por %p45, %p46
    %p48 = scmp.ne.s32.totalorder %s34, %s35
    %p49 = scmp.eq.s32.totalorder %s27, 1
    %p50 = por %p48, %p49
    %p52 = scmp.ne.s32.totalorder %s35, %s51
    %p53 = scmp.eq.s32.totalorder %s27, 0
    %p54 = por %p52, %p53
    %s55 = ssub.s32 %s21, %s28
    %p56 = scmp.eq.s32.totalorder %s55, 0
    %s58 = sadd.s32 %s57, 1
    %s59 = scalar_select %p56, %s57, %s58
    %p62 = pneg %p56
    %p63 = scmp.eq.s32.totalorder %s21, 1
    %p64 = por %p62, %p63
    %p65 = scmp.ne.s32.totalorder %s57, %s60
    %p66 = scmp.eq.s32.totalorder %s21, 0
    %p67 = por %p65, %p66
    %p68 = scmp.ne.s32.totalorder %s57, %s60
    %p69 = scmp.eq.s32.totalorder %s26, 1
    %p70 = por %p68, %p69
    %p71 = scmp.ne.s32.totalorder %s60, %s61
    %p72 = scmp.eq.s32.totalorder %s26, 0
    %p73 = por %p71, %p72
    %p74 = scmp.ne.s32.totalorder %s60, %s61
    %p75 = scmp.eq.s32.totalorder %s27, 1
    %p76 = por %p74, %p75
    %p78 = scmp.ne.s32.totalorder %s61, %s77
    %p79 = scmp.eq.s32.totalorder %s27, 0
    %p80 = por %p78, %p79
    %s81 = ssub.s32 %s21, %s28
    %p82 = scmp.eq.s32.totalorder %s81, 0
    %s84 = sadd.s32 %s83, 1
    %s85 = scalar_select %p82, %s83, %s84
    %p88 = pneg %p82
    %p89 = scmp.eq.s32.totalorder %s21, 1
    %p90 = por %p88, %p89
    %p91 = scmp.ne.s32.totalorder %s83, %s86
    %p92 = scmp.eq.s32.totalorder %s21, 0
    %p93 = por %p91, %p92
    %p94 = scmp.ne.s32.totalorder %s83, %s86
    %p95 = scmp.eq.s32.totalorder %s26, 1
    %p96 = por %p94, %p95
    %p97 = scmp.ne.s32.totalorder %s86, %s87
    %p98 = scmp.eq.s32.totalorder %s26, 0
    %p99 = por %p97, %p98
    %p100 = scmp.ne.s32.totalorder %s86, %s87
    %p101 = scmp.eq.s32.totalorder %s27, 1
    %p102 = por %p100, %p101
    %p104 = scmp.ne.s32.totalorder %s87, %s103
    %p105 = scmp.eq.s32.totalorder %s27, 0
    %p106 = por %p104, %p105
    %s108 = sadd.s32 %s107, 1
    %p111 = scmp.eq.s32.totalorder %s21, 1
    %p112 = scmp.ne.s32.totalorder %s107, %s109
    %p113 = scmp.eq.s32.totalorder %s21, 0
    %p114 = por %p112, %p113
    %p115 = scmp.ne.s32.totalorder %s107, %s109
    %p116 = scmp.eq.s32.totalorder %s26, 1
    %p117 = por %p115, %p116
    %p118 = scmp.ne.s32.totalorder %s109, %s110
    %p119 = scmp.eq.s32.totalorder %s26, 0
    %p120 = por %p118, %p119
    %p121 = scmp.ne.s32.totalorder %s109, %s110
    %p122 = scmp.eq.s32.totalorder %s27, 1
    %p123 = por %p121, %p122
    %p125 = scmp.ne.s32.totalorder %s110, %s124
    %p126 = scmp.eq.s32.totalorder %s27, 0
    %p127 = por %p125, %p126
    %s129 = sadd.s32 %s128, 1
    %p132 = scmp.eq.s32.totalorder %s21, 1
    %p133 = scmp.ne.s32.totalorder %s128, %s130
    %p134 = scmp.eq.s32.totalorder %s21, 0
    %p135 = por %p133, %p134
    %p136 = scmp.ne.s32.totalorder %s128, %s130
    %p137 = scmp.eq.s32.totalorder %s26, 1
    %p138 = por %p136, %p137
    %p139 = scmp.ne.s32.totalorder %s130, %s131
    %p140 = scmp.eq.s32.totalorder %s26, 0
    %p141 = por %p139, %p140
    %p142 = scmp.ne.s32.totalorder %s130, %s131
    %p143 = scmp.eq.s32.totalorder %s27, 1
    %p144 = por %p142, %p143
    %p146 = scmp.ne.s32.totalorder %s131, %s145
    %p147 = scmp.eq.s32.totalorder %s27, 0
    %p148 = por %p146, %p147
    %s150 = sadd.s32 %s149, 1
    %p153 = scmp.eq.s32.totalorder %s21, 1
    %p154 = scmp.ne.s32.totalorder %s149, %s151
    %p155 = scmp.eq.s32.totalorder %s21, 0
    %p156 = por %p154, %p155
    %p157 = scmp.ne.s32.totalorder %s149, %s151
    %p158 = scmp.eq.s32.totalorder %s26, 1
    %p159 = por %p157, %p158
    %p160 = scmp.ne.s32.totalorder %s151, %s152
    %p161 = scmp.eq.s32.totalorder %s26, 0
    %p162 = por %p160, %p161
    %p163 = scmp.ne.s32.totalorder %s151, %s152
    %p164 = scmp.eq.s32.totalorder %s27, 1
    %p165 = por %p163, %p164
    %p167 = scmp.ne.s32.totalorder %s152, %s166
    %p168 = scmp.eq.s32.totalorder %s27, 0
    %p169 = por %p167, %p168
    %s171 = sadd.s32 %s170, 1
    %p174 = scmp.eq.s32.totalorder %s21, 1
    %p175 = scmp.ne.s32.totalorder %s170, %s172
    %p176 = scmp.eq.s32.totalorder %s21, 0
    %p177 = por %p175, %p176
    %p178 = scmp.ne.s32.totalorder %s170, %s172
    %p179 = scmp.eq.s32.totalorder %s26, 1
    %p180 = por %p178, %p179
    %p181 = scmp.ne.s32.totalorder %s172, %s173
    %p182 = scmp.eq.s32.totalorder %s26, 0
    %p183 = por %p181, %p182
    %p184 = scmp.ne.s32.totalorder %s172, %s173
    %p185 = scmp.eq.s32.totalorder %s27, 1
    %p186 = por %p184, %p185
    %p188 = scmp.ne.s32.totalorder %s173, %s187
    %p189 = scmp.eq.s32.totalorder %s27, 0
    %p190 = por %p188, %p189
    %s192 = sadd.s32 %s191, 1
    %p195 = scmp.eq.s32.totalorder %s21, 1
    %p196 = scmp.ne.s32.totalorder %s191, %s193
    %p197 = scmp.eq.s32.totalorder %s21, 0
    %p198 = por %p196, %p197
    %p199 = scmp.ne.s32.totalorder %s191, %s193
    %p200 = scmp.eq.s32.totalorder %s26, 1
    %p201 = por %p199, %p200
    %p202 = scmp.ne.s32.totalorder %s193, %s194
    %p203 = scmp.eq.s32.totalorder %s26, 0
    %p204 = por %p202, %p203
    %p205 = scmp.ne.s32.totalorder %s193, %s194
    %p206 = scmp.eq.s32.totalorder %s27, 1
    %p207 = por %p205, %p206
    %p209 = scmp.ne.s32.totalorder %s194, %s208
    %p210 = scmp.eq.s32.totalorder %s27, 0
    %p211 = por %p209, %p210
    %s213 = sadd.s32 %s212, 1
    %p216 = scmp.eq.s32.totalorder %s21, 1
    %p217 = scmp.ne.s32.totalorder %s212, %s214
    %p218 = scmp.eq.s32.totalorder %s21, 0
    %p219 = por %p217, %p218
    %p220 = scmp.ne.s32.totalorder %s212, %s214
    %p221 = scmp.eq.s32.totalorder %s26, 1
    %p222 = por %p220, %p221
    %p223 = scmp.ne.s32.totalorder %s214, %s215
    %p224 = scmp.eq.s32.totalorder %s26, 0
    %p225 = por %p223, %p224
    %p226 = scmp.ne.s32.totalorder %s214, %s215
    %p227 = scmp.eq.s32.totalorder %s27, 1
    %p228 = por %p226, %p227
    %p230 = scmp.ne.s32.totalorder %s215, %s229
    %p231 = scmp.eq.s32.totalorder %s27, 0
    %p232 = por %p230, %p231
    %s234 = sadd.s32 %s233, 1
    %p237 = scmp.eq.s32.totalorder %s21, 1
    %p238 = scmp.ne.s32.totalorder %s233, %s235
    %p239 = scmp.eq.s32.totalorder %s21, 0
    %p240 = por %p238, %p239
    %p241 = scmp.ne.s32.totalorder %s233, %s235
    %p242 = scmp.eq.s32.totalorder %s26, 1
    %p243 = por %p241, %p242
    %p244 = scmp.ne.s32.totalorder %s235, %s236
    %p245 = scmp.eq.s32.totalorder %s26, 0
    %p246 = por %p244, %p245
    %p247 = scmp.ne.s32.totalorder %s235, %s236
    %p248 = scmp.eq.s32.totalorder %s27, 1
    %p249 = por %p247, %p248
    %p251 = scmp.ne.s32.totalorder %s236, %s250
    %p252 = scmp.eq.s32.totalorder %s27, 0
    %p253 = por %p251, %p252
    %s255 = sadd.s32 %s254, 1
    %p258 = scmp.eq.s32.totalorder %s21, 1
    %p259 = scmp.ne.s32.totalorder %s254, %s256
    %p260 = scmp.eq.s32.totalorder %s21, 0
    %p261 = por %p259, %p260
    %p262 = scmp.ne.s32.totalorder %s254, %s256
    %p263 = scmp.eq.s32.totalorder %s26, 1
    %p264 = por %p262, %p263
    %p265 = scmp.ne.s32.totalorder %s256, %s257
    %p266 = scmp.eq.s32.totalorder %s26, 0
    %p267 = por %p265, %p266
    %p268 = scmp.ne.s32.totalorder %s256, %s257
    %p269 = scmp.eq.s32.totalorder %s27, 1
    %p270 = por %p268, %p269
    %p272 = scmp.ne.s32.totalorder %s257, %s271
    %p273 = scmp.eq.s32.totalorder %s27, 0
    %p274 = por %p272, %p273
    %s276 = sadd.s32 %s275, 1
    %p279 = scmp.eq.s32.totalorder %s21, 1
    %p280 = scmp.ne.s32.totalorder %s275, %s277
    %p281 = scmp.eq.s32.totalorder %s21, 0
    %p282 = por %p280, %p281
    %p283 = scmp.ne.s32.totalorder %s275, %s277
    %p284 = scmp.eq.s32.totalorder %s26, 1
    %p285 = por %p283, %p284
    %p286 = scmp.ne.s32.totalorder %s277, %s278
    %p287 = scmp.eq.s32.totalorder %s26, 0
    %p288 = por %p286, %p287
    %p289 = scmp.ne.s32.totalorder %s277, %s278
    %p290 = scmp.eq.s32.totalorder %s27, 1
    %p291 = por %p289, %p290
    %p293 = scmp.ne.s32.totalorder %s278, %s292
    %p294 = scmp.eq.s32.totalorder %s27, 0
    %p295 = por %p293, %p294
    %s297 = sadd.s32 %s296, 1
    %p300 = scmp.eq.s32.totalorder %s21, 1
    %p301 = scmp.ne.s32.totalorder %s296, %s298
    %p302 = scmp.eq.s32.totalorder %s21, 0
    %p303 = por %p301, %p302
    %p304 = scmp.ne.s32.totalorder %s296, %s298
    %p305 = scmp.eq.s32.totalorder %s26, 1
    %p306 = por %p304, %p305
    %p307 = scmp.ne.s32.totalorder %s298, %s299
    %p308 = scmp.eq.s32.totalorder %s26, 0
    %p309 = por %p307, %p308
    %p310 = scmp.ne.s32.totalorder %s298, %s299
    %p311 = scmp.eq.s32.totalorder %s27, 1
    %p312 = por %p310, %p311
    %p314 = scmp.ne.s32.totalorder %s299, %s313
    %p315 = scmp.eq.s32.totalorder %s27, 0
    %p316 = por %p314, %p315
    %s318 = sadd.s32 %s317, 1
    %p321 = scmp.eq.s32.totalorder %s21, 1
    %p322 = scmp.ne.s32.totalorder %s317, %s319
    %p323 = scmp.eq.s32.totalorder %s21, 0
    %p324 = por %p322, %p323
    %p325 = scmp.ne.s32.totalorder %s317, %s319
    %p326 = scmp.eq.s32.totalorder %s26, 1
    %p327 = por %p325, %p326
    %p328 = scmp.ne.s32.totalorder %s319, %s320
    %p329 = scmp.eq.s32.totalorder %s26, 0
    %p330 = por %p328, %p329
    %p331 = scmp.ne.s32.totalorder %s319, %s320
    %p332 = scmp.eq.s32.totalorder %s27, 1
    %p333 = por %p331, %p332
    %p335 = scmp.ne.s32.totalorder %s320, %s334
    %p336 = scmp.eq.s32.totalorder %s27, 0
    %p337 = por %p335, %p336
    %s339 = sadd.s32 %s338, 1
    %p342 = scmp.eq.s32.totalorder %s21, 1
    %p343 = scmp.ne.s32.totalorder %s338, %s340
    %p344 = scmp.eq.s32.totalorder %s21, 0
    %p345 = por %p343, %p344
    %p346 = scmp.ne.s32.totalorder %s338, %s340
    %p347 = scmp.eq.s32.totalorder %s26, 1
    %p348 = por %p346, %p347
    %p349 = scmp.ne.s32.totalorder %s340, %s341
    %p350 = scmp.eq.s32.totalorder %s26, 0
    %p351 = por %p349, %p350
    %p352 = scmp.ne.s32.totalorder %s340, %s341
    %p353 = scmp.eq.s32.totalorder %s27, 1
    %p354 = por %p352, %p353
    %p356 = scmp.ne.s32.totalorder %s341, %s355
    %p357 = scmp.eq.s32.totalorder %s27, 0
    %p358 = por %p356, %p357
    %s359 = ssub.s32 %s21, %s28
    %p360 = scmp.eq.s32.totalorder %s359, 0
    %s362 = sadd.s32 %s361, 1
    %s363 = scalar_select %p360, %s361, %s362
    %p366 = pneg %p360
    %p367 = scmp.eq.s32.totalorder %s21, 1
    %p368 = por %p366, %p367
    %p369 = scmp.ne.s32.totalorder %s361, %s364
    %p370 = scmp.eq.s32.totalorder %s21, 0
    %p371 = por %p369, %p370
    %p372 = scmp.ne.s32.totalorder %s361, %s364
    %p373 = scmp.eq.s32.totalorder %s26, 1
    %p374 = por %p372, %p373
    %p375 = scmp.ne.s32.totalorder %s364, %s365
    %p376 = scmp.eq.s32.totalorder %s26, 0
    %p377 = por %p375, %p376
    %p378 = scmp.ne.s32.totalorder %s364, %s365
    %p379 = scmp.eq.s32.totalorder %s27, 1
    %p380 = por %p378, %p379
    %p382 = scmp.ne.s32.totalorder %s365, %s381
    %p383 = scmp.eq.s32.totalorder %s27, 0
    %p384 = por %p382, %p383
    %p385 = scmp.le.s32.totalorder 1, %s21
    %p386 = scmp.lt.s32.totalorder %s21, 3
    %p387 = pnand %p385, %p386
    %p388 = pneg %p387
    // Predicated region
    $region9: #{gin_convnet_forward.3} parent=5 // pred_check
      _
    $region10: #{gin_convnet_forward.3} parent=5 // pred_check_branch
      %390 = sbr.rel (%p387) target = $region12
    $region11: #{gin_convnet_forward.3} parent=5 // pred_region
      %s391 = ssub.s32 %s21, 1
      // Predicated region
      $region13: #{gin_convnet_forward.3} parent=11 // pred_check
        %p392 = pneg %p120
      $region14: #{gin_convnet_forward.3} parent=11 // pred_check_branch
        %394 = sbr.rel (%p392) target = $region16
      $region15: #{gin_convnet_forward.3} parent=11 // pred_region
        _
      $region16: #{gin_convnet_forward.3} parent=11 // pred_fallthru
        _
      // Predicated region
      $region17: #{gin_convnet_forward.3} parent=11 // pred_check
        %p395 = pneg %p141
      $region18: #{gin_convnet_forward.3} parent=11 // pred_check_branch
        %397 = sbr.rel (%p395) target = $region20
      $region19: #{gin_convnet_forward.3} parent=11 // pred_region
        _
      $region20: #{gin_convnet_forward.3} parent=11 // pred_fallthru
        _
      // Predicated region
      $region21: #{gin_convnet_forward.3} parent=11 // pred_check
        %p398 = pneg %p162
      $region22: #{gin_convnet_forward.3} parent=11 // pred_check_branch
        %400 = sbr.rel (%p398) target = $region24
      $region23: #{gin_convnet_forward.3} parent=11 // pred_region
        _
      $region24: #{gin_convnet_forward.3} parent=11 // pred_fallthru
        _
      // Predicated region
      $region25: #{gin_convnet_forward.3} parent=11 // pred_check
        %p401 = pneg %p183
      $region26: #{gin_convnet_forward.3} parent=11 // pred_check_branch
        %403 = sbr.rel (%p401) target = $region28
      $region27: #{gin_convnet_forward.3} parent=11 // pred_region
        _
      $region28: #{gin_convnet_forward.3} parent=11 // pred_fallthru
        _
      // Predicated region
      $region29: #{gin_convnet_forward.3} parent=11 // pred_check
        %p404 = pneg %p204
      $region30: #{gin_convnet_forward.3} parent=11 // pred_check_branch
        %406 = sbr.rel (%p404) target = $region32
      $region31: #{gin_convnet_forward.3} parent=11 // pred_region
        _
      $region32: #{gin_convnet_forward.3} parent=11 // pred_fallthru
        _
      // Predicated region
      $region33: #{gin_convnet_forward.3} parent=11 // pred_check
        %p407 = pneg %p225
      $region34: #{gin_convnet_forward.3} parent=11 // pred_check_branch
        %409 = sbr.rel (%p407) target = $region36
      $region35: #{gin_convnet_forward.3} parent=11 // pred_region
        _
      $region36: #{gin_convnet_forward.3} parent=11 // pred_fallthru
        _
      // Predicated region
      $region37: #{gin_convnet_forward.3} parent=11 // pred_check
        %p410 = pneg %p246
      $region38: #{gin_convnet_forward.3} parent=11 // pred_check_branch
        %412 = sbr.rel (%p410) target = $region40
      $region39: #{gin_convnet_forward.3} parent=11 // pred_region
        _
      $region40: #{gin_convnet_forward.3} parent=11 // pred_fallthru
        _
      // Predicated region
      $region41: #{gin_convnet_forward.3} parent=11 // pred_check
        %p413 = pneg %p267
      $region42: #{gin_convnet_forward.3} parent=11 // pred_check_branch
        %415 = sbr.rel (%p413) target = $region44
      $region43: #{gin_convnet_forward.3} parent=11 // pred_region
        _
      $region44: #{gin_convnet_forward.3} parent=11 // pred_fallthru
        _
      // Predicated region
      $region45: #{gin_convnet_forward.3} parent=11 // pred_check
        %p416 = pneg %p288
      $region46: #{gin_convnet_forward.3} parent=11 // pred_check_branch
        %418 = sbr.rel (%p416) target = $region48
      $region47: #{gin_convnet_forward.3} parent=11 // pred_region
        _
      $region48: #{gin_convnet_forward.3} parent=11 // pred_fallthru
        _
      // Predicated region
      $region49: #{gin_convnet_forward.3} parent=11 // pred_check
        %p419 = pneg %p309
      $region50: #{gin_convnet_forward.3} parent=11 // pred_check_branch
        %421 = sbr.rel (%p419) target = $region52
      $region51: #{gin_convnet_forward.3} parent=11 // pred_region
        _
      $region52: #{gin_convnet_forward.3} parent=11 // pred_fallthru
        _
      // Predicated region
      $region53: #{gin_convnet_forward.3} parent=11 // pred_check
        %p422 = pneg %p330
      $region54: #{gin_convnet_forward.3} parent=11 // pred_check_branch
        %424 = sbr.rel (%p422) target = $region56
      $region55: #{gin_convnet_forward.3} parent=11 // pred_region
        _
      $region56: #{gin_convnet_forward.3} parent=11 // pred_fallthru
        _
      // Predicated region
      $region57: #{gin_convnet_forward.3} parent=11 // pred_check
        %p425 = pneg %p351
      $region58: #{gin_convnet_forward.3} parent=11 // pred_check_branch
        %427 = sbr.rel (%p425) target = $region60
      $region59: #{gin_convnet_forward.3} parent=11 // pred_region
        _
      $region60: #{gin_convnet_forward.3} parent=11 // pred_fallthru
        _
    $region12: #{gin_convnet_forward.3} parent=5 // pred_fallthru
      _
    %p428 = scmp.lt.s32.totalorder %s21, 2
    // Predicated region
    $region61: #{gin_convnet_forward.3} parent=5 // pred_check
      %p429 = pneg %p428
    $region62: #{gin_convnet_forward.3} parent=5 // pred_check_branch
      %431 = sbr.rel (%p429) target = $region64
    $region63: #{gin_convnet_forward.3} parent=5 // pred_region
      // Predicated region
      $region65: #{gin_convnet_forward.3} parent=63 // pred_check
        %p432 = pneg %p41
      $region66: #{gin_convnet_forward.3} parent=63 // pred_check_branch
        %434 = sbr.rel (%p432) target = $region68
      $region67: #{gin_convnet_forward.3} parent=63 // pred_region
        %p435 = scmp.lt.s32.totalorder %s21, 1
        %s436 = scalar_select %p435, %s21, 1
        %s437 = smul.addr %s436, 4
        %s438 = scalar_lea.vmem %s0, %s437
      $region68: #{gin_convnet_forward.3} parent=63 // pred_fallthru
        _
      // Predicated region
      $region69: #{gin_convnet_forward.3} parent=63 // pred_check
        %p439 = pneg %p67
      $region70: #{gin_convnet_forward.3} parent=63 // pred_check_branch
        %441 = sbr.rel (%p439) target = $region72
      $region71: #{gin_convnet_forward.3} parent=63 // pred_region
        %p442 = scmp.lt.s32.totalorder %s21, 1
        %s443 = scalar_select %p442, %s21, 1
        %s444 = smul.addr %s443, 4
        %s445 = scalar_lea.vmem %s1, %s444
      $region72: #{gin_convnet_forward.3} parent=63 // pred_fallthru
        _
      // Predicated region
      $region73: #{gin_convnet_forward.3} parent=63 // pred_check
        %p446 = pneg %p93
      $region74: #{gin_convnet_forward.3} parent=63 // pred_check_branch
        %448 = sbr.rel (%p446) target = $region76
      $region75: #{gin_convnet_forward.3} parent=63 // pred_region
        %p449 = scmp.lt.s32.totalorder %s21, 1
        %s450 = scalar_select %p449, %s21, 1
        %s451 = scalar_lea.vmem %s2, %s450
      $region76: #{gin_convnet_forward.3} parent=63 // pred_fallthru
        _
    $region64: #{gin_convnet_forward.3} parent=5 // pred_fallthru
      _
    %p452 = scmp.le.s32.totalorder 1, %s21
    %p453 = scmp.lt.s32.totalorder %s21, 3
    %p454 = pnand %p452, %p453
    %p455 = pneg %p454
    // Predicated region
    $region77: #{gin_convnet_forward.3} parent=5 // pred_check
      _
    $region78: #{gin_convnet_forward.3} parent=5 // pred_check_branch
      %457 = sbr.rel (%p454) target = $region80
    $region79: #{gin_convnet_forward.3} parent=5 // pred_region
      %s458 = ssub.s32 %s21, 1
      %p459 = scmp.lt.s32.totalorder %s26, 1
      %s460 = scalar_select %p459, %s26, 1
      %s461 = smul.addr %s460, 4
      %s462 = scalar_lea.vmem %s0, %s461
      %p463 = pneg %p47
      %p464 = pneg %p44
      %p465 = scmp.lt.s32.totalorder %s26, 1
      %s466 = scalar_select %p465, %s26, 1
      %s467 = smul.addr %s466, 4
      %s468 = scalar_lea.vmem %s1, %s467
      %p469 = pneg %p73
      %p470 = pneg %p70
      %p471 = scmp.lt.s32.totalorder %s26, 1
      %s472 = scalar_select %p471, %s26, 1
      %s473 = scalar_lea.vmem %s2, %s472
      %p474 = pneg %p99
      %p475 = pneg %p96
      %p476 = pneg %p120
      %p477 = pneg %p117
      %p478 = pneg %p141
      %p479 = pneg %p138
      %p480 = pneg %p162
      %p481 = pneg %p159
      %p482 = pneg %p183
      %p483 = pneg %p180
      %p484 = pneg %p204
      %p485 = pneg %p201
      %p486 = pneg %p225
      %p487 = pneg %p222
      %p488 = pneg %p246
      %p489 = pneg %p243
      %p490 = pneg %p267
      %p491 = pneg %p264
      %p492 = pneg %p288
      %p493 = pneg %p285
      %p494 = pneg %p309
      %p495 = pneg %p306
      %p496 = pneg %p330
      %p497 = pneg %p327
      %p498 = pneg %p351
      %p499 = pneg %p348
      %p500 = pneg %p377
      %p501 = pneg %p374
      %p502 = scmp.lt.s32.totalorder %s26, 1
      %s503 = scalar_select %p502, %s26, 1
      %s504 = scalar_lea.vmem %s15, %s503
      %p505 = scmp.lt.s32.totalorder %s26, 1
      %s506 = scalar_select %p505, %s26, 1
      %s507 = smul.addr %s506, 4
      %s508 = scalar_lea.vmem %s0, %s507
      %p509 = scmp.lt.s32.totalorder %s26, 1
      %s510 = scalar_select %p509, %s26, 1
      %s511 = smul.addr %s510, 4
      %s512 = scalar_lea.vmem %s1, %s511
      %p513 = scmp.lt.s32.totalorder %s26, 1
      %s514 = scalar_select %p513, %s26, 1
      %s515 = scalar_lea.vmem %s2, %s514
      %p516 = scmp.lt.s32.totalorder %s26, 1
      %s517 = scalar_select %p516, %s26, 1
      %s518 = scalar_lea.vmem %s15, %s517
      %v520 = vld [vmem:[%s508] sm:$0xf]
      %v521 = vunpack.c.l.bf16 %v520
      %v522 = vld [vmem:[%s512] sm:$0xf]
      %v523 = vld [vmem:[%s3] sm:$0xf]
      %v524 = vld [vmem:[%s3 + $0x4] sm:$0xf]
      %v525 = vld [vmem:[%s3 + $0x8] sm:$0xf]
      %v526 = vld [vmem:[%s3 + $0xc] sm:$0xf]
      %v527 = vld [vmem:[%s3 + $0x10] sm:$0xf]
      %v528 = vld [vmem:[%s3 + $0x14] sm:$0xf]
      %v529 = vld [vmem:[%s3 + $0x18] sm:$0xf]
      %v530 = vld [vmem:[%s3 + $0x1c] sm:$0xf]
      %v531 = vld [vmem:[%s3 + $0x20] sm:$0xf]
      %v532 = vld [vmem:[%s3 + $0x24] sm:$0x7]
      %v543 = vunpack.c.l.b16 %v523
      %v544 = vunpack.c.l.b16 %v524
      %v545 = vunpack.c.l.b16 %v525
      %v546 = vunpack.c.l.b16 %v526
      %v547 = vunpack.c.l.b16 %v527
      %v548 = vunpack.c.l.b16 %v528
      %v549 = vunpack.c.l.b16 %v529
      %v550 = vunpack.c.l.b16 %v530
      %v551 = vunpack.c.l.b16 %v531
      %v552 = vunpack.c.l.b16 %v532
      %v553 = vpack.c.b16 %v544, %v543
      %v554 = vpack.c.b16 %v546, %v545
      %v555 = vpack.c.b16 %v548, %v547
      %v556 = vpack.c.b16 %v550, %v549
      %v557 = vpack.c.b16 %v552, %v551
      %vm562 = vcmask 637952
      %v564 = vsel %vm562, %v522, 0
      %vm566 = vcmask 1046528
      %v568 = vsel %vm566, %v557, 0
      %570 = vmatpush.bf16.msra.mxu0 0
      %571 = vmatpush.bf16.msra.mxu0 0
      %572 = vmatpush.bf16.msra.mxu0 0
      %573 = vmatpush.bf16.msra.mxu0 %v568
      %574 = vmatpush.bf16.msra.mxu0 %v556
      %575 = vmatpush.bf16.msra.mxu0 %v555
      %576 = vmatpush.bf16.msra.mxu0 %v554
      %577 = vmatpush.bf16.msra.mxu0 %v553
      %578 = vmatmul.bf16.gmra.mxu0 %v564
      %v579 = vpop.f32.mrf.mxu0
      %v580 = vadd.f32 0.0, %v579
      %v581 = vpop.f32.mrf.mxu0
      %582 = vdwg.mxu0
      %v583 = vld [vmem:[%s4] sm:$0x1]
      %v585 = vperm.slane %v583, 0
      %vm587 = vcmask 64512
      %v589 = vsel %vm587, %v521, 0
      %591 = vmatpush.msra.mxu0 0.0
      %592 = vmatpush.msra.mxu0 0.0
      %593 = vmatpush.msra.mxu0 0.0
      %594 = vmatpush.msra.mxu0 0.0
      %595 = vmatpush.msra.mxu0 0.0
      %596 = vmatpush.msra.mxu0 0.0
      %597 = vmatpush.msra.mxu0 0.0
      %598 = vmatpush.msra.mxu0 0.0
      %599 = vmatpush.msra.mxu0 0.0
      %600 = vmatpush.msra.mxu0 0.0
      %601 = vmatpush.msra.mxu0 0.0
      %602 = vmatpush.msra.mxu0 0.0
      %603 = vmatpush.msra.mxu0 0.0
      %604 = vmatpush.msra.mxu0 0.0
      %605 = vmatpush.msra.mxu0 0.0
      %606 = vmatpush.msra.mxu0 %v580
      %607 = vmatmul.f32.gmra.mxu0 %v589
      %v608 = vpop.f32.mrf.mxu0
      %v609 = vadd.f32 %v585, %v608
      %610 = vdwg.mxu0
      %v611 = vmax.f32 %v609, 0.0
      %v612 = vpack.c.bf16 %v611, %v611
      %v613 = vld [vmem:[%s5] sm:$0xf]
      %v614 = vld [vmem:[%s5 + $0x4] sm:$0xf]
      %v615 = vld [vmem:[%s5 + $0x8] sm:$0xf]
      %v616 = vld [vmem:[%s5 + $0xc] sm:$0xf]
      %v617 = vld [vmem:[%s6] sm:$0x1]
      %v619 = vperm.slane %v617, 0
      %v625 = vunpack.c.l.b16 %v613
      %v626 = vunpack.c.l.b16 %v614
      %v627 = vunpack.c.l.b16 %v615
      %v628 = vunpack.c.l.b16 %v616
      %v629 = vpack.c.b16 %v626, %v625
      %v630 = vpack.c.b16 %v628, %v627
      %vm633 = vcmask 261120
      %v635 = vsel %vm633, %v612, 0
      %637 = vmatpush.bf16.msra.mxu0 0
      %638 = vmatpush.bf16.msra.mxu0 0
      %639 = vmatpush.bf16.msra.mxu0 0
      %640 = vmatpush.bf16.msra.mxu0 0
      %641 = vmatpush.bf16.msra.mxu0 0
      %642 = vmatpush.bf16.msra.mxu0 0
      %643 = vmatpush.bf16.msra.mxu0 %v630
      %644 = vmatpush.bf16.msra.mxu0 %v629
      %645 = vmatmul.bf16.gmra.mxu0 %v635
      %v646 = vpop.f32.mrf.mxu0
      %v647 = vadd.f32 %v619, %v646
      %v648 = vpop.f32.mrf.mxu0
      %649 = vdwg.mxu0
      %v650 = vmax.f32 %v647, 0.0
      %v651 = vld [vmem:[%s11] sm:$0x1]
      %v653 = vperm.slane %v651, 0
      %v655 = vmul.f32 %v650, %v653
      %v656 = vld [vmem:[%s12] sm:$0x1]
      %v658 = vperm.slane %v656, 0
      %v660 = vadd.f32 %v655, %v658
      %661 = vmatpush.msra.mxu0 0.0
      %662 = vmatpush.msra.mxu0 0.0
      %663 = vmatpush.msra.mxu0 0.0
      %664 = vmatpush.msra.mxu0 0.0
      %665 = vmatpush.msra.mxu0 0.0
      %666 = vmatpush.msra.mxu0 0.0
      %667 = vmatpush.msra.mxu0 0.0
      %668 = vmatpush.msra.mxu0 0.0
      %669 = vmatpush.msra.mxu0 0.0
      %670 = vmatpush.msra.mxu0 0.0
      %671 = vmatpush.msra.mxu0 0.0
      %672 = vmatpush.msra.mxu0 0.0
      %673 = vmatpush.msra.mxu0 0.0
      %674 = vmatpush.msra.mxu0 0.0
      %675 = vmatpush.msra.mxu0 0.0
      %676 = vmatpush.msra.mxu0 %v660
      %677 = vmatmul.f32.gmra.mxu0 %v589
      %v678 = vpop.f32.mrf.mxu0
      %v679 = vadd.f32 0.0, %v678
      %680 = vdwg.mxu0
      %v681 = vpack.c.bf16 %v679, %v679
      %v682 = vld [vmem:[%s7] sm:$0xf]
      %v683 = vld [vmem:[%s7 + $0x4] sm:$0xf]
      %v684 = vld [vmem:[%s7 + $0x8] sm:$0xf]
      %v685 = vld [vmem:[%s7 + $0xc] sm:$0xf]
      %v686 = vld [vmem:[%s8] sm:$0x1]
      %v688 = vperm.slane %v686, 0
      %v694 = vunpack.c.l.b16 %v682
      %v695 = vunpack.c.l.b16 %v683
      %v696 = vunpack.c.l.b16 %v684
      %v697 = vunpack.c.l.b16 %v685
      %v698 = vpack.c.b16 %v695, %v694
      %v699 = vpack.c.b16 %v697, %v696
      %v703 = vsel %vm633, %v681, 0
      %705 = vmatpush.bf16.msra.mxu0 0
      %706 = vmatpush.bf16.msra.mxu0 0
      %707 = vmatpush.bf16.msra.mxu0 0
      %708 = vmatpush.bf16.msra.mxu0 0
      %709 = vmatpush.bf16.msra.mxu0 0
      %710 = vmatpush.bf16.msra.mxu0 0
      %711 = vmatpush.bf16.msra.mxu0 %v699
      %712 = vmatpush.bf16.msra.mxu0 %v698
      %713 = vmatmul.bf16.gmra.mxu0 %v703
      %v714 = vpop.f32.mrf.mxu0
      %v715 = vadd.f32 %v688, %v714
      %v716 = vpop.f32.mrf.mxu0
      %717 = vdwg.mxu0
      %v718 = vmax.f32 %v715, 0.0
      %v719 = vpack.c.bf16 %v718, %v718
      %v720 = vld [vmem:[%s9] sm:$0xf]
      %v721 = vld [vmem:[%s9 + $0x4] sm:$0xf]
      %v722 = vld [vmem:[%s9 + $0x8] sm:$0xf]
      %v723 = vld [vmem:[%s9 + $0xc] sm:$0xf]
      %v724 = vld [vmem:[%s10] sm:$0x1]
      %v726 = vperm.slane %v724, 0
      %v732 = vunpack.c.l.b16 %v720
      %v733 = vunpack.c.l.b16 %v721
      %v734 = vunpack.c.l.b16 %v722
      %v735 = vunpack.c.l.b16 %v723
      %v736 = vpack.c.b16 %v733, %v732
      %v737 = vpack.c.b16 %v735, %v734
      %v741 = vsel %vm633, %v719, 0
      %743 = vmatpush.bf16.msra.mxu0 0
      %744 = vmatpush.bf16.msra.mxu0 0
      %745 = vmatpush.bf16.msra.mxu0 0
      %746 = vmatpush.bf16.msra.mxu0 0
      %747 = vmatpush.bf16.msra.mxu0 0
      %748 = vmatpush.bf16.msra.mxu0 0
      %749 = vmatpush.bf16.msra.mxu0 %v737
      %750 = vmatpush.bf16.msra.mxu0 %v736
      %751 = vmatmul.bf16.gmra.mxu0 %v741
      %v752 = vpop.f32.mrf.mxu0
      %v753 = vadd.f32 %v726, %v752
      %v754 = vpop.f32.mrf.mxu0
      %755 = vdwg.mxu0
      %v756 = vmax.f32 %v753, 0.0
      %s757 = scalar_lea.vmem %s11, 1
      %v758 = vld [vmem:[%s757] sm:$0x1]
      %v760 = vperm.slane %v758, 0
      %v762 = vmul.f32 %v756, %v760
      %s763 = scalar_lea.vmem %s12, 1
      %v764 = vld [vmem:[%s763] sm:$0x1]
      %v766 = vperm.slane %v764, 0
      %v768 = vadd.f32 %v762, %v766
      %769 = vmatpush.msra.mxu0 0.0
      %770 = vmatpush.msra.mxu0 0.0
      %771 = vmatpush.msra.mxu0 0.0
      %772 = vmatpush.msra.mxu0 0.0
      %773 = vmatpush.msra.mxu0 0.0
      %774 = vmatpush.msra.mxu0 0.0
      %775 = vmatpush.msra.mxu0 0.0
      %776 = vmatpush.msra.mxu0 0.0
      %777 = vmatpush.msra.mxu0 0.0
      %778 = vmatpush.msra.mxu0 0.0
      %779 = vmatpush.msra.mxu0 0.0
      %780 = vmatpush.msra.mxu0 0.0
      %781 = vmatpush.msra.mxu0 0.0
      %782 = vmatpush.msra.mxu0 0.0
      %783 = vmatpush.msra.mxu0 0.0
      %784 = vmatpush.msra.mxu0 %v768
      %785 = vmatmul.f32.gmra.mxu0 %v589
      %v786 = vpop.f32.mrf.mxu0
      %v787 = vadd.f32 0.0, %v786
      %788 = vdwg.mxu0
      %v789 = vpack.c.bf16 %v787, %v787
      %s790 = scalar_lea.vmem %s7, 16
      %v791 = vld [vmem:[%s790] sm:$0xf]
      %v792 = vld [vmem:[%s790 + $0x4] sm:$0xf]
      %v793 = vld [vmem:[%s790 + $0x8] sm:$0xf]
      %v794 = vld [vmem:[%s790 + $0xc] sm:$0xf]
      %s795 = scalar_lea.vmem %s8, 1
      %v796 = vld [vmem:[%s795] sm:$0x1]
      %v798 = vperm.slane %v796, 0
      %v804 = vunpack.c.l.b16 %v791
      %v805 = vunpack.c.l.b16 %v792
      %v806 = vunpack.c.l.b16 %v793
      %v807 = vunpack.c.l.b16 %v794
      %v808 = vpack.c.b16 %v805, %v804
      %v809 = vpack.c.b16 %v807, %v806
      %v813 = vsel %vm633, %v789, 0
      %815 = vmatpush.bf16.msra.mxu0 0
      %816 = vmatpush.bf16.msra.mxu0 0
      %817 = vmatpush.bf16.msra.mxu0 0
      %818 = vmatpush.bf16.msra.mxu0 0
      %819 = vmatpush.bf16.msra.mxu0 0
      %820 = vmatpush.bf16.msra.mxu0 0
      %821 = vmatpush.bf16.msra.mxu0 %v809
      %822 = vmatpush.bf16.msra.mxu0 %v808
      %823 = vmatmul.bf16.gmra.mxu0 %v813
      %v824 = vpop.f32.mrf.mxu0
      %v825 = vadd.f32 %v798, %v824
      %v826 = vpop.f32.mrf.mxu0
      %827 = vdwg.mxu0
      %v828 = vmax.f32 %v825, 0.0
      %v829 = vpack.c.bf16 %v828, %v828
      %s830 = scalar_lea.vmem %s9, 16
      %v831 = vld [vmem:[%s830] sm:$0xf]
      %v832 = vld [vmem:[%s830 + $0x4] sm:$0xf]
      %v833 = vld [vmem:[%s830 + $0x8] sm:$0xf]
      %v834 = vld [vmem:[%s830 + $0xc] sm:$0xf]
      %s835 = scalar_lea.vmem %s10, 1
      %v836 = vld [vmem:[%s835] sm:$0x1]
      %v838 = vperm.slane %v836, 0
      %v844 = vunpack.c.l.b16 %v831
      %v845 = vunpack.c.l.b16 %v832
      %v846 = vunpack.c.l.b16 %v833
      %v847 = vunpack.c.l.b16 %v834
      %v848 = vpack.c.b16 %v845, %v844
      %v849 = vpack.c.b16 %v847, %v846
      %v853 = vsel %vm633, %v829, 0
      %855 = vmatpush.bf16.msra.mxu0 0
      %856 = vmatpush.bf16.msra.mxu0 0
      %857 = vmatpush.bf16.msra.mxu0 0
      %858 = vmatpush.bf16.msra.mxu0 0
      %859 = vmatpush.bf16.msra.mxu0 0
      %860 = vmatpush.bf16.msra.mxu0 0
      %861 = vmatpush.bf16.msra.mxu0 %v849
      %862 = vmatpush.bf16.msra.mxu0 %v848
      %863 = vmatmul.bf16.gmra.mxu0 %v853
      %v864 = vpop.f32.mrf.mxu0
      %v865 = vadd.f32 %v838, %v864
      %v866 = vpop.f32.mrf.mxu0
      %867 = vdwg.mxu0
      %v868 = vmax.f32 %v865, 0.0
      %s869 = scalar_lea.vmem %s11, 2
      %v870 = vld [vmem:[%s869] sm:$0x1]
      %v872 = vperm.slane %v870, 0
      %v874 = vmul.f32 %v868, %v872
      %s875 = scalar_lea.vmem %s12, 2
      %v876 = vld [vmem:[%s875] sm:$0x1]
      %v878 = vperm.slane %v876, 0
      %v880 = vadd.f32 %v874, %v878
      %881 = vmatpush.msra.mxu0 0.0
      %882 = vmatpush.msra.mxu0 0.0
      %883 = vmatpush.msra.mxu0 0.0
      %884 = vmatpush.msra.mxu0 0.0
      %885 = vmatpush.msra.mxu0 0.0
      %886 = vmatpush.msra.mxu0 0.0
      %887 = vmatpush.msra.mxu0 0.0
      %888 = vmatpush.msra.mxu0 0.0
      %889 = vmatpush.msra.mxu0 0.0
      %890 = vmatpush.msra.mxu0 0.0
      %891 = vmatpush.msra.mxu0 0.0
      %892 = vmatpush.msra.mxu0 0.0
      %893 = vmatpush.msra.mxu0 0.0
      %894 = vmatpush.msra.mxu0 0.0
      %895 = vmatpush.msra.mxu0 0.0
      %896 = vmatpush.msra.mxu0 %v880
      %897 = vmatmul.f32.gmra.mxu0 %v589
      %v898 = vpop.f32.mrf.mxu0
      %v899 = vadd.f32 0.0, %v898
      %900 = vdwg.mxu0
      %v901 = vpack.c.bf16 %v899, %v899
      %s902 = scalar_lea.vmem %s7, 32
      %v903 = vld [vmem:[%s902] sm:$0xf]
      %v904 = vld [vmem:[%s902 + $0x4] sm:$0xf]
      %v905 = vld [vmem:[%s902 + $0x8] sm:$0xf]
      %v906 = vld [vmem:[%s902 + $0xc] sm:$0xf]
      %s907 = scalar_lea.vmem %s8, 2
      %v908 = vld [vmem:[%s907] sm:$0x1]
      %v910 = vperm.slane %v908, 0
      %v916 = vunpack.c.l.b16 %v903
      %v917 = vunpack.c.l.b16 %v904
      %v918 = vunpack.c.l.b16 %v905
      %v919 = vunpack.c.l.b16 %v906
      %v920 = vpack.c.b16 %v917, %v916
      %v921 = vpack.c.b16 %v919, %v918
      %v925 = vsel %vm633, %v901, 0
      %927 = vmatpush.bf16.msra.mxu0 0
      %928 = vmatpush.bf16.msra.mxu0 0
      %929 = vmatpush.bf16.msra.mxu0 0
      %930 = vmatpush.bf16.msra.mxu0 0
      %931 = vmatpush.bf16.msra.mxu0 0
      %932 = vmatpush.bf16.msra.mxu0 0
      %933 = vmatpush.bf16.msra.mxu0 %v921
      %934 = vmatpush.bf16.msra.mxu0 %v920
      %935 = vmatmul.bf16.gmra.mxu0 %v925
      %v936 = vpop.f32.mrf.mxu0
      %v937 = vadd.f32 %v910, %v936
      %v938 = vpop.f32.mrf.mxu0
      %939 = vdwg.mxu0
      %v940 = vmax.f32 %v937, 0.0
      %v941 = vpack.c.bf16 %v940, %v940
      %s942 = scalar_lea.vmem %s9, 32
      %v943 = vld [vmem:[%s942] sm:$0xf]
      %v944 = vld [vmem:[%s942 + $0x4] sm:$0xf]
      %v945 = vld [vmem:[%s942 + $0x8] sm:$0xf]
      %v946 = vld [vmem:[%s942 + $0xc] sm:$0xf]
      %s947 = scalar_lea.vmem %s10, 2
      %v948 = vld [vmem:[%s947] sm:$0x1]
      %v950 = vperm.slane %v948, 0
      %v956 = vunpack.c.l.b16 %v943
      %v957 = vunpack.c.l.b16 %v944
      %v958 = vunpack.c.l.b16 %v945
      %v959 = vunpack.c.l.b16 %v946
      %v960 = vpack.c.b16 %v957, %v956
      %v961 = vpack.c.b16 %v959, %v958
      %v965 = vsel %vm633, %v941, 0
      %967 = vmatpush.bf16.msra.mxu0 0
      %968 = vmatpush.bf16.msra.mxu0 0
      %969 = vmatpush.bf16.msra.mxu0 0
      %970 = vmatpush.bf16.msra.mxu0 0
      %971 = vmatpush.bf16.msra.mxu0 0
      %972 = vmatpush.bf16.msra.mxu0 0
      %973 = vmatpush.bf16.msra.mxu0 %v961
      %974 = vmatpush.bf16.msra.mxu0 %v960
      %975 = vmatmul.bf16.gmra.mxu0 %v965
      %v976 = vpop.f32.mrf.mxu0
      %v977 = vadd.f32 %v950, %v976
      %v978 = vpop.f32.mrf.mxu0
      %979 = vdwg.mxu0
      %v980 = vmax.f32 %v977, 0.0
      %s981 = scalar_lea.vmem %s11, 3
      %v982 = vld [vmem:[%s981] sm:$0x1]
      %v984 = vperm.slane %v982, 0
      %v986 = vmul.f32 %v980, %v984
      %s987 = scalar_lea.vmem %s12, 3
      %v988 = vld [vmem:[%s987] sm:$0x1]
      %v990 = vperm.slane %v988, 0
      %v992 = vadd.f32 %v986, %v990
      %993 = vmatpush.msra.mxu0 0.0
      %994 = vmatpush.msra.mxu0 0.0
      %995 = vmatpush.msra.mxu0 0.0
      %996 = vmatpush.msra.mxu0 0.0
      %997 = vmatpush.msra.mxu0 0.0
      %998 = vmatpush.msra.mxu0 0.0
      %999 = vmatpush.msra.mxu0 0.0
      %1000 = vmatpush.msra.mxu0 0.0
      %1001 = vmatpush.msra.mxu0 0.0
      %1002 = vmatpush.msra.mxu0 0.0
      %1003 = vmatpush.msra.mxu0 0.0
      %1004 = vmatpush.msra.mxu0 0.0
      %1005 = vmatpush.msra.mxu0 0.0
      %1006 = vmatpush.msra.mxu0 0.0
      %1007 = vmatpush.msra.mxu0 0.0
      %1008 = vmatpush.msra.mxu0 %v992
      %1009 = vmatmul.f32.gmra.mxu0 %v589
      %v1010 = vpop.f32.mrf.mxu0
      %v1011 = vadd.f32 0.0, %v1010
      %1012 = vdwg.mxu0
      %v1013 = vpack.c.bf16 %v1011, %v1011
      %s1014 = scalar_lea.vmem %s7, 48
      %v1015 = vld [vmem:[%s1014] sm:$0xf]
      %v1016 = vld [vmem:[%s1014 + $0x4] sm:$0xf]
      %v1017 = vld [vmem:[%s1014 + $0x8] sm:$0xf]
      %v1018 = vld [vmem:[%s1014 + $0xc] sm:$0xf]
      %s1019 = scalar_lea.vmem %s8, 3
      %v1020 = vld [vmem:[%s1019] sm:$0x1]
      %v1022 = vperm.slane %v1020, 0
      %v1028 = vunpack.c.l.b16 %v1015
      %v1029 = vunpack.c.l.b16 %v1016
      %v1030 = vunpack.c.l.b16 %v1017
      %v1031 = vunpack.c.l.b16 %v1018
      %v1032 = vpack.c.b16 %v1029, %v1028
      %v1033 = vpack.c.b16 %v1031, %v1030
      %v1037 = vsel %vm633, %v1013, 0
      %1039 = vmatpush.bf16.msra.mxu0 0
      %1040 = vmatpush.bf16.msra.mxu0 0
      %1041 = vmatpush.bf16.msra.mxu0 0
      %1042 = vmatpush.bf16.msra.mxu0 0
      %1043 = vmatpush.bf16.msra.mxu0 0
      %1044 = vmatpush.bf16.msra.mxu0 0
      %1045 = vmatpush.bf16.msra.mxu0 %v1033
      %1046 = vmatpush.bf16.msra.mxu0 %v1032
      %1047 = vmatmul.bf16.gmra.mxu0 %v1037
      %v1048 = vpop.f32.mrf.mxu0
      %v1049 = vadd.f32 %v1022, %v1048
      %v1050 = vpop.f32.mrf.mxu0
      %1051 = vdwg.mxu0
      %v1052 = vmax.f32 %v1049, 0.0
      %v1053 = vpack.c.bf16 %v1052, %v1052
      %s1054 = scalar_lea.vmem %s9, 48
      %v1055 = vld [vmem:[%s1054] sm:$0xf]
      %v1056 = vld [vmem:[%s1054 + $0x4] sm:$0xf]
      %v1057 = vld [vmem:[%s1054 + $0x8] sm:$0xf]
      %v1058 = vld [vmem:[%s1054 + $0xc] sm:$0xf]
      %s1059 = scalar_lea.vmem %s10, 3
      %v1060 = vld [vmem:[%s1059] sm:$0x1]
      %v1062 = vperm.slane %v1060, 0
      %v1068 = vunpack.c.l.b16 %v1055
      %v1069 = vunpack.c.l.b16 %v1056
      %v1070 = vunpack.c.l.b16 %v1057
      %v1071 = vunpack.c.l.b16 %v1058
      %v1072 = vpack.c.b16 %v1069, %v1068
      %v1073 = vpack.c.b16 %v1071, %v1070
      %v1077 = vsel %vm633, %v1053, 0
      %1079 = vmatpush.bf16.msra.mxu0 0
      %1080 = vmatpush.bf16.msra.mxu0 0
      %1081 = vmatpush.bf16.msra.mxu0 0
      %1082 = vmatpush.bf16.msra.mxu0 0
      %1083 = vmatpush.bf16.msra.mxu0 0
      %1084 = vmatpush.bf16.msra.mxu0 0
      %1085 = vmatpush.bf16.msra.mxu0 %v1073
      %1086 = vmatpush.bf16.msra.mxu0 %v1072
      %1087 = vmatmul.bf16.gmra.mxu0 %v1077
      %v1088 = vpop.f32.mrf.mxu0
      %v1089 = vadd.f32 %v1062, %v1088
      %v1090 = vpop.f32.mrf.mxu0
      %1091 = vdwg.mxu0
      %v1092 = vmax.f32 %v1089, 0.0
      %s1093 = scalar_lea.vmem %s11, 4
      %v1094 = vld [vmem:[%s1093] sm:$0x1]
      %v1096 = vperm.slane %v1094, 0
      %v1098 = vmul.f32 %v1092, %v1096
      %s1099 = scalar_lea.vmem %s12, 4
      %v1100 = vld [vmem:[%s1099] sm:$0x1]
      %v1102 = vperm.slane %v1100, 0
      %v1104 = vadd.f32 %v1098, %v1102
      %v1105 = vld [vmem:[%s515] sm:$0x1]
      %v1107 = vsel %vm587, %v1105, 0
      %1109 = vmatpush.msra.mxu0 0.0
      %1110 = vmatpush.msra.mxu0 0.0
      %1111 = vmatpush.msra.mxu0 0.0
      %1112 = vmatpush.msra.mxu0 0.0
      %1113 = vmatpush.msra.mxu0 0.0
      %1114 = vmatpush.msra.mxu0 0.0
      %1115 = vmatpush.msra.mxu0 0.0
      %1116 = vmatpush.msra.mxu0 0.0
      %1117 = vmatpush.msra.mxu0 0.0
      %1118 = vmatpush.msra.mxu0 0.0
      %1119 = vmatpush.msra.mxu0 0.0
      %1120 = vmatpush.msra.mxu0 0.0
      %1121 = vmatpush.msra.mxu0 0.0
      %1122 = vmatpush.msra.mxu0 0.0
      %1123 = vmatpush.msra.mxu0 0.0
      %1124 = vmatpush.msra.mxu0 %v1104
      %1125 = vmatmul.f32.gmra.mxu0 %v1107
      %v1126 = vpop.f32.mrf.mxu0
      %v1127 = vadd.f32 0.0, %v1126
      %1128 = vdwg.mxu0
      %v1129 = vpack.c.bf16 %v1127, %v1127
      %v1130 = vld [vmem:[%s13] sm:$0xf]
      %v1131 = vld [vmem:[%s13 + $0x4] sm:$0xf]
      %v1132 = vld [vmem:[%s13 + $0x8] sm:$0xf]
      %v1133 = vld [vmem:[%s13 + $0xc] sm:$0xf]
      %v1134 = vld [vmem:[%s14] sm:$0x1]
      %v1139 = vunpack.c.l.b16 %v1130
      %v1140 = vunpack.c.l.b16 %v1131
      %v1141 = vunpack.c.l.b16 %v1132
      %v1142 = vunpack.c.l.b16 %v1133
      %v1143 = vpack.c.b16 %v1140, %v1139
      %v1144 = vpack.c.b16 %v1142, %v1141
      %v1148 = vsel %vm633, %v1129, 0
      %1150 = vmatpush.bf16.msra.mxu0 0
      %1151 = vmatpush.bf16.msra.mxu0 0
      %1152 = vmatpush.bf16.msra.mxu0 0
      %1153 = vmatpush.bf16.msra.mxu0 0
      %1154 = vmatpush.bf16.msra.mxu0 0
      %1155 = vmatpush.bf16.msra.mxu0 0
      %1156 = vmatpush.bf16.msra.mxu0 %v1144
      %1157 = vmatpush.bf16.msra.mxu0 %v1143
      %1158 = vmatmul.bf16.gmra.mxu0 %v1148
      %v1159 = vpop.f32.mrf.mxu0
      %v1160 = vadd.f32 %v1134, %v1159
      %v1161 = vpop.f32.mrf.mxu0
      %1162 = vdwg.mxu0
      %v1163 = vmax.f32 %v1160, 0.0
      %v1164 = vpack.c.bf16 %v1163, %v1163
      %vm1165 = vcmask 1040384
      %vm1166 = vsmask.f32 256
      %vm1167 = vmand %vm1165, %vm1166
      %v1168 = vld [vmem:[%s518] sm:$0x1]
      %v1169 = vsel %vm1167, %v1164, %v1168
      %1170 = vst [vmem:[%s518] sm:$0x1] %v1169
      %p1171 = scmp.lt.s32.totalorder %s26, 1
      %s1172 = scalar_select %p1171, %s26, 1
      %s1173 = scalar_lea.vmem %s15, %s1172
      // Predicated region
      $region81: #{gin_convnet_forward.3} parent=79 // pred_check
        %p1174 = pneg %p374
      $region82: #{gin_convnet_forward.3} parent=79 // pred_check_branch
        %1176 = sbr.rel (%p1174) target = $region84
      $region83: #{gin_convnet_forward.3} parent=79 // pred_region
        _
      $region84: #{gin_convnet_forward.3} parent=79 // pred_fallthru
        _
    $region80: #{gin_convnet_forward.3} parent=5 // pred_fallthru
      _
    %p1177 = scmp.le.s32.totalorder 2, %s21
    // Predicated region
    $region85: #{gin_convnet_forward.3} parent=5 // pred_check
      %p1178 = pneg %p1177
    $region86: #{gin_convnet_forward.3} parent=5 // pred_check_branch
      %1180 = sbr.rel (%p1178) target = $region88
    $region87: #{gin_convnet_forward.3} parent=5 // pred_region
      %s1181 = ssub.s32 %s21, 2
      // Predicated region
      $region89: #{gin_convnet_forward.3} parent=87 // pred_check
        %p1182 = pneg %p380
      $region90: #{gin_convnet_forward.3} parent=87 // pred_check_branch
        %1184 = sbr.rel (%p1182) target = $region92
      $region91: #{gin_convnet_forward.3} parent=87 // pred_region
        %p1185 = scmp.lt.s32.totalorder %s27, 1
        %s1186 = scalar_select %p1185, %s27, 1
        %s1187 = scalar_lea.vmem %s15, %s1186
      $region92: #{gin_convnet_forward.3} parent=87 // pred_fallthru
        _
    $region88: #{gin_convnet_forward.3} parent=5 // pred_fallthru
      _
  $region6: #{gin_convnet_forward.3} parent=0 // loop_footer
    %s25 = sadd.s32 1, %s21
  $region7: #{gin_convnet_forward.3} parent=0 // loop_footer_branch
    %20 = sbr.rel target = $region3
  $region8: #{gin_convnet_forward.3} parent=0 // loop_exit
    _

// kernel: gin_convnet_forward.4
$region0: #{gin_convnet_forward.4}
  #allocation0 [shape = 'u32[]', space=smem, size = 0x4, offset = 0x4, fixed_abs, tag = 'smem constant byte address 0x4 - core index']
  #allocation1 [shape = 'u32[72,128]{1,0:T(1,128)}', space=vmem, size = 0x9000, scoped, tag = 'internal scratch']
  %s0 = inlined_call_operand.vmem [shape: s32[2,1,1000], index: 0, kind: input, shape index: {}]
  %s1 = inlined_call_operand.hbm [shape: bf16[1000,256], index: 1, kind: input, shape index: {}]
  %s2 = inlined_call_operand.vmem [shape: bf16[8,128,32], index: 2, kind: input, shape index: {}]
  %s3 = inlined_call_operand.vmem [shape: bf16[2,128,32], index: 3, kind: output, shape index: {}]
  %s4 = sld [smem:[#allocation0]]
  $region49: #{gin_convnet_forward.4} parent=0
    _
  %s6 = ssub.s32 1, %s4
  %s7 = scalar_select 0, %s6, %s4
  $region1: #{gin_convnet_forward.4} parent=0
    #allocation2 [shape = 'u8[512000]{0}', space=vmem, size = 0x7d000, scoped, tag = 'input window, operand 1, single buffered']
    #allocation3 [shape = 's32[2]{0}', space=sflag, size = 0x8, scoped, tag = 'scoped memory for gin_convnet_forward.4']
    %8 = vsyncpa [#allocation3], 0
    loop: start=0, step=1, limit=4
    $region2: #{gin_convnet_forward.4} parent=1 // loop_pre_header
      _
    $region3: #{gin_convnet_forward.4} parent=1 // loop_header
      %s10 = sphi 0, %s14
      %p11 = scmp.ge.s32.totalorder %s10, 4
      %s20 = sphi 0, %s22
      %s23 = sphi 0, %s20
      %s24 = sphi 0, %s23
      %s40 = sphi 0, %s24
      %s44 = sphi 0, %s44
      %s46 = sphi 0, %s44
      %s47 = sphi 0, %s46
      %s61 = sphi 0, %s47
      %s65 = sphi 0, %s65
      %s67 = sphi 0, %s65
      %s68 = sphi 0, %s67
      %s82 = sphi 0, %s68
      %s88 = sphi 0, %s90
      %s91 = sphi 0, %s88
      %s92 = sphi 0, %s91
      %s108 = sphi 0, %s92
    $region4: #{gin_convnet_forward.4} parent=1 // loop_header_branch
      %13 = sbr.rel (%p11) target = $region8
    $region5: #{gin_convnet_forward.4} parent=1 // loop_body
      %s15 = ssub.s32 %s10, 1
      %s16 = ssub.s32 %s10, 2
      %s17 = sadd.s32 %s10, 1
      %s18 = ssub.s32 %s10, %s17
      %p19 = scmp.eq.s32.totalorder %s18, 0
      %s21 = sadd.s32 %s20, 1
      %s22 = scalar_select %p19, %s20, %s21
      %p25 = pneg %p19
      %p26 = scmp.eq.s32.totalorder %s10, 1
      %p27 = por %p25, %p26
      %p28 = scmp.ne.s32.totalorder %s20, %s23
      %p29 = scmp.eq.s32.totalorder %s10, 0
      %p30 = por %p28, %p29
      %p31 = scmp.ne.s32.totalorder %s20, %s23
      %p32 = scmp.eq.s32.totalorder %s15, 1
      %p33 = por %p31, %p32
      %p34 = scmp.ne.s32.totalorder %s23, %s24
      %p35 = scmp.eq.s32.totalorder %s15, 0
      %p36 = por %p34, %p35
      %p37 = scmp.ne.s32.totalorder %s23, %s24
      %p38 = scmp.eq.s32.totalorder %s16, 1
      %p39 = por %p37, %p38
      %p41 = scmp.ne.s32.totalorder %s24, %s40
      %p42 = scmp.eq.s32.totalorder %s16, 0
      %p43 = por %p41, %p42
      %s45 = sadd.s32 %s44, 1
      %p48 = scmp.eq.s32.totalorder %s10, 1
      %p49 = scmp.ne.s32.totalorder %s44, %s46
      %p50 = scmp.eq.s32.totalorder %s10, 0
      %p51 = por %p49, %p50
      %p52 = scmp.ne.s32.totalorder %s44, %s46
      %p53 = scmp.eq.s32.totalorder %s15, 1
      %p54 = por %p52, %p53
      %p55 = scmp.ne.s32.totalorder %s46, %s47
      %p56 = scmp.eq.s32.totalorder %s15, 0
      %p57 = por %p55, %p56
      %p58 = scmp.ne.s32.totalorder %s46, %s47
      %p59 = scmp.eq.s32.totalorder %s16, 1
      %p60 = por %p58, %p59
      %p62 = scmp.ne.s32.totalorder %s47, %s61
      %p63 = scmp.eq.s32.totalorder %s16, 0
      %p64 = por %p62, %p63
      %s66 = sadd.s32 %s65, 1
      %p69 = scmp.eq.s32.totalorder %s10, 1
      %p70 = scmp.ne.s32.totalorder %s65, %s67
      %p71 = scmp.eq.s32.totalorder %s10, 0
      %p72 = por %p70, %p71
      %p73 = scmp.ne.s32.totalorder %s65, %s67
      %p74 = scmp.eq.s32.totalorder %s15, 1
      %p75 = por %p73, %p74
      %p76 = scmp.ne.s32.totalorder %s67, %s68
      %p77 = scmp.eq.s32.totalorder %s15, 0
      %p78 = por %p76, %p77
      %p79 = scmp.ne.s32.totalorder %s67, %s68
      %p80 = scmp.eq.s32.totalorder %s16, 1
      %p81 = por %p79, %p80
      %p83 = scmp.ne.s32.totalorder %s68, %s82
      %p84 = scmp.eq.s32.totalorder %s16, 0
      %p85 = por %p83, %p84
      %s86 = ssub.s32 %s10, %s17
      %p87 = scmp.eq.s32.totalorder %s86, 0
      %s89 = sadd.s32 %s88, 1
      %s90 = scalar_select %p87, %s88, %s89
      %p93 = pneg %p87
      %p94 = scmp.eq.s32.totalorder %s10, 1
      %p95 = por %p93, %p94
      %p96 = scmp.ne.s32.totalorder %s88, %s91
      %p97 = scmp.eq.s32.totalorder %s10, 0
      %p98 = por %p96, %p97
      %p99 = scmp.ne.s32.totalorder %s88, %s91
      %p100 = scmp.eq.s32.totalorder %s15, 1
      %p101 = por %p99, %p100
      %p102 = scmp.ne.s32.totalorder %s91, %s92
      %p103 = scmp.eq.s32.totalorder %s15, 0
      %p104 = por %p102, %p103
      %p105 = scmp.ne.s32.totalorder %s91, %s92
      %p106 = scmp.eq.s32.totalorder %s16, 1
      %p107 = por %p105, %p106
      %p109 = scmp.ne.s32.totalorder %s92, %s108
      %p110 = scmp.eq.s32.totalorder %s16, 0
      %p111 = por %p109, %p110
      %p112 = scmp.le.s32.totalorder 1, %s10
      %p113 = scmp.lt.s32.totalorder %s10, 3
      %p114 = pnand %p112, %p113
      %p115 = pneg %p114
      // Predicated region
      $region9: #{gin_convnet_forward.4} parent=5 // pred_check
        _
      $region10: #{gin_convnet_forward.4} parent=5 // pred_check_branch
        %117 = sbr.rel (%p114) target = $region12
      $region11: #{gin_convnet_forward.4} parent=5 // pred_region
        %s118 = ssub.s32 %s10, 1
        // Predicated region
        $region13: #{gin_convnet_forward.4} parent=11 // pred_check
          %p119 = pneg %p57
        $region14: #{gin_convnet_forward.4} parent=11 // pred_check_branch
          %121 = sbr.rel (%p119) target = $region16
        $region15: #{gin_convnet_forward.4} parent=11 // pred_region
          %123 = vsyncadd [#allocation3], 0
          %s124 = sshll.u32 %s1, 4
          %s125 = int_to_ptr.hbm [resolvable:$true] %s124
          %s126 = sshll.u32 [#allocation2], 4
          %s127 = int_to_ptr.vmem [resolvable:$true] %s126
          %132 = dma.hbm_to_vmem [thread:$0]  %s125, 16000, %s127, [#allocation3], 128, 128, 8
        $region16: #{gin_convnet_forward.4} parent=11 // pred_fallthru
          _
        // Predicated region
        $region17: #{gin_convnet_forward.4} parent=11 // pred_check
          %p133 = pneg %p78
        $region18: #{gin_convnet_forward.4} parent=11 // pred_check_branch
          %135 = sbr.rel (%p133) target = $region20
        $region19: #{gin_convnet_forward.4} parent=11 // pred_region
          _
        $region20: #{gin_convnet_forward.4} parent=11 // pred_fallthru
          _
      $region12: #{gin_convnet_forward.4} parent=5 // pred_fallthru
        _
      %p136 = scmp.lt.s32.totalorder %s10, 2
      // Predicated region
      $region21: #{gin_convnet_forward.4} parent=5 // pred_check
        %p137 = pneg %p136
      $region22: #{gin_convnet_forward.4} parent=5 // pred_check_branch
        %139 = sbr.rel (%p137) target = $region24
      $region23: #{gin_convnet_forward.4} parent=5 // pred_region
        // Predicated region
        $region25: #{gin_convnet_forward.4} parent=23 // pred_check
          %p140 = pneg %p30
        $region26: #{gin_convnet_forward.4} parent=23 // pred_check_branch
          %142 = sbr.rel (%p140) target = $region28
        $region27: #{gin_convnet_forward.4} parent=23 // pred_region
          %p143 = scmp.lt.s32.totalorder %s10, 1
          %s144 = scalar_select %p143, %s10, 1
          %s145 = smul.addr %s144, 8
          %s146 = scalar_lea.vmem %s0, %s145
        $region28: #{gin_convnet_forward.4} parent=23 // pred_fallthru
          _
      $region24: #{gin_convnet_forward.4} parent=5 // pred_fallthru
        _
      %p147 = scmp.le.s32.totalorder 1, %s10
      %p148 = scmp.lt.s32.totalorder %s10, 3
      %p149 = pnand %p147, %p148
      %p150 = pneg %p149
      // Predicated region
      $region29: #{gin_convnet_forward.4} parent=5 // pred_check
        _
      $region30: #{gin_convnet_forward.4} parent=5 // pred_check_branch
        %152 = sbr.rel (%p149) target = $region32
      $region31: #{gin_convnet_forward.4} parent=5 // pred_region
        %s153 = ssub.s32 %s10, 1
        // Predicated region
        $region33: #{gin_convnet_forward.4} parent=31 // pred_check
          %p154 = pneg %p57
        $region34: #{gin_convnet_forward.4} parent=31 // pred_check_branch
          %156 = sbr.rel (%p154) target = $region36
        $region35: #{gin_convnet_forward.4} parent=31 // pred_region
          %158 = dma.done [#allocation3], 16000
        $region36: #{gin_convnet_forward.4} parent=31 // pred_fallthru
          _
        %p159 = scmp.lt.s32.totalorder %s15, 1
        %s160 = scalar_select %p159, %s15, 1
        %s161 = smul.addr %s160, 8
        %s162 = scalar_lea.vmem %s0, %s161
        %p163 = pneg %p36
        %p164 = pneg %p33
        %p165 = pneg %p57
        %p166 = pneg %p54
        %p167 = pneg %p78
        %p168 = pneg %p75
        %p169 = pneg %p104
        %p170 = pneg %p101
        %p171 = scmp.lt.s32.totalorder %s15, 1
        %s172 = scalar_select %p171, %s15, 1
        %s173 = smul.addr %s172, 16
        %s174 = smul.addr %s173, 4
        %s175 = scalar_lea.vmem %s3, %s174
        %p176 = scmp.lt.s32.totalorder %s15, 1
        %s177 = scalar_select %p176, %s15, 1
        %s178 = smul.addr %s177, 8
        %s179 = scalar_lea.vmem %s0, %s178
        %p180 = scmp.lt.s32.totalorder %s15, 1
        %s181 = scalar_select %p180, %s15, 1
        %s182 = smul.addr %s181, 16
        %s183 = smul.addr %s182, 4
        %s184 = scalar_lea.vmem %s3, %s183
        %v186 = vld [vmem:[%s179] sm:$0xff]
        %v187 = vlaneseq
        %v188 = vshrl.u32 %v187, 7
        %v189 = vadd.s32 %v188, 8
        %v190 = vadd.s32 %v188, 16
        %v191 = vadd.s32 %v188, 24
        %v192 = vperm.slane %v186, 0
        %v193 = vperm.slane %v186, 1
        %v194 = vperm.slane %v186, 2
        %v195 = vperm.slane %v186, 3
        %v196 = vperm.slane %v186, 4
        %v197 = vperm.slane %v186, 5
        %v198 = vperm.slane %v186, 6
        %v199 = vperm.slane %v186, 7
        %vm200 = vcmp.eq.s32.totalorder %v188, %v192
        %vm201 = vcmp.eq.s32.totalorder %v188, %v193
        %vm202 = vcmp.eq.s32.totalorder %v188, %v194
        %vm203 = vcmp.eq.s32.totalorder %v188, %v195
        %vm204 = vcmp.eq.s32.totalorder %v188, %v196
        %vm205 = vcmp.eq.s32.totalorder %v188, %v197
        %vm206 = vcmp.eq.s32.totalorder %v188, %v198
        %vm207 = vcmp.eq.s32.totalorder %v188, %v199
        %vm208 = vcmp.eq.s32.totalorder %v189, %v192
        %vm209 = vcmp.eq.s32.totalorder %v189, %v193
        %vm210 = vcmp.eq.s32.totalorder %v189, %v194
        %vm211 = vcmp.eq.s32.totalorder %v189, %v195
        %vm212 = vcmp.eq.s32.totalorder %v189, %v196
        %vm213 = vcmp.eq.s32.totalorder %v189, %v197
        %vm214 = vcmp.eq.s32.totalorder %v189, %v198
        %vm215 = vcmp.eq.s32.totalorder %v189, %v199
        %vm216 = vcmp.eq.s32.totalorder %v190, %v192
        %vm217 = vcmp.eq.s32.totalorder %v190, %v193
        %vm218 = vcmp.eq.s32.totalorder %v190, %v194
        %vm219 = vcmp.eq.s32.totalorder %v190, %v195
        %vm220 = vcmp.eq.s32.totalorder %v190, %v196
        %vm221 = vcmp.eq.s32.totalorder %v190, %v197
        %vm222 = vcmp.eq.s32.totalorder %v190, %v198
        %vm223 = vcmp.eq.s32.totalorder %v190, %v199
        %vm224 = vcmp.eq.s32.totalorder %v191, %v192
        %vm225 = vcmp.eq.s32.totalorder %v191, %v193
        %vm226 = vcmp.eq.s32.totalorder %v191, %v194
        %vm227 = vcmp.eq.s32.totalorder %v191, %v195
        %vm228 = vcmp.eq.s32.totalorder %v191, %v196
        %vm229 = vcmp.eq.s32.totalorder %v191, %v197
        %vm230 = vcmp.eq.s32.totalorder %v191, %v198
        %vm231 = vcmp.eq.s32.totalorder %v191, %v199
        %v232 = vsel %vm200, 1.0, 0.0
        %v233 = vsel %vm201, 1.0, 0.0
        %v234 = vsel %vm202, 1.0, 0.0
        %v235 = vsel %vm203, 1.0, 0.0
        %v236 = vsel %vm204, 1.0, 0.0
        %v237 = vsel %vm205, 1.0, 0.0
        %v238 = vsel %vm206, 1.0, 0.0
        %v239 = vsel %vm207, 1.0, 0.0
        %v240 = vsel %vm208, 1.0, 0.0
        %v241 = vsel %vm209, 1.0, 0.0
        %v242 = vsel %vm210, 1.0, 0.0
        %v243 = vsel %vm211, 1.0, 0.0
        %v244 = vsel %vm212, 1.0, 0.0
        %v245 = vsel %vm213, 1.0, 0.0
        %v246 = vsel %vm214, 1.0, 0.0
        %v247 = vsel %vm215, 1.0, 0.0
        %v248 = vsel %vm216, 1.0, 0.0
        %v249 = vsel %vm217, 1.0, 0.0
        %v250 = vsel %vm218, 1.0, 0.0
        %v251 = vsel %vm219, 1.0, 0.0
        %v252 = vsel %vm220, 1.0, 0.0
        %v253 = vsel %vm221, 1.0, 0.0
        %v254 = vsel %vm222, 1.0, 0.0
        %v255 = vsel %vm223, 1.0, 0.0
        %v256 = vsel %vm224, 1.0, 0.0
        %v257 = vsel %vm225, 1.0, 0.0
        %v258 = vsel %vm226, 1.0, 0.0
        %v259 = vsel %vm227, 1.0, 0.0
        %v260 = vsel %vm228, 1.0, 0.0
        %v261 = vsel %vm229, 1.0, 0.0
        %v262 = vsel %vm230, 1.0, 0.0
        %v263 = vsel %vm231, 1.0, 0.0
        %v264 = vpack.c.bf16 %v240, %v232
        %v265 = vpack.c.bf16 %v241, %v233
        %v266 = vpack.c.bf16 %v242, %v234
        %v267 = vpack.c.bf16 %v243, %v235
        %v268 = vpack.c.bf16 %v244, %v236
        %v269 = vpack.c.bf16 %v245, %v237
        %v270 = vpack.c.bf16 %v246, %v238
        %v271 = vpack.c.bf16 %v247, %v239
        %v272 = vpack.c.bf16 %v256, %v248
        %v273 = vpack.c.bf16 %v257, %v249
        %v274 = vpack.c.bf16 %v258, %v250
        %v275 = vpack.c.bf16 %v259, %v251
        %v276 = vpack.c.bf16 %v260, %v252
        %v277 = vpack.c.bf16 %v261, %v253
        %v278 = vpack.c.bf16 %v262, %v254
        %v279 = vpack.c.bf16 %v263, %v255
        %v280 = vld [vmem:[#allocation2] sm:$0xff]
        %v281 = vld [vmem:[#allocation2 + $0x8] sm:$0xff]
        %v282 = vld [vmem:[#allocation2 + $0x10] sm:$0xff]
        %v283 = vld [vmem:[#allocation2 + $0x18] sm:$0xff]
        %v284 = vld [vmem:[#allocation2 + $0x20] sm:$0xff]
        %v285 = vld [vmem:[#allocation2 + $0x28] sm:$0xff]
        %v286 = vld [vmem:[#allocation2 + $0x30] sm:$0xff]
        %v287 = vld [vmem:[#allocation2 + $0x38] sm:$0xff]
        %v288 = vld [vmem:[#allocation2 + $0x40] sm:$0xff]
        %v289 = vld [vmem:[#allocation2 + $0x48] sm:$0xff]
        %v290 = vld [vmem:[#allocation2 + $0x50] sm:$0xff]
        %v291 = vld [vmem:[#allocation2 + $0x58] sm:$0xff]
        %v292 = vld [vmem:[#allocation2 + $0x60] sm:$0xff]
        %v293 = vld [vmem:[#allocation2 + $0x68] sm:$0xff]
        %v294 = vld [vmem:[#allocation2 + $0x70] sm:$0xff]
        %v295 = vld [vmem:[#allocation2 + $0x78] sm:$0xff]
        %v296 = vld [vmem:[#allocation2 + $0x80] sm:$0xff]
        %v297 = vld [vmem:[#allocation2 + $0x88] sm:$0xff]
        %v298 = vld [vmem:[#allocation2 + $0x90] sm:$0xff]
        %v299 = vld [vmem:[#allocation2 + $0x98] sm:$0xff]
        %v300 = vld [vmem:[#allocation2 + $0xa0] sm:$0xff]
        %v301 = vld [vmem:[#allocation2 + $0xa8] sm:$0xff]
        %v302 = vld [vmem:[#allocation2 + $0xb0] sm:$0xff]
        %v303 = vld [vmem:[#allocation2 + $0xb8] sm:$0xff]
        %v304 = vld [vmem:[#allocation2 + $0xc0] sm:$0xff]
        %v305 = vld [vmem:[#allocation2 + $0xc8] sm:$0xff]
        %v306 = vld [vmem:[#allocation2 + $0xd0] sm:$0xff]
        %v307 = vld [vmem:[#allocation2 + $0xd8] sm:$0xff]
        %v308 = vld [vmem:[#allocation2 + $0xe0] sm:$0xff]
        %v309 = vld [vmem:[#allocation2 + $0xe8] sm:$0xff]
        %v310 = vld [vmem:[#allocation2 + $0xf0] sm:$0xff]
        %v311 = vld [vmem:[#allocation2 + $0xf8] sm:$0xff]
        %v312 = vld [vmem:[#allocation2 + $0x100] sm:$0xff]
        %v313 = vld [vmem:[#allocation2 + $0x108] sm:$0xff]
        %v314 = vld [vmem:[#allocation2 + $0x110] sm:$0xff]
        %v315 = vld [vmem:[#allocation2 + $0x118] sm:$0xff]
        %v316 = vld [vmem:[#allocation2 + $0x120] sm:$0xff]
        %v317 = vld [vmem:[#allocation2 + $0x128] sm:$0xff]
        %v318 = vld [vmem:[#allocation2 + $0x130] sm:$0xff]
        %v319 = vld [vmem:[#allocation2 + $0x138] sm:$0xff]
        %v320 = vld [vmem:[#allocation2 + $0x140] sm:$0xff]
        %v321 = vld [vmem:[#allocation2 + $0x148] sm:$0xff]
        %v322 = vld [vmem:[#allocation2 + $0x150] sm:$0xff]
        %v323 = vld [vmem:[#allocation2 + $0x158] sm:$0xff]
        %v324 = vld [vmem:[#allocation2 + $0x160] sm:$0xff]
        %v325 = vld [vmem:[#allocation2 + $0x168] sm:$0xff]
        %v326 = vld [vmem:[#allocation2 + $0x170] sm:$0xff]
        %v327 = vld [vmem:[#allocation2 + $0x178] sm:$0xff]
        %v328 = vld [vmem:[#allocation2 + $0x180] sm:$0xff]
        %v329 = vld [vmem:[#allocation2 + $0x188] sm:$0xff]
        %v330 = vld [vmem:[#allocation2 + $0x190] sm:$0xff]
        %v331 = vld [vmem:[#allocation2 + $0x198] sm:$0xff]
        %v332 = vld [vmem:[#allocation2 + $0x1a0] sm:$0xff]
        %v333 = vld [vmem:[#allocation2 + $0x1a8] sm:$0xff]
        %v334 = vld [vmem:[#allocation2 + $0x1b0] sm:$0xff]
        %v335 = vld [vmem:[#allocation2 + $0x1b8] sm:$0xff]
        %v336 = vld [vmem:[#allocation2 + $0x1c0] sm:$0xff]
        %v337 = vld [vmem:[#allocation2 + $0x1c8] sm:$0xff]
        %v338 = vld [vmem:[#allocation2 + $0x1d0] sm:$0xff]
        %v339 = vld [vmem:[#allocation2 + $0x1d8] sm:$0xff]
        %v340 = vld [vmem:[#allocation2 + $0x1e0] sm:$0xff]
        %v341 = vld [vmem:[#allocation2 + $0x1e8] sm:$0xff]
        %v342 = vld [vmem:[#allocation2 + $0x1f0] sm:$0xff]
        %v343 = vld [vmem:[#allocation2 + $0x1f8] sm:$0xff]
        %v344 = vld [vmem:[#allocation2 + $0x200] sm:$0xff]
        %v345 = vld [vmem:[#allocation2 + $0x208] sm:$0xff]
        %v346 = vld [vmem:[#allocation2 + $0x210] sm:$0xff]
        %v347 = vld [vmem:[#allocation2 + $0x218] sm:$0xff]
        %v348 = vld [vmem:[#allocation2 + $0x220] sm:$0xff]
        %v349 = vld [vmem:[#allocation2 + $0x228] sm:$0xff]
        %v350 = vld [vmem:[#allocation2 + $0x230] sm:$0xff]
        %v351 = vld [vmem:[#allocation2 + $0x238] sm:$0xff]
        %v352 = vld [vmem:[#allocation2 + $0x240] sm:$0xff]
        %v353 = vld [vmem:[#allocation2 + $0x248] sm:$0xff]
        %v354 = vld [vmem:[#allocation2 + $0x250] sm:$0xff]
        %v355 = vld [vmem:[#allocation2 + $0x258] sm:$0xff]
        %v356 = vld [vmem:[#allocation2 + $0x260] sm:$0xff]
        %v357 = vld [vmem:[#allocation2 + $0x268] sm:$0xff]
        %v358 = vld [vmem:[#allocation2 + $0x270] sm:$0xff]
        %v359 = vld [vmem:[#allocation2 + $0x278] sm:$0xff]
        %v360 = vld [vmem:[#allocation2 + $0x280] sm:$0xff]
        %v361 = vld [vmem:[#allocation2 + $0x288] sm:$0xff]
        %v362 = vld [vmem:[#allocation2 + $0x290] sm:$0xff]
        %v363 = vld [vmem:[#allocation2 + $0x298] sm:$0xff]
        %v364 = vld [vmem:[#allocation2 + $0x2a0] sm:$0xff]
        %v365 = vld [vmem:[#allocation2 + $0x2a8] sm:$0xff]
        %v366 = vld [vmem:[#allocation2 + $0x2b0] sm:$0xff]
        %v367 = vld [vmem:[#allocation2 + $0x2b8] sm:$0xff]
        %v368 = vld [vmem:[#allocation2 + $0x2c0] sm:$0xff]
        %v369 = vld [vmem:[#allocation2 + $0x2c8] sm:$0xff]
        %v370 = vld [vmem:[#allocation2 + $0x2d0] sm:$0xff]
        %v371 = vld [vmem:[#allocation2 + $0x2d8] sm:$0xff]
        %v372 = vld [vmem:[#allocation2 + $0x2e0] sm:$0xff]
        %v373 = vld [vmem:[#allocation2 + $0x2e8] sm:$0xff]
        %v374 = vld [vmem:[#allocation2 + $0x2f0] sm:$0xff]
        %v375 = vld [vmem:[#allocation2 + $0x2f8] sm:$0xff]
        %v376 = vld [vmem:[#allocation2 + $0x300] sm:$0xff]
        %v377 = vld [vmem:[#allocation2 + $0x308] sm:$0xff]
        %v378 = vld [vmem:[#allocation2 + $0x310] sm:$0xff]
        %v379 = vld [vmem:[#allocation2 + $0x318] sm:$0xff]
        %v380 = vld [vmem:[#allocation2 + $0x320] sm:$0xff]
        %v381 = vld [vmem:[#allocation2 + $0x328] sm:$0xff]
        %v382 = vld [vmem:[#allocation2 + $0x330] sm:$0xff]
        %v383 = vld [vmem:[#allocation2 + $0x338] sm:$0xff]
        %v384 = vld [vmem:[#allocation2 + $0x340] sm:$0xff]
        %v385 = vld [vmem:[#allocation2 + $0x348] sm:$0xff]
        %v386 = vld [vmem:[#allocation2 + $0x350] sm:$0xff]
        %v387 = vld [vmem:[#allocation2 + $0x358] sm:$0xff]
        %v388 = vld [vmem:[#allocation2 + $0x360] sm:$0xff]
        %v389 = vld [vmem:[#allocation2 + $0x368] sm:$0xff]
        %v390 = vld [vmem:[#allocation2 + $0x370] sm:$0xff]
        %v391 = vld [vmem:[#allocation2 + $0x378] sm:$0xff]
        %v392 = vld [vmem:[#allocation2 + $0x380] sm:$0xff]
        %v393 = vld [vmem:[#allocation2 + $0x388] sm:$0xff]
        %v394 = vld [vmem:[#allocation2 + $0x390] sm:$0xff]
        %v395 = vld [vmem:[#allocation2 + $0x398] sm:$0xff]
        %v396 = vld [vmem:[#allocation2 + $0x3a0] sm:$0xff]
        %v397 = vld [vmem:[#allocation2 + $0x3a8] sm:$0xff]
        %v398 = vld [vmem:[#allocation2 + $0x3b0] sm:$0xff]
        %v399 = vld [vmem:[#allocation2 + $0x3b8] sm:$0xff]
        %v400 = vld [vmem:[#allocation2 + $0x3c0] sm:$0xff]
        %v401 = vld [vmem:[#allocation2 + $0x3c8] sm:$0xff]
        %v402 = vld [vmem:[#allocation2 + $0x3d0] sm:$0xff]
        %v403 = vld [vmem:[#allocation2 + $0x3d8] sm:$0xff]
        %v404 = vld [vmem:[#allocation2 + $0x3e0] sm:$0xff]
        %v530 = vunpack.c.l.b16 %v280
        %v531 = vunpack.c.h.b16 %v280
        %v532 = vunpack.c.l.b16 %v281
        %v533 = vunpack.c.h.b16 %v281
        %v534 = vunpack.c.l.b16 %v282
        %v535 = vunpack.c.h.b16 %v282
        %v536 = vunpack.c.l.b16 %v283
        %v537 = vunpack.c.h.b16 %v283
        %v538 = vunpack.c.l.b16 %v284
        %v539 = vunpack.c.h.b16 %v284
        %v540 = vunpack.c.l.b16 %v285
        %v541 = vunpack.c.h.b16 %v285
        %v542 = vunpack.c.l.b16 %v286
        %v543 = vunpack.c.h.b16 %v286
        %v544 = vunpack.c.l.b16 %v287
        %v545 = vunpack.c.h.b16 %v287
        %v546 = vunpack.c.l.b16 %v288
        %v547 = vunpack.c.h.b16 %v288
        %v548 = vunpack.c.l.b16 %v289
        %v549 = vunpack.c.h.b16 %v289
        %v550 = vunpack.c.l.b16 %v290
        %v551 = vunpack.c.h.b16 %v290
        %v552 = vunpack.c.l.b16 %v291
        %v553 = vunpack.c.h.b16 %v291
        %v554 = vunpack.c.l.b16 %v292
        %v555 = vunpack.c.h.b16 %v292
        %v556 = vunpack.c.l.b16 %v293
        %v557 = vunpack.c.h.b16 %v293
        %v558 = vunpack.c.l.b16 %v294
        %v559 = vunpack.c.h.b16 %v294
        %v560 = vunpack.c.l.b16 %v295
        %v561 = vunpack.c.h.b16 %v295
        %v562 = vunpack.c.l.b16 %v296
        %v563 = vunpack.c.h.b16 %v296
        %v564 = vunpack.c.l.b16 %v297
        %v565 = vunpack.c.h.b16 %v297
        %v566 = vunpack.c.l.b16 %v298
        %v567 = vunpack.c.h.b16 %v298
        %v568 = vunpack.c.l.b16 %v299
        %v569 = vunpack.c.h.b16 %v299
        %v570 = vunpack.c.l.b16 %v300
        %v571 = vunpack.c.h.b16 %v300
        %v572 = vunpack.c.l.b16 %v301
        %v573 = vunpack.c.h.b16 %v301
        %v574 = vunpack.c.l.b16 %v302
        %v575 = vunpack.c.h.b16 %v302
        %v576 = vunpack.c.l.b16 %v303
        %v577 = vunpack.c.h.b16 %v303
        %v578 = vunpack.c.l.b16 %v304
        %v579 = vunpack.c.h.b16 %v304
        %v580 = vunpack.c.l.b16 %v305
        %v581 = vunpack.c.h.b16 %v305
        %v582 = vunpack.c.l.b16 %v306
        %v583 = vunpack.c.h.b16 %v306
        %v584 = vunpack.c.l.b16 %v307
        %v585 = vunpack.c.h.b16 %v307
        %v586 = vunpack.c.l.b16 %v308
        %v587 = vunpack.c.h.b16 %v308
        %v588 = vunpack.c.l.b16 %v309
        %v589 = vunpack.c.h.b16 %v309
        %v590 = vunpack.c.l.b16 %v310
        %v591 = vunpack.c.h.b16 %v310
        %v592 = vunpack.c.l.b16 %v311
        %v593 = vunpack.c.h.b16 %v311
        %v594 = vunpack.c.l.b16 %v312
        %v595 = vunpack.c.h.b16 %v312
        %v596 = vunpack.c.l.b16 %v313
        %v597 = vunpack.c.h.b16 %v313
        %v598 = vunpack.c.l.b16 %v314
        %v599 = vunpack.c.h.b16 %v314
        %v600 = vunpack.c.l.b16 %v315
        %v601 = vunpack.c.h.b16 %v315
        %v602 = vunpack.c.l.b16 %v316
        %v603 = vunpack.c.h.b16 %v316
        %v604 = vunpack.c.l.b16 %v317
        %v605 = vunpack.c.h.b16 %v317
        %v606 = vunpack.c.l.b16 %v318
        %v607 = vunpack.c.h.b16 %v318
        %v608 = vunpack.c.l.b16 %v319
        %v609 = vunpack.c.h.b16 %v319
        %v610 = vunpack.c.l.b16 %v320
        %v611 = vunpack.c.h.b16 %v320
        %v612 = vunpack.c.l.b16 %v321
        %v613 = vunpack.c.h.b16 %v321
        %v614 = vunpack.c.l.b16 %v322
        %v615 = vunpack.c.h.b16 %v322
        %v616 = vunpack.c.l.b16 %v323
        %v617 = vunpack.c.h.b16 %v323
        %v618 = vunpack.c.l.b16 %v324
        %v619 = vunpack.c.h.b16 %v324
        %v620 = vunpack.c.l.b16 %v325
        %v621 = vunpack.c.h.b16 %v325
        %v622 = vunpack.c.l.b16 %v326
        %v623 = vunpack.c.h.b16 %v326
        %v624 = vunpack.c.l.b16 %v327
        %v625 = vunpack.c.h.b16 %v327
        %v626 = vunpack.c.l.b16 %v328
        %v627 = vunpack.c.h.b16 %v328
        %v628 = vunpack.c.l.b16 %v329
        %v629 = vunpack.c.h.b16 %v329
        %v630 = vunpack.c.l.b16 %v330
        %v631 = vunpack.c.h.b16 %v330
        %v632 = vunpack.c.l.b16 %v331
        %v633 = vunpack.c.h.b16 %v331
        %v634 = vunpack.c.l.b16 %v332
        %v635 = vunpack.c.h.b16 %v332
        %v636 = vunpack.c.l.b16 %v333
        %v637 = vunpack.c.h.b16 %v333
        %v638 = vunpack.c.l.b16 %v334
        %v639 = vunpack.c.h.b16 %v334
        %v640 = vunpack.c.l.b16 %v335
        %v641 = vunpack.c.h.b16 %v335
        %v642 = vunpack.c.l.b16 %v336
        %v643 = vunpack.c.h.b16 %v336
        %v644 = vunpack.c.l.b16 %v337
        %v645 = vunpack.c.h.b16 %v337
        %v646 = vunpack.c.l.b16 %v338
        %v647 = vunpack.c.h.b16 %v338
        %v648 = vunpack.c.l.b16 %v339
        %v649 = vunpack.c.h.b16 %v339
        %v650 = vunpack.c.l.b16 %v340
        %v651 = vunpack.c.h.b16 %v340
        %v652 = vunpack.c.l.b16 %v341
        %v653 = vunpack.c.h.b16 %v341
        %v654 = vunpack.c.l.b16 %v342
        %v655 = vunpack.c.h.b16 %v342
        %v656 = vunpack.c.l.b16 %v343
        %v657 = vunpack.c.h.b16 %v343
        %v658 = vunpack.c.l.b16 %v344
        %v659 = vunpack.c.h.b16 %v344
        %v660 = vunpack.c.l.b16 %v345
        %v661 = vunpack.c.h.b16 %v345
        %v662 = vunpack.c.l.b16 %v346
        %v663 = vunpack.c.h.b16 %v346
        %v664 = vunpack.c.l.b16 %v347
        %v665 = vunpack.c.h.b16 %v347
        %v666 = vunpack.c.l.b16 %v348
        %v667 = vunpack.c.h.b16 %v348
        %v668 = vunpack.c.l.b16 %v349
        %v669 = vunpack.c.h.b16 %v349
        %v670 = vunpack.c.l.b16 %v350
        %v671 = vunpack.c.h.b16 %v350
        %v672 = vunpack.c.l.b16 %v351
        %v673 = vunpack.c.h.b16 %v351
        %v674 = vunpack.c.l.b16 %v352
        %v675 = vunpack.c.h.b16 %v352
        %v676 = vunpack.c.l.b16 %v353
        %v677 = vunpack.c.h.b16 %v353
        %v678 = vunpack.c.l.b16 %v354
        %v679 = vunpack.c.h.b16 %v354
        %v680 = vunpack.c.l.b16 %v355
        %v681 = vunpack.c.h.b16 %v355
        %v682 = vunpack.c.l.b16 %v356
        %v683 = vunpack.c.h.b16 %v356
        %v684 = vunpack.c.l.b16 %v357
        %v685 = vunpack.c.h.b16 %v357
        %v686 = vunpack.c.l.b16 %v358
        %v687 = vunpack.c.h.b16 %v358
        %v688 = vunpack.c.l.b16 %v359
        %v689 = vunpack.c.h.b16 %v359
        %v690 = vunpack.c.l.b16 %v360
        %v691 = vunpack.c.h.b16 %v360
        %v692 = vunpack.c.l.b16 %v361
        %v693 = vunpack.c.h.b16 %v361
        %v694 = vunpack.c.l.b16 %v362
        %v695 = vunpack.c.h.b16 %v362
        %v696 = vunpack.c.l.b16 %v363
        %v697 = vunpack.c.h.b16 %v363
        %v698 = vunpack.c.l.b16 %v364
        %v699 = vunpack.c.h.b16 %v364
        %v700 = vunpack.c.l.b16 %v365
        %v701 = vunpack.c.h.b16 %v365
        %v702 = vunpack.c.l.b16 %v366
        %v703 = vunpack.c.h.b16 %v366
        %v704 = vunpack.c.l.b16 %v367
        %v705 = vunpack.c.h.b16 %v367
        %v706 = vunpack.c.l.b16 %v368
        %v707 = vunpack.c.h.b16 %v368
        %v708 = vunpack.c.l.b16 %v369
        %v709 = vunpack.c.h.b16 %v369
        %v710 = vunpack.c.l.b16 %v370
        %v711 = vunpack.c.h.b16 %v370
        %v712 = vunpack.c.l.b16 %v371
        %v713 = vunpack.c.h.b16 %v371
        %v714 = vunpack.c.l.b16 %v372
        %v715 = vunpack.c.h.b16 %v372
        %v716 = vunpack.c.l.b16 %v373
        %v717 = vunpack.c.h.b16 %v373
        %v718 = vunpack.c.l.b16 %v374
        %v719 = vunpack.c.h.b16 %v374
        %v720 = vunpack.c.l.b16 %v375
        %v721 = vunpack.c.h.b16 %v375
        %v722 = vunpack.c.l.b16 %v376
        %v723 = vunpack.c.h.b16 %v376
        %v724 = vunpack.c.l.b16 %v377
        %v725 = vunpack.c.h.b16 %v377
        %v726 = vunpack.c.l.b16 %v378
        %v727 = vunpack.c.h.b16 %v378
        %v728 = vunpack.c.l.b16 %v379
        %v729 = vunpack.c.h.b16 %v379
        %v730 = vunpack.c.l.b16 %v380
        %v731 = vunpack.c.h.b16 %v380
        %v732 = vunpack.c.l.b16 %v381
        %v733 = vunpack.c.h.b16 %v381
        %v734 = vunpack.c.l.b16 %v382
        %v735 = vunpack.c.h.b16 %v382
        %v736 = vunpack.c.l.b16 %v383
        %v737 = vunpack.c.h.b16 %v383
        %v738 = vunpack.c.l.b16 %v384
        %v739 = vunpack.c.h.b16 %v384
        %v740 = vunpack.c.l.b16 %v385
        %v741 = vunpack.c.h.b16 %v385
        %v742 = vunpack.c.l.b16 %v386
        %v743 = vunpack.c.h.b16 %v386
        %v744 = vunpack.c.l.b16 %v387
        %v745 = vunpack.c.h.b16 %v387
        %v746 = vunpack.c.l.b16 %v388
        %v747 = vunpack.c.h.b16 %v388
        %v748 = vunpack.c.l.b16 %v389
        %v749 = vunpack.c.h.b16 %v389
        %v750 = vunpack.c.l.b16 %v390
        %v751 = vunpack.c.h.b16 %v390
        %v752 = vunpack.c.l.b16 %v391
        %v753 = vunpack.c.h.b16 %v391
        %v754 = vunpack.c.l.b16 %v392
        %v755 = vunpack.c.h.b16 %v392
        %v756 = vunpack.c.l.b16 %v393
        %v757 = vunpack.c.h.b16 %v393
        %v758 = vunpack.c.l.b16 %v394
        %v759 = vunpack.c.h.b16 %v394
        %v760 = vunpack.c.l.b16 %v395
        %v761 = vunpack.c.h.b16 %v395
        %v762 = vunpack.c.l.b16 %v396
        %v763 = vunpack.c.h.b16 %v396
        %v764 = vunpack.c.l.b16 %v397
        %v765 = vunpack.c.h.b16 %v397
        %v766 = vunpack.c.l.b16 %v398
        %v767 = vunpack.c.h.b16 %v398
        %v768 = vunpack.c.l.b16 %v399
        %v769 = vunpack.c.h.b16 %v399
        %v770 = vunpack.c.l.b16 %v400
        %v771 = vunpack.c.h.b16 %v400
        %v772 = vunpack.c.l.b16 %v401
        %v773 = vunpack.c.h.b16 %v401
        %v774 = vunpack.c.l.b16 %v402
        %v775 = vunpack.c.h.b16 %v402
        %v776 = vunpack.c.l.b16 %v403
        %v777 = vunpack.c.h.b16 %v403
        %v778 = vunpack.c.l.b16 %v404
        %v779 = vunpack.c.h.b16 %v404
        %v780 = vpack.c.b16 %v532, %v530
        %v781 = vpack.c.b16 %v533, %v531
        %v782 = vpack.c.b16 %v536, %v534
        %v783 = vpack.c.b16 %v537, %v535
        %v784 = vpack.c.b16 %v540, %v538
        %v785 = vpack.c.b16 %v541, %v539
        %v786 = vpack.c.b16 %v544, %v542
        %v787 = vpack.c.b16 %v545, %v543
        %v788 = vpack.c.b16 %v548, %v546
        %v789 = vpack.c.b16 %v549, %v547
        %v790 = vpack.c.b16 %v552, %v550
        %v791 = vpack.c.b16 %v553, %v551
        %v792 = vpack.c.b16 %v556, %v554
        %v793 = vpack.c.b16 %v557, %v555
        %v794 = vpack.c.b16 %v560, %v558
        %v795 = vpack.c.b16 %v561, %v559
        %v796 = vpack.c.b16 %v564, %v562
        %v797 = vpack.c.b16 %v565, %v563
        %v798 = vpack.c.b16 %v568, %v566
        %v799 = vpack.c.b16 %v569, %v567
        %v800 = vpack.c.b16 %v572, %v570
        %v801 = vpack.c.b16 %v573, %v571
        %v802 = vpack.c.b16 %v576, %v574
        %v803 = vpack.c.b16 %v577, %v575
        %v804 = vpack.c.b16 %v580, %v578
        %v805 = vpack.c.b16 %v581, %v579
        %v806 = vpack.c.b16 %v584, %v582
        %v807 = vpack.c.b16 %v585, %v583
        %v808 = vpack.c.b16 %v588, %v586
        %v809 = vpack.c.b16 %v589, %v587
        %v810 = vpack.c.b16 %v592, %v590
        %v811 = vpack.c.b16 %v593, %v591
        %v812 = vpack.c.b16 %v596, %v594
        %v813 = vpack.c.b16 %v597, %v595
        %v814 = vpack.c.b16 %v600, %v598
        %v815 = vpack.c.b16 %v601, %v599
        %v816 = vpack.c.b16 %v604, %v602
        %v817 = vpack.c.b16 %v605, %v603
        %v818 = vpack.c.b16 %v608, %v606
        %v819 = vpack.c.b16 %v609, %v607
        %v820 = vpack.c.b16 %v612, %v610
        %v821 = vpack.c.b16 %v613, %v611
        %v822 = vpack.c.b16 %v616, %v614
        %v823 = vpack.c.b16 %v617, %v615
        %v824 = vpack.c.b16 %v620, %v618
        %v825 = vpack.c.b16 %v621, %v619
        %v826 = vpack.c.b16 %v624, %v622
        %v827 = vpack.c.b16 %v625, %v623
        %v828 = vpack.c.b16 %v628, %v626
        %v829 = vpack.c.b16 %v629, %v627
        %v830 = vpack.c.b16 %v632, %v630
        %v831 = vpack.c.b16 %v633, %v631
        %v832 = vpack.c.b16 %v636, %v634
        %v833 = vpack.c.b16 %v637, %v635
        %v834 = vpack.c.b16 %v640, %v638
        %v835 = vpack.c.b16 %v641, %v639
        %v836 = vpack.c.b16 %v644, %v642
        %v837 = vpack.c.b16 %v645, %v643
        %v838 = vpack.c.b16 %v648, %v646
        %v839 = vpack.c.b16 %v649, %v647
        %v840 = vpack.c.b16 %v652, %v650
        %v841 = vpack.c.b16 %v653, %v651
        %v842 = vpack.c.b16 %v656, %v654
        %v843 = vpack.c.b16 %v657, %v655
        %v844 = vpack.c.b16 %v660, %v658
        %v845 = vpack.c.b16 %v661, %v659
        %v846 = vpack.c.b16 %v664, %v662
        %v847 = vpack.c.b16 %v665, %v663
        %v848 = vpack.c.b16 %v668, %v666
        %v849 = vpack.c.b16 %v669, %v667
        %v850 = vpack.c.b16 %v672, %v670
        %v851 = vpack.c.b16 %v673, %v671
        %v852 = vpack.c.b16 %v676, %v674
        %v853 = vpack.c.b16 %v677, %v675
        %v854 = vpack.c.b16 %v680, %v678
        %v855 = vpack.c.b16 %v681, %v679
        %v856 = vpack.c.b16 %v684, %v682
        %v857 = vpack.c.b16 %v685, %v683
        %v858 = vpack.c.b16 %v688, %v686
        %v859 = vpack.c.b16 %v689, %v687
        %v860 = vpack.c.b16 %v692, %v690
        %v861 = vpack.c.b16 %v693, %v691
        %v862 = vpack.c.b16 %v696, %v694
        %v863 = vpack.c.b16 %v697, %v695
        %v864 = vpack.c.b16 %v700, %v698
        %v865 = vpack.c.b16 %v701, %v699
        %v866 = vpack.c.b16 %v704, %v702
        %v867 = vpack.c.b16 %v705, %v703
        %v868 = vpack.c.b16 %v708, %v706
        %v869 = vpack.c.b16 %v709, %v707
        %v870 = vpack.c.b16 %v712, %v710
        %v871 = vpack.c.b16 %v713, %v711
        %v872 = vpack.c.b16 %v716, %v714
        %v873 = vpack.c.b16 %v717, %v715
        %v874 = vpack.c.b16 %v720, %v718
        %v875 = vpack.c.b16 %v721, %v719
        %v876 = vpack.c.b16 %v724, %v722
        %v877 = vpack.c.b16 %v725, %v723
        %v878 = vpack.c.b16 %v728, %v726
        %v879 = vpack.c.b16 %v729, %v727
        %v880 = vpack.c.b16 %v732, %v730
        %v881 = vpack.c.b16 %v733, %v731
        %v882 = vpack.c.b16 %v736, %v734
        %v883 = vpack.c.b16 %v737, %v735
        %v884 = vpack.c.b16 %v740, %v738
        %v885 = vpack.c.b16 %v741, %v739
        %v886 = vpack.c.b16 %v744, %v742
        %v887 = vpack.c.b16 %v745, %v743
        %v888 = vpack.c.b16 %v748, %v746
        %v889 = vpack.c.b16 %v749, %v747
        %v890 = vpack.c.b16 %v752, %v750
        %v891 = vpack.c.b16 %v753, %v751
        %v892 = vpack.c.b16 %v756, %v754
        %v893 = vpack.c.b16 %v757, %v755
        %v894 = vpack.c.b16 %v760, %v758
        %v895 = vpack.c.b16 %v761, %v759
        %v896 = vpack.c.b16 %v764, %v762
        %v897 = vpack.c.b16 %v765, %v763
        %v898 = vpack.c.b16 %v768, %v766
        %v899 = vpack.c.b16 %v769, %v767
        %v900 = vpack.c.b16 %v772, %v770
        %v901 = vpack.c.b16 %v773, %v771
        %v902 = vpack.c.b16 %v776, %v774
        %v903 = vpack.c.b16 %v777, %v775
        %v904 = vpack.c.b16 %v778, %v778
        %v905 = vpack.c.b16 %v779, %v779
        %vm1030 = vcmask 850944
        %v1032 = vsel %vm1030, %v271, 0
        %v1035 = vsel %vm1030, %v279, 0
        %vm1037 = vcmask 1043456
        %v1039 = vsel %vm1037, %v904, 0
        %v1042 = vsel %vm1037, %v905, 0
        %1044 = vmatpush.bf16.msra.mxu0 %v794
        %1045 = vmatpush.bf16.msra.mxu0 %v792
        %1046 = vmatpush.bf16.msra.mxu0 %v790
        %1047 = vmatpush.bf16.msra.mxu0 %v788
        %1048 = vmatpush.bf16.msra.mxu0 %v786
        %1049 = vmatpush.bf16.msra.mxu0 %v784
        %1050 = vmatpush.bf16.msra.mxu0 %v782
        %1051 = vmatpush.bf16.msra.mxu0 %v780
        %1052 = vmatmul.bf16.gmra.mxu0 %v264
        %v1053 = vpop.f32.mrf.mxu0
        %v1054 = vadd.f32 0.0, %v1053
        %v1055 = vpop.f32.mrf.mxu0
        %v1056 = vadd.f32 0.0, %v1055
        %1057 = vmatmul.bf16.gmra.mxu0 %v272
        %v1058 = vpop.f32.mrf.mxu0
        %v1059 = vadd.f32 0.0, %v1058
        %v1060 = vpop.f32.mrf.mxu0
        %v1061 = vadd.f32 0.0, %v1060
        %1062 = vdwg.mxu0
        %1063 = vmatpush.bf16.msra.mxu0 %v810
        %1064 = vmatpush.bf16.msra.mxu0 %v808
        %1065 = vmatpush.bf16.msra.mxu0 %v806
        %1066 = vmatpush.bf16.msra.mxu0 %v804
        %1067 = vmatpush.bf16.msra.mxu0 %v802
        %1068 = vmatpush.bf16.msra.mxu0 %v800
        %1069 = vmatpush.bf16.msra.mxu0 %v798
        %1070 = vmatpush.bf16.msra.mxu0 %v796
        %1071 = vmatmul.bf16.gmra.mxu0 %v265
        %v1072 = vpop.f32.mrf.mxu0
        %v1073 = vadd.f32 %v1054, %v1072
        %v1074 = vpop.f32.mrf.mxu0
        %v1075 = vadd.f32 %v1056, %v1074
        %1076 = vmatmul.bf16.gmra.mxu0 %v273
        %v1077 = vpop.f32.mrf.mxu0
        %v1078 = vadd.f32 %v1059, %v1077
        %v1079 = vpop.f32.mrf.mxu0
        %v1080 = vadd.f32 %v1061, %v1079
        %1081 = vdwg.mxu0
        %1082 = vmatpush.bf16.msra.mxu0 %v826
        %1083 = vmatpush.bf16.msra.mxu0 %v824
        %1084 = vmatpush.bf16.msra.mxu0 %v822
        %1085 = vmatpush.bf16.msra.mxu0 %v820
        %1086 = vmatpush.bf16.msra.mxu0 %v818
        %1087 = vmatpush.bf16.msra.mxu0 %v816
        %1088 = vmatpush.bf16.msra.mxu0 %v814
        %1089 = vmatpush.bf16.msra.mxu0 %v812
        %1090 = vmatmul.bf16.gmra.mxu0 %v266
        %v1091 = vpop.f32.mrf.mxu0
        %v1092 = vadd.f32 %v1073, %v1091
        %v1093 = vpop.f32.mrf.mxu0
        %v1094 = vadd.f32 %v1075, %v1093
        %1095 = vmatmul.bf16.gmra.mxu0 %v274
        %v1096 = vpop.f32.mrf.mxu0
        %v1097 = vadd.f32 %v1078, %v1096
        %v1098 = vpop.f32.mrf.mxu0
        %v1099 = vadd.f32 %v1080, %v1098
        %1100 = vdwg.mxu0
        %1101 = vmatpush.bf16.msra.mxu0 %v842
        %1102 = vmatpush.bf16.msra.mxu0 %v840
        %1103 = vmatpush.bf16.msra.mxu0 %v838
        %1104 = vmatpush.bf16.msra.mxu0 %v836
        %1105 = vmatpush.bf16.msra.mxu0 %v834
        %1106 = vmatpush.bf16.msra.mxu0 %v832
        %1107 = vmatpush.bf16.msra.mxu0 %v830
        %1108 = vmatpush.bf16.msra.mxu0 %v828
        %1109 = vmatmul.bf16.gmra.mxu0 %v267
        %v1110 = vpop.f32.mrf.mxu0
        %v1111 = vadd.f32 %v1092, %v1110
        %v1112 = vpop.f32.mrf.mxu0
        %v1113 = vadd.f32 %v1094, %v1112
        %1114 = vmatmul.bf16.gmra.mxu0 %v275
        %v1115 = vpop.f32.mrf.mxu0
        %v1116 = vadd.f32 %v1097, %v1115
        %v1117 = vpop.f32.mrf.mxu0
        %v1118 = vadd.f32 %v1099, %v1117
        %1119 = vdwg.mxu0
        %1120 = vmatpush.bf16.msra.mxu0 %v858
        %1121 = vmatpush.bf16.msra.mxu0 %v856
        %1122 = vmatpush.bf16.msra.mxu0 %v854
        %1123 = vmatpush.bf16.msra.mxu0 %v852
        %1124 = vmatpush.bf16.msra.mxu0 %v850
        %1125 = vmatpush.bf16.msra.mxu0 %v848
        %1126 = vmatpush.bf16.msra.mxu0 %v846
        %1127 = vmatpush.bf16.msra.mxu0 %v844
        %1128 = vmatmul.bf16.gmra.mxu0 %v268
        %v1129 = vpop.f32.mrf.mxu0
        %v1130 = vadd.f32 %v1111, %v1129
        %v1131 = vpop.f32.mrf.mxu0
        %v1132 = vadd.f32 %v1113, %v1131
        %1133 = vmatmul.bf16.gmra.mxu0 %v276
        %v1134 = vpop.f32.mrf.mxu0
        %v1135 = vadd.f32 %v1116, %v1134
        %v1136 = vpop.f32.mrf.mxu0
        %v1137 = vadd.f32 %v1118, %v1136
        %1138 = vdwg.mxu0
        %1139 = vmatpush.bf16.msra.mxu0 %v874
        %1140 = vmatpush.bf16.msra.mxu0 %v872
        %1141 = vmatpush.bf16.msra.mxu0 %v870
        %1142 = vmatpush.bf16.msra.mxu0 %v868
        %1143 = vmatpush.bf16.msra.mxu0 %v866
        %1144 = vmatpush.bf16.msra.mxu0 %v864
        %1145 = vmatpush.bf16.msra.mxu0 %v862
        %1146 = vmatpush.bf16.msra.mxu0 %v860
        %1147 = vmatmul.bf16.gmra.mxu0 %v269
        %v1148 = vpop.f32.mrf.mxu0
        %v1149 = vadd.f32 %v1130, %v1148
        %v1150 = vpop.f32.mrf.mxu0
        %v1151 = vadd.f32 %v1132, %v1150
        %1152 = vmatmul.bf16.gmra.mxu0 %v277
        %v1153 = vpop.f32.mrf.mxu0
        %v1154 = vadd.f32 %v1135, %v1153
        %v1155 = vpop.f32.mrf.mxu0
        %v1156 = vadd.f32 %v1137, %v1155
        %1157 = vdwg.mxu0
        %1158 = vmatpush.bf16.msra.mxu0 %v890
        %1159 = vmatpush.bf16.msra.mxu0 %v888
        %1160 = vmatpush.bf16.msra.mxu0 %v886
        %1161 = vmatpush.bf16.msra.mxu0 %v884
        %1162 = vmatpush.bf16.msra.mxu0 %v882
        %1163 = vmatpush.bf16.msra.mxu0 %v880
        %1164 = vmatpush.bf16.msra.mxu0 %v878
        %1165 = vmatpush.bf16.msra.mxu0 %v876
        %1166 = vmatmul.bf16.gmra.mxu0 %v270
        %v1167 = vpop.f32.mrf.mxu0
        %v1168 = vadd.f32 %v1149, %v1167
        %v1169 = vpop.f32.mrf.mxu0
        %v1170 = vadd.f32 %v1151, %v1169
        %1171 = vmatmul.bf16.gmra.mxu0 %v278
        %v1172 = vpop.f32.mrf.mxu0
        %v1173 = vadd.f32 %v1154, %v1172
        %v1174 = vpop.f32.mrf.mxu0
        %v1175 = vadd.f32 %v1156, %v1174
        %1176 = vdwg.mxu0
        %1177 = vmatpush.bf16.msra.mxu0 0
        %1178 = vmatpush.bf16.msra.mxu0 %v1039
        %1179 = vmatpush.bf16.msra.mxu0 %v902
        %1180 = vmatpush.bf16.msra.mxu0 %v900
        %1181 = vmatpush.bf16.msra.mxu0 %v898
        %1182 = vmatpush.bf16.msra.mxu0 %v896
        %1183 = vmatpush.bf16.msra.mxu0 %v894
        %1184 = vmatpush.bf16.msra.mxu0 %v892
        %1185 = vmatmul.bf16.gmra.mxu0 %v1032
        %v1186 = vpop.f32.mrf.mxu0
        %v1187 = vadd.f32 %v1168, %v1186
        %v1188 = vpop.f32.mrf.mxu0
        %v1189 = vadd.f32 %v1170, %v1188
        %1190 = vmatmul.bf16.gmra.mxu0 %v1035
        %v1191 = vpop.f32.mrf.mxu0
        %v1192 = vadd.f32 %v1173, %v1191
        %v1193 = vpop.f32.mrf.mxu0
        %v1194 = vadd.f32 %v1175, %v1193
        %1195 = vdwg.mxu0
        %1196 = vmatpush.bf16.msra.mxu0 %v795
        %1197 = vmatpush.bf16.msra.mxu0 %v793
        %1198 = vmatpush.bf16.msra.mxu0 %v791
        %1199 = vmatpush.bf16.msra.mxu0 %v789
        %1200 = vmatpush.bf16.msra.mxu0 %v787
        %1201 = vmatpush.bf16.msra.mxu0 %v785
        %1202 = vmatpush.bf16.msra.mxu0 %v783
        %1203 = vmatpush.bf16.msra.mxu0 %v781
        %1204 = vmatmul.bf16.gmra.mxu0 %v264
        %v1205 = vpop.f32.mrf.mxu0
        %v1206 = vadd.f32 0.0, %v1205
        %v1207 = vpop.f32.mrf.mxu0
        %v1208 = vadd.f32 0.0, %v1207
        %1209 = vmatmul.bf16.gmra.mxu0 %v272
        %v1210 = vpop.f32.mrf.mxu0
        %v1211 = vadd.f32 0.0, %v1210
        %v1212 = vpop.f32.mrf.mxu0
        %v1213 = vadd.f32 0.0, %v1212
        %1214 = vdwg.mxu0
        %1215 = vmatpush.bf16.msra.mxu0 %v811
        %1216 = vmatpush.bf16.msra.mxu0 %v809
        %1217 = vmatpush.bf16.msra.mxu0 %v807
        %1218 = vmatpush.bf16.msra.mxu0 %v805
        %1219 = vmatpush.bf16.msra.mxu0 %v803
        %1220 = vmatpush.bf16.msra.mxu0 %v801
        %1221 = vmatpush.bf16.msra.mxu0 %v799
        %1222 = vmatpush.bf16.msra.mxu0 %v797
        %1223 = vmatmul.bf16.gmra.mxu0 %v265
        %v1224 = vpop.f32.mrf.mxu0
        %v1225 = vadd.f32 %v1206, %v1224
        %v1226 = vpop.f32.mrf.mxu0
        %v1227 = vadd.f32 %v1208, %v1226
        %1228 = vmatmul.bf16.gmra.mxu0 %v273
        %v1229 = vpop.f32.mrf.mxu0
        %v1230 = vadd.f32 %v1211, %v1229
        %v1231 = vpop.f32.mrf.mxu0
        %v1232 = vadd.f32 %v1213, %v1231
        %1233 = vdwg.mxu0
        %1234 = vmatpush.bf16.msra.mxu0 %v827
        %1235 = vmatpush.bf16.msra.mxu0 %v825
        %1236 = vmatpush.bf16.msra.mxu0 %v823
        %1237 = vmatpush.bf16.msra.mxu0 %v821
        %1238 = vmatpush.bf16.msra.mxu0 %v819
        %1239 = vmatpush.bf16.msra.mxu0 %v817
        %1240 = vmatpush.bf16.msra.mxu0 %v815
        %1241 = vmatpush.bf16.msra.mxu0 %v813
        %1242 = vmatmul.bf16.gmra.mxu0 %v266
        %v1243 = vpop.f32.mrf.mxu0
        %v1244 = vadd.f32 %v1225, %v1243
        %v1245 = vpop.f32.mrf.mxu0
        %v1246 = vadd.f32 %v1227, %v1245
        %1247 = vmatmul.bf16.gmra.mxu0 %v274
        %v1248 = vpop.f32.mrf.mxu0
        %v1249 = vadd.f32 %v1230, %v1248
        %v1250 = vpop.f32.mrf.mxu0
        %v1251 = vadd.f32 %v1232, %v1250
        %1252 = vdwg.mxu0
        %1253 = vmatpush.bf16.msra.mxu0 %v843
        %1254 = vmatpush.bf16.msra.mxu0 %v841
        %1255 = vmatpush.bf16.msra.mxu0 %v839
        %1256 = vmatpush.bf16.msra.mxu0 %v837
        %1257 = vmatpush.bf16.msra.mxu0 %v835
        %1258 = vmatpush.bf16.msra.mxu0 %v833
        %1259 = vmatpush.bf16.msra.mxu0 %v831
        %1260 = vmatpush.bf16.msra.mxu0 %v829
        %1261 = vmatmul.bf16.gmra.mxu0 %v267
        %v1262 = vpop.f32.mrf.mxu0
        %v1263 = vadd.f32 %v1244, %v1262
        %v1264 = vpop.f32.mrf.mxu0
        %v1265 = vadd.f32 %v1246, %v1264
        %1266 = vmatmul.bf16.gmra.mxu0 %v275
        %v1267 = vpop.f32.mrf.mxu0
        %v1268 = vadd.f32 %v1249, %v1267
        %v1269 = vpop.f32.mrf.mxu0
        %v1270 = vadd.f32 %v1251, %v1269
        %1271 = vdwg.mxu0
        %1272 = vmatpush.bf16.msra.mxu0 %v859
        %1273 = vmatpush.bf16.msra.mxu0 %v857
        %1274 = vmatpush.bf16.msra.mxu0 %v855
        %1275 = vmatpush.bf16.msra.mxu0 %v853
        %1276 = vmatpush.bf16.msra.mxu0 %v851
        %1277 = vmatpush.bf16.msra.mxu0 %v849
        %1278 = vmatpush.bf16.msra.mxu0 %v847
        %1279 = vmatpush.bf16.msra.mxu0 %v845
        %1280 = vmatmul.bf16.gmra.mxu0 %v268
        %v1281 = vpop.f32.mrf.mxu0
        %v1282 = vadd.f32 %v1263, %v1281
        %v1283 = vpop.f32.mrf.mxu0
        %v1284 = vadd.f32 %v1265, %v1283
        %1285 = vmatmul.bf16.gmra.mxu0 %v276
        %v1286 = vpop.f32.mrf.mxu0
        %v1287 = vadd.f32 %v1268, %v1286
        %v1288 = vpop.f32.mrf.mxu0
        %v1289 = vadd.f32 %v1270, %v1288
        %1290 = vdwg.mxu0
        %1291 = vmatpush.bf16.msra.mxu0 %v875
        %1292 = vmatpush.bf16.msra.mxu0 %v873
        %1293 = vmatpush.bf16.msra.mxu0 %v871
        %1294 = vmatpush.bf16.msra.mxu0 %v869
        %1295 = vmatpush.bf16.msra.mxu0 %v867
        %1296 = vmatpush.bf16.msra.mxu0 %v865
        %1297 = vmatpush.bf16.msra.mxu0 %v863
        %1298 = vmatpush.bf16.msra.mxu0 %v861
        %1299 = vmatmul.bf16.gmra.mxu0 %v269
        %v1300 = vpop.f32.mrf.mxu0
        %v1301 = vadd.f32 %v1282, %v1300
        %v1302 = vpop.f32.mrf.mxu0
        %v1303 = vadd.f32 %v1284, %v1302
        %1304 = vmatmul.bf16.gmra.mxu0 %v277
        %v1305 = vpop.f32.mrf.mxu0
        %v1306 = vadd.f32 %v1287, %v1305
        %v1307 = vpop.f32.mrf.mxu0
        %v1308 = vadd.f32 %v1289, %v1307
        %1309 = vdwg.mxu0
        %1310 = vmatpush.bf16.msra.mxu0 %v891
        %1311 = vmatpush.bf16.msra.mxu0 %v889
        %1312 = vmatpush.bf16.msra.mxu0 %v887
        %1313 = vmatpush.bf16.msra.mxu0 %v885
        %1314 = vmatpush.bf16.msra.mxu0 %v883
        %1315 = vmatpush.bf16.msra.mxu0 %v881
        %1316 = vmatpush.bf16.msra.mxu0 %v879
        %1317 = vmatpush.bf16.msra.mxu0 %v877
        %1318 = vmatmul.bf16.gmra.mxu0 %v270
        %v1319 = vpop.f32.mrf.mxu0
        %v1320 = vadd.f32 %v1301, %v1319
        %v1321 = vpop.f32.mrf.mxu0
        %v1322 = vadd.f32 %v1303, %v1321
        %1323 = vmatmul.bf16.gmra.mxu0 %v278
        %v1324 = vpop.f32.mrf.mxu0
        %v1325 = vadd.f32 %v1306, %v1324
        %v1326 = vpop.f32.mrf.mxu0
        %v1327 = vadd.f32 %v1308, %v1326
        %1328 = vdwg.mxu0
        %1329 = vmatpush.bf16.msra.mxu0 0
        %1330 = vmatpush.bf16.msra.mxu0 %v1042
        %1331 = vmatpush.bf16.msra.mxu0 %v903
        %1332 = vmatpush.bf16.msra.mxu0 %v901
        %1333 = vmatpush.bf16.msra.mxu0 %v899
        %1334 = vmatpush.bf16.msra.mxu0 %v897
        %1335 = vmatpush.bf16.msra.mxu0 %v895
        %1336 = vmatpush.bf16.msra.mxu0 %v893
        %1337 = vmatmul.bf16.gmra.mxu0 %v1032
        %v1338 = vpop.f32.mrf.mxu0
        %v1339 = vadd.f32 %v1320, %v1338
        %v1340 = vpop.f32.mrf.mxu0
        %v1341 = vadd.f32 %v1322, %v1340
        %1342 = vmatmul.bf16.gmra.mxu0 %v1035
        %v1343 = vpop.f32.mrf.mxu0
        %v1344 = vadd.f32 %v1325, %v1343
        %v1345 = vpop.f32.mrf.mxu0
        %v1346 = vadd.f32 %v1327, %v1345
        %1347 = vdwg.mxu0
        %v1348 = vpack.c.bf16 %v1189, %v1187
        %v1349 = vpack.c.bf16 %v1194, %v1192
        %v1350 = vld [vmem:[%s2] sm:$0xf]
        %v1351 = vld [vmem:[%s2 + $0x4] sm:$0xf]
        %v1352 = vld [vmem:[%s2 + $0x8] sm:$0xf]
        %v1353 = vld [vmem:[%s2 + $0xc] sm:$0xf]
        %v1354 = vld [vmem:[%s2 + $0x10] sm:$0xf]
        %v1355 = vld [vmem:[%s2 + $0x14] sm:$0xf]
        %v1356 = vld [vmem:[%s2 + $0x18] sm:$0xf]
        %v1357 = vld [vmem:[%s2 + $0x1c] sm:$0xf]
        %v1358 = vld [vmem:[%s2 + $0x20] sm:$0xf]
        %v1359 = vld [vmem:[%s2 + $0x24] sm:$0xf]
        %v1360 = vld [vmem:[%s2 + $0x28] sm:$0xf]
        %v1361 = vld [vmem:[%s2 + $0x2c] sm:$0xf]
        %v1362 = vld [vmem:[%s2 + $0x30] sm:$0xf]
        %v1363 = vld [vmem:[%s2 + $0x34] sm:$0xf]
        %v1364 = vld [vmem:[%s2 + $0x38] sm:$0xf]
        %v1365 = vld [vmem:[%s2 + $0x3c] sm:$0xf]
        %s1366 = scalar_lea.vmem %s2, 64
        %v1367 = vld [vmem:[%s1366] sm:$0xf]
        %v1368 = vld [vmem:[%s1366 + $0x4] sm:$0xf]
        %v1369 = vld [vmem:[%s1366 + $0x8] sm:$0xf]
        %v1370 = vld [vmem:[%s1366 + $0xc] sm:$0xf]
        %v1371 = vld [vmem:[%s1366 + $0x10] sm:$0xf]
        %v1372 = vld [vmem:[%s1366 + $0x14] sm:$0xf]
        %v1373 = vld [vmem:[%s1366 + $0x18] sm:$0xf]
        %v1374 = vld [vmem:[%s1366 + $0x1c] sm:$0xf]
        %v1375 = vld [vmem:[%s1366 + $0x20] sm:$0xf]
        %v1376 = vld [vmem:[%s1366 + $0x24] sm:$0xf]
        %v1377 = vld [vmem:[%s1366 + $0x28] sm:$0xf]
        %v1378 = vld [vmem:[%s1366 + $0x2c] sm:$0xf]
        %v1379 = vld [vmem:[%s1366 + $0x30] sm:$0xf]
        %v1380 = vld [vmem:[%s1366 + $0x34] sm:$0xf]
        %v1381 = vld [vmem:[%s1366 + $0x38] sm:$0xf]
        %v1382 = vld [vmem:[%s1366 + $0x3c] sm:$0xf]
        %v1399 = vunpack.c.l.b16 %v1367
        %v1400 = vunpack.c.l.b16 %v1368
        %v1401 = vunpack.c.l.b16 %v1369
        %v1402 = vunpack.c.l.b16 %v1370
        %v1403 = vunpack.c.l.b16 %v1371
        %v1404 = vunpack.c.l.b16 %v1372
        %v1405 = vunpack.c.l.b16 %v1373
        %v1406 = vunpack.c.l.b16 %v1374
        %v1407 = vunpack.c.l.b16 %v1375
        %v1408 = vunpack.c.l.b16 %v1376
        %v1409 = vunpack.c.l.b16 %v1377
        %v1410 = vunpack.c.l.b16 %v1378
        %v1411 = vunpack.c.l.b16 %v1379
        %v1412 = vunpack.c.l.b16 %v1380
        %v1413 = vunpack.c.l.b16 %v1381
        %v1414 = vunpack.c.l.b16 %v1382
        %v1415 = vpack.c.b16 %v1400, %v1399
        %v1416 = vpack.c.b16 %v1402, %v1401
        %v1417 = vpack.c.b16 %v1404, %v1403
        %v1418 = vpack.c.b16 %v1406, %v1405
        %v1419 = vpack.c.b16 %v1408, %v1407
        %v1420 = vpack.c.b16 %v1410, %v1409
        %v1421 = vpack.c.b16 %v1412, %v1411
        %v1422 = vpack.c.b16 %v1414, %v1413
        %1425 = vrot.lane.b32.xlu0 %v1348, 96
        %v1426 = vpop.permute.xlu0 %1425
        %1427 = vrot.lane.b32.xlu0 %v1349, 96
        %v1428 = vpop.permute.xlu0 %1427
        %vm1431 = vcmask 261120
        %v1433 = vsel %vm1431, %v1415, 0
        %v1436 = vsel %vm1431, %v1416, 0
        %v1439 = vsel %vm1431, %v1417, 0
        %v1442 = vsel %vm1431, %v1418, 0
        %v1445 = vsel %vm1431, %v1419, 0
        %v1448 = vsel %vm1431, %v1420, 0
        %v1451 = vsel %vm1431, %v1421, 0
        %v1454 = vsel %vm1431, %v1422, 0
        %1456 = vmatpush.bf16.msra.mxu0 0
        %1457 = vmatpush.bf16.msra.mxu0 0
        %1458 = vmatpush.bf16.msra.mxu0 0
        %1459 = vmatpush.bf16.msra.mxu0 0
        %1460 = vmatpush.bf16.msra.mxu0 0
        %1461 = vmatpush.bf16.msra.mxu0 0
        %1462 = vmatpush.bf16.msra.mxu0 %v1428
        %1463 = vmatpush.bf16.msra.mxu0 %v1426
        %1464 = vmatmul.bf16.gmra.mxu0 %v1433
        %v1465 = vpop.f32.mrf.mxu0
        %v1466 = vadd.f32 0.0, %v1465
        %v1467 = vpop.f32.mrf.mxu0
        %v1468 = vadd.f32 0.0, %v1467
        %1469 = vmatmul.bf16.gmra.mxu0 %v1436
        %v1470 = vpop.f32.mrf.mxu0
        %v1471 = vadd.f32 0.0, %v1470
        %v1472 = vpop.f32.mrf.mxu0
        %v1473 = vadd.f32 0.0, %v1472
        %1474 = vmatmul.bf16.gmra.mxu0 %v1439
        %v1475 = vpop.f32.mrf.mxu0
        %v1476 = vadd.f32 0.0, %v1475
        %v1477 = vpop.f32.mrf.mxu0
        %v1478 = vadd.f32 0.0, %v1477
        %1479 = vmatmul.bf16.gmra.mxu0 %v1442
        %v1480 = vpop.f32.mrf.mxu0
        %v1481 = vadd.f32 0.0, %v1480
        %v1482 = vpop.f32.mrf.mxu0
        %v1483 = vadd.f32 0.0, %v1482
        %1484 = vmatmul.bf16.gmra.mxu0 %v1445
        %v1485 = vpop.f32.mrf.mxu0
        %v1486 = vadd.f32 0.0, %v1485
        %v1487 = vpop.f32.mrf.mxu0
        %v1488 = vadd.f32 0.0, %v1487
        %1489 = vmatmul.bf16.gmra.mxu0 %v1448
        %v1490 = vpop.f32.mrf.mxu0
        %v1491 = vadd.f32 0.0, %v1490
        %v1492 = vpop.f32.mrf.mxu0
        %v1493 = vadd.f32 0.0, %v1492
        %1494 = vmatmul.bf16.gmra.mxu0 %v1451
        %v1495 = vpop.f32.mrf.mxu0
        %v1496 = vadd.f32 0.0, %v1495
        %v1497 = vpop.f32.mrf.mxu0
        %v1498 = vadd.f32 0.0, %v1497
        %1499 = vmatmul.bf16.gmra.mxu0 %v1454
        %v1500 = vpop.f32.mrf.mxu0
        %v1501 = vadd.f32 0.0, %v1500
        %v1502 = vpop.f32.mrf.mxu0
        %v1503 = vadd.f32 0.0, %v1502
        %1504 = vdwg.mxu0
        %v1521 = vunpack.c.l.b16 %v1350
        %v1522 = vunpack.c.l.b16 %v1351
        %v1523 = vunpack.c.l.b16 %v1352
        %v1524 = vunpack.c.l.b16 %v1353
        %v1525 = vunpack.c.l.b16 %v1354
        %v1526 = vunpack.c.l.b16 %v1355
        %v1527 = vunpack.c.l.b16 %v1356
        %v1528 = vunpack.c.l.b16 %v1357
        %v1529 = vunpack.c.l.b16 %v1358
        %v1530 = vunpack.c.l.b16 %v1359
        %v1531 = vunpack.c.l.b16 %v1360
        %v1532 = vunpack.c.l.b16 %v1361
        %v1533 = vunpack.c.l.b16 %v1362
        %v1534 = vunpack.c.l.b16 %v1363
        %v1535 = vunpack.c.l.b16 %v1364
        %v1536 = vunpack.c.l.b16 %v1365
        %v1537 = vpack.c.b16 %v1522, %v1521
        %v1538 = vpack.c.b16 %v1524, %v1523
        %v1539 = vpack.c.b16 %v1526, %v1525
        %v1540 = vpack.c.b16 %v1528, %v1527
        %v1541 = vpack.c.b16 %v1530, %v1529
        %v1542 = vpack.c.b16 %v1532, %v1531
        %v1543 = vpack.c.b16 %v1534, %v1533
        %v1544 = vpack.c.b16 %v1536, %v1535
        %v1546 = vsel %vm1431, %v1537, 0
        %v1549 = vsel %vm1431, %v1538, 0
        %v1552 = vsel %vm1431, %v1539, 0
        %v1555 = vsel %vm1431, %v1540, 0
        %v1558 = vsel %vm1431, %v1541, 0
        %v1561 = vsel %vm1431, %v1542, 0
        %v1564 = vsel %vm1431, %v1543, 0
        %v1567 = vsel %vm1431, %v1544, 0
        %1569 = vmatpush.bf16.msra.mxu0 0
        %1570 = vmatpush.bf16.msra.mxu0 0
        %1571 = vmatpush.bf16.msra.mxu0 0
        %1572 = vmatpush.bf16.msra.mxu0 0
        %1573 = vmatpush.bf16.msra.mxu0 0
        %1574 = vmatpush.bf16.msra.mxu0 0
        %1575 = vmatpush.bf16.msra.mxu0 %v1349
        %1576 = vmatpush.bf16.msra.mxu0 %v1348
        %1577 = vmatmul.bf16.gmra.mxu0 %v1546
        %v1578 = vpop.f32.mrf.mxu0
        %v1579 = vadd.f32 %v1466, %v1578
        %v1580 = vpop.f32.mrf.mxu0
        %v1581 = vadd.f32 %v1468, %v1580
        %1582 = vmatmul.bf16.gmra.mxu0 %v1549
        %v1583 = vpop.f32.mrf.mxu0
        %v1584 = vadd.f32 %v1471, %v1583
        %v1585 = vpop.f32.mrf.mxu0
        %v1586 = vadd.f32 %v1473, %v1585
        %1587 = vmatmul.bf16.gmra.mxu0 %v1552
        %v1588 = vpop.f32.mrf.mxu0
        %v1589 = vadd.f32 %v1476, %v1588
        %v1590 = vpop.f32.mrf.mxu0
        %v1591 = vadd.f32 %v1478, %v1590
        %1592 = vmatmul.bf16.gmra.mxu0 %v1555
        %v1593 = vpop.f32.mrf.mxu0
        %v1594 = vadd.f32 %v1481, %v1593
        %v1595 = vpop.f32.mrf.mxu0
        %v1596 = vadd.f32 %v1483, %v1595
        %1597 = vmatmul.bf16.gmra.mxu0 %v1558
        %v1598 = vpop.f32.mrf.mxu0
        %v1599 = vadd.f32 %v1486, %v1598
        %v1600 = vpop.f32.mrf.mxu0
        %v1601 = vadd.f32 %v1488, %v1600
        %1602 = vmatmul.bf16.gmra.mxu0 %v1561
        %v1603 = vpop.f32.mrf.mxu0
        %v1604 = vadd.f32 %v1491, %v1603
        %v1605 = vpop.f32.mrf.mxu0
        %v1606 = vadd.f32 %v1493, %v1605
        %1607 = vmatmul.bf16.gmra.mxu0 %v1564
        %v1608 = vpop.f32.mrf.mxu0
        %v1609 = vadd.f32 %v1496, %v1608
        %v1610 = vpop.f32.mrf.mxu0
        %v1611 = vadd.f32 %v1498, %v1610
        %1612 = vmatmul.bf16.gmra.mxu0 %v1567
        %v1613 = vpop.f32.mrf.mxu0
        %v1614 = vadd.f32 %v1501, %v1613
        %v1615 = vpop.f32.mrf.mxu0
        %v1616 = vadd.f32 %v1503, %v1615
        %1617 = vdwg.mxu0
        %s1618 = scalar_lea.vmem %s2, 128
        %v1619 = vld [vmem:[%s1618] sm:$0xf]
        %v1620 = vld [vmem:[%s1618 + $0x4] sm:$0xf]
        %v1621 = vld [vmem:[%s1618 + $0x8] sm:$0xf]
        %v1622 = vld [vmem:[%s1618 + $0xc] sm:$0xf]
        %v1623 = vld [vmem:[%s1618 + $0x10] sm:$0xf]
        %v1624 = vld [vmem:[%s1618 + $0x14] sm:$0xf]
        %v1625 = vld [vmem:[%s1618 + $0x18] sm:$0xf]
        %v1626 = vld [vmem:[%s1618 + $0x1c] sm:$0xf]
        %v1627 = vld [vmem:[%s1618 + $0x20] sm:$0xf]
        %v1628 = vld [vmem:[%s1618 + $0x24] sm:$0xf]
        %v1629 = vld [vmem:[%s1618 + $0x28] sm:$0xf]
        %v1630 = vld [vmem:[%s1618 + $0x2c] sm:$0xf]
        %v1631 = vld [vmem:[%s1618 + $0x30] sm:$0xf]
        %v1632 = vld [vmem:[%s1618 + $0x34] sm:$0xf]
        %v1633 = vld [vmem:[%s1618 + $0x38] sm:$0xf]
        %v1634 = vld [vmem:[%s1618 + $0x3c] sm:$0xf]
        %v1651 = vunpack.c.l.b16 %v1619
        %v1652 = vunpack.c.l.b16 %v1620
        %v1653 = vunpack.c.l.b16 %v1621
        %v1654 = vunpack.c.l.b16 %v1622
        %v1655 = vunpack.c.l.b16 %v1623
        %v1656 = vunpack.c.l.b16 %v1624
        %v1657 = vunpack.c.l.b16 %v1625
        %v1658 = vunpack.c.l.b16 %v1626
        %v1659 = vunpack.c.l.b16 %v1627
        %v1660 = vunpack.c.l.b16 %v1628
        %v1661 = vunpack.c.l.b16 %v1629
        %v1662 = vunpack.c.l.b16 %v1630
        %v1663 = vunpack.c.l.b16 %v1631
        %v1664 = vunpack.c.l.b16 %v1632
        %v1665 = vunpack.c.l.b16 %v1633
        %v1666 = vunpack.c.l.b16 %v1634
        %v1667 = vpack.c.b16 %v1652, %v1651
        %v1668 = vpack.c.b16 %v1654, %v1653
        %v1669 = vpack.c.b16 %v1656, %v1655
        %v1670 = vpack.c.b16 %v1658, %v1657
        %v1671 = vpack.c.b16 %v1660, %v1659
        %v1672 = vpack.c.b16 %v1662, %v1661
        %v1673 = vpack.c.b16 %v1664, %v1663
        %v1674 = vpack.c.b16 %v1666, %v1665
        %1675 = vrot.lane.b32.xlu0 %v1348, 64
        %v1676 = vpop.permute.xlu0 %1675
        %1677 = vrot.lane.b32.xlu0 %v1349, 64
        %v1678 = vpop.permute.xlu0 %1677
        %v1682 = vsel %vm1431, %v1667, 0
        %v1685 = vsel %vm1431, %v1668, 0
        %v1688 = vsel %vm1431, %v1669, 0
        %v1691 = vsel %vm1431, %v1670, 0
        %v1694 = vsel %vm1431, %v1671, 0
        %v1697 = vsel %vm1431, %v1672, 0
        %v1700 = vsel %vm1431, %v1673, 0
        %v1703 = vsel %vm1431, %v1674, 0
        %1705 = vmatpush.bf16.msra.mxu0 0
        %1706 = vmatpush.bf16.msra.mxu0 0
        %1707 = vmatpush.bf16.msra.mxu0 0
        %1708 = vmatpush.bf16.msra.mxu0 0
        %1709 = vmatpush.bf16.msra.mxu0 0
        %1710 = vmatpush.bf16.msra.mxu0 0
        %1711 = vmatpush.bf16.msra.mxu0 %v1678
        %1712 = vmatpush.bf16.msra.mxu0 %v1676
        %1713 = vmatmul.bf16.gmra.mxu0 %v1682
        %v1714 = vpop.f32.mrf.mxu0
        %v1715 = vadd.f32 0.0, %v1714
        %v1716 = vpop.f32.mrf.mxu0
        %v1717 = vadd.f32 0.0, %v1716
        %1718 = vmatmul.bf16.gmra.mxu0 %v1685
        %v1719 = vpop.f32.mrf.mxu0
        %v1720 = vadd.f32 0.0, %v1719
        %v1721 = vpop.f32.mrf.mxu0
        %v1722 = vadd.f32 0.0, %v1721
        %1723 = vmatmul.bf16.gmra.mxu0 %v1688
        %v1724 = vpop.f32.mrf.mxu0
        %v1725 = vadd.f32 0.0, %v1724
        %v1726 = vpop.f32.mrf.mxu0
        %v1727 = vadd.f32 0.0, %v1726
        %1728 = vmatmul.bf16.gmra.mxu0 %v1691
        %v1729 = vpop.f32.mrf.mxu0
        %v1730 = vadd.f32 0.0, %v1729
        %v1731 = vpop.f32.mrf.mxu0
        %v1732 = vadd.f32 0.0, %v1731
        %1733 = vmatmul.bf16.gmra.mxu0 %v1694
        %v1734 = vpop.f32.mrf.mxu0
        %v1735 = vadd.f32 0.0, %v1734
        %v1736 = vpop.f32.mrf.mxu0
        %v1737 = vadd.f32 0.0, %v1736
        %1738 = vmatmul.bf16.gmra.mxu0 %v1697
        %v1739 = vpop.f32.mrf.mxu0
        %v1740 = vadd.f32 0.0, %v1739
        %v1741 = vpop.f32.mrf.mxu0
        %v1742 = vadd.f32 0.0, %v1741
        %1743 = vmatmul.bf16.gmra.mxu0 %v1700
        %v1744 = vpop.f32.mrf.mxu0
        %v1745 = vadd.f32 0.0, %v1744
        %v1746 = vpop.f32.mrf.mxu0
        %v1747 = vadd.f32 0.0, %v1746
        %1748 = vmatmul.bf16.gmra.mxu0 %v1703
        %v1749 = vpop.f32.mrf.mxu0
        %v1750 = vadd.f32 0.0, %v1749
        %v1751 = vpop.f32.mrf.mxu0
        %v1752 = vadd.f32 0.0, %v1751
        %1753 = vdwg.mxu0
        %v1754 = vadd.f32 %v1579, %v1715
        %v1755 = vadd.f32 %v1581, %v1717
        %v1756 = vadd.f32 %v1584, %v1720
        %v1757 = vadd.f32 %v1586, %v1722
        %v1758 = vadd.f32 %v1589, %v1725
        %v1759 = vadd.f32 %v1591, %v1727
        %v1760 = vadd.f32 %v1594, %v1730
        %v1761 = vadd.f32 %v1596, %v1732
        %v1762 = vadd.f32 %v1599, %v1735
        %v1763 = vadd.f32 %v1601, %v1737
        %v1764 = vadd.f32 %v1604, %v1740
        %v1765 = vadd.f32 %v1606, %v1742
        %v1766 = vadd.f32 %v1609, %v1745
        %v1767 = vadd.f32 %v1611, %v1747
        %v1768 = vadd.f32 %v1614, %v1750
        %v1769 = vadd.f32 %v1616, %v1752
        %s1770 = scalar_lea.vmem %s2, 192
        %v1771 = vld [vmem:[%s1770] sm:$0xf]
        %v1772 = vld [vmem:[%s1770 + $0x4] sm:$0xf]
        %v1773 = vld [vmem:[%s1770 + $0x8] sm:$0xf]
        %v1774 = vld [vmem:[%s1770 + $0xc] sm:$0xf]
        %v1775 = vld [vmem:[%s1770 + $0x10] sm:$0xf]
        %v1776 = vld [vmem:[%s1770 + $0x14] sm:$0xf]
        %v1777 = vld [vmem:[%s1770 + $0x18] sm:$0xf]
        %v1778 = vld [vmem:[%s1770 + $0x1c] sm:$0xf]
        %v1779 = vld [vmem:[%s1770 + $0x20] sm:$0xf]
        %v1780 = vld [vmem:[%s1770 + $0x24] sm:$0xf]
        %v1781 = vld [vmem:[%s1770 + $0x28] sm:$0xf]
        %v1782 = vld [vmem:[%s1770 + $0x2c] sm:$0xf]
        %v1783 = vld [vmem:[%s1770 + $0x30] sm:$0xf]
        %v1784 = vld [vmem:[%s1770 + $0x34] sm:$0xf]
        %v1785 = vld [vmem:[%s1770 + $0x38] sm:$0xf]
        %v1786 = vld [vmem:[%s1770 + $0x3c] sm:$0xf]
        %v1803 = vunpack.c.l.b16 %v1771
        %v1804 = vunpack.c.l.b16 %v1772
        %v1805 = vunpack.c.l.b16 %v1773
        %v1806 = vunpack.c.l.b16 %v1774
        %v1807 = vunpack.c.l.b16 %v1775
        %v1808 = vunpack.c.l.b16 %v1776
        %v1809 = vunpack.c.l.b16 %v1777
        %v1810 = vunpack.c.l.b16 %v1778
        %v1811 = vunpack.c.l.b16 %v1779
        %v1812 = vunpack.c.l.b16 %v1780
        %v1813 = vunpack.c.l.b16 %v1781
        %v1814 = vunpack.c.l.b16 %v1782
        %v1815 = vunpack.c.l.b16 %v1783
        %v1816 = vunpack.c.l.b16 %v1784
        %v1817 = vunpack.c.l.b16 %v1785
        %v1818 = vunpack.c.l.b16 %v1786
        %v1819 = vpack.c.b16 %v1804, %v1803
        %v1820 = vpack.c.b16 %v1806, %v1805
        %v1821 = vpack.c.b16 %v1808, %v1807
        %v1822 = vpack.c.b16 %v1810, %v1809
        %v1823 = vpack.c.b16 %v1812, %v1811
        %v1824 = vpack.c.b16 %v1814, %v1813
        %v1825 = vpack.c.b16 %v1816, %v1815
        %v1826 = vpack.c.b16 %v1818, %v1817
        %1827 = vrot.lane.b32.xlu0 %v1348, 32
        %v1828 = vpop.permute.xlu0 %1827
        %1829 = vrot.lane.b32.xlu0 %v1349, 32
        %v1830 = vpop.permute.xlu0 %1829
        %v1834 = vsel %vm1431, %v1819, 0
        %v1837 = vsel %vm1431, %v1820, 0
        %v1840 = vsel %vm1431, %v1821, 0
        %v1843 = vsel %vm1431, %v1822, 0
        %v1846 = vsel %vm1431, %v1823, 0
        %v1849 = vsel %vm1431, %v1824, 0
        %v1852 = vsel %vm1431, %v1825, 0
        %v1855 = vsel %vm1431, %v1826, 0
        %1857 = vmatpush.bf16.msra.mxu0 0
        %1858 = vmatpush.bf16.msra.mxu0 0
        %1859 = vmatpush.bf16.msra.mxu0 0
        %1860 = vmatpush.bf16.msra.mxu0 0
        %1861 = vmatpush.bf16.msra.mxu0 0
        %1862 = vmatpush.bf16.msra.mxu0 0
        %1863 = vmatpush.bf16.msra.mxu0 %v1830
        %1864 = vmatpush.bf16.msra.mxu0 %v1828
        %1865 = vmatmul.bf16.gmra.mxu0 %v1834
        %v1866 = vpop.f32.mrf.mxu0
        %v1867 = vadd.f32 0.0, %v1866
        %v1868 = vpop.f32.mrf.mxu0
        %v1869 = vadd.f32 0.0, %v1868
        %1870 = vmatmul.bf16.gmra.mxu0 %v1837
        %v1871 = vpop.f32.mrf.mxu0
        %v1872 = vadd.f32 0.0, %v1871
        %v1873 = vpop.f32.mrf.mxu0
        %v1874 = vadd.f32 0.0, %v1873
        %1875 = vmatmul.bf16.gmra.mxu0 %v1840
        %v1876 = vpop.f32.mrf.mxu0
        %v1877 = vadd.f32 0.0, %v1876
        %v1878 = vpop.f32.mrf.mxu0
        %v1879 = vadd.f32 0.0, %v1878
        %1880 = vmatmul.bf16.gmra.mxu0 %v1843
        %v1881 = vpop.f32.mrf.mxu0
        %v1882 = vadd.f32 0.0, %v1881
        %v1883 = vpop.f32.mrf.mxu0
        %v1884 = vadd.f32 0.0, %v1883
        %1885 = vmatmul.bf16.gmra.mxu0 %v1846
        %v1886 = vpop.f32.mrf.mxu0
        %v1887 = vadd.f32 0.0, %v1886
        %v1888 = vpop.f32.mrf.mxu0
        %v1889 = vadd.f32 0.0, %v1888
        %1890 = vmatmul.bf16.gmra.mxu0 %v1849
        %v1891 = vpop.f32.mrf.mxu0
        %v1892 = vadd.f32 0.0, %v1891
        %v1893 = vpop.f32.mrf.mxu0
        %v1894 = vadd.f32 0.0, %v1893
        %1895 = vmatmul.bf16.gmra.mxu0 %v1852
        %v1896 = vpop.f32.mrf.mxu0
        %v1897 = vadd.f32 0.0, %v1896
        %v1898 = vpop.f32.mrf.mxu0
        %v1899 = vadd.f32 0.0, %v1898
        %1900 = vmatmul.bf16.gmra.mxu0 %v1855
        %v1901 = vpop.f32.mrf.mxu0
        %v1902 = vadd.f32 0.0, %v1901
        %v1903 = vpop.f32.mrf.mxu0
        %v1904 = vadd.f32 0.0, %v1903
        %1905 = vdwg.mxu0
        %v1906 = vadd.f32 %v1754, %v1867
        %v1907 = vadd.f32 %v1755, %v1869
        %v1908 = vadd.f32 %v1756, %v1872
        %v1909 = vadd.f32 %v1757, %v1874
        %v1910 = vadd.f32 %v1758, %v1877
        %v1911 = vadd.f32 %v1759, %v1879
        %v1912 = vadd.f32 %v1760, %v1882
        %v1913 = vadd.f32 %v1761, %v1884
        %v1914 = vadd.f32 %v1762, %v1887
        %v1915 = vadd.f32 %v1763, %v1889
        %v1916 = vadd.f32 %v1764, %v1892
        %v1917 = vadd.f32 %v1765, %v1894
        %v1918 = vadd.f32 %v1766, %v1897
        %v1919 = vadd.f32 %v1767, %v1899
        %v1920 = vadd.f32 %v1768, %v1902
        %v1921 = vadd.f32 %v1769, %v1904
        %v1922 = vpack.c.bf16 %v1341, %v1339
        %v1923 = vpack.c.bf16 %v1346, %v1344
        %s1924 = scalar_lea.vmem %s2, 256
        %v1925 = vld [vmem:[%s1924] sm:$0xf]
        %v1926 = vld [vmem:[%s1924 + $0x4] sm:$0xf]
        %v1927 = vld [vmem:[%s1924 + $0x8] sm:$0xf]
        %v1928 = vld [vmem:[%s1924 + $0xc] sm:$0xf]
        %v1929 = vld [vmem:[%s1924 + $0x10] sm:$0xf]
        %v1930 = vld [vmem:[%s1924 + $0x14] sm:$0xf]
        %v1931 = vld [vmem:[%s1924 + $0x18] sm:$0xf]
        %v1932 = vld [vmem:[%s1924 + $0x1c] sm:$0xf]
        %v1933 = vld [vmem:[%s1924 + $0x20] sm:$0xf]
        %v1934 = vld [vmem:[%s1924 + $0x24] sm:$0xf]
        %v1935 = vld [vmem:[%s1924 + $0x28] sm:$0xf]
        %v1936 = vld [vmem:[%s1924 + $0x2c] sm:$0xf]
        %v1937 = vld [vmem:[%s1924 + $0x30] sm:$0xf]
        %v1938 = vld [vmem:[%s1924 + $0x34] sm:$0xf]
        %v1939 = vld [vmem:[%s1924 + $0x38] sm:$0xf]
        %v1940 = vld [vmem:[%s1924 + $0x3c] sm:$0xf]
        %v1957 = vunpack.c.l.b16 %v1925
        %v1958 = vunpack.c.l.b16 %v1926
        %v1959 = vunpack.c.l.b16 %v1927
        %v1960 = vunpack.c.l.b16 %v1928
        %v1961 = vunpack.c.l.b16 %v1929
        %v1962 = vunpack.c.l.b16 %v1930
        %v1963 = vunpack.c.l.b16 %v1931
        %v1964 = vunpack.c.l.b16 %v1932
        %v1965 = vunpack.c.l.b16 %v1933
        %v1966 = vunpack.c.l.b16 %v1934
        %v1967 = vunpack.c.l.b16 %v1935
        %v1968 = vunpack.c.l.b16 %v1936
        %v1969 = vunpack.c.l.b16 %v1937
        %v1970 = vunpack.c.l.b16 %v1938
        %v1971 = vunpack.c.l.b16 %v1939
        %v1972 = vunpack.c.l.b16 %v1940
        %v1973 = vpack.c.b16 %v1958, %v1957
        %v1974 = vpack.c.b16 %v1960, %v1959
        %v1975 = vpack.c.b16 %v1962, %v1961
        %v1976 = vpack.c.b16 %v1964, %v1963
        %v1977 = vpack.c.b16 %v1966, %v1965
        %v1978 = vpack.c.b16 %v1968, %v1967
        %v1979 = vpack.c.b16 %v1970, %v1969
        %v1980 = vpack.c.b16 %v1972, %v1971
        %v1982 = vsel %vm1431, %v1973, 0
        %v1985 = vsel %vm1431, %v1974, 0
        %v1988 = vsel %vm1431, %v1975, 0
        %v1991 = vsel %vm1431, %v1976, 0
        %v1994 = vsel %vm1431, %v1977, 0
        %v1997 = vsel %vm1431, %v1978, 0
        %v2000 = vsel %vm1431, %v1979, 0
        %v2003 = vsel %vm1431, %v1980, 0
        %2005 = vmatpush.bf16.msra.mxu0 0
        %2006 = vmatpush.bf16.msra.mxu0 0
        %2007 = vmatpush.bf16.msra.mxu0 0
        %2008 = vmatpush.bf16.msra.mxu0 0
        %2009 = vmatpush.bf16.msra.mxu0 0
        %2010 = vmatpush.bf16.msra.mxu0 0
        %2011 = vmatpush.bf16.msra.mxu0 %v1923
        %2012 = vmatpush.bf16.msra.mxu0 %v1922
        %2013 = vmatmul.bf16.gmra.mxu0 %v1982
        %v2014 = vpop.f32.mrf.mxu0
        %v2015 = vadd.f32 0.0, %v2014
        %v2016 = vpop.f32.mrf.mxu0
        %v2017 = vadd.f32 0.0, %v2016
        %2018 = vmatmul.bf16.gmra.mxu0 %v1985
        %v2019 = vpop.f32.mrf.mxu0
        %v2020 = vadd.f32 0.0, %v2019
        %v2021 = vpop.f32.mrf.mxu0
        %v2022 = vadd.f32 0.0, %v2021
        %2023 = vmatmul.bf16.gmra.mxu0 %v1988
        %v2024 = vpop.f32.mrf.mxu0
        %v2025 = vadd.f32 0.0, %v2024
        %v2026 = vpop.f32.mrf.mxu0
        %v2027 = vadd.f32 0.0, %v2026
        %2028 = vmatmul.bf16.gmra.mxu0 %v1991
        %v2029 = vpop.f32.mrf.mxu0
        %v2030 = vadd.f32 0.0, %v2029
        %v2031 = vpop.f32.mrf.mxu0
        %v2032 = vadd.f32 0.0, %v2031
        %2033 = vmatmul.bf16.gmra.mxu0 %v1994
        %v2034 = vpop.f32.mrf.mxu0
        %v2035 = vadd.f32 0.0, %v2034
        %v2036 = vpop.f32.mrf.mxu0
        %v2037 = vadd.f32 0.0, %v2036
        %2038 = vmatmul.bf16.gmra.mxu0 %v1997
        %v2039 = vpop.f32.mrf.mxu0
        %v2040 = vadd.f32 0.0, %v2039
        %v2041 = vpop.f32.mrf.mxu0
        %v2042 = vadd.f32 0.0, %v2041
        %2043 = vmatmul.bf16.gmra.mxu0 %v2000
        %v2044 = vpop.f32.mrf.mxu0
        %v2045 = vadd.f32 0.0, %v2044
        %v2046 = vpop.f32.mrf.mxu0
        %v2047 = vadd.f32 0.0, %v2046
        %2048 = vmatmul.bf16.gmra.mxu0 %v2003
        %v2049 = vpop.f32.mrf.mxu0
        %v2050 = vadd.f32 0.0, %v2049
        %v2051 = vpop.f32.mrf.mxu0
        %v2052 = vadd.f32 0.0, %v2051
        %2053 = vdwg.mxu0
        %v2054 = vadd.f32 %v1906, %v2015
        %v2055 = vadd.f32 %v1907, %v2017
        %v2056 = vadd.f32 %v1908, %v2020
        %v2057 = vadd.f32 %v1909, %v2022
        %v2058 = vadd.f32 %v1910, %v2025
        %v2059 = vadd.f32 %v1911, %v2027
        %v2060 = vadd.f32 %v1912, %v2030
        %v2061 = vadd.f32 %v1913, %v2032
        %v2062 = vadd.f32 %v1914, %v2035
        %v2063 = vadd.f32 %v1915, %v2037
        %v2064 = vadd.f32 %v1916, %v2040
        %v2065 = vadd.f32 %v1917, %v2042
        %v2066 = vadd.f32 %v1918, %v2045
        %v2067 = vadd.f32 %v1919, %v2047
        %v2068 = vadd.f32 %v1920, %v2050
        %v2069 = vadd.f32 %v1921, %v2052
        %s2070 = scalar_lea.vmem %s2, 320
        %v2071 = vld [vmem:[%s2070] sm:$0xf]
        %v2072 = vld [vmem:[%s2070 + $0x4] sm:$0xf]
        %v2073 = vld [vmem:[%s2070 + $0x8] sm:$0xf]
        %v2074 = vld [vmem:[%s2070 + $0xc] sm:$0xf]
        %v2075 = vld [vmem:[%s2070 + $0x10] sm:$0xf]
        %v2076 = vld [vmem:[%s2070 + $0x14] sm:$0xf]
        %v2077 = vld [vmem:[%s2070 + $0x18] sm:$0xf]
        %v2078 = vld [vmem:[%s2070 + $0x1c] sm:$0xf]
        %v2079 = vld [vmem:[%s2070 + $0x20] sm:$0xf]
        %v2080 = vld [vmem:[%s2070 + $0x24] sm:$0xf]
        %v2081 = vld [vmem:[%s2070 + $0x28] sm:$0xf]
        %v2082 = vld [vmem:[%s2070 + $0x2c] sm:$0xf]
        %v2083 = vld [vmem:[%s2070 + $0x30] sm:$0xf]
        %v2084 = vld [vmem:[%s2070 + $0x34] sm:$0xf]
        %v2085 = vld [vmem:[%s2070 + $0x38] sm:$0xf]
        %v2086 = vld [vmem:[%s2070 + $0x3c] sm:$0xf]
        %v2103 = vunpack.c.l.b16 %v2071
        %v2104 = vunpack.c.l.b16 %v2072
        %v2105 = vunpack.c.l.b16 %v2073
        %v2106 = vunpack.c.l.b16 %v2074
        %v2107 = vunpack.c.l.b16 %v2075
        %v2108 = vunpack.c.l.b16 %v2076
        %v2109 = vunpack.c.l.b16 %v2077
        %v2110 = vunpack.c.l.b16 %v2078
        %v2111 = vunpack.c.l.b16 %v2079
        %v2112 = vunpack.c.l.b16 %v2080
        %v2113 = vunpack.c.l.b16 %v2081
        %v2114 = vunpack.c.l.b16 %v2082
        %v2115 = vunpack.c.l.b16 %v2083
        %v2116 = vunpack.c.l.b16 %v2084
        %v2117 = vunpack.c.l.b16 %v2085
        %v2118 = vunpack.c.l.b16 %v2086
        %v2119 = vpack.c.b16 %v2104, %v2103
        %v2120 = vpack.c.b16 %v2106, %v2105
        %v2121 = vpack.c.b16 %v2108, %v2107
        %v2122 = vpack.c.b16 %v2110, %v2109
        %v2123 = vpack.c.b16 %v2112, %v2111
        %v2124 = vpack.c.b16 %v2114, %v2113
        %v2125 = vpack.c.b16 %v2116, %v2115
        %v2126 = vpack.c.b16 %v2118, %v2117
        %2129 = vrot.lane.b32.xlu0 %v1922, 96
        %v2130 = vpop.permute.xlu0 %2129
        %2131 = vrot.lane.b32.xlu0 %v1923, 96
        %v2132 = vpop.permute.xlu0 %2131
        %v2136 = vsel %vm1431, %v2119, 0
        %v2139 = vsel %vm1431, %v2120, 0
        %v2142 = vsel %vm1431, %v2121, 0
        %v2145 = vsel %vm1431, %v2122, 0
        %v2148 = vsel %vm1431, %v2123, 0
        %v2151 = vsel %vm1431, %v2124, 0
        %v2154 = vsel %vm1431, %v2125, 0
        %v2157 = vsel %vm1431, %v2126, 0
        %2159 = vmatpush.bf16.msra.mxu0 0
        %2160 = vmatpush.bf16.msra.mxu0 0
        %2161 = vmatpush.bf16.msra.mxu0 0
        %2162 = vmatpush.bf16.msra.mxu0 0
        %2163 = vmatpush.bf16.msra.mxu0 0
        %2164 = vmatpush.bf16.msra.mxu0 0
        %2165 = vmatpush.bf16.msra.mxu0 %v2132
        %2166 = vmatpush.bf16.msra.mxu0 %v2130
        %2167 = vmatmul.bf16.gmra.mxu0 %v2136
        %v2168 = vpop.f32.mrf.mxu0
        %v2169 = vadd.f32 0.0, %v2168
        %v2170 = vpop.f32.mrf.mxu0
        %v2171 = vadd.f32 0.0, %v2170
        %2172 = vmatmul.bf16.gmra.mxu0 %v2139
        %v2173 = vpop.f32.mrf.mxu0
        %v2174 = vadd.f32 0.0, %v2173
        %v2175 = vpop.f32.mrf.mxu0
        %v2176 = vadd.f32 0.0, %v2175
        %2177 = vmatmul.bf16.gmra.mxu0 %v2142
        %v2178 = vpop.f32.mrf.mxu0
        %v2179 = vadd.f32 0.0, %v2178
        %v2180 = vpop.f32.mrf.mxu0
        %v2181 = vadd.f32 0.0, %v2180
        %2182 = vmatmul.bf16.gmra.mxu0 %v2145
        %v2183 = vpop.f32.mrf.mxu0
        %v2184 = vadd.f32 0.0, %v2183
        %v2185 = vpop.f32.mrf.mxu0
        %v2186 = vadd.f32 0.0, %v2185
        %2187 = vmatmul.bf16.gmra.mxu0 %v2148
        %v2188 = vpop.f32.mrf.mxu0
        %v2189 = vadd.f32 0.0, %v2188
        %v2190 = vpop.f32.mrf.mxu0
        %v2191 = vadd.f32 0.0, %v2190
        %2192 = vmatmul.bf16.gmra.mxu0 %v2151
        %v2193 = vpop.f32.mrf.mxu0
        %v2194 = vadd.f32 0.0, %v2193
        %v2195 = vpop.f32.mrf.mxu0
        %v2196 = vadd.f32 0.0, %v2195
        %2197 = vmatmul.bf16.gmra.mxu0 %v2154
        %v2198 = vpop.f32.mrf.mxu0
        %v2199 = vadd.f32 0.0, %v2198
        %v2200 = vpop.f32.mrf.mxu0
        %v2201 = vadd.f32 0.0, %v2200
        %2202 = vmatmul.bf16.gmra.mxu0 %v2157
        %v2203 = vpop.f32.mrf.mxu0
        %v2204 = vadd.f32 0.0, %v2203
        %v2205 = vpop.f32.mrf.mxu0
        %v2206 = vadd.f32 0.0, %v2205
        %2207 = vdwg.mxu0
        %v2208 = vadd.f32 %v2054, %v2169
        %v2209 = vadd.f32 %v2055, %v2171
        %v2210 = vadd.f32 %v2056, %v2174
        %v2211 = vadd.f32 %v2057, %v2176
        %v2212 = vadd.f32 %v2058, %v2179
        %v2213 = vadd.f32 %v2059, %v2181
        %v2214 = vadd.f32 %v2060, %v2184
        %v2215 = vadd.f32 %v2061, %v2186
        %v2216 = vadd.f32 %v2062, %v2189
        %v2217 = vadd.f32 %v2063, %v2191
        %v2218 = vadd.f32 %v2064, %v2194
        %v2219 = vadd.f32 %v2065, %v2196
        %v2220 = vadd.f32 %v2066, %v2199
        %v2221 = vadd.f32 %v2067, %v2201
        %v2222 = vadd.f32 %v2068, %v2204
        %v2223 = vadd.f32 %v2069, %v2206
        %s2224 = scalar_lea.vmem %s2, 384
        %v2225 = vld [vmem:[%s2224] sm:$0xf]
        %v2226 = vld [vmem:[%s2224 + $0x4] sm:$0xf]
        %v2227 = vld [vmem:[%s2224 + $0x8] sm:$0xf]
        %v2228 = vld [vmem:[%s2224 + $0xc] sm:$0xf]
        %v2229 = vld [vmem:[%s2224 + $0x10] sm:$0xf]
        %v2230 = vld [vmem:[%s2224 + $0x14] sm:$0xf]
        %v2231 = vld [vmem:[%s2224 + $0x18] sm:$0xf]
        %v2232 = vld [vmem:[%s2224 + $0x1c] sm:$0xf]
        %v2233 = vld [vmem:[%s2224 + $0x20] sm:$0xf]
        %v2234 = vld [vmem:[%s2224 + $0x24] sm:$0xf]
        %v2235 = vld [vmem:[%s2224 + $0x28] sm:$0xf]
        %v2236 = vld [vmem:[%s2224 + $0x2c] sm:$0xf]
        %v2237 = vld [vmem:[%s2224 + $0x30] sm:$0xf]
        %v2238 = vld [vmem:[%s2224 + $0x34] sm:$0xf]
        %v2239 = vld [vmem:[%s2224 + $0x38] sm:$0xf]
        %v2240 = vld [vmem:[%s2224 + $0x3c] sm:$0xf]
        %v2257 = vunpack.c.l.b16 %v2225
        %v2258 = vunpack.c.l.b16 %v2226
        %v2259 = vunpack.c.l.b16 %v2227
        %v2260 = vunpack.c.l.b16 %v2228
        %v2261 = vunpack.c.l.b16 %v2229
        %v2262 = vunpack.c.l.b16 %v2230
        %v2263 = vunpack.c.l.b16 %v2231
        %v2264 = vunpack.c.l.b16 %v2232
        %v2265 = vunpack.c.l.b16 %v2233
        %v2266 = vunpack.c.l.b16 %v2234
        %v2267 = vunpack.c.l.b16 %v2235
        %v2268 = vunpack.c.l.b16 %v2236
        %v2269 = vunpack.c.l.b16 %v2237
        %v2270 = vunpack.c.l.b16 %v2238
        %v2271 = vunpack.c.l.b16 %v2239
        %v2272 = vunpack.c.l.b16 %v2240
        %v2273 = vpack.c.b16 %v2258, %v2257
        %v2274 = vpack.c.b16 %v2260, %v2259
        %v2275 = vpack.c.b16 %v2262, %v2261
        %v2276 = vpack.c.b16 %v2264, %v2263
        %v2277 = vpack.c.b16 %v2266, %v2265
        %v2278 = vpack.c.b16 %v2268, %v2267
        %v2279 = vpack.c.b16 %v2270, %v2269
        %v2280 = vpack.c.b16 %v2272, %v2271
        %2281 = vrot.lane.b32.xlu0 %v1922, 64
        %v2282 = vpop.permute.xlu0 %2281
        %2283 = vrot.lane.b32.xlu0 %v1923, 64
        %v2284 = vpop.permute.xlu0 %2283
        %v2288 = vsel %vm1431, %v2273, 0
        %v2291 = vsel %vm1431, %v2274, 0
        %v2294 = vsel %vm1431, %v2275, 0
        %v2297 = vsel %vm1431, %v2276, 0
        %v2300 = vsel %vm1431, %v2277, 0
        %v2303 = vsel %vm1431, %v2278, 0
        %v2306 = vsel %vm1431, %v2279, 0
        %v2309 = vsel %vm1431, %v2280, 0
        %2311 = vmatpush.bf16.msra.mxu0 0
        %2312 = vmatpush.bf16.msra.mxu0 0
        %2313 = vmatpush.bf16.msra.mxu0 0
        %2314 = vmatpush.bf16.msra.mxu0 0
        %2315 = vmatpush.bf16.msra.mxu0 0
        %2316 = vmatpush.bf16.msra.mxu0 0
        %2317 = vmatpush.bf16.msra.mxu0 %v2284
        %2318 = vmatpush.bf16.msra.mxu0 %v2282
        %2319 = vmatmul.bf16.gmra.mxu0 %v2288
        %v2320 = vpop.f32.mrf.mxu0
        %v2321 = vadd.f32 0.0, %v2320
        %v2322 = vpop.f32.mrf.mxu0
        %v2323 = vadd.f32 0.0, %v2322
        %2324 = vmatmul.bf16.gmra.mxu0 %v2291
        %v2325 = vpop.f32.mrf.mxu0
        %v2326 = vadd.f32 0.0, %v2325
        %v2327 = vpop.f32.mrf.mxu0
        %v2328 = vadd.f32 0.0, %v2327
        %2329 = vmatmul.bf16.gmra.mxu0 %v2294
        %v2330 = vpop.f32.mrf.mxu0
        %v2331 = vadd.f32 0.0, %v2330
        %v2332 = vpop.f32.mrf.mxu0
        %v2333 = vadd.f32 0.0, %v2332
        %2334 = vmatmul.bf16.gmra.mxu0 %v2297
        %v2335 = vpop.f32.mrf.mxu0
        %v2336 = vadd.f32 0.0, %v2335
        %v2337 = vpop.f32.mrf.mxu0
        %v2338 = vadd.f32 0.0, %v2337
        %2339 = vmatmul.bf16.gmra.mxu0 %v2300
        %v2340 = vpop.f32.mrf.mxu0
        %v2341 = vadd.f32 0.0, %v2340
        %v2342 = vpop.f32.mrf.mxu0
        %v2343 = vadd.f32 0.0, %v2342
        %2344 = vmatmul.bf16.gmra.mxu0 %v2303
        %v2345 = vpop.f32.mrf.mxu0
        %v2346 = vadd.f32 0.0, %v2345
        %v2347 = vpop.f32.mrf.mxu0
        %v2348 = vadd.f32 0.0, %v2347
        %2349 = vmatmul.bf16.gmra.mxu0 %v2306
        %v2350 = vpop.f32.mrf.mxu0
        %v2351 = vadd.f32 0.0, %v2350
        %v2352 = vpop.f32.mrf.mxu0
        %v2353 = vadd.f32 0.0, %v2352
        %2354 = vmatmul.bf16.gmra.mxu0 %v2309
        %v2355 = vpop.f32.mrf.mxu0
        %v2356 = vadd.f32 0.0, %v2355
        %v2357 = vpop.f32.mrf.mxu0
        %v2358 = vadd.f32 0.0, %v2357
        %2359 = vdwg.mxu0
        %v2360 = vadd.f32 %v2208, %v2321
        %v2361 = vadd.f32 %v2209, %v2323
        %v2362 = vadd.f32 %v2210, %v2326
        %v2363 = vadd.f32 %v2211, %v2328
        %v2364 = vadd.f32 %v2212, %v2331
        %v2365 = vadd.f32 %v2213, %v2333
        %v2366 = vadd.f32 %v2214, %v2336
        %v2367 = vadd.f32 %v2215, %v2338
        %v2368 = vadd.f32 %v2216, %v2341
        %v2369 = vadd.f32 %v2217, %v2343
        %v2370 = vadd.f32 %v2218, %v2346
        %v2371 = vadd.f32 %v2219, %v2348
        %v2372 = vadd.f32 %v2220, %v2351
        %v2373 = vadd.f32 %v2221, %v2353
        %v2374 = vadd.f32 %v2222, %v2356
        %v2375 = vadd.f32 %v2223, %v2358
        %s2376 = scalar_lea.vmem %s2, 448
        %v2377 = vld [vmem:[%s2376] sm:$0xf]
        %v2378 = vld [vmem:[%s2376 + $0x4] sm:$0xf]
        %v2379 = vld [vmem:[%s2376 + $0x8] sm:$0xf]
        %v2380 = vld [vmem:[%s2376 + $0xc] sm:$0xf]
        %v2381 = vld [vmem:[%s2376 + $0x10] sm:$0xf]
        %v2382 = vld [vmem:[%s2376 + $0x14] sm:$0xf]
        %v2383 = vld [vmem:[%s2376 + $0x18] sm:$0xf]
        %v2384 = vld [vmem:[%s2376 + $0x1c] sm:$0xf]
        %v2385 = vld [vmem:[%s2376 + $0x20] sm:$0xf]
        %v2386 = vld [vmem:[%s2376 + $0x24] sm:$0xf]
        %v2387 = vld [vmem:[%s2376 + $0x28] sm:$0xf]
        %v2388 = vld [vmem:[%s2376 + $0x2c] sm:$0xf]
        %v2389 = vld [vmem:[%s2376 + $0x30] sm:$0xf]
        %v2390 = vld [vmem:[%s2376 + $0x34] sm:$0xf]
        %v2391 = vld [vmem:[%s2376 + $0x38] sm:$0xf]
        %v2392 = vld [vmem:[%s2376 + $0x3c] sm:$0xf]
        %v2409 = vunpack.c.l.b16 %v2377
        %v2410 = vunpack.c.l.b16 %v2378
        %v2411 = vunpack.c.l.b16 %v2379
        %v2412 = vunpack.c.l.b16 %v2380
        %v2413 = vunpack.c.l.b16 %v2381
        %v2414 = vunpack.c.l.b16 %v2382
        %v2415 = vunpack.c.l.b16 %v2383
        %v2416 = vunpack.c.l.b16 %v2384
        %v2417 = vunpack.c.l.b16 %v2385
        %v2418 = vunpack.c.l.b16 %v2386
        %v2419 = vunpack.c.l.b16 %v2387
        %v2420 = vunpack.c.l.b16 %v2388
        %v2421 = vunpack.c.l.b16 %v2389
        %v2422 = vunpack.c.l.b16 %v2390
        %v2423 = vunpack.c.l.b16 %v2391
        %v2424 = vunpack.c.l.b16 %v2392
        %v2425 = vpack.c.b16 %v2410, %v2409
        %v2426 = vpack.c.b16 %v2412, %v2411
        %v2427 = vpack.c.b16 %v2414, %v2413
        %v2428 = vpack.c.b16 %v2416, %v2415
        %v2429 = vpack.c.b16 %v2418, %v2417
        %v2430 = vpack.c.b16 %v2420, %v2419
        %v2431 = vpack.c.b16 %v2422, %v2421
        %v2432 = vpack.c.b16 %v2424, %v2423
        %2433 = vrot.lane.b32.xlu0 %v1922, 32
        %v2434 = vpop.permute.xlu0 %2433
        %2435 = vrot.lane.b32.xlu0 %v1923, 32
        %v2436 = vpop.permute.xlu0 %2435
        %v2440 = vsel %vm1431, %v2425, 0
        %v2443 = vsel %vm1431, %v2426, 0
        %v2446 = vsel %vm1431, %v2427, 0
        %v2449 = vsel %vm1431, %v2428, 0
        %v2452 = vsel %vm1431, %v2429, 0
        %v2455 = vsel %vm1431, %v2430, 0
        %v2458 = vsel %vm1431, %v2431, 0
        %v2461 = vsel %vm1431, %v2432, 0
        %2463 = vmatpush.bf16.msra.mxu0 0
        %2464 = vmatpush.bf16.msra.mxu0 0
        %2465 = vmatpush.bf16.msra.mxu0 0
        %2466 = vmatpush.bf16.msra.mxu0 0
        %2467 = vmatpush.bf16.msra.mxu0 0
        %2468 = vmatpush.bf16.msra.mxu0 0
        %2469 = vmatpush.bf16.msra.mxu0 %v2436
        %2470 = vmatpush.bf16.msra.mxu0 %v2434
        %2471 = vmatmul.bf16.gmra.mxu0 %v2440
        %v2472 = vpop.f32.mrf.mxu0
        %v2473 = vadd.f32 0.0, %v2472
        %v2474 = vpop.f32.mrf.mxu0
        %v2475 = vadd.f32 0.0, %v2474
        %2476 = vmatmul.bf16.gmra.mxu0 %v2443
        %v2477 = vpop.f32.mrf.mxu0
        %v2478 = vadd.f32 0.0, %v2477
        %v2479 = vpop.f32.mrf.mxu0
        %v2480 = vadd.f32 0.0, %v2479
        %2481 = vmatmul.bf16.gmra.mxu0 %v2446
        %v2482 = vpop.f32.mrf.mxu0
        %v2483 = vadd.f32 0.0, %v2482
        %v2484 = vpop.f32.mrf.mxu0
        %v2485 = vadd.f32 0.0, %v2484
        %2486 = vmatmul.bf16.gmra.mxu0 %v2449
        %v2487 = vpop.f32.mrf.mxu0
        %v2488 = vadd.f32 0.0, %v2487
        %v2489 = vpop.f32.mrf.mxu0
        %v2490 = vadd.f32 0.0, %v2489
        %2491 = vmatmul.bf16.gmra.mxu0 %v2452
        %v2492 = vpop.f32.mrf.mxu0
        %v2493 = vadd.f32 0.0, %v2492
        %v2494 = vpop.f32.mrf.mxu0
        %v2495 = vadd.f32 0.0, %v2494
        %2496 = vmatmul.bf16.gmra.mxu0 %v2455
        %v2497 = vpop.f32.mrf.mxu0
        %v2498 = vadd.f32 0.0, %v2497
        %v2499 = vpop.f32.mrf.mxu0
        %v2500 = vadd.f32 0.0, %v2499
        %2501 = vmatmul.bf16.gmra.mxu0 %v2458
        %v2502 = vpop.f32.mrf.mxu0
        %v2503 = vadd.f32 0.0, %v2502
        %v2504 = vpop.f32.mrf.mxu0
        %v2505 = vadd.f32 0.0, %v2504
        %2506 = vmatmul.bf16.gmra.mxu0 %v2461
        %v2507 = vpop.f32.mrf.mxu0
        %v2508 = vadd.f32 0.0, %v2507
        %v2509 = vpop.f32.mrf.mxu0
        %v2510 = vadd.f32 0.0, %v2509
        %2511 = vdwg.mxu0
        %v2512 = vadd.f32 %v2360, %v2473
        %v2513 = vadd.f32 %v2361, %v2475
        %v2514 = vadd.f32 %v2362, %v2478
        %v2515 = vadd.f32 %v2363, %v2480
        %v2516 = vadd.f32 %v2364, %v2483
        %v2517 = vadd.f32 %v2365, %v2485
        %v2518 = vadd.f32 %v2366, %v2488
        %v2519 = vadd.f32 %v2367, %v2490
        %v2520 = vadd.f32 %v2368, %v2493
        %v2521 = vadd.f32 %v2369, %v2495
        %v2522 = vadd.f32 %v2370, %v2498
        %v2523 = vadd.f32 %v2371, %v2500
        %v2524 = vadd.f32 %v2372, %v2503
        %v2525 = vadd.f32 %v2373, %v2505
        %v2526 = vadd.f32 %v2374, %v2508
        %v2527 = vadd.f32 %v2375, %v2510
        %v2528 = vpack.c.bf16 %v2512, %v2512
        %v2529 = vpack.c.bf16 %v2513, %v2513
        %v2530 = vpack.c.bf16 %v2514, %v2514
        %v2531 = vpack.c.bf16 %v2515, %v2515
        %v2532 = vpack.c.bf16 %v2516, %v2516
        %v2533 = vpack.c.bf16 %v2517, %v2517
        %v2534 = vpack.c.bf16 %v2518, %v2518
        %v2535 = vpack.c.bf16 %v2519, %v2519
        %v2536 = vpack.c.bf16 %v2520, %v2520
        %v2537 = vpack.c.bf16 %v2521, %v2521
        %v2538 = vpack.c.bf16 %v2522, %v2522
        %v2539 = vpack.c.bf16 %v2523, %v2523
        %v2540 = vpack.c.bf16 %v2524, %v2524
        %v2541 = vpack.c.bf16 %v2525, %v2525
        %v2542 = vpack.c.bf16 %v2526, %v2526
        %v2543 = vpack.c.bf16 %v2527, %v2527
        %vm2544 = vcmask 257024
        %2545 = vst.msk [vmem:[%s184] sm:$0xf] %vm2544, %v2528
        %2546 = vst.msk [vmem:[%s184 + $0x4] sm:$0xf] %vm2544, %v2529
        %2547 = vst.msk [vmem:[%s184 + $0x8] sm:$0xf] %vm2544, %v2530
        %2548 = vst.msk [vmem:[%s184 + $0xc] sm:$0xf] %vm2544, %v2531
        %2549 = vst.msk [vmem:[%s184 + $0x10] sm:$0xf] %vm2544, %v2532
        %2550 = vst.msk [vmem:[%s184 + $0x14] sm:$0xf] %vm2544, %v2533
        %2551 = vst.msk [vmem:[%s184 + $0x18] sm:$0xf] %vm2544, %v2534
        %2552 = vst.msk [vmem:[%s184 + $0x1c] sm:$0xf] %vm2544, %v2535
        %2553 = vst.msk [vmem:[%s184 + $0x20] sm:$0xf] %vm2544, %v2536
        %2554 = vst.msk [vmem:[%s184 + $0x24] sm:$0xf] %vm2544, %v2537
        %2555 = vst.msk [vmem:[%s184 + $0x28] sm:$0xf] %vm2544, %v2538
        %2556 = vst.msk [vmem:[%s184 + $0x2c] sm:$0xf] %vm2544, %v2539
        %2557 = vst.msk [vmem:[%s184 + $0x30] sm:$0xf] %vm2544, %v2540
        %2558 = vst.msk [vmem:[%s184 + $0x34] sm:$0xf] %vm2544, %v2541
        %2559 = vst.msk [vmem:[%s184 + $0x38] sm:$0xf] %vm2544, %v2542
        %2560 = vst.msk [vmem:[%s184 + $0x3c] sm:$0xf] %vm2544, %v2543
        %p2561 = scmp.lt.s32.totalorder %s15, 1
        %s2562 = scalar_select %p2561, %s15, 1
        %s2563 = smul.addr %s2562, 16
        %s2564 = smul.addr %s2563, 4
        %s2565 = scalar_lea.vmem %s3, %s2564
        // Predicated region
        $region37: #{gin_convnet_forward.4} parent=31 // pred_check
          %p2566 = pneg %p101
        $region38: #{gin_convnet_forward.4} parent=31 // pred_check_branch
          %2568 = sbr.rel (%p2566) target = $region40
        $region39: #{gin_convnet_forward.4} parent=31 // pred_region
          _
        $region40: #{gin_convnet_forward.4} parent=31 // pred_fallthru
          _
      $region32: #{gin_convnet_forward.4} parent=5 // pred_fallthru
        _
      %p2569 = scmp.le.s32.totalorder 2, %s10
      // Predicated region
      $region41: #{gin_convnet_forward.4} parent=5 // pred_check
        %p2570 = pneg %p2569
      $region42: #{gin_convnet_forward.4} parent=5 // pred_check_branch
        %2572 = sbr.rel (%p2570) target = $region44
      $region43: #{gin_convnet_forward.4} parent=5 // pred_region
        %s2573 = ssub.s32 %s10, 2
        // Predicated region
        $region45: #{gin_convnet_forward.4} parent=43 // pred_check
          %p2574 = pneg %p107
        $region46: #{gin_convnet_forward.4} parent=43 // pred_check_branch
          %2576 = sbr.rel (%p2574) target = $region48
        $region47: #{gin_convnet_forward.4} parent=43 // pred_region
          %p2577 = scmp.lt.s32.totalorder %s16, 1
          %s2578 = scalar_select %p2577, %s16, 1
          %s2579 = smul.addr %s2578, 16
          %s2580 = smul.addr %s2579, 4
          %s2581 = scalar_lea.vmem %s3, %s2580
        $region48: #{gin_convnet_forward.4} parent=43 // pred_fallthru
          _
      $region44: #{gin_convnet_forward.4} parent=5 // pred_fallthru
        _
    $region6: #{gin_convnet_forward.4} parent=1 // loop_footer
      %s14 = sadd.s32 1, %s10
    $region7: #{gin_convnet_forward.4} parent=1 // loop_footer_branch
      %9 = sbr.rel target = $region3
    $region8: #{gin_convnet_forward.4} parent=1 // loop_exit
      _
    %2582 = vsyncpa [#allocation3], 1
    %s2583 = scalar_lea.sflag [#allocation3], 1
    %2584 = vsyncpa %s2583, 1

// kernel: gin_convnet_forward.5
$region0: #{gin_convnet_forward.5}
  #allocation0 [shape = 'u32[]', space=smem, size = 0x4, offset = 0x4, fixed_abs, tag = 'smem constant byte address 0x4 - core index']
  #allocation1 [shape = 'u32[72,128]{1,0:T(1,128)}', space=vmem, size = 0x9000, scoped, tag = 'internal scratch']
  #allocation2 [shape = 'f32[1,1]{1,0:T(1,128)S(1)}', space=vmem, size = 0x200, scoped, tag = 'scoped memory for gin_convnet_forward.5']
  %s0 = inlined_call_operand.vmem [shape: bf16[8,128], index: 0, kind: input, shape index: {}]
  %s1 = inlined_call_operand.vmem [shape: bf16[8,4096], index: 1, kind: input, shape index: {}]
  %s2 = inlined_call_operand.hbm [shape: bf16[4096,128], index: 2, kind: input, shape index: {}]
  %s3 = inlined_call_operand.vmem [shape: f32[1,128], index: 3, kind: input, shape index: {}]
  %s4 = inlined_call_operand.vmem [shape: bf16[128,1024], index: 4, kind: input, shape index: {}]
  %s5 = inlined_call_operand.hbm [shape: bf16[128,1024], index: 5, kind: input, shape index: {}]
  %s6 = inlined_call_operand.vmem [shape: f32[1,1024], index: 6, kind: input, shape index: {}]
  %s7 = inlined_call_operand.hbm [shape: bf16[1024,256], index: 7, kind: input, shape index: {}]
  %s8 = inlined_call_operand.vmem [shape: f32[1,256], index: 8, kind: input, shape index: {}]
  %s9 = inlined_call_operand.vmem [shape: bf16[1,256], index: 9, kind: input, shape index: {}]
  %s10 = inlined_call_operand.<no memory space> [shape: f32[1,1], index: 10, kind: input, shape index: {}]
  %s11 = inlined_call_operand.vmem [shape: f32[8,1], index: 11, kind: output, shape index: {}]
  %s12 = sld [smem:[#allocation0]]
  $region66: #{gin_convnet_forward.5} parent=0
    _
  %s14 = ssub.s32 1, %s12
  %s15 = scalar_select 0, %s14, %s12
  %v16 = vstv %s10
  %17 = vst [vmem:[#allocation2] sm:$0x1] %v16
  $region1: #{gin_convnet_forward.5} parent=0
    #allocation3 [shape = 'u8[1048576]{0}', space=vmem, size = 0x100000, scoped, tag = 'input window, operand 2, single buffered']
    #allocation4 [shape = 's32[1]{0}', space=sflag, size = 0x4, scoped, tag = 'scoped memory for gin_convnet_forward.5']
    #allocation5 [shape = 'u8[262144]{0}', space=vmem, size = 0x40000, scoped, tag = 'input window, operand 5, single buffered']
    #allocation6 [shape = 's32[1]{0}', space=sflag, size = 0x4, scoped, tag = 'scoped memory for gin_convnet_forward.5']
    #allocation7 [shape = 'u8[524288]{0}', space=vmem, size = 0x80000, scoped, tag = 'input window, operand 7, single buffered']
    %18 = vsyncpa [#allocation4], 0
    %19 = vsyncpa [#allocation6], 0
    // Predicated region
    $region2: #{gin_convnet_forward.5} parent=1 // pred_check
      _
    $region3: #{gin_convnet_forward.5} parent=1 // pred_check_branch
      %21 = sbr.rel (0) target = $region5
    $region4: #{gin_convnet_forward.5} parent=1 // pred_region
      _
    $region5: #{gin_convnet_forward.5} parent=1 // pred_fallthru
      _
    // Predicated region
    $region6: #{gin_convnet_forward.5} parent=1 // pred_check
      _
    $region7: #{gin_convnet_forward.5} parent=1 // pred_check_branch
      %23 = sbr.rel (0) target = $region9
    $region8: #{gin_convnet_forward.5} parent=1 // pred_region
      _
    $region9: #{gin_convnet_forward.5} parent=1 // pred_fallthru
      _
    // Predicated region
    $region10: #{gin_convnet_forward.5} parent=1 // pred_check
      _
    $region11: #{gin_convnet_forward.5} parent=1 // pred_check_branch
      %25 = sbr.rel (0) target = $region13
    $region12: #{gin_convnet_forward.5} parent=1 // pred_region
      %27 = vsyncadd [#allocation4], 0
      %s28 = sshll.u32 %s2, 4
      %s29 = int_to_ptr.hbm [resolvable:$true] %s28
      %s30 = sshll.u32 [#allocation3], 4
      %s31 = int_to_ptr.vmem [resolvable:$true] %s30
      %36 = dma.hbm_to_vmem [thread:$0]  %s29, 32768, %s31, [#allocation4], 64, 64, 4
    $region13: #{gin_convnet_forward.5} parent=1 // pred_fallthru
      _
    // Predicated region
    $region14: #{gin_convnet_forward.5} parent=1 // pred_check
      _
    $region15: #{gin_convnet_forward.5} parent=1 // pred_check_branch
      %38 = sbr.rel (0) target = $region17
    $region16: #{gin_convnet_forward.5} parent=1 // pred_region
      _
    $region17: #{gin_convnet_forward.5} parent=1 // pred_fallthru
      _
    // Predicated region
    $region18: #{gin_convnet_forward.5} parent=1 // pred_check
      _
    $region19: #{gin_convnet_forward.5} parent=1 // pred_check_branch
      %40 = sbr.rel (0) target = $region21
    $region20: #{gin_convnet_forward.5} parent=1 // pred_region
      _
    $region21: #{gin_convnet_forward.5} parent=1 // pred_fallthru
      _
    // Predicated region
    $region22: #{gin_convnet_forward.5} parent=1 // pred_check
      _
    $region23: #{gin_convnet_forward.5} parent=1 // pred_check_branch
      %42 = sbr.rel (0) target = $region25
    $region24: #{gin_convnet_forward.5} parent=1 // pred_region
      %44 = vsyncadd [#allocation6], 0
      %s45 = sshll.u32 %s5, 4
      %s46 = int_to_ptr.hbm [resolvable:$true] %s45
      %s47 = sshll.u32 [#allocation5], 4
      %s48 = int_to_ptr.vmem [resolvable:$true] %s47
      %53 = dma.hbm_to_vmem [thread:$0]  %s46, 8192, %s48, [#allocation6], 512, 512, 32
    $region25: #{gin_convnet_forward.5} parent=1 // pred_fallthru
      _
    // Predicated region
    $region26: #{gin_convnet_forward.5} parent=1 // pred_check
      _
    $region27: #{gin_convnet_forward.5} parent=1 // pred_check_branch
      %55 = sbr.rel (0) target = $region29
    $region28: #{gin_convnet_forward.5} parent=1 // pred_region
      _
    $region29: #{gin_convnet_forward.5} parent=1 // pred_fallthru
      _
    // Predicated region
    $region30: #{gin_convnet_forward.5} parent=1 // pred_check
      _
    $region31: #{gin_convnet_forward.5} parent=1 // pred_check_branch
      %57 = sbr.rel (0) target = $region33
    $region32: #{gin_convnet_forward.5} parent=1 // pred_region
      %59 = vsyncadd [#allocation6], 0
      %s60 = sshll.u32 %s7, 4
      %s61 = int_to_ptr.hbm [resolvable:$true] %s60
      %s62 = sshll.u32 [#allocation7], 4
      %s63 = int_to_ptr.vmem [resolvable:$true] %s62
      %68 = dma.hbm_to_vmem [thread:$0]  %s61, 16384, %s63, [#allocation6], 128, 128, 8
    $region33: #{gin_convnet_forward.5} parent=1 // pred_fallthru
      _
    // Predicated region
    $region34: #{gin_convnet_forward.5} parent=1 // pred_check
      _
    $region35: #{gin_convnet_forward.5} parent=1 // pred_check_branch
      %70 = sbr.rel (0) target = $region37
    $region36: #{gin_convnet_forward.5} parent=1 // pred_region
      _
    $region37: #{gin_convnet_forward.5} parent=1 // pred_fallthru
      _
    // Predicated region
    $region38: #{gin_convnet_forward.5} parent=1 // pred_check
      _
    $region39: #{gin_convnet_forward.5} parent=1 // pred_check_branch
      %72 = sbr.rel (0) target = $region41
    $region40: #{gin_convnet_forward.5} parent=1 // pred_region
      _
    $region41: #{gin_convnet_forward.5} parent=1 // pred_fallthru
      _
    // Predicated region
    $region42: #{gin_convnet_forward.5} parent=1 // pred_check
      _
    $region43: #{gin_convnet_forward.5} parent=1 // pred_check_branch
      %74 = sbr.rel (0) target = $region45
    $region44: #{gin_convnet_forward.5} parent=1 // pred_region
      _
    $region45: #{gin_convnet_forward.5} parent=1 // pred_fallthru
      _
    // Predicated region
    $region46: #{gin_convnet_forward.5} parent=1 // pred_check
      _
    $region47: #{gin_convnet_forward.5} parent=1 // pred_check_branch
      %76 = sbr.rel (0) target = $region49
    $region48: #{gin_convnet_forward.5} parent=1 // pred_region
      %78 = dma.done [#allocation4], 32768
    $region49: #{gin_convnet_forward.5} parent=1 // pred_fallthru
      _
    // Predicated region
    $region50: #{gin_convnet_forward.5} parent=1 // pred_check
      _
    $region51: #{gin_convnet_forward.5} parent=1 // pred_check_branch
      %80 = sbr.rel (0) target = $region53
    $region52: #{gin_convnet_forward.5} parent=1 // pred_region
      %82 = dma.done [#allocation6], 8192
    $region53: #{gin_convnet_forward.5} parent=1 // pred_fallthru
      _
    // Predicated region
    $region54: #{gin_convnet_forward.5} parent=1 // pred_check
      _
    $region55: #{gin_convnet_forward.5} parent=1 // pred_check_branch
      %84 = sbr.rel (0) target = $region57
    $region56: #{gin_convnet_forward.5} parent=1 // pred_region
      %86 = dma.done [#allocation6], 16384
    $region57: #{gin_convnet_forward.5} parent=1 // pred_fallthru
      _
    %v87 = vld [vmem:[%s1] sm:$0xff]
    %v88 = vld [vmem:[%s1 + $0x8] sm:$0xff]
    %v89 = vld [vmem:[%s1 + $0x10] sm:$0xff]
    %v90 = vld [vmem:[%s1 + $0x18] sm:$0xff]
    %v91 = vld [vmem:[%s1 + $0x20] sm:$0xff]
    %v92 = vld [vmem:[%s1 + $0x28] sm:$0xff]
    %v93 = vld [vmem:[%s1 + $0x30] sm:$0xff]
    %v94 = vld [vmem:[%s1 + $0x38] sm:$0xff]
    %v95 = vld [vmem:[%s1 + $0x40] sm:$0xff]
    %v96 = vld [vmem:[%s1 + $0x48] sm:$0xff]
    %v97 = vld [vmem:[%s1 + $0x50] sm:$0xff]
    %v98 = vld [vmem:[%s1 + $0x58] sm:$0xff]
    %v99 = vld [vmem:[%s1 + $0x60] sm:$0xff]
    %v100 = vld [vmem:[%s1 + $0x68] sm:$0xff]
    %v101 = vld [vmem:[%s1 + $0x70] sm:$0xff]
    %v102 = vld [vmem:[%s1 + $0x78] sm:$0xff]
    %v103 = vld [vmem:[#allocation3] sm:$0xf]
    %v104 = vld [vmem:[#allocation3 + $0x4] sm:$0xf]
    %v105 = vld [vmem:[#allocation3 + $0x8] sm:$0xf]
    %v106 = vld [vmem:[#allocation3 + $0xc] sm:$0xf]
    %v107 = vld [vmem:[#allocation3 + $0x10] sm:$0xf]
    %v108 = vld [vmem:[#allocation3 + $0x14] sm:$0xf]
    %v109 = vld [vmem:[#allocation3 + $0x18] sm:$0xf]
    %v110 = vld [vmem:[#allocation3 + $0x1c] sm:$0xf]
    %v111 = vld [vmem:[#allocation3 + $0x20] sm:$0xf]
    %v112 = vld [vmem:[#allocation3 + $0x24] sm:$0xf]
    %v113 = vld [vmem:[#allocation3 + $0x28] sm:$0xf]
    %v114 = vld [vmem:[#allocation3 + $0x2c] sm:$0xf]
    %v115 = vld [vmem:[#allocation3 + $0x30] sm:$0xf]
    %v116 = vld [vmem:[#allocation3 + $0x34] sm:$0xf]
    %v117 = vld [vmem:[#allocation3 + $0x38] sm:$0xf]
    %v118 = vld [vmem:[#allocation3 + $0x3c] sm:$0xf]
    %v119 = vld [vmem:[#allocation3 + $0x40] sm:$0xf]
    %v120 = vld [vmem:[#allocation3 + $0x44] sm:$0xf]
    %v121 = vld [vmem:[#allocation3 + $0x48] sm:$0xf]
    %v122 = vld [vmem:[#allocation3 + $0x4c] sm:$0xf]
    %v123 = vld [vmem:[#allocation3 + $0x50] sm:$0xf]
    %v124 = vld [vmem:[#allocation3 + $0x54] sm:$0xf]
    %v125 = vld [vmem:[#allocation3 + $0x58] sm:$0xf]
    %v126 = vld [vmem:[#allocation3 + $0x5c] sm:$0xf]
    %v127 = vld [vmem:[#allocation3 + $0x60] sm:$0xf]
    %v128 = vld [vmem:[#allocation3 + $0x64] sm:$0xf]
    %v129 = vld [vmem:[#allocation3 + $0x68] sm:$0xf]
    %v130 = vld [vmem:[#allocation3 + $0x6c] sm:$0xf]
    %v131 = vld [vmem:[#allocation3 + $0x70] sm:$0xf]
    %v132 = vld [vmem:[#allocation3 + $0x74] sm:$0xf]
    %v133 = vld [vmem:[#allocation3 + $0x78] sm:$0xf]
    %v134 = vld [vmem:[#allocation3 + $0x7c] sm:$0xf]
    %v135 = vld [vmem:[#allocation3 + $0x80] sm:$0xf]
    %v136 = vld [vmem:[#allocation3 + $0x84] sm:$0xf]
    %v137 = vld [vmem:[#allocation3 + $0x88] sm:$0xf]
    %v138 = vld [vmem:[#allocation3 + $0x8c] sm:$0xf]
    %v139 = vld [vmem:[#allocation3 + $0x90] sm:$0xf]
    %v140 = vld [vmem:[#allocation3 + $0x94] sm:$0xf]
    %v141 = vld [vmem:[#allocation3 + $0x98] sm:$0xf]
    %v142 = vld [vmem:[#allocation3 + $0x9c] sm:$0xf]
    %v143 = vld [vmem:[#allocation3 + $0xa0] sm:$0xf]
    %v144 = vld [vmem:[#allocation3 + $0xa4] sm:$0xf]
    %v145 = vld [vmem:[#allocation3 + $0xa8] sm:$0xf]
    %v146 = vld [vmem:[#allocation3 + $0xac] sm:$0xf]
    %v147 = vld [vmem:[#allocation3 + $0xb0] sm:$0xf]
    %v148 = vld [vmem:[#allocation3 + $0xb4] sm:$0xf]
    %v149 = vld [vmem:[#allocation3 + $0xb8] sm:$0xf]
    %v150 = vld [vmem:[#allocation3 + $0xbc] sm:$0xf]
    %v151 = vld [vmem:[#allocation3 + $0xc0] sm:$0xf]
    %v152 = vld [vmem:[#allocation3 + $0xc4] sm:$0xf]
    %v153 = vld [vmem:[#allocation3 + $0xc8] sm:$0xf]
    %v154 = vld [vmem:[#allocation3 + $0xcc] sm:$0xf]
    %v155 = vld [vmem:[#allocation3 + $0xd0] sm:$0xf]
    %v156 = vld [vmem:[#allocation3 + $0xd4] sm:$0xf]
    %v157 = vld [vmem:[#allocation3 + $0xd8] sm:$0xf]
    %v158 = vld [vmem:[#allocation3 + $0xdc] sm:$0xf]
    %v159 = vld [vmem:[#allocation3 + $0xe0] sm:$0xf]
    %v160 = vld [vmem:[#allocation3 + $0xe4] sm:$0xf]
    %v161 = vld [vmem:[#allocation3 + $0xe8] sm:$0xf]
    %v162 = vld [vmem:[#allocation3 + $0xec] sm:$0xf]
    %v163 = vld [vmem:[#allocation3 + $0xf0] sm:$0xf]
    %v164 = vld [vmem:[#allocation3 + $0xf4] sm:$0xf]
    %v165 = vld [vmem:[#allocation3 + $0xf8] sm:$0xf]
    %v166 = vld [vmem:[#allocation3 + $0xfc] sm:$0xf]
    %v167 = vld [vmem:[#allocation3 + $0x100] sm:$0xf]
    %v168 = vld [vmem:[#allocation3 + $0x104] sm:$0xf]
    %v169 = vld [vmem:[#allocation3 + $0x108] sm:$0xf]
    %v170 = vld [vmem:[#allocation3 + $0x10c] sm:$0xf]
    %v171 = vld [vmem:[#allocation3 + $0x110] sm:$0xf]
    %v172 = vld [vmem:[#allocation3 + $0x114] sm:$0xf]
    %v173 = vld [vmem:[#allocation3 + $0x118] sm:$0xf]
    %v174 = vld [vmem:[#allocation3 + $0x11c] sm:$0xf]
    %v175 = vld [vmem:[#allocation3 + $0x120] sm:$0xf]
    %v176 = vld [vmem:[#allocation3 + $0x124] sm:$0xf]
    %v177 = vld [vmem:[#allocation3 + $0x128] sm:$0xf]
    %v178 = vld [vmem:[#allocation3 + $0x12c] sm:$0xf]
    %v179 = vld [vmem:[#allocation3 + $0x130] sm:$0xf]
    %v180 = vld [vmem:[#allocation3 + $0x134] sm:$0xf]
    %v181 = vld [vmem:[#allocation3 + $0x138] sm:$0xf]
    %v182 = vld [vmem:[#allocation3 + $0x13c] sm:$0xf]
    %v183 = vld [vmem:[#allocation3 + $0x140] sm:$0xf]
    %v184 = vld [vmem:[#allocation3 + $0x144] sm:$0xf]
    %v185 = vld [vmem:[#allocation3 + $0x148] sm:$0xf]
    %v186 = vld [vmem:[#allocation3 + $0x14c] sm:$0xf]
    %v187 = vld [vmem:[#allocation3 + $0x150] sm:$0xf]
    %v188 = vld [vmem:[#allocation3 + $0x154] sm:$0xf]
    %v189 = vld [vmem:[#allocation3 + $0x158] sm:$0xf]
    %v190 = vld [vmem:[#allocation3 + $0x15c] sm:$0xf]
    %v191 = vld [vmem:[#allocation3 + $0x160] sm:$0xf]
    %v192 = vld [vmem:[#allocation3 + $0x164] sm:$0xf]
    %v193 = vld [vmem:[#allocation3 + $0x168] sm:$0xf]
    %v194 = vld [vmem:[#allocation3 + $0x16c] sm:$0xf]
    %v195 = vld [vmem:[#allocation3 + $0x170] sm:$0xf]
    %v196 = vld [vmem:[#allocation3 + $0x174] sm:$0xf]
    %v197 = vld [vmem:[#allocation3 + $0x178] sm:$0xf]
    %v198 = vld [vmem:[#allocation3 + $0x17c] sm:$0xf]
    %v199 = vld [vmem:[#allocation3 + $0x180] sm:$0xf]
    %v200 = vld [vmem:[#allocation3 + $0x184] sm:$0xf]
    %v201 = vld [vmem:[#allocation3 + $0x188] sm:$0xf]
    %v202 = vld [vmem:[#allocation3 + $0x18c] sm:$0xf]
    %v203 = vld [vmem:[#allocation3 + $0x190] sm:$0xf]
    %v204 = vld [vmem:[#allocation3 + $0x194] sm:$0xf]
    %v205 = vld [vmem:[#allocation3 + $0x198] sm:$0xf]
    %v206 = vld [vmem:[#allocation3 + $0x19c] sm:$0xf]
    %v207 = vld [vmem:[#allocation3 + $0x1a0] sm:$0xf]
    %v208 = vld [vmem:[#allocation3 + $0x1a4] sm:$0xf]
    %v209 = vld [vmem:[#allocation3 + $0x1a8] sm:$0xf]
    %v210 = vld [vmem:[#allocation3 + $0x1ac] sm:$0xf]
    %v211 = vld [vmem:[#allocation3 + $0x1b0] sm:$0xf]
    %v212 = vld [vmem:[#allocation3 + $0x1b4] sm:$0xf]
    %v213 = vld [vmem:[#allocation3 + $0x1b8] sm:$0xf]
    %v214 = vld [vmem:[#allocation3 + $0x1bc] sm:$0xf]
    %v215 = vld [vmem:[#allocation3 + $0x1c0] sm:$0xf]
    %v216 = vld [vmem:[#allocation3 + $0x1c4] sm:$0xf]
    %v217 = vld [vmem:[#allocation3 + $0x1c8] sm:$0xf]
    %v218 = vld [vmem:[#allocation3 + $0x1cc] sm:$0xf]
    %v219 = vld [vmem:[#allocation3 + $0x1d0] sm:$0xf]
    %v220 = vld [vmem:[#allocation3 + $0x1d4] sm:$0xf]
    %v221 = vld [vmem:[#allocation3 + $0x1d8] sm:$0xf]
    %v222 = vld [vmem:[#allocation3 + $0x1dc] sm:$0xf]
    %v223 = vld [vmem:[#allocation3 + $0x1e0] sm:$0xf]
    %v224 = vld [vmem:[#allocation3 + $0x1e4] sm:$0xf]
    %v225 = vld [vmem:[#allocation3 + $0x1e8] sm:$0xf]
    %v226 = vld [vmem:[#allocation3 + $0x1ec] sm:$0xf]
    %v227 = vld [vmem:[#allocation3 + $0x1f0] sm:$0xf]
    %v228 = vld [vmem:[#allocation3 + $0x1f4] sm:$0xf]
    %v229 = vld [vmem:[#allocation3 + $0x1f8] sm:$0xf]
    %v230 = vld [vmem:[#allocation3 + $0x1fc] sm:$0xf]
    %v231 = vld [vmem:[#allocation3 + $0x200] sm:$0xf]
    %v232 = vld [vmem:[#allocation3 + $0x204] sm:$0xf]
    %v233 = vld [vmem:[#allocation3 + $0x208] sm:$0xf]
    %v234 = vld [vmem:[#allocation3 + $0x20c] sm:$0xf]
    %v235 = vld [vmem:[#allocation3 + $0x210] sm:$0xf]
    %v236 = vld [vmem:[#allocation3 + $0x214] sm:$0xf]
    %v237 = vld [vmem:[#allocation3 + $0x218] sm:$0xf]
    %v238 = vld [vmem:[#allocation3 + $0x21c] sm:$0xf]
    %v239 = vld [vmem:[#allocation3 + $0x220] sm:$0xf]
    %v240 = vld [vmem:[#allocation3 + $0x224] sm:$0xf]
    %v241 = vld [vmem:[#allocation3 + $0x228] sm:$0xf]
    %v242 = vld [vmem:[#allocation3 + $0x22c] sm:$0xf]
    %v243 = vld [vmem:[#allocation3 + $0x230] sm:$0xf]
    %v244 = vld [vmem:[#allocation3 + $0x234] sm:$0xf]
    %v245 = vld [vmem:[#allocation3 + $0x238] sm:$0xf]
    %v246 = vld [vmem:[#allocation3 + $0x23c] sm:$0xf]
    %v247 = vld [vmem:[#allocation3 + $0x240] sm:$0xf]
    %v248 = vld [vmem:[#allocation3 + $0x244] sm:$0xf]
    %v249 = vld [vmem:[#allocation3 + $0x248] sm:$0xf]
    %v250 = vld [vmem:[#allocation3 + $0x24c] sm:$0xf]
    %v251 = vld [vmem:[#allocation3 + $0x250] sm:$0xf]
    %v252 = vld [vmem:[#allocation3 + $0x254] sm:$0xf]
    %v253 = vld [vmem:[#allocation3 + $0x258] sm:$0xf]
    %v254 = vld [vmem:[#allocation3 + $0x25c] sm:$0xf]
    %v255 = vld [vmem:[#allocation3 + $0x260] sm:$0xf]
    %v256 = vld [vmem:[#allocation3 + $0x264] sm:$0xf]
    %v257 = vld [vmem:[#allocation3 + $0x268] sm:$0xf]
    %v258 = vld [vmem:[#allocation3 + $0x26c] sm:$0xf]
    %v259 = vld [vmem:[#allocation3 + $0x270] sm:$0xf]
    %v260 = vld [vmem:[#allocation3 + $0x274] sm:$0xf]
    %v261 = vld [vmem:[#allocation3 + $0x278] sm:$0xf]
    %v262 = vld [vmem:[#allocation3 + $0x27c] sm:$0xf]
    %v263 = vld [vmem:[#allocation3 + $0x280] sm:$0xf]
    %v264 = vld [vmem:[#allocation3 + $0x284] sm:$0xf]
    %v265 = vld [vmem:[#allocation3 + $0x288] sm:$0xf]
    %v266 = vld [vmem:[#allocation3 + $0x28c] sm:$0xf]
    %v267 = vld [vmem:[#allocation3 + $0x290] sm:$0xf]
    %v268 = vld [vmem:[#allocation3 + $0x294] sm:$0xf]
    %v269 = vld [vmem:[#allocation3 + $0x298] sm:$0xf]
    %v270 = vld [vmem:[#allocation3 + $0x29c] sm:$0xf]
    %v271 = vld [vmem:[#allocation3 + $0x2a0] sm:$0xf]
    %v272 = vld [vmem:[#allocation3 + $0x2a4] sm:$0xf]
    %v273 = vld [vmem:[#allocation3 + $0x2a8] sm:$0xf]
    %v274 = vld [vmem:[#allocation3 + $0x2ac] sm:$0xf]
    %v275 = vld [vmem:[#allocation3 + $0x2b0] sm:$0xf]
    %v276 = vld [vmem:[#allocation3 + $0x2b4] sm:$0xf]
    %v277 = vld [vmem:[#allocation3 + $0x2b8] sm:$0xf]
    %v278 = vld [vmem:[#allocation3 + $0x2bc] sm:$0xf]
    %v279 = vld [vmem:[#allocation3 + $0x2c0] sm:$0xf]
    %v280 = vld [vmem:[#allocation3 + $0x2c4] sm:$0xf]
    %v281 = vld [vmem:[#allocation3 + $0x2c8] sm:$0xf]
    %v282 = vld [vmem:[#allocation3 + $0x2cc] sm:$0xf]
    %v283 = vld [vmem:[#allocation3 + $0x2d0] sm:$0xf]
    %v284 = vld [vmem:[#allocation3 + $0x2d4] sm:$0xf]
    %v285 = vld [vmem:[#allocation3 + $0x2d8] sm:$0xf]
    %v286 = vld [vmem:[#allocation3 + $0x2dc] sm:$0xf]
    %v287 = vld [vmem:[#allocation3 + $0x2e0] sm:$0xf]
    %v288 = vld [vmem:[#allocation3 + $0x2e4] sm:$0xf]
    %v289 = vld [vmem:[#allocation3 + $0x2e8] sm:$0xf]
    %v290 = vld [vmem:[#allocation3 + $0x2ec] sm:$0xf]
    %v291 = vld [vmem:[#allocation3 + $0x2f0] sm:$0xf]
    %v292 = vld [vmem:[#allocation3 + $0x2f4] sm:$0xf]
    %v293 = vld [vmem:[#allocation3 + $0x2f8] sm:$0xf]
    %v294 = vld [vmem:[#allocation3 + $0x2fc] sm:$0xf]
    %v295 = vld [vmem:[#allocation3 + $0x300] sm:$0xf]
    %v296 = vld [vmem:[#allocation3 + $0x304] sm:$0xf]
    %v297 = vld [vmem:[#allocation3 + $0x308] sm:$0xf]
    %v298 = vld [vmem:[#allocation3 + $0x30c] sm:$0xf]
    %v299 = vld [vmem:[#allocation3 + $0x310] sm:$0xf]
    %v300 = vld [vmem:[#allocation3 + $0x314] sm:$0xf]
    %v301 = vld [vmem:[#allocation3 + $0x318] sm:$0xf]
    %v302 = vld [vmem:[#allocation3 + $0x31c] sm:$0xf]
    %v303 = vld [vmem:[#allocation3 + $0x320] sm:$0xf]
    %v304 = vld [vmem:[#allocation3 + $0x324] sm:$0xf]
    %v305 = vld [vmem:[#allocation3 + $0x328] sm:$0xf]
    %v306 = vld [vmem:[#allocation3 + $0x32c] sm:$0xf]
    %v307 = vld [vmem:[#allocation3 + $0x330] sm:$0xf]
    %v308 = vld [vmem:[#allocation3 + $0x334] sm:$0xf]
    %v309 = vld [vmem:[#allocation3 + $0x338] sm:$0xf]
    %v310 = vld [vmem:[#allocation3 + $0x33c] sm:$0xf]
    %v311 = vld [vmem:[#allocation3 + $0x340] sm:$0xf]
    %v312 = vld [vmem:[#allocation3 + $0x344] sm:$0xf]
    %v313 = vld [vmem:[#allocation3 + $0x348] sm:$0xf]
    %v314 = vld [vmem:[#allocation3 + $0x34c] sm:$0xf]
    %v315 = vld [vmem:[#allocation3 + $0x350] sm:$0xf]
    %v316 = vld [vmem:[#allocation3 + $0x354] sm:$0xf]
    %v317 = vld [vmem:[#allocation3 + $0x358] sm:$0xf]
    %v318 = vld [vmem:[#allocation3 + $0x35c] sm:$0xf]
    %v319 = vld [vmem:[#allocation3 + $0x360] sm:$0xf]
    %v320 = vld [vmem:[#allocation3 + $0x364] sm:$0xf]
    %v321 = vld [vmem:[#allocation3 + $0x368] sm:$0xf]
    %v322 = vld [vmem:[#allocation3 + $0x36c] sm:$0xf]
    %v323 = vld [vmem:[#allocation3 + $0x370] sm:$0xf]
    %v324 = vld [vmem:[#allocation3 + $0x374] sm:$0xf]
    %v325 = vld [vmem:[#allocation3 + $0x378] sm:$0xf]
    %v326 = vld [vmem:[#allocation3 + $0x37c] sm:$0xf]
    %v327 = vld [vmem:[#allocation3 + $0x380] sm:$0xf]
    %v328 = vld [vmem:[#allocation3 + $0x384] sm:$0xf]
    %v329 = vld [vmem:[#allocation3 + $0x388] sm:$0xf]
    %v330 = vld [vmem:[#allocation3 + $0x38c] sm:$0xf]
    %v331 = vld [vmem:[#allocation3 + $0x390] sm:$0xf]
    %v332 = vld [vmem:[#allocation3 + $0x394] sm:$0xf]
    %v333 = vld [vmem:[#allocation3 + $0x398] sm:$0xf]
    %v334 = vld [vmem:[#allocation3 + $0x39c] sm:$0xf]
    %v335 = vld [vmem:[#allocation3 + $0x3a0] sm:$0xf]
    %v336 = vld [vmem:[#allocation3 + $0x3a4] sm:$0xf]
    %v337 = vld [vmem:[#allocation3 + $0x3a8] sm:$0xf]
    %v338 = vld [vmem:[#allocation3 + $0x3ac] sm:$0xf]
    %v339 = vld [vmem:[#allocation3 + $0x3b0] sm:$0xf]
    %v340 = vld [vmem:[#allocation3 + $0x3b4] sm:$0xf]
    %v341 = vld [vmem:[#allocation3 + $0x3b8] sm:$0xf]
    %v342 = vld [vmem:[#allocation3 + $0x3bc] sm:$0xf]
    %v343 = vld [vmem:[#allocation3 + $0x3c0] sm:$0xf]
    %v344 = vld [vmem:[#allocation3 + $0x3c4] sm:$0xf]
    %v345 = vld [vmem:[#allocation3 + $0x3c8] sm:$0xf]
    %v346 = vld [vmem:[#allocation3 + $0x3cc] sm:$0xf]
    %v347 = vld [vmem:[#allocation3 + $0x3d0] sm:$0xf]
    %v348 = vld [vmem:[#allocation3 + $0x3d4] sm:$0xf]
    %v349 = vld [vmem:[#allocation3 + $0x3d8] sm:$0xf]
    %v350 = vld [vmem:[#allocation3 + $0x3dc] sm:$0xf]
    %v351 = vld [vmem:[#allocation3 + $0x3e0] sm:$0xf]
    %v352 = vld [vmem:[#allocation3 + $0x3e4] sm:$0xf]
    %v353 = vld [vmem:[#allocation3 + $0x3e8] sm:$0xf]
    %v354 = vld [vmem:[#allocation3 + $0x3ec] sm:$0xf]
    %v355 = vld [vmem:[#allocation3 + $0x3f0] sm:$0xf]
    %v356 = vld [vmem:[#allocation3 + $0x3f4] sm:$0xf]
    %v357 = vld [vmem:[#allocation3 + $0x3f8] sm:$0xf]
    %v358 = vld [vmem:[#allocation3 + $0x3fc] sm:$0xf]
    %v359 = vld [vmem:[#allocation3 + $0x400] sm:$0xf]
    %v360 = vld [vmem:[#allocation3 + $0x404] sm:$0xf]
    %v361 = vld [vmem:[#allocation3 + $0x408] sm:$0xf]
    %v362 = vld [vmem:[#allocation3 + $0x40c] sm:$0xf]
    %v363 = vld [vmem:[#allocation3 + $0x410] sm:$0xf]
    %v364 = vld [vmem:[#allocation3 + $0x414] sm:$0xf]
    %v365 = vld [vmem:[#allocation3 + $0x418] sm:$0xf]
    %v366 = vld [vmem:[#allocation3 + $0x41c] sm:$0xf]
    %v367 = vld [vmem:[#allocation3 + $0x420] sm:$0xf]
    %v368 = vld [vmem:[#allocation3 + $0x424] sm:$0xf]
    %v369 = vld [vmem:[#allocation3 + $0x428] sm:$0xf]
    %v370 = vld [vmem:[#allocation3 + $0x42c] sm:$0xf]
    %v371 = vld [vmem:[#allocation3 + $0x430] sm:$0xf]
    %v372 = vld [vmem:[#allocation3 + $0x434] sm:$0xf]
    %v373 = vld [vmem:[#allocation3 + $0x438] sm:$0xf]
    %v374 = vld [vmem:[#allocation3 + $0x43c] sm:$0xf]
    %v375 = vld [vmem:[#allocation3 + $0x440] sm:$0xf]
    %v376 = vld [vmem:[#allocation3 + $0x444] sm:$0xf]
    %v377 = vld [vmem:[#allocation3 + $0x448] sm:$0xf]
    %v378 = vld [vmem:[#allocation3 + $0x44c] sm:$0xf]
    %v379 = vld [vmem:[#allocation3 + $0x450] sm:$0xf]
    %v380 = vld [vmem:[#allocation3 + $0x454] sm:$0xf]
    %v381 = vld [vmem:[#allocation3 + $0x458] sm:$0xf]
    %v382 = vld [vmem:[#allocation3 + $0x45c] sm:$0xf]
    %v383 = vld [vmem:[#allocation3 + $0x460] sm:$0xf]
    %v384 = vld [vmem:[#allocation3 + $0x464] sm:$0xf]
    %v385 = vld [vmem:[#allocation3 + $0x468] sm:$0xf]
    %v386 = vld [vmem:[#allocation3 + $0x46c] sm:$0xf]
    %v387 = vld [vmem:[#allocation3 + $0x470] sm:$0xf]
    %v388 = vld [vmem:[#allocation3 + $0x474] sm:$0xf]
    %v389 = vld [vmem:[#allocation3 + $0x478] sm:$0xf]
    %v390 = vld [vmem:[#allocation3 + $0x47c] sm:$0xf]
    %v391 = vld [vmem:[#allocation3 + $0x480] sm:$0xf]
    %v392 = vld [vmem:[#allocation3 + $0x484] sm:$0xf]
    %v393 = vld [vmem:[#allocation3 + $0x488] sm:$0xf]
    %v394 = vld [vmem:[#allocation3 + $0x48c] sm:$0xf]
    %v395 = vld [vmem:[#allocation3 + $0x490] sm:$0xf]
    %v396 = vld [vmem:[#allocation3 + $0x494] sm:$0xf]
    %v397 = vld [vmem:[#allocation3 + $0x498] sm:$0xf]
    %v398 = vld [vmem:[#allocation3 + $0x49c] sm:$0xf]
    %v399 = vld [vmem:[#allocation3 + $0x4a0] sm:$0xf]
    %v400 = vld [vmem:[#allocation3 + $0x4a4] sm:$0xf]
    %v401 = vld [vmem:[#allocation3 + $0x4a8] sm:$0xf]
    %v402 = vld [vmem:[#allocation3 + $0x4ac] sm:$0xf]
    %v403 = vld [vmem:[#allocation3 + $0x4b0] sm:$0xf]
    %v404 = vld [vmem:[#allocation3 + $0x4b4] sm:$0xf]
    %v405 = vld [vmem:[#allocation3 + $0x4b8] sm:$0xf]
    %v406 = vld [vmem:[#allocation3 + $0x4bc] sm:$0xf]
    %v407 = vld [vmem:[#allocation3 + $0x4c0] sm:$0xf]
    %v408 = vld [vmem:[#allocation3 + $0x4c4] sm:$0xf]
    %v409 = vld [vmem:[#allocation3 + $0x4c8] sm:$0xf]
    %v410 = vld [vmem:[#allocation3 + $0x4cc] sm:$0xf]
    %v411 = vld [vmem:[#allocation3 + $0x4d0] sm:$0xf]
    %v412 = vld [vmem:[#allocation3 + $0x4d4] sm:$0xf]
    %v413 = vld [vmem:[#allocation3 + $0x4d8] sm:$0xf]
    %v414 = vld [vmem:[#allocation3 + $0x4dc] sm:$0xf]
    %v415 = vld [vmem:[#allocation3 + $0x4e0] sm:$0xf]
    %v416 = vld [vmem:[#allocation3 + $0x4e4] sm:$0xf]
    %v417 = vld [vmem:[#allocation3 + $0x4e8] sm:$0xf]
    %v418 = vld [vmem:[#allocation3 + $0x4ec] sm:$0xf]
    %v419 = vld [vmem:[#allocation3 + $0x4f0] sm:$0xf]
    %v420 = vld [vmem:[#allocation3 + $0x4f4] sm:$0xf]
    %v421 = vld [vmem:[#allocation3 + $0x4f8] sm:$0xf]
    %v422 = vld [vmem:[#allocation3 + $0x4fc] sm:$0xf]
    %v423 = vld [vmem:[#allocation3 + $0x500] sm:$0xf]
    %v424 = vld [vmem:[#allocation3 + $0x504] sm:$0xf]
    %v425 = vld [vmem:[#allocation3 + $0x508] sm:$0xf]
    %v426 = vld [vmem:[#allocation3 + $0x50c] sm:$0xf]
    %v427 = vld [vmem:[#allocation3 + $0x510] sm:$0xf]
    %v428 = vld [vmem:[#allocation3 + $0x514] sm:$0xf]
    %v429 = vld [vmem:[#allocation3 + $0x518] sm:$0xf]
    %v430 = vld [vmem:[#allocation3 + $0x51c] sm:$0xf]
    %v431 = vld [vmem:[#allocation3 + $0x520] sm:$0xf]
    %v432 = vld [vmem:[#allocation3 + $0x524] sm:$0xf]
    %v433 = vld [vmem:[#allocation3 + $0x528] sm:$0xf]
    %v434 = vld [vmem:[#allocation3 + $0x52c] sm:$0xf]
    %v435 = vld [vmem:[#allocation3 + $0x530] sm:$0xf]
    %v436 = vld [vmem:[#allocation3 + $0x534] sm:$0xf]
    %v437 = vld [vmem:[#allocation3 + $0x538] sm:$0xf]
    %v438 = vld [vmem:[#allocation3 + $0x53c] sm:$0xf]
    %v439 = vld [vmem:[#allocation3 + $0x540] sm:$0xf]
    %v440 = vld [vmem:[#allocation3 + $0x544] sm:$0xf]
    %v441 = vld [vmem:[#allocation3 + $0x548] sm:$0xf]
    %v442 = vld [vmem:[#allocation3 + $0x54c] sm:$0xf]
    %v443 = vld [vmem:[#allocation3 + $0x550] sm:$0xf]
    %v444 = vld [vmem:[#allocation3 + $0x554] sm:$0xf]
    %v445 = vld [vmem:[#allocation3 + $0x558] sm:$0xf]
    %v446 = vld [vmem:[#allocation3 + $0x55c] sm:$0xf]
    %v447 = vld [vmem:[#allocation3 + $0x560] sm:$0xf]
    %v448 = vld [vmem:[#allocation3 + $0x564] sm:$0xf]
    %v449 = vld [vmem:[#allocation3 + $0x568] sm:$0xf]
    %v450 = vld [vmem:[#allocation3 + $0x56c] sm:$0xf]
    %v451 = vld [vmem:[#allocation3 + $0x570] sm:$0xf]
    %v452 = vld [vmem:[#allocation3 + $0x574] sm:$0xf]
    %v453 = vld [vmem:[#allocation3 + $0x578] sm:$0xf]
    %v454 = vld [vmem:[#allocation3 + $0x57c] sm:$0xf]
    %v455 = vld [vmem:[#allocation3 + $0x580] sm:$0xf]
    %v456 = vld [vmem:[#allocation3 + $0x584] sm:$0xf]
    %v457 = vld [vmem:[#allocation3 + $0x588] sm:$0xf]
    %v458 = vld [vmem:[#allocation3 + $0x58c] sm:$0xf]
    %v459 = vld [vmem:[#allocation3 + $0x590] sm:$0xf]
    %v460 = vld [vmem:[#allocation3 + $0x594] sm:$0xf]
    %v461 = vld [vmem:[#allocation3 + $0x598] sm:$0xf]
    %v462 = vld [vmem:[#allocation3 + $0x59c] sm:$0xf]
    %v463 = vld [vmem:[#allocation3 + $0x5a0] sm:$0xf]
    %v464 = vld [vmem:[#allocation3 + $0x5a4] sm:$0xf]
    %v465 = vld [vmem:[#allocation3 + $0x5a8] sm:$0xf]
    %v466 = vld [vmem:[#allocation3 + $0x5ac] sm:$0xf]
    %v467 = vld [vmem:[#allocation3 + $0x5b0] sm:$0xf]
    %v468 = vld [vmem:[#allocation3 + $0x5b4] sm:$0xf]
    %v469 = vld [vmem:[#allocation3 + $0x5b8] sm:$0xf]
    %v470 = vld [vmem:[#allocation3 + $0x5bc] sm:$0xf]
    %v471 = vld [vmem:[#allocation3 + $0x5c0] sm:$0xf]
    %v472 = vld [vmem:[#allocation3 + $0x5c4] sm:$0xf]
    %v473 = vld [vmem:[#allocation3 + $0x5c8] sm:$0xf]
    %v474 = vld [vmem:[#allocation3 + $0x5cc] sm:$0xf]
    %v475 = vld [vmem:[#allocation3 + $0x5d0] sm:$0xf]
    %v476 = vld [vmem:[#allocation3 + $0x5d4] sm:$0xf]
    %v477 = vld [vmem:[#allocation3 + $0x5d8] sm:$0xf]
    %v478 = vld [vmem:[#allocation3 + $0x5dc] sm:$0xf]
    %v479 = vld [vmem:[#allocation3 + $0x5e0] sm:$0xf]
    %v480 = vld [vmem:[#allocation3 + $0x5e4] sm:$0xf]
    %v481 = vld [vmem:[#allocation3 + $0x5e8] sm:$0xf]
    %v482 = vld [vmem:[#allocation3 + $0x5ec] sm:$0xf]
    %v483 = vld [vmem:[#allocation3 + $0x5f0] sm:$0xf]
    %v484 = vld [vmem:[#allocation3 + $0x5f4] sm:$0xf]
    %v485 = vld [vmem:[#allocation3 + $0x5f8] sm:$0xf]
    %v486 = vld [vmem:[#allocation3 + $0x5fc] sm:$0xf]
    %v487 = vld [vmem:[#allocation3 + $0x600] sm:$0xf]
    %v488 = vld [vmem:[#allocation3 + $0x604] sm:$0xf]
    %v489 = vld [vmem:[#allocation3 + $0x608] sm:$0xf]
    %v490 = vld [vmem:[#allocation3 + $0x60c] sm:$0xf]
    %v491 = vld [vmem:[#allocation3 + $0x610] sm:$0xf]
    %v492 = vld [vmem:[#allocation3 + $0x614] sm:$0xf]
    %v493 = vld [vmem:[#allocation3 + $0x618] sm:$0xf]
    %v494 = vld [vmem:[#allocation3 + $0x61c] sm:$0xf]
    %v495 = vld [vmem:[#allocation3 + $0x620] sm:$0xf]
    %v496 = vld [vmem:[#allocation3 + $0x624] sm:$0xf]
    %v497 = vld [vmem:[#allocation3 + $0x628] sm:$0xf]
    %v498 = vld [vmem:[#allocation3 + $0x62c] sm:$0xf]
    %v499 = vld [vmem:[#allocation3 + $0x630] sm:$0xf]
    %v500 = vld [vmem:[#allocation3 + $0x634] sm:$0xf]
    %v501 = vld [vmem:[#allocation3 + $0x638] sm:$0xf]
    %v502 = vld [vmem:[#allocation3 + $0x63c] sm:$0xf]
    %v503 = vld [vmem:[#allocation3 + $0x640] sm:$0xf]
    %v504 = vld [vmem:[#allocation3 + $0x644] sm:$0xf]
    %v505 = vld [vmem:[#allocation3 + $0x648] sm:$0xf]
    %v506 = vld [vmem:[#allocation3 + $0x64c] sm:$0xf]
    %v507 = vld [vmem:[#allocation3 + $0x650] sm:$0xf]
    %v508 = vld [vmem:[#allocation3 + $0x654] sm:$0xf]
    %v509 = vld [vmem:[#allocation3 + $0x658] sm:$0xf]
    %v510 = vld [vmem:[#allocation3 + $0x65c] sm:$0xf]
    %v511 = vld [vmem:[#allocation3 + $0x660] sm:$0xf]
    %v512 = vld [vmem:[#allocation3 + $0x664] sm:$0xf]
    %v513 = vld [vmem:[#allocation3 + $0x668] sm:$0xf]
    %v514 = vld [vmem:[#allocation3 + $0x66c] sm:$0xf]
    %v515 = vld [vmem:[#allocation3 + $0x670] sm:$0xf]
    %v516 = vld [vmem:[#allocation3 + $0x674] sm:$0xf]
    %v517 = vld [vmem:[#allocation3 + $0x678] sm:$0xf]
    %v518 = vld [vmem:[#allocation3 + $0x67c] sm:$0xf]
    %v519 = vld [vmem:[#allocation3 + $0x680] sm:$0xf]
    %v520 = vld [vmem:[#allocation3 + $0x684] sm:$0xf]
    %v521 = vld [vmem:[#allocation3 + $0x688] sm:$0xf]
    %v522 = vld [vmem:[#allocation3 + $0x68c] sm:$0xf]
    %v523 = vld [vmem:[#allocation3 + $0x690] sm:$0xf]
    %v524 = vld [vmem:[#allocation3 + $0x694] sm:$0xf]
    %v525 = vld [vmem:[#allocation3 + $0x698] sm:$0xf]
    %v526 = vld [vmem:[#allocation3 + $0x69c] sm:$0xf]
    %v527 = vld [vmem:[#allocation3 + $0x6a0] sm:$0xf]
    %v528 = vld [vmem:[#allocation3 + $0x6a4] sm:$0xf]
    %v529 = vld [vmem:[#allocation3 + $0x6a8] sm:$0xf]
    %v530 = vld [vmem:[#allocation3 + $0x6ac] sm:$0xf]
    %v531 = vld [vmem:[#allocation3 + $0x6b0] sm:$0xf]
    %v532 = vld [vmem:[#allocation3 + $0x6b4] sm:$0xf]
    %v533 = vld [vmem:[#allocation3 + $0x6b8] sm:$0xf]
    %v534 = vld [vmem:[#allocation3 + $0x6bc] sm:$0xf]
    %v535 = vld [vmem:[#allocation3 + $0x6c0] sm:$0xf]
    %v536 = vld [vmem:[#allocation3 + $0x6c4] sm:$0xf]
    %v537 = vld [vmem:[#allocation3 + $0x6c8] sm:$0xf]
    %v538 = vld [vmem:[#allocation3 + $0x6cc] sm:$0xf]
    %v539 = vld [vmem:[#allocation3 + $0x6d0] sm:$0xf]
    %v540 = vld [vmem:[#allocation3 + $0x6d4] sm:$0xf]
    %v541 = vld [vmem:[#allocation3 + $0x6d8] sm:$0xf]
    %v542 = vld [vmem:[#allocation3 + $0x6dc] sm:$0xf]
    %v543 = vld [vmem:[#allocation3 + $0x6e0] sm:$0xf]
    %v544 = vld [vmem:[#allocation3 + $0x6e4] sm:$0xf]
    %v545 = vld [vmem:[#allocation3 + $0x6e8] sm:$0xf]
    %v546 = vld [vmem:[#allocation3 + $0x6ec] sm:$0xf]
    %v547 = vld [vmem:[#allocation3 + $0x6f0] sm:$0xf]
    %v548 = vld [vmem:[#allocation3 + $0x6f4] sm:$0xf]
    %v549 = vld [vmem:[#allocation3 + $0x6f8] sm:$0xf]
    %v550 = vld [vmem:[#allocation3 + $0x6fc] sm:$0xf]
    %v551 = vld [vmem:[#allocation3 + $0x700] sm:$0xf]
    %v552 = vld [vmem:[#allocation3 + $0x704] sm:$0xf]
    %v553 = vld [vmem:[#allocation3 + $0x708] sm:$0xf]
    %v554 = vld [vmem:[#allocation3 + $0x70c] sm:$0xf]
    %v555 = vld [vmem:[#allocation3 + $0x710] sm:$0xf]
    %v556 = vld [vmem:[#allocation3 + $0x714] sm:$0xf]
    %v557 = vld [vmem:[#allocation3 + $0x718] sm:$0xf]
    %v558 = vld [vmem:[#allocation3 + $0x71c] sm:$0xf]
    %v559 = vld [vmem:[#allocation3 + $0x720] sm:$0xf]
    %v560 = vld [vmem:[#allocation3 + $0x724] sm:$0xf]
    %v561 = vld [vmem:[#allocation3 + $0x728] sm:$0xf]
    %v562 = vld [vmem:[#allocation3 + $0x72c] sm:$0xf]
    %v563 = vld [vmem:[#allocation3 + $0x730] sm:$0xf]
    %v564 = vld [vmem:[#allocation3 + $0x734] sm:$0xf]
    %v565 = vld [vmem:[#allocation3 + $0x738] sm:$0xf]
    %v566 = vld [vmem:[#allocation3 + $0x73c] sm:$0xf]
    %v567 = vld [vmem:[#allocation3 + $0x740] sm:$0xf]
    %v568 = vld [vmem:[#allocation3 + $0x744] sm:$0xf]
    %v569 = vld [vmem:[#allocation3 + $0x748] sm:$0xf]
    %v570 = vld [vmem:[#allocation3 + $0x74c] sm:$0xf]
    %v571 = vld [vmem:[#allocation3 + $0x750] sm:$0xf]
    %v572 = vld [vmem:[#allocation3 + $0x754] sm:$0xf]
    %v573 = vld [vmem:[#allocation3 + $0x758] sm:$0xf]
    %v574 = vld [vmem:[#allocation3 + $0x75c] sm:$0xf]
    %v575 = vld [vmem:[#allocation3 + $0x760] sm:$0xf]
    %v576 = vld [vmem:[#allocation3 + $0x764] sm:$0xf]
    %v577 = vld [vmem:[#allocation3 + $0x768] sm:$0xf]
    %v578 = vld [vmem:[#allocation3 + $0x76c] sm:$0xf]
    %v579 = vld [vmem:[#allocation3 + $0x770] sm:$0xf]
    %v580 = vld [vmem:[#allocation3 + $0x774] sm:$0xf]
    %v581 = vld [vmem:[#allocation3 + $0x778] sm:$0xf]
    %v582 = vld [vmem:[#allocation3 + $0x77c] sm:$0xf]
    %v583 = vld [vmem:[#allocation3 + $0x780] sm:$0xf]
    %v584 = vld [vmem:[#allocation3 + $0x784] sm:$0xf]
    %v585 = vld [vmem:[#allocation3 + $0x788] sm:$0xf]
    %v586 = vld [vmem:[#allocation3 + $0x78c] sm:$0xf]
    %v587 = vld [vmem:[#allocation3 + $0x790] sm:$0xf]
    %v588 = vld [vmem:[#allocation3 + $0x794] sm:$0xf]
    %v589 = vld [vmem:[#allocation3 + $0x798] sm:$0xf]
    %v590 = vld [vmem:[#allocation3 + $0x79c] sm:$0xf]
    %v591 = vld [vmem:[#allocation3 + $0x7a0] sm:$0xf]
    %v592 = vld [vmem:[#allocation3 + $0x7a4] sm:$0xf]
    %v593 = vld [vmem:[#allocation3 + $0x7a8] sm:$0xf]
    %v594 = vld [vmem:[#allocation3 + $0x7ac] sm:$0xf]
    %v595 = vld [vmem:[#allocation3 + $0x7b0] sm:$0xf]
    %v596 = vld [vmem:[#allocation3 + $0x7b4] sm:$0xf]
    %v597 = vld [vmem:[#allocation3 + $0x7b8] sm:$0xf]
    %v598 = vld [vmem:[#allocation3 + $0x7bc] sm:$0xf]
    %v599 = vld [vmem:[#allocation3 + $0x7c0] sm:$0xf]
    %v600 = vld [vmem:[#allocation3 + $0x7c4] sm:$0xf]
    %v601 = vld [vmem:[#allocation3 + $0x7c8] sm:$0xf]
    %v602 = vld [vmem:[#allocation3 + $0x7cc] sm:$0xf]
    %v603 = vld [vmem:[#allocation3 + $0x7d0] sm:$0xf]
    %v604 = vld [vmem:[#allocation3 + $0x7d4] sm:$0xf]
    %v605 = vld [vmem:[#allocation3 + $0x7d8] sm:$0xf]
    %v606 = vld [vmem:[#allocation3 + $0x7dc] sm:$0xf]
    %v607 = vld [vmem:[#allocation3 + $0x7e0] sm:$0xf]
    %v608 = vld [vmem:[#allocation3 + $0x7e4] sm:$0xf]
    %v609 = vld [vmem:[#allocation3 + $0x7e8] sm:$0xf]
    %v610 = vld [vmem:[#allocation3 + $0x7ec] sm:$0xf]
    %v611 = vld [vmem:[#allocation3 + $0x7f0] sm:$0xf]
    %v612 = vld [vmem:[#allocation3 + $0x7f4] sm:$0xf]
    %v613 = vld [vmem:[#allocation3 + $0x7f8] sm:$0xf]
    %v614 = vld [vmem:[#allocation3 + $0x7fc] sm:$0xf]
    %v615 = vld [vmem:[%s3] sm:$0x1]
    %v617 = vperm.slane %v615, 0
    %v635 = vunpack.c.l.b16 %v87
    %v636 = vunpack.c.h.b16 %v87
    %v637 = vunpack.c.l.b16 %v88
    %v638 = vunpack.c.h.b16 %v88
    %v639 = vunpack.c.l.b16 %v89
    %v640 = vunpack.c.h.b16 %v89
    %v641 = vunpack.c.l.b16 %v90
    %v642 = vunpack.c.h.b16 %v90
    %v643 = vunpack.c.l.b16 %v91
    %v644 = vunpack.c.h.b16 %v91
    %v645 = vunpack.c.l.b16 %v92
    %v646 = vunpack.c.h.b16 %v92
    %v647 = vunpack.c.l.b16 %v93
    %v648 = vunpack.c.h.b16 %v93
    %v649 = vunpack.c.l.b16 %v94
    %v650 = vunpack.c.h.b16 %v94
    %v651 = vunpack.c.l.b16 %v95
    %v652 = vunpack.c.h.b16 %v95
    %v653 = vunpack.c.l.b16 %v96
    %v654 = vunpack.c.h.b16 %v96
    %v655 = vunpack.c.l.b16 %v97
    %v656 = vunpack.c.h.b16 %v97
    %v657 = vunpack.c.l.b16 %v98
    %v658 = vunpack.c.h.b16 %v98
    %v659 = vunpack.c.l.b16 %v99
    %v660 = vunpack.c.h.b16 %v99
    %v661 = vunpack.c.l.b16 %v100
    %v662 = vunpack.c.h.b16 %v100
    %v663 = vunpack.c.l.b16 %v101
    %v664 = vunpack.c.h.b16 %v101
    %v665 = vunpack.c.l.b16 %v102
    %v666 = vunpack.c.h.b16 %v102
    %v667 = vpack.c.b16 %v635, %v635
    %v668 = vpack.c.b16 %v636, %v636
    %v669 = vpack.c.b16 %v637, %v637
    %v670 = vpack.c.b16 %v638, %v638
    %v671 = vpack.c.b16 %v639, %v639
    %v672 = vpack.c.b16 %v640, %v640
    %v673 = vpack.c.b16 %v641, %v641
    %v674 = vpack.c.b16 %v642, %v642
    %v675 = vpack.c.b16 %v643, %v643
    %v676 = vpack.c.b16 %v644, %v644
    %v677 = vpack.c.b16 %v645, %v645
    %v678 = vpack.c.b16 %v646, %v646
    %v679 = vpack.c.b16 %v647, %v647
    %v680 = vpack.c.b16 %v648, %v648
    %v681 = vpack.c.b16 %v649, %v649
    %v682 = vpack.c.b16 %v650, %v650
    %v683 = vpack.c.b16 %v651, %v651
    %v684 = vpack.c.b16 %v652, %v652
    %v685 = vpack.c.b16 %v653, %v653
    %v686 = vpack.c.b16 %v654, %v654
    %v687 = vpack.c.b16 %v655, %v655
    %v688 = vpack.c.b16 %v656, %v656
    %v689 = vpack.c.b16 %v657, %v657
    %v690 = vpack.c.b16 %v658, %v658
    %v691 = vpack.c.b16 %v659, %v659
    %v692 = vpack.c.b16 %v660, %v660
    %v693 = vpack.c.b16 %v661, %v661
    %v694 = vpack.c.b16 %v662, %v662
    %v695 = vpack.c.b16 %v663, %v663
    %v696 = vpack.c.b16 %v664, %v664
    %v697 = vpack.c.b16 %v665, %v665
    %v698 = vpack.c.b16 %v666, %v666
    %v1243 = vunpack.c.l.b16 %v103
    %v1244 = vunpack.c.l.b16 %v104
    %v1245 = vunpack.c.l.b16 %v105
    %v1246 = vunpack.c.l.b16 %v106
    %v1247 = vunpack.c.l.b16 %v107
    %v1248 = vunpack.c.l.b16 %v108
    %v1249 = vunpack.c.l.b16 %v109
    %v1250 = vunpack.c.l.b16 %v110
    %v1251 = vunpack.c.l.b16 %v111
    %v1252 = vunpack.c.l.b16 %v112
    %v1253 = vunpack.c.l.b16 %v113
    %v1254 = vunpack.c.l.b16 %v114
    %v1255 = vunpack.c.l.b16 %v115
    %v1256 = vunpack.c.l.b16 %v116
    %v1257 = vunpack.c.l.b16 %v117
    %v1258 = vunpack.c.l.b16 %v118
    %v1259 = vunpack.c.l.b16 %v119
    %v1260 = vunpack.c.l.b16 %v120
    %v1261 = vunpack.c.l.b16 %v121
    %v1262 = vunpack.c.l.b16 %v122
    %v1263 = vunpack.c.l.b16 %v123
    %v1264 = vunpack.c.l.b16 %v124
    %v1265 = vunpack.c.l.b16 %v125
    %v1266 = vunpack.c.l.b16 %v126
    %v1267 = vunpack.c.l.b16 %v127
    %v1268 = vunpack.c.l.b16 %v128
    %v1269 = vunpack.c.l.b16 %v129
    %v1270 = vunpack.c.l.b16 %v130
    %v1271 = vunpack.c.l.b16 %v131
    %v1272 = vunpack.c.l.b16 %v132
    %v1273 = vunpack.c.l.b16 %v133
    %v1274 = vunpack.c.l.b16 %v134
    %v1275 = vunpack.c.l.b16 %v135
    %v1276 = vunpack.c.l.b16 %v136
    %v1277 = vunpack.c.l.b16 %v137
    %v1278 = vunpack.c.l.b16 %v138
    %v1279 = vunpack.c.l.b16 %v139
    %v1280 = vunpack.c.l.b16 %v140
    %v1281 = vunpack.c.l.b16 %v141
    %v1282 = vunpack.c.l.b16 %v142
    %v1283 = vunpack.c.l.b16 %v143
    %v1284 = vunpack.c.l.b16 %v144
    %v1285 = vunpack.c.l.b16 %v145
    %v1286 = vunpack.c.l.b16 %v146
    %v1287 = vunpack.c.l.b16 %v147
    %v1288 = vunpack.c.l.b16 %v148
    %v1289 = vunpack.c.l.b16 %v149
    %v1290 = vunpack.c.l.b16 %v150
    %v1291 = vunpack.c.l.b16 %v151
    %v1292 = vunpack.c.l.b16 %v152
    %v1293 = vunpack.c.l.b16 %v153
    %v1294 = vunpack.c.l.b16 %v154
    %v1295 = vunpack.c.l.b16 %v155
    %v1296 = vunpack.c.l.b16 %v156
    %v1297 = vunpack.c.l.b16 %v157
    %v1298 = vunpack.c.l.b16 %v158
    %v1299 = vunpack.c.l.b16 %v159
    %v1300 = vunpack.c.l.b16 %v160
    %v1301 = vunpack.c.l.b16 %v161
    %v1302 = vunpack.c.l.b16 %v162
    %v1303 = vunpack.c.l.b16 %v163
    %v1304 = vunpack.c.l.b16 %v164
    %v1305 = vunpack.c.l.b16 %v165
    %v1306 = vunpack.c.l.b16 %v166
    %v1307 = vunpack.c.l.b16 %v167
    %v1308 = vunpack.c.l.b16 %v168
    %v1309 = vunpack.c.l.b16 %v169
    %v1310 = vunpack.c.l.b16 %v170
    %v1311 = vunpack.c.l.b16 %v171
    %v1312 = vunpack.c.l.b16 %v172
    %v1313 = vunpack.c.l.b16 %v173
    %v1314 = vunpack.c.l.b16 %v174
    %v1315 = vunpack.c.l.b16 %v175
    %v1316 = vunpack.c.l.b16 %v176
    %v1317 = vunpack.c.l.b16 %v177
    %v1318 = vunpack.c.l.b16 %v178
    %v1319 = vunpack.c.l.b16 %v179
    %v1320 = vunpack.c.l.b16 %v180
    %v1321 = vunpack.c.l.b16 %v181
    %v1322 = vunpack.c.l.b16 %v182
    %v1323 = vunpack.c.l.b16 %v183
    %v1324 = vunpack.c.l.b16 %v184
    %v1325 = vunpack.c.l.b16 %v185
    %v1326 = vunpack.c.l.b16 %v186
    %v1327 = vunpack.c.l.b16 %v187
    %v1328 = vunpack.c.l.b16 %v188
    %v1329 = vunpack.c.l.b16 %v189
    %v1330 = vunpack.c.l.b16 %v190
    %v1331 = vunpack.c.l.b16 %v191
    %v1332 = vunpack.c.l.b16 %v192
    %v1333 = vunpack.c.l.b16 %v193
    %v1334 = vunpack.c.l.b16 %v194
    %v1335 = vunpack.c.l.b16 %v195
    %v1336 = vunpack.c.l.b16 %v196
    %v1337 = vunpack.c.l.b16 %v197
    %v1338 = vunpack.c.l.b16 %v198
    %v1339 = vunpack.c.l.b16 %v199
    %v1340 = vunpack.c.l.b16 %v200
    %v1341 = vunpack.c.l.b16 %v201
    %v1342 = vunpack.c.l.b16 %v202
    %v1343 = vunpack.c.l.b16 %v203
    %v1344 = vunpack.c.l.b16 %v204
    %v1345 = vunpack.c.l.b16 %v205
    %v1346 = vunpack.c.l.b16 %v206
    %v1347 = vunpack.c.l.b16 %v207
    %v1348 = vunpack.c.l.b16 %v208
    %v1349 = vunpack.c.l.b16 %v209
    %v1350 = vunpack.c.l.b16 %v210
    %v1351 = vunpack.c.l.b16 %v211
    %v1352 = vunpack.c.l.b16 %v212
    %v1353 = vunpack.c.l.b16 %v213
    %v1354 = vunpack.c.l.b16 %v214
    %v1355 = vunpack.c.l.b16 %v215
    %v1356 = vunpack.c.l.b16 %v216
    %v1357 = vunpack.c.l.b16 %v217
    %v1358 = vunpack.c.l.b16 %v218
    %v1359 = vunpack.c.l.b16 %v219
    %v1360 = vunpack.c.l.b16 %v220
    %v1361 = vunpack.c.l.b16 %v221
    %v1362 = vunpack.c.l.b16 %v222
    %v1363 = vunpack.c.l.b16 %v223
    %v1364 = vunpack.c.l.b16 %v224
    %v1365 = vunpack.c.l.b16 %v225
    %v1366 = vunpack.c.l.b16 %v226
    %v1367 = vunpack.c.l.b16 %v227
    %v1368 = vunpack.c.l.b16 %v228
    %v1369 = vunpack.c.l.b16 %v229
    %v1370 = vunpack.c.l.b16 %v230
    %v1371 = vunpack.c.l.b16 %v231
    %v1372 = vunpack.c.l.b16 %v232
    %v1373 = vunpack.c.l.b16 %v233
    %v1374 = vunpack.c.l.b16 %v234
    %v1375 = vunpack.c.l.b16 %v235
    %v1376 = vunpack.c.l.b16 %v236
    %v1377 = vunpack.c.l.b16 %v237
    %v1378 = vunpack.c.l.b16 %v238
    %v1379 = vunpack.c.l.b16 %v239
    %v1380 = vunpack.c.l.b16 %v240
    %v1381 = vunpack.c.l.b16 %v241
    %v1382 = vunpack.c.l.b16 %v242
    %v1383 = vunpack.c.l.b16 %v243
    %v1384 = vunpack.c.l.b16 %v244
    %v1385 = vunpack.c.l.b16 %v245
    %v1386 = vunpack.c.l.b16 %v246
    %v1387 = vunpack.c.l.b16 %v247
    %v1388 = vunpack.c.l.b16 %v248
    %v1389 = vunpack.c.l.b16 %v249
    %v1390 = vunpack.c.l.b16 %v250
    %v1391 = vunpack.c.l.b16 %v251
    %v1392 = vunpack.c.l.b16 %v252
    %v1393 = vunpack.c.l.b16 %v253
    %v1394 = vunpack.c.l.b16 %v254
    %v1395 = vunpack.c.l.b16 %v255
    %v1396 = vunpack.c.l.b16 %v256
    %v1397 = vunpack.c.l.b16 %v257
    %v1398 = vunpack.c.l.b16 %v258
    %v1399 = vunpack.c.l.b16 %v259
    %v1400 = vunpack.c.l.b16 %v260
    %v1401 = vunpack.c.l.b16 %v261
    %v1402 = vunpack.c.l.b16 %v262
    %v1403 = vunpack.c.l.b16 %v263
    %v1404 = vunpack.c.l.b16 %v264
    %v1405 = vunpack.c.l.b16 %v265
    %v1406 = vunpack.c.l.b16 %v266
    %v1407 = vunpack.c.l.b16 %v267
    %v1408 = vunpack.c.l.b16 %v268
    %v1409 = vunpack.c.l.b16 %v269
    %v1410 = vunpack.c.l.b16 %v270
    %v1411 = vunpack.c.l.b16 %v271
    %v1412 = vunpack.c.l.b16 %v272
    %v1413 = vunpack.c.l.b16 %v273
    %v1414 = vunpack.c.l.b16 %v274
    %v1415 = vunpack.c.l.b16 %v275
    %v1416 = vunpack.c.l.b16 %v276
    %v1417 = vunpack.c.l.b16 %v277
    %v1418 = vunpack.c.l.b16 %v278
    %v1419 = vunpack.c.l.b16 %v279
    %v1420 = vunpack.c.l.b16 %v280
    %v1421 = vunpack.c.l.b16 %v281
    %v1422 = vunpack.c.l.b16 %v282
    %v1423 = vunpack.c.l.b16 %v283
    %v1424 = vunpack.c.l.b16 %v284
    %v1425 = vunpack.c.l.b16 %v285
    %v1426 = vunpack.c.l.b16 %v286
    %v1427 = vunpack.c.l.b16 %v287
    %v1428 = vunpack.c.l.b16 %v288
    %v1429 = vunpack.c.l.b16 %v289
    %v1430 = vunpack.c.l.b16 %v290
    %v1431 = vunpack.c.l.b16 %v291
    %v1432 = vunpack.c.l.b16 %v292
    %v1433 = vunpack.c.l.b16 %v293
    %v1434 = vunpack.c.l.b16 %v294
    %v1435 = vunpack.c.l.b16 %v295
    %v1436 = vunpack.c.l.b16 %v296
    %v1437 = vunpack.c.l.b16 %v297
    %v1438 = vunpack.c.l.b16 %v298
    %v1439 = vunpack.c.l.b16 %v299
    %v1440 = vunpack.c.l.b16 %v300
    %v1441 = vunpack.c.l.b16 %v301
    %v1442 = vunpack.c.l.b16 %v302
    %v1443 = vunpack.c.l.b16 %v303
    %v1444 = vunpack.c.l.b16 %v304
    %v1445 = vunpack.c.l.b16 %v305
    %v1446 = vunpack.c.l.b16 %v306
    %v1447 = vunpack.c.l.b16 %v307
    %v1448 = vunpack.c.l.b16 %v308
    %v1449 = vunpack.c.l.b16 %v309
    %v1450 = vunpack.c.l.b16 %v310
    %v1451 = vunpack.c.l.b16 %v311
    %v1452 = vunpack.c.l.b16 %v312
    %v1453 = vunpack.c.l.b16 %v313
    %v1454 = vunpack.c.l.b16 %v314
    %v1455 = vunpack.c.l.b16 %v315
    %v1456 = vunpack.c.l.b16 %v316
    %v1457 = vunpack.c.l.b16 %v317
    %v1458 = vunpack.c.l.b16 %v318
    %v1459 = vunpack.c.l.b16 %v319
    %v1460 = vunpack.c.l.b16 %v320
    %v1461 = vunpack.c.l.b16 %v321
    %v1462 = vunpack.c.l.b16 %v322
    %v1463 = vunpack.c.l.b16 %v323
    %v1464 = vunpack.c.l.b16 %v324
    %v1465 = vunpack.c.l.b16 %v325
    %v1466 = vunpack.c.l.b16 %v326
    %v1467 = vunpack.c.l.b16 %v327
    %v1468 = vunpack.c.l.b16 %v328
    %v1469 = vunpack.c.l.b16 %v329
    %v1470 = vunpack.c.l.b16 %v330
    %v1471 = vunpack.c.l.b16 %v331
    %v1472 = vunpack.c.l.b16 %v332
    %v1473 = vunpack.c.l.b16 %v333
    %v1474 = vunpack.c.l.b16 %v334
    %v1475 = vunpack.c.l.b16 %v335
    %v1476 = vunpack.c.l.b16 %v336
    %v1477 = vunpack.c.l.b16 %v337
    %v1478 = vunpack.c.l.b16 %v338
    %v1479 = vunpack.c.l.b16 %v339
    %v1480 = vunpack.c.l.b16 %v340
    %v1481 = vunpack.c.l.b16 %v341
    %v1482 = vunpack.c.l.b16 %v342
    %v1483 = vunpack.c.l.b16 %v343
    %v1484 = vunpack.c.l.b16 %v344
    %v1485 = vunpack.c.l.b16 %v345
    %v1486 = vunpack.c.l.b16 %v346
    %v1487 = vunpack.c.l.b16 %v347
    %v1488 = vunpack.c.l.b16 %v348
    %v1489 = vunpack.c.l.b16 %v349
    %v1490 = vunpack.c.l.b16 %v350
    %v1491 = vunpack.c.l.b16 %v351
    %v1492 = vunpack.c.l.b16 %v352
    %v1493 = vunpack.c.l.b16 %v353
    %v1494 = vunpack.c.l.b16 %v354
    %v1495 = vunpack.c.l.b16 %v355
    %v1496 = vunpack.c.l.b16 %v356
    %v1497 = vunpack.c.l.b16 %v357
    %v1498 = vunpack.c.l.b16 %v358
    %v1499 = vunpack.c.l.b16 %v359
    %v1500 = vunpack.c.l.b16 %v360
    %v1501 = vunpack.c.l.b16 %v361
    %v1502 = vunpack.c.l.b16 %v362
    %v1503 = vunpack.c.l.b16 %v363
    %v1504 = vunpack.c.l.b16 %v364
    %v1505 = vunpack.c.l.b16 %v365
    %v1506 = vunpack.c.l.b16 %v366
    %v1507 = vunpack.c.l.b16 %v367
    %v1508 = vunpack.c.l.b16 %v368
    %v1509 = vunpack.c.l.b16 %v369
    %v1510 = vunpack.c.l.b16 %v370
    %v1511 = vunpack.c.l.b16 %v371
    %v1512 = vunpack.c.l.b16 %v372
    %v1513 = vunpack.c.l.b16 %v373
    %v1514 = vunpack.c.l.b16 %v374
    %v1515 = vunpack.c.l.b16 %v375
    %v1516 = vunpack.c.l.b16 %v376
    %v1517 = vunpack.c.l.b16 %v377
    %v1518 = vunpack.c.l.b16 %v378
    %v1519 = vunpack.c.l.b16 %v379
    %v1520 = vunpack.c.l.b16 %v380
    %v1521 = vunpack.c.l.b16 %v381
    %v1522 = vunpack.c.l.b16 %v382
    %v1523 = vunpack.c.l.b16 %v383
    %v1524 = vunpack.c.l.b16 %v384
    %v1525 = vunpack.c.l.b16 %v385
    %v1526 = vunpack.c.l.b16 %v386
    %v1527 = vunpack.c.l.b16 %v387
    %v1528 = vunpack.c.l.b16 %v388
    %v1529 = vunpack.c.l.b16 %v389
    %v1530 = vunpack.c.l.b16 %v390
    %v1531 = vunpack.c.l.b16 %v391
    %v1532 = vunpack.c.l.b16 %v392
    %v1533 = vunpack.c.l.b16 %v393
    %v1534 = vunpack.c.l.b16 %v394
    %v1535 = vunpack.c.l.b16 %v395
    %v1536 = vunpack.c.l.b16 %v396
    %v1537 = vunpack.c.l.b16 %v397
    %v1538 = vunpack.c.l.b16 %v398
    %v1539 = vunpack.c.l.b16 %v399
    %v1540 = vunpack.c.l.b16 %v400
    %v1541 = vunpack.c.l.b16 %v401
    %v1542 = vunpack.c.l.b16 %v402
    %v1543 = vunpack.c.l.b16 %v403
    %v1544 = vunpack.c.l.b16 %v404
    %v1545 = vunpack.c.l.b16 %v405
    %v1546 = vunpack.c.l.b16 %v406
    %v1547 = vunpack.c.l.b16 %v407
    %v1548 = vunpack.c.l.b16 %v408
    %v1549 = vunpack.c.l.b16 %v409
    %v1550 = vunpack.c.l.b16 %v410
    %v1551 = vunpack.c.l.b16 %v411
    %v1552 = vunpack.c.l.b16 %v412
    %v1553 = vunpack.c.l.b16 %v413
    %v1554 = vunpack.c.l.b16 %v414
    %v1555 = vunpack.c.l.b16 %v415
    %v1556 = vunpack.c.l.b16 %v416
    %v1557 = vunpack.c.l.b16 %v417
    %v1558 = vunpack.c.l.b16 %v418
    %v1559 = vunpack.c.l.b16 %v419
    %v1560 = vunpack.c.l.b16 %v420
    %v1561 = vunpack.c.l.b16 %v421
    %v1562 = vunpack.c.l.b16 %v422
    %v1563 = vunpack.c.l.b16 %v423
    %v1564 = vunpack.c.l.b16 %v424
    %v1565 = vunpack.c.l.b16 %v425
    %v1566 = vunpack.c.l.b16 %v426
    %v1567 = vunpack.c.l.b16 %v427
    %v1568 = vunpack.c.l.b16 %v428
    %v1569 = vunpack.c.l.b16 %v429
    %v1570 = vunpack.c.l.b16 %v430
    %v1571 = vunpack.c.l.b16 %v431
    %v1572 = vunpack.c.l.b16 %v432
    %v1573 = vunpack.c.l.b16 %v433
    %v1574 = vunpack.c.l.b16 %v434
    %v1575 = vunpack.c.l.b16 %v435
    %v1576 = vunpack.c.l.b16 %v436
    %v1577 = vunpack.c.l.b16 %v437
    %v1578 = vunpack.c.l.b16 %v438
    %v1579 = vunpack.c.l.b16 %v439
    %v1580 = vunpack.c.l.b16 %v440
    %v1581 = vunpack.c.l.b16 %v441
    %v1582 = vunpack.c.l.b16 %v442
    %v1583 = vunpack.c.l.b16 %v443
    %v1584 = vunpack.c.l.b16 %v444
    %v1585 = vunpack.c.l.b16 %v445
    %v1586 = vunpack.c.l.b16 %v446
    %v1587 = vunpack.c.l.b16 %v447
    %v1588 = vunpack.c.l.b16 %v448
    %v1589 = vunpack.c.l.b16 %v449
    %v1590 = vunpack.c.l.b16 %v450
    %v1591 = vunpack.c.l.b16 %v451
    %v1592 = vunpack.c.l.b16 %v452
    %v1593 = vunpack.c.l.b16 %v453
    %v1594 = vunpack.c.l.b16 %v454
    %v1595 = vunpack.c.l.b16 %v455
    %v1596 = vunpack.c.l.b16 %v456
    %v1597 = vunpack.c.l.b16 %v457
    %v1598 = vunpack.c.l.b16 %v458
    %v1599 = vunpack.c.l.b16 %v459
    %v1600 = vunpack.c.l.b16 %v460
    %v1601 = vunpack.c.l.b16 %v461
    %v1602 = vunpack.c.l.b16 %v462
    %v1603 = vunpack.c.l.b16 %v463
    %v1604 = vunpack.c.l.b16 %v464
    %v1605 = vunpack.c.l.b16 %v465
    %v1606 = vunpack.c.l.b16 %v466
    %v1607 = vunpack.c.l.b16 %v467
    %v1608 = vunpack.c.l.b16 %v468
    %v1609 = vunpack.c.l.b16 %v469
    %v1610 = vunpack.c.l.b16 %v470
    %v1611 = vunpack.c.l.b16 %v471
    %v1612 = vunpack.c.l.b16 %v472
    %v1613 = vunpack.c.l.b16 %v473
    %v1614 = vunpack.c.l.b16 %v474
    %v1615 = vunpack.c.l.b16 %v475
    %v1616 = vunpack.c.l.b16 %v476
    %v1617 = vunpack.c.l.b16 %v477
    %v1618 = vunpack.c.l.b16 %v478
    %v1619 = vunpack.c.l.b16 %v479
    %v1620 = vunpack.c.l.b16 %v480
    %v1621 = vunpack.c.l.b16 %v481
    %v1622 = vunpack.c.l.b16 %v482
    %v1623 = vunpack.c.l.b16 %v483
    %v1624 = vunpack.c.l.b16 %v484
    %v1625 = vunpack.c.l.b16 %v485
    %v1626 = vunpack.c.l.b16 %v486
    %v1627 = vunpack.c.l.b16 %v487
    %v1628 = vunpack.c.l.b16 %v488
    %v1629 = vunpack.c.l.b16 %v489
    %v1630 = vunpack.c.l.b16 %v490
    %v1631 = vunpack.c.l.b16 %v491
    %v1632 = vunpack.c.l.b16 %v492
    %v1633 = vunpack.c.l.b16 %v493
    %v1634 = vunpack.c.l.b16 %v494
    %v1635 = vunpack.c.l.b16 %v495
    %v1636 = vunpack.c.l.b16 %v496
    %v1637 = vunpack.c.l.b16 %v497
    %v1638 = vunpack.c.l.b16 %v498
    %v1639 = vunpack.c.l.b16 %v499
    %v1640 = vunpack.c.l.b16 %v500
    %v1641 = vunpack.c.l.b16 %v501
    %v1642 = vunpack.c.l.b16 %v502
    %v1643 = vunpack.c.l.b16 %v503
    %v1644 = vunpack.c.l.b16 %v504
    %v1645 = vunpack.c.l.b16 %v505
    %v1646 = vunpack.c.l.b16 %v506
    %v1647 = vunpack.c.l.b16 %v507
    %v1648 = vunpack.c.l.b16 %v508
    %v1649 = vunpack.c.l.b16 %v509
    %v1650 = vunpack.c.l.b16 %v510
    %v1651 = vunpack.c.l.b16 %v511
    %v1652 = vunpack.c.l.b16 %v512
    %v1653 = vunpack.c.l.b16 %v513
    %v1654 = vunpack.c.l.b16 %v514
    %v1655 = vunpack.c.l.b16 %v515
    %v1656 = vunpack.c.l.b16 %v516
    %v1657 = vunpack.c.l.b16 %v517
    %v1658 = vunpack.c.l.b16 %v518
    %v1659 = vunpack.c.l.b16 %v519
    %v1660 = vunpack.c.l.b16 %v520
    %v1661 = vunpack.c.l.b16 %v521
    %v1662 = vunpack.c.l.b16 %v522
    %v1663 = vunpack.c.l.b16 %v523
    %v1664 = vunpack.c.l.b16 %v524
    %v1665 = vunpack.c.l.b16 %v525
    %v1666 = vunpack.c.l.b16 %v526
    %v1667 = vunpack.c.l.b16 %v527
    %v1668 = vunpack.c.l.b16 %v528
    %v1669 = vunpack.c.l.b16 %v529
    %v1670 = vunpack.c.l.b16 %v530
    %v1671 = vunpack.c.l.b16 %v531
    %v1672 = vunpack.c.l.b16 %v532
    %v1673 = vunpack.c.l.b16 %v533
    %v1674 = vunpack.c.l.b16 %v534
    %v1675 = vunpack.c.l.b16 %v535
    %v1676 = vunpack.c.l.b16 %v536
    %v1677 = vunpack.c.l.b16 %v537
    %v1678 = vunpack.c.l.b16 %v538
    %v1679 = vunpack.c.l.b16 %v539
    %v1680 = vunpack.c.l.b16 %v540
    %v1681 = vunpack.c.l.b16 %v541
    %v1682 = vunpack.c.l.b16 %v542
    %v1683 = vunpack.c.l.b16 %v543
    %v1684 = vunpack.c.l.b16 %v544
    %v1685 = vunpack.c.l.b16 %v545
    %v1686 = vunpack.c.l.b16 %v546
    %v1687 = vunpack.c.l.b16 %v547
    %v1688 = vunpack.c.l.b16 %v548
    %v1689 = vunpack.c.l.b16 %v549
    %v1690 = vunpack.c.l.b16 %v550
    %v1691 = vunpack.c.l.b16 %v551
    %v1692 = vunpack.c.l.b16 %v552
    %v1693 = vunpack.c.l.b16 %v553
    %v1694 = vunpack.c.l.b16 %v554
    %v1695 = vunpack.c.l.b16 %v555
    %v1696 = vunpack.c.l.b16 %v556
    %v1697 = vunpack.c.l.b16 %v557
    %v1698 = vunpack.c.l.b16 %v558
    %v1699 = vunpack.c.l.b16 %v559
    %v1700 = vunpack.c.l.b16 %v560
    %v1701 = vunpack.c.l.b16 %v561
    %v1702 = vunpack.c.l.b16 %v562
    %v1703 = vunpack.c.l.b16 %v563
    %v1704 = vunpack.c.l.b16 %v564
    %v1705 = vunpack.c.l.b16 %v565
    %v1706 = vunpack.c.l.b16 %v566
    %v1707 = vunpack.c.l.b16 %v567
    %v1708 = vunpack.c.l.b16 %v568
    %v1709 = vunpack.c.l.b16 %v569
    %v1710 = vunpack.c.l.b16 %v570
    %v1711 = vunpack.c.l.b16 %v571
    %v1712 = vunpack.c.l.b16 %v572
    %v1713 = vunpack.c.l.b16 %v573
    %v1714 = vunpack.c.l.b16 %v574
    %v1715 = vunpack.c.l.b16 %v575
    %v1716 = vunpack.c.l.b16 %v576
    %v1717 = vunpack.c.l.b16 %v577
    %v1718 = vunpack.c.l.b16 %v578
    %v1719 = vunpack.c.l.b16 %v579
    %v1720 = vunpack.c.l.b16 %v580
    %v1721 = vunpack.c.l.b16 %v581
    %v1722 = vunpack.c.l.b16 %v582
    %v1723 = vunpack.c.l.b16 %v583
    %v1724 = vunpack.c.l.b16 %v584
    %v1725 = vunpack.c.l.b16 %v585
    %v1726 = vunpack.c.l.b16 %v586
    %v1727 = vunpack.c.l.b16 %v587
    %v1728 = vunpack.c.l.b16 %v588
    %v1729 = vunpack.c.l.b16 %v589
    %v1730 = vunpack.c.l.b16 %v590
    %v1731 = vunpack.c.l.b16 %v591
    %v1732 = vunpack.c.l.b16 %v592
    %v1733 = vunpack.c.l.b16 %v593
    %v1734 = vunpack.c.l.b16 %v594
    %v1735 = vunpack.c.l.b16 %v595
    %v1736 = vunpack.c.l.b16 %v596
    %v1737 = vunpack.c.l.b16 %v597
    %v1738 = vunpack.c.l.b16 %v598
    %v1739 = vunpack.c.l.b16 %v599
    %v1740 = vunpack.c.l.b16 %v600
    %v1741 = vunpack.c.l.b16 %v601
    %v1742 = vunpack.c.l.b16 %v602
    %v1743 = vunpack.c.l.b16 %v603
    %v1744 = vunpack.c.l.b16 %v604
    %v1745 = vunpack.c.l.b16 %v605
    %v1746 = vunpack.c.l.b16 %v606
    %v1747 = vunpack.c.l.b16 %v607
    %v1748 = vunpack.c.l.b16 %v608
    %v1749 = vunpack.c.l.b16 %v609
    %v1750 = vunpack.c.l.b16 %v610
    %v1751 = vunpack.c.l.b16 %v611
    %v1752 = vunpack.c.l.b16 %v612
    %v1753 = vunpack.c.l.b16 %v613
    %v1754 = vunpack.c.l.b16 %v614
    %v1755 = vpack.c.b16 %v1244, %v1243
    %v1756 = vpack.c.b16 %v1246, %v1245
    %v1757 = vpack.c.b16 %v1248, %v1247
    %v1758 = vpack.c.b16 %v1250, %v1249
    %v1759 = vpack.c.b16 %v1252, %v1251
    %v1760 = vpack.c.b16 %v1254, %v1253
    %v1761 = vpack.c.b16 %v1256, %v1255
    %v1762 = vpack.c.b16 %v1258, %v1257
    %v1763 = vpack.c.b16 %v1260, %v1259
    %v1764 = vpack.c.b16 %v1262, %v1261
    %v1765 = vpack.c.b16 %v1264, %v1263
    %v1766 = vpack.c.b16 %v1266, %v1265
    %v1767 = vpack.c.b16 %v1268, %v1267
    %v1768 = vpack.c.b16 %v1270, %v1269
    %v1769 = vpack.c.b16 %v1272, %v1271
    %v1770 = vpack.c.b16 %v1274, %v1273
    %v1771 = vpack.c.b16 %v1276, %v1275
    %v1772 = vpack.c.b16 %v1278, %v1277
    %v1773 = vpack.c.b16 %v1280, %v1279
    %v1774 = vpack.c.b16 %v1282, %v1281
    %v1775 = vpack.c.b16 %v1284, %v1283
    %v1776 = vpack.c.b16 %v1286, %v1285
    %v1777 = vpack.c.b16 %v1288, %v1287
    %v1778 = vpack.c.b16 %v1290, %v1289
    %v1779 = vpack.c.b16 %v1292, %v1291
    %v1780 = vpack.c.b16 %v1294, %v1293
    %v1781 = vpack.c.b16 %v1296, %v1295
    %v1782 = vpack.c.b16 %v1298, %v1297
    %v1783 = vpack.c.b16 %v1300, %v1299
    %v1784 = vpack.c.b16 %v1302, %v1301
    %v1785 = vpack.c.b16 %v1304, %v1303
    %v1786 = vpack.c.b16 %v1306, %v1305
    %v1787 = vpack.c.b16 %v1308, %v1307
    %v1788 = vpack.c.b16 %v1310, %v1309
    %v1789 = vpack.c.b16 %v1312, %v1311
    %v1790 = vpack.c.b16 %v1314, %v1313
    %v1791 = vpack.c.b16 %v1316, %v1315
    %v1792 = vpack.c.b16 %v1318, %v1317
    %v1793 = vpack.c.b16 %v1320, %v1319
    %v1794 = vpack.c.b16 %v1322, %v1321
    %v1795 = vpack.c.b16 %v1324, %v1323
    %v1796 = vpack.c.b16 %v1326, %v1325
    %v1797 = vpack.c.b16 %v1328, %v1327
    %v1798 = vpack.c.b16 %v1330, %v1329
    %v1799 = vpack.c.b16 %v1332, %v1331
    %v1800 = vpack.c.b16 %v1334, %v1333
    %v1801 = vpack.c.b16 %v1336, %v1335
    %v1802 = vpack.c.b16 %v1338, %v1337
    %v1803 = vpack.c.b16 %v1340, %v1339
    %v1804 = vpack.c.b16 %v1342, %v1341
    %v1805 = vpack.c.b16 %v1344, %v1343
    %v1806 = vpack.c.b16 %v1346, %v1345
    %v1807 = vpack.c.b16 %v1348, %v1347
    %v1808 = vpack.c.b16 %v1350, %v1349
    %v1809 = vpack.c.b16 %v1352, %v1351
    %v1810 = vpack.c.b16 %v1354, %v1353
    %v1811 = vpack.c.b16 %v1356, %v1355
    %v1812 = vpack.c.b16 %v1358, %v1357
    %v1813 = vpack.c.b16 %v1360, %v1359
    %v1814 = vpack.c.b16 %v1362, %v1361
    %v1815 = vpack.c.b16 %v1364, %v1363
    %v1816 = vpack.c.b16 %v1366, %v1365
    %v1817 = vpack.c.b16 %v1368, %v1367
    %v1818 = vpack.c.b16 %v1370, %v1369
    %v1819 = vpack.c.b16 %v1372, %v1371
    %v1820 = vpack.c.b16 %v1374, %v1373
    %v1821 = vpack.c.b16 %v1376, %v1375
    %v1822 = vpack.c.b16 %v1378, %v1377
    %v1823 = vpack.c.b16 %v1380, %v1379
    %v1824 = vpack.c.b16 %v1382, %v1381
    %v1825 = vpack.c.b16 %v1384, %v1383
    %v1826 = vpack.c.b16 %v1386, %v1385
    %v1827 = vpack.c.b16 %v1388, %v1387
    %v1828 = vpack.c.b16 %v1390, %v1389
    %v1829 = vpack.c.b16 %v1392, %v1391
    %v1830 = vpack.c.b16 %v1394, %v1393
    %v1831 = vpack.c.b16 %v1396, %v1395
    %v1832 = vpack.c.b16 %v1398, %v1397
    %v1833 = vpack.c.b16 %v1400, %v1399
    %v1834 = vpack.c.b16 %v1402, %v1401
    %v1835 = vpack.c.b16 %v1404, %v1403
    %v1836 = vpack.c.b16 %v1406, %v1405
    %v1837 = vpack.c.b16 %v1408, %v1407
    %v1838 = vpack.c.b16 %v1410, %v1409
    %v1839 = vpack.c.b16 %v1412, %v1411
    %v1840 = vpack.c.b16 %v1414, %v1413
    %v1841 = vpack.c.b16 %v1416, %v1415
    %v1842 = vpack.c.b16 %v1418, %v1417
    %v1843 = vpack.c.b16 %v1420, %v1419
    %v1844 = vpack.c.b16 %v1422, %v1421
    %v1845 = vpack.c.b16 %v1424, %v1423
    %v1846 = vpack.c.b16 %v1426, %v1425
    %v1847 = vpack.c.b16 %v1428, %v1427
    %v1848 = vpack.c.b16 %v1430, %v1429
    %v1849 = vpack.c.b16 %v1432, %v1431
    %v1850 = vpack.c.b16 %v1434, %v1433
    %v1851 = vpack.c.b16 %v1436, %v1435
    %v1852 = vpack.c.b16 %v1438, %v1437
    %v1853 = vpack.c.b16 %v1440, %v1439
    %v1854 = vpack.c.b16 %v1442, %v1441
    %v1855 = vpack.c.b16 %v1444, %v1443
    %v1856 = vpack.c.b16 %v1446, %v1445
    %v1857 = vpack.c.b16 %v1448, %v1447
    %v1858 = vpack.c.b16 %v1450, %v1449
    %v1859 = vpack.c.b16 %v1452, %v1451
    %v1860 = vpack.c.b16 %v1454, %v1453
    %v1861 = vpack.c.b16 %v1456, %v1455
    %v1862 = vpack.c.b16 %v1458, %v1457
    %v1863 = vpack.c.b16 %v1460, %v1459
    %v1864 = vpack.c.b16 %v1462, %v1461
    %v1865 = vpack.c.b16 %v1464, %v1463
    %v1866 = vpack.c.b16 %v1466, %v1465
    %v1867 = vpack.c.b16 %v1468, %v1467
    %v1868 = vpack.c.b16 %v1470, %v1469
    %v1869 = vpack.c.b16 %v1472, %v1471
    %v1870 = vpack.c.b16 %v1474, %v1473
    %v1871 = vpack.c.b16 %v1476, %v1475
    %v1872 = vpack.c.b16 %v1478, %v1477
    %v1873 = vpack.c.b16 %v1480, %v1479
    %v1874 = vpack.c.b16 %v1482, %v1481
    %v1875 = vpack.c.b16 %v1484, %v1483
    %v1876 = vpack.c.b16 %v1486, %v1485
    %v1877 = vpack.c.b16 %v1488, %v1487
    %v1878 = vpack.c.b16 %v1490, %v1489
    %v1879 = vpack.c.b16 %v1492, %v1491
    %v1880 = vpack.c.b16 %v1494, %v1493
    %v1881 = vpack.c.b16 %v1496, %v1495
    %v1882 = vpack.c.b16 %v1498, %v1497
    %v1883 = vpack.c.b16 %v1500, %v1499
    %v1884 = vpack.c.b16 %v1502, %v1501
    %v1885 = vpack.c.b16 %v1504, %v1503
    %v1886 = vpack.c.b16 %v1506, %v1505
    %v1887 = vpack.c.b16 %v1508, %v1507
    %v1888 = vpack.c.b16 %v1510, %v1509
    %v1889 = vpack.c.b16 %v1512, %v1511
    %v1890 = vpack.c.b16 %v1514, %v1513
    %v1891 = vpack.c.b16 %v1516, %v1515
    %v1892 = vpack.c.b16 %v1518, %v1517
    %v1893 = vpack.c.b16 %v1520, %v1519
    %v1894 = vpack.c.b16 %v1522, %v1521
    %v1895 = vpack.c.b16 %v1524, %v1523
    %v1896 = vpack.c.b16 %v1526, %v1525
    %v1897 = vpack.c.b16 %v1528, %v1527
    %v1898 = vpack.c.b16 %v1530, %v1529
    %v1899 = vpack.c.b16 %v1532, %v1531
    %v1900 = vpack.c.b16 %v1534, %v1533
    %v1901 = vpack.c.b16 %v1536, %v1535
    %v1902 = vpack.c.b16 %v1538, %v1537
    %v1903 = vpack.c.b16 %v1540, %v1539
    %v1904 = vpack.c.b16 %v1542, %v1541
    %v1905 = vpack.c.b16 %v1544, %v1543
    %v1906 = vpack.c.b16 %v1546, %v1545
    %v1907 = vpack.c.b16 %v1548, %v1547
    %v1908 = vpack.c.b16 %v1550, %v1549
    %v1909 = vpack.c.b16 %v1552, %v1551
    %v1910 = vpack.c.b16 %v1554, %v1553
    %v1911 = vpack.c.b16 %v1556, %v1555
    %v1912 = vpack.c.b16 %v1558, %v1557
    %v1913 = vpack.c.b16 %v1560, %v1559
    %v1914 = vpack.c.b16 %v1562, %v1561
    %v1915 = vpack.c.b16 %v1564, %v1563
    %v1916 = vpack.c.b16 %v1566, %v1565
    %v1917 = vpack.c.b16 %v1568, %v1567
    %v1918 = vpack.c.b16 %v1570, %v1569
    %v1919 = vpack.c.b16 %v1572, %v1571
    %v1920 = vpack.c.b16 %v1574, %v1573
    %v1921 = vpack.c.b16 %v1576, %v1575
    %v1922 = vpack.c.b16 %v1578, %v1577
    %v1923 = vpack.c.b16 %v1580, %v1579
    %v1924 = vpack.c.b16 %v1582, %v1581
    %v1925 = vpack.c.b16 %v1584, %v1583
    %v1926 = vpack.c.b16 %v1586, %v1585
    %v1927 = vpack.c.b16 %v1588, %v1587
    %v1928 = vpack.c.b16 %v1590, %v1589
    %v1929 = vpack.c.b16 %v1592, %v1591
    %v1930 = vpack.c.b16 %v1594, %v1593
    %v1931 = vpack.c.b16 %v1596, %v1595
    %v1932 = vpack.c.b16 %v1598, %v1597
    %v1933 = vpack.c.b16 %v1600, %v1599
    %v1934 = vpack.c.b16 %v1602, %v1601
    %v1935 = vpack.c.b16 %v1604, %v1603
    %v1936 = vpack.c.b16 %v1606, %v1605
    %v1937 = vpack.c.b16 %v1608, %v1607
    %v1938 = vpack.c.b16 %v1610, %v1609
    %v1939 = vpack.c.b16 %v1612, %v1611
    %v1940 = vpack.c.b16 %v1614, %v1613
    %v1941 = vpack.c.b16 %v1616, %v1615
    %v1942 = vpack.c.b16 %v1618, %v1617
    %v1943 = vpack.c.b16 %v1620, %v1619
    %v1944 = vpack.c.b16 %v1622, %v1621
    %v1945 = vpack.c.b16 %v1624, %v1623
    %v1946 = vpack.c.b16 %v1626, %v1625
    %v1947 = vpack.c.b16 %v1628, %v1627
    %v1948 = vpack.c.b16 %v1630, %v1629
    %v1949 = vpack.c.b16 %v1632, %v1631
    %v1950 = vpack.c.b16 %v1634, %v1633
    %v1951 = vpack.c.b16 %v1636, %v1635
    %v1952 = vpack.c.b16 %v1638, %v1637
    %v1953 = vpack.c.b16 %v1640, %v1639
    %v1954 = vpack.c.b16 %v1642, %v1641
    %v1955 = vpack.c.b16 %v1644, %v1643
    %v1956 = vpack.c.b16 %v1646, %v1645
    %v1957 = vpack.c.b16 %v1648, %v1647
    %v1958 = vpack.c.b16 %v1650, %v1649
    %v1959 = vpack.c.b16 %v1652, %v1651
    %v1960 = vpack.c.b16 %v1654, %v1653
    %v1961 = vpack.c.b16 %v1656, %v1655
    %v1962 = vpack.c.b16 %v1658, %v1657
    %v1963 = vpack.c.b16 %v1660, %v1659
    %v1964 = vpack.c.b16 %v1662, %v1661
    %v1965 = vpack.c.b16 %v1664, %v1663
    %v1966 = vpack.c.b16 %v1666, %v1665
    %v1967 = vpack.c.b16 %v1668, %v1667
    %v1968 = vpack.c.b16 %v1670, %v1669
    %v1969 = vpack.c.b16 %v1672, %v1671
    %v1970 = vpack.c.b16 %v1674, %v1673
    %v1971 = vpack.c.b16 %v1676, %v1675
    %v1972 = vpack.c.b16 %v1678, %v1677
    %v1973 = vpack.c.b16 %v1680, %v1679
    %v1974 = vpack.c.b16 %v1682, %v1681
    %v1975 = vpack.c.b16 %v1684, %v1683
    %v1976 = vpack.c.b16 %v1686, %v1685
    %v1977 = vpack.c.b16 %v1688, %v1687
    %v1978 = vpack.c.b16 %v1690, %v1689
    %v1979 = vpack.c.b16 %v1692, %v1691
    %v1980 = vpack.c.b16 %v1694, %v1693
    %v1981 = vpack.c.b16 %v1696, %v1695
    %v1982 = vpack.c.b16 %v1698, %v1697
    %v1983 = vpack.c.b16 %v1700, %v1699
    %v1984 = vpack.c.b16 %v1702, %v1701
    %v1985 = vpack.c.b16 %v1704, %v1703
    %v1986 = vpack.c.b16 %v1706, %v1705
    %v1987 = vpack.c.b16 %v1708, %v1707
    %v1988 = vpack.c.b16 %v1710, %v1709
    %v1989 = vpack.c.b16 %v1712, %v1711
    %v1990 = vpack.c.b16 %v1714, %v1713
    %v1991 = vpack.c.b16 %v1716, %v1715
    %v1992 = vpack.c.b16 %v1718, %v1717
    %v1993 = vpack.c.b16 %v1720, %v1719
    %v1994 = vpack.c.b16 %v1722, %v1721
    %v1995 = vpack.c.b16 %v1724, %v1723
    %v1996 = vpack.c.b16 %v1726, %v1725
    %v1997 = vpack.c.b16 %v1728, %v1727
    %v1998 = vpack.c.b16 %v1730, %v1729
    %v1999 = vpack.c.b16 %v1732, %v1731
    %v2000 = vpack.c.b16 %v1734, %v1733
    %v2001 = vpack.c.b16 %v1736, %v1735
    %v2002 = vpack.c.b16 %v1738, %v1737
    %v2003 = vpack.c.b16 %v1740, %v1739
    %v2004 = vpack.c.b16 %v1742, %v1741
    %v2005 = vpack.c.b16 %v1744, %v1743
    %v2006 = vpack.c.b16 %v1746, %v1745
    %v2007 = vpack.c.b16 %v1748, %v1747
    %v2008 = vpack.c.b16 %v1750, %v1749
    %v2009 = vpack.c.b16 %v1752, %v1751
    %v2010 = vpack.c.b16 %v1754, %v1753
    %2267 = vmatpush.bf16.msra.mxu0 %v1762
    %2268 = vmatpush.bf16.msra.mxu0 %v1761
    %2269 = vmatpush.bf16.msra.mxu0 %v1760
    %2270 = vmatpush.bf16.msra.mxu0 %v1759
    %2271 = vmatpush.bf16.msra.mxu0 %v1758
    %2272 = vmatpush.bf16.msra.mxu0 %v1757
    %2273 = vmatpush.bf16.msra.mxu0 %v1756
    %2274 = vmatpush.bf16.msra.mxu0 %v1755
    %2275 = vmatmul.bf16.gmra.mxu0 %v667
    %v2276 = vpop.f32.mrf.mxu0
    %v2277 = vadd.f32 %v617, %v2276
    %v2278 = vpop.f32.mrf.mxu0
    %2279 = vdwg.mxu0
    %2280 = vmatpush.bf16.msra.mxu0 %v1770
    %2281 = vmatpush.bf16.msra.mxu0 %v1769
    %2282 = vmatpush.bf16.msra.mxu0 %v1768
    %2283 = vmatpush.bf16.msra.mxu0 %v1767
    %2284 = vmatpush.bf16.msra.mxu0 %v1766
    %2285 = vmatpush.bf16.msra.mxu0 %v1765
    %2286 = vmatpush.bf16.msra.mxu0 %v1764
    %2287 = vmatpush.bf16.msra.mxu0 %v1763
    %2288 = vmatmul.bf16.gmra.mxu0 %v668
    %v2289 = vpop.f32.mrf.mxu0
    %v2290 = vadd.f32 %v2277, %v2289
    %v2291 = vpop.f32.mrf.mxu0
    %2292 = vdwg.mxu0
    %2293 = vmatpush.bf16.msra.mxu0 %v1778
    %2294 = vmatpush.bf16.msra.mxu0 %v1777
    %2295 = vmatpush.bf16.msra.mxu0 %v1776
    %2296 = vmatpush.bf16.msra.mxu0 %v1775
    %2297 = vmatpush.bf16.msra.mxu0 %v1774
    %2298 = vmatpush.bf16.msra.mxu0 %v1773
    %2299 = vmatpush.bf16.msra.mxu0 %v1772
    %2300 = vmatpush.bf16.msra.mxu0 %v1771
    %2301 = vmatmul.bf16.gmra.mxu0 %v669
    %v2302 = vpop.f32.mrf.mxu0
    %v2303 = vadd.f32 %v2290, %v2302
    %v2304 = vpop.f32.mrf.mxu0
    %2305 = vdwg.mxu0
    %2306 = vmatpush.bf16.msra.mxu0 %v1786
    %2307 = vmatpush.bf16.msra.mxu0 %v1785
    %2308 = vmatpush.bf16.msra.mxu0 %v1784
    %2309 = vmatpush.bf16.msra.mxu0 %v1783
    %2310 = vmatpush.bf16.msra.mxu0 %v1782
    %2311 = vmatpush.bf16.msra.mxu0 %v1781
    %2312 = vmatpush.bf16.msra.mxu0 %v1780
    %2313 = vmatpush.bf16.msra.mxu0 %v1779
    %2314 = vmatmul.bf16.gmra.mxu0 %v670
    %v2315 = vpop.f32.mrf.mxu0
    %v2316 = vadd.f32 %v2303, %v2315
    %v2317 = vpop.f32.mrf.mxu0
    %2318 = vdwg.mxu0
    %2319 = vmatpush.bf16.msra.mxu0 %v1794
    %2320 = vmatpush.bf16.msra.mxu0 %v1793
    %2321 = vmatpush.bf16.msra.mxu0 %v1792
    %2322 = vmatpush.bf16.msra.mxu0 %v1791
    %2323 = vmatpush.bf16.msra.mxu0 %v1790
    %2324 = vmatpush.bf16.msra.mxu0 %v1789
    %2325 = vmatpush.bf16.msra.mxu0 %v1788
    %2326 = vmatpush.bf16.msra.mxu0 %v1787
    %2327 = vmatmul.bf16.gmra.mxu0 %v671
    %v2328 = vpop.f32.mrf.mxu0
    %v2329 = vadd.f32 %v2316, %v2328
    %v2330 = vpop.f32.mrf.mxu0
    %2331 = vdwg.mxu0
    %2332 = vmatpush.bf16.msra.mxu0 %v1802
    %2333 = vmatpush.bf16.msra.mxu0 %v1801
    %2334 = vmatpush.bf16.msra.mxu0 %v1800
    %2335 = vmatpush.bf16.msra.mxu0 %v1799
    %2336 = vmatpush.bf16.msra.mxu0 %v1798
    %2337 = vmatpush.bf16.msra.mxu0 %v1797
    %2338 = vmatpush.bf16.msra.mxu0 %v1796
    %2339 = vmatpush.bf16.msra.mxu0 %v1795
    %2340 = vmatmul.bf16.gmra.mxu0 %v672
    %v2341 = vpop.f32.mrf.mxu0
    %v2342 = vadd.f32 %v2329, %v2341
    %v2343 = vpop.f32.mrf.mxu0
    %2344 = vdwg.mxu0
    %2345 = vmatpush.bf16.msra.mxu0 %v1810
    %2346 = vmatpush.bf16.msra.mxu0 %v1809
    %2347 = vmatpush.bf16.msra.mxu0 %v1808
    %2348 = vmatpush.bf16.msra.mxu0 %v1807
    %2349 = vmatpush.bf16.msra.mxu0 %v1806
    %2350 = vmatpush.bf16.msra.mxu0 %v1805
    %2351 = vmatpush.bf16.msra.mxu0 %v1804
    %2352 = vmatpush.bf16.msra.mxu0 %v1803
    %2353 = vmatmul.bf16.gmra.mxu0 %v673
    %v2354 = vpop.f32.mrf.mxu0
    %v2355 = vadd.f32 %v2342, %v2354
    %v2356 = vpop.f32.mrf.mxu0
    %2357 = vdwg.mxu0
    %2358 = vmatpush.bf16.msra.mxu0 %v1818
    %2359 = vmatpush.bf16.msra.mxu0 %v1817
    %2360 = vmatpush.bf16.msra.mxu0 %v1816
    %2361 = vmatpush.bf16.msra.mxu0 %v1815
    %2362 = vmatpush.bf16.msra.mxu0 %v1814
    %2363 = vmatpush.bf16.msra.mxu0 %v1813
    %2364 = vmatpush.bf16.msra.mxu0 %v1812
    %2365 = vmatpush.bf16.msra.mxu0 %v1811
    %2366 = vmatmul.bf16.gmra.mxu0 %v674
    %v2367 = vpop.f32.mrf.mxu0
    %v2368 = vadd.f32 %v2355, %v2367
    %v2369 = vpop.f32.mrf.mxu0
    %2370 = vdwg.mxu0
    %2371 = vmatpush.bf16.msra.mxu0 %v1826
    %2372 = vmatpush.bf16.msra.mxu0 %v1825
    %2373 = vmatpush.bf16.msra.mxu0 %v1824
    %2374 = vmatpush.bf16.msra.mxu0 %v1823
    %2375 = vmatpush.bf16.msra.mxu0 %v1822
    %2376 = vmatpush.bf16.msra.mxu0 %v1821
    %2377 = vmatpush.bf16.msra.mxu0 %v1820
    %2378 = vmatpush.bf16.msra.mxu0 %v1819
    %2379 = vmatmul.bf16.gmra.mxu0 %v675
    %v2380 = vpop.f32.mrf.mxu0
    %v2381 = vadd.f32 %v2368, %v2380
    %v2382 = vpop.f32.mrf.mxu0
    %2383 = vdwg.mxu0
    %2384 = vmatpush.bf16.msra.mxu0 %v1834
    %2385 = vmatpush.bf16.msra.mxu0 %v1833
    %2386 = vmatpush.bf16.msra.mxu0 %v1832
    %2387 = vmatpush.bf16.msra.mxu0 %v1831
    %2388 = vmatpush.bf16.msra.mxu0 %v1830
    %2389 = vmatpush.bf16.msra.mxu0 %v1829
    %2390 = vmatpush.bf16.msra.mxu0 %v1828
    %2391 = vmatpush.bf16.msra.mxu0 %v1827
    %2392 = vmatmul.bf16.gmra.mxu0 %v676
    %v2393 = vpop.f32.mrf.mxu0
    %v2394 = vadd.f32 %v2381, %v2393
    %v2395 = vpop.f32.mrf.mxu0
    %2396 = vdwg.mxu0
    %2397 = vmatpush.bf16.msra.mxu0 %v1842
    %2398 = vmatpush.bf16.msra.mxu0 %v1841
    %2399 = vmatpush.bf16.msra.mxu0 %v1840
    %2400 = vmatpush.bf16.msra.mxu0 %v1839
    %2401 = vmatpush.bf16.msra.mxu0 %v1838
    %2402 = vmatpush.bf16.msra.mxu0 %v1837
    %2403 = vmatpush.bf16.msra.mxu0 %v1836
    %2404 = vmatpush.bf16.msra.mxu0 %v1835
    %2405 = vmatmul.bf16.gmra.mxu0 %v677
    %v2406 = vpop.f32.mrf.mxu0
    %v2407 = vadd.f32 %v2394, %v2406
    %v2408 = vpop.f32.mrf.mxu0
    %2409 = vdwg.mxu0
    %2410 = vmatpush.bf16.msra.mxu0 %v1850
    %2411 = vmatpush.bf16.msra.mxu0 %v1849
    %2412 = vmatpush.bf16.msra.mxu0 %v1848
    %2413 = vmatpush.bf16.msra.mxu0 %v1847
    %2414 = vmatpush.bf16.msra.mxu0 %v1846
    %2415 = vmatpush.bf16.msra.mxu0 %v1845
    %2416 = vmatpush.bf16.msra.mxu0 %v1844
    %2417 = vmatpush.bf16.msra.mxu0 %v1843
    %2418 = vmatmul.bf16.gmra.mxu0 %v678
    %v2419 = vpop.f32.mrf.mxu0
    %v2420 = vadd.f32 %v2407, %v2419
    %v2421 = vpop.f32.mrf.mxu0
    %2422 = vdwg.mxu0
    %2423 = vmatpush.bf16.msra.mxu0 %v1858
    %2424 = vmatpush.bf16.msra.mxu0 %v1857
    %2425 = vmatpush.bf16.msra.mxu0 %v1856
    %2426 = vmatpush.bf16.msra.mxu0 %v1855
    %2427 = vmatpush.bf16.msra.mxu0 %v1854
    %2428 = vmatpush.bf16.msra.mxu0 %v1853
    %2429 = vmatpush.bf16.msra.mxu0 %v1852
    %2430 = vmatpush.bf16.msra.mxu0 %v1851
    %2431 = vmatmul.bf16.gmra.mxu0 %v679
    %v2432 = vpop.f32.mrf.mxu0
    %v2433 = vadd.f32 %v2420, %v2432
    %v2434 = vpop.f32.mrf.mxu0
    %2435 = vdwg.mxu0
    %2436 = vmatpush.bf16.msra.mxu0 %v1866
    %2437 = vmatpush.bf16.msra.mxu0 %v1865
    %2438 = vmatpush.bf16.msra.mxu0 %v1864
    %2439 = vmatpush.bf16.msra.mxu0 %v1863
    %2440 = vmatpush.bf16.msra.mxu0 %v1862
    %2441 = vmatpush.bf16.msra.mxu0 %v1861
    %2442 = vmatpush.bf16.msra.mxu0 %v1860
    %2443 = vmatpush.bf16.msra.mxu0 %v1859
    %2444 = vmatmul.bf16.gmra.mxu0 %v680
    %v2445 = vpop.f32.mrf.mxu0
    %v2446 = vadd.f32 %v2433, %v2445
    %v2447 = vpop.f32.mrf.mxu0
    %2448 = vdwg.mxu0
    %2449 = vmatpush.bf16.msra.mxu0 %v1874
    %2450 = vmatpush.bf16.msra.mxu0 %v1873
    %2451 = vmatpush.bf16.msra.mxu0 %v1872
    %2452 = vmatpush.bf16.msra.mxu0 %v1871
    %2453 = vmatpush.bf16.msra.mxu0 %v1870
    %2454 = vmatpush.bf16.msra.mxu0 %v1869
    %2455 = vmatpush.bf16.msra.mxu0 %v1868
    %2456 = vmatpush.bf16.msra.mxu0 %v1867
    %2457 = vmatmul.bf16.gmra.mxu0 %v681
    %v2458 = vpop.f32.mrf.mxu0
    %v2459 = vadd.f32 %v2446, %v2458
    %v2460 = vpop.f32.mrf.mxu0
    %2461 = vdwg.mxu0
    %2462 = vmatpush.bf16.msra.mxu0 %v1882
    %2463 = vmatpush.bf16.msra.mxu0 %v1881
    %2464 = vmatpush.bf16.msra.mxu0 %v1880
    %2465 = vmatpush.bf16.msra.mxu0 %v1879
    %2466 = vmatpush.bf16.msra.mxu0 %v1878
    %2467 = vmatpush.bf16.msra.mxu0 %v1877
    %2468 = vmatpush.bf16.msra.mxu0 %v1876
    %2469 = vmatpush.bf16.msra.mxu0 %v1875
    %2470 = vmatmul.bf16.gmra.mxu0 %v682
    %v2471 = vpop.f32.mrf.mxu0
    %v2472 = vadd.f32 %v2459, %v2471
    %v2473 = vpop.f32.mrf.mxu0
    %2474 = vdwg.mxu0
    %2475 = vmatpush.bf16.msra.mxu0 %v1890
    %2476 = vmatpush.bf16.msra.mxu0 %v1889
    %2477 = vmatpush.bf16.msra.mxu0 %v1888
    %2478 = vmatpush.bf16.msra.mxu0 %v1887
    %2479 = vmatpush.bf16.msra.mxu0 %v1886
    %2480 = vmatpush.bf16.msra.mxu0 %v1885
    %2481 = vmatpush.bf16.msra.mxu0 %v1884
    %2482 = vmatpush.bf16.msra.mxu0 %v1883
    %2483 = vmatmul.bf16.gmra.mxu0 %v683
    %v2484 = vpop.f32.mrf.mxu0
    %v2485 = vadd.f32 %v2472, %v2484
    %v2486 = vpop.f32.mrf.mxu0
    %2487 = vdwg.mxu0
    %2488 = vmatpush.bf16.msra.mxu0 %v1898
    %2489 = vmatpush.bf16.msra.mxu0 %v1897
    %2490 = vmatpush.bf16.msra.mxu0 %v1896
    %2491 = vmatpush.bf16.msra.mxu0 %v1895
    %2492 = vmatpush.bf16.msra.mxu0 %v1894
    %2493 = vmatpush.bf16.msra.mxu0 %v1893
    %2494 = vmatpush.bf16.msra.mxu0 %v1892
    %2495 = vmatpush.bf16.msra.mxu0 %v1891
    %2496 = vmatmul.bf16.gmra.mxu0 %v684
    %v2497 = vpop.f32.mrf.mxu0
    %v2498 = vadd.f32 %v2485, %v2497
    %v2499 = vpop.f32.mrf.mxu0
    %2500 = vdwg.mxu0
    %2501 = vmatpush.bf16.msra.mxu0 %v1906
    %2502 = vmatpush.bf16.msra.mxu0 %v1905
    %2503 = vmatpush.bf16.msra.mxu0 %v1904
    %2504 = vmatpush.bf16.msra.mxu0 %v1903
    %2505 = vmatpush.bf16.msra.mxu0 %v1902
    %2506 = vmatpush.bf16.msra.mxu0 %v1901
    %2507 = vmatpush.bf16.msra.mxu0 %v1900
    %2508 = vmatpush.bf16.msra.mxu0 %v1899
    %2509 = vmatmul.bf16.gmra.mxu0 %v685
    %v2510 = vpop.f32.mrf.mxu0
    %v2511 = vadd.f32 %v2498, %v2510
    %v2512 = vpop.f32.mrf.mxu0
    %2513 = vdwg.mxu0
    %2514 = vmatpush.bf16.msra.mxu0 %v1914
    %2515 = vmatpush.bf16.msra.mxu0 %v1913
    %2516 = vmatpush.bf16.msra.mxu0 %v1912
    %2517 = vmatpush.bf16.msra.mxu0 %v1911
    %2518 = vmatpush.bf16.msra.mxu0 %v1910
    %2519 = vmatpush.bf16.msra.mxu0 %v1909
    %2520 = vmatpush.bf16.msra.mxu0 %v1908
    %2521 = vmatpush.bf16.msra.mxu0 %v1907
    %2522 = vmatmul.bf16.gmra.mxu0 %v686
    %v2523 = vpop.f32.mrf.mxu0
    %v2524 = vadd.f32 %v2511, %v2523
    %v2525 = vpop.f32.mrf.mxu0
    %2526 = vdwg.mxu0
    %2527 = vmatpush.bf16.msra.mxu0 %v1922
    %2528 = vmatpush.bf16.msra.mxu0 %v1921
    %2529 = vmatpush.bf16.msra.mxu0 %v1920
    %2530 = vmatpush.bf16.msra.mxu0 %v1919
    %2531 = vmatpush.bf16.msra.mxu0 %v1918
    %2532 = vmatpush.bf16.msra.mxu0 %v1917
    %2533 = vmatpush.bf16.msra.mxu0 %v1916
    %2534 = vmatpush.bf16.msra.mxu0 %v1915
    %2535 = vmatmul.bf16.gmra.mxu0 %v687
    %v2536 = vpop.f32.mrf.mxu0
    %v2537 = vadd.f32 %v2524, %v2536
    %v2538 = vpop.f32.mrf.mxu0
    %2539 = vdwg.mxu0
    %2540 = vmatpush.bf16.msra.mxu0 %v1930
    %2541 = vmatpush.bf16.msra.mxu0 %v1929
    %2542 = vmatpush.bf16.msra.mxu0 %v1928
    %2543 = vmatpush.bf16.msra.mxu0 %v1927
    %2544 = vmatpush.bf16.msra.mxu0 %v1926
    %2545 = vmatpush.bf16.msra.mxu0 %v1925
    %2546 = vmatpush.bf16.msra.mxu0 %v1924
    %2547 = vmatpush.bf16.msra.mxu0 %v1923
    %2548 = vmatmul.bf16.gmra.mxu0 %v688
    %v2549 = vpop.f32.mrf.mxu0
    %v2550 = vadd.f32 %v2537, %v2549
    %v2551 = vpop.f32.mrf.mxu0
    %2552 = vdwg.mxu0
    %2553 = vmatpush.bf16.msra.mxu0 %v1938
    %2554 = vmatpush.bf16.msra.mxu0 %v1937
    %2555 = vmatpush.bf16.msra.mxu0 %v1936
    %2556 = vmatpush.bf16.msra.mxu0 %v1935
    %2557 = vmatpush.bf16.msra.mxu0 %v1934
    %2558 = vmatpush.bf16.msra.mxu0 %v1933
    %2559 = vmatpush.bf16.msra.mxu0 %v1932
    %2560 = vmatpush.bf16.msra.mxu0 %v1931
    %2561 = vmatmul.bf16.gmra.mxu0 %v689
    %v2562 = vpop.f32.mrf.mxu0
    %v2563 = vadd.f32 %v2550, %v2562
    %v2564 = vpop.f32.mrf.mxu0
    %2565 = vdwg.mxu0
    %2566 = vmatpush.bf16.msra.mxu0 %v1946
    %2567 = vmatpush.bf16.msra.mxu0 %v1945
    %2568 = vmatpush.bf16.msra.mxu0 %v1944
    %2569 = vmatpush.bf16.msra.mxu0 %v1943
    %2570 = vmatpush.bf16.msra.mxu0 %v1942
    %2571 = vmatpush.bf16.msra.mxu0 %v1941
    %2572 = vmatpush.bf16.msra.mxu0 %v1940
    %2573 = vmatpush.bf16.msra.mxu0 %v1939
    %2574 = vmatmul.bf16.gmra.mxu0 %v690
    %v2575 = vpop.f32.mrf.mxu0
    %v2576 = vadd.f32 %v2563, %v2575
    %v2577 = vpop.f32.mrf.mxu0
    %2578 = vdwg.mxu0
    %2579 = vmatpush.bf16.msra.mxu0 %v1954
    %2580 = vmatpush.bf16.msra.mxu0 %v1953
    %2581 = vmatpush.bf16.msra.mxu0 %v1952
    %2582 = vmatpush.bf16.msra.mxu0 %v1951
    %2583 = vmatpush.bf16.msra.mxu0 %v1950
    %2584 = vmatpush.bf16.msra.mxu0 %v1949
    %2585 = vmatpush.bf16.msra.mxu0 %v1948
    %2586 = vmatpush.bf16.msra.mxu0 %v1947
    %2587 = vmatmul.bf16.gmra.mxu0 %v691
    %v2588 = vpop.f32.mrf.mxu0
    %v2589 = vadd.f32 %v2576, %v2588
    %v2590 = vpop.f32.mrf.mxu0
    %2591 = vdwg.mxu0
    %2592 = vmatpush.bf16.msra.mxu0 %v1962
    %2593 = vmatpush.bf16.msra.mxu0 %v1961
    %2594 = vmatpush.bf16.msra.mxu0 %v1960
    %2595 = vmatpush.bf16.msra.mxu0 %v1959
    %2596 = vmatpush.bf16.msra.mxu0 %v1958
    %2597 = vmatpush.bf16.msra.mxu0 %v1957
    %2598 = vmatpush.bf16.msra.mxu0 %v1956
    %2599 = vmatpush.bf16.msra.mxu0 %v1955
    %2600 = vmatmul.bf16.gmra.mxu0 %v692
    %v2601 = vpop.f32.mrf.mxu0
    %v2602 = vadd.f32 %v2589, %v2601
    %v2603 = vpop.f32.mrf.mxu0
    %2604 = vdwg.mxu0
    %2605 = vmatpush.bf16.msra.mxu0 %v1970
    %2606 = vmatpush.bf16.msra.mxu0 %v1969
    %2607 = vmatpush.bf16.msra.mxu0 %v1968
    %2608 = vmatpush.bf16.msra.mxu0 %v1967
    %2609 = vmatpush.bf16.msra.mxu0 %v1966
    %2610 = vmatpush.bf16.msra.mxu0 %v1965
    %2611 = vmatpush.bf16.msra.mxu0 %v1964
    %2612 = vmatpush.bf16.msra.mxu0 %v1963
    %2613 = vmatmul.bf16.gmra.mxu0 %v693
    %v2614 = vpop.f32.mrf.mxu0
    %v2615 = vadd.f32 %v2602, %v2614
    %v2616 = vpop.f32.mrf.mxu0
    %2617 = vdwg.mxu0
    %2618 = vmatpush.bf16.msra.mxu0 %v1978
    %2619 = vmatpush.bf16.msra.mxu0 %v1977
    %2620 = vmatpush.bf16.msra.mxu0 %v1976
    %2621 = vmatpush.bf16.msra.mxu0 %v1975
    %2622 = vmatpush.bf16.msra.mxu0 %v1974
    %2623 = vmatpush.bf16.msra.mxu0 %v1973
    %2624 = vmatpush.bf16.msra.mxu0 %v1972
    %2625 = vmatpush.bf16.msra.mxu0 %v1971
    %2626 = vmatmul.bf16.gmra.mxu0 %v694
    %v2627 = vpop.f32.mrf.mxu0
    %v2628 = vadd.f32 %v2615, %v2627
    %v2629 = vpop.f32.mrf.mxu0
    %2630 = vdwg.mxu0
    %2631 = vmatpush.bf16.msra.mxu0 %v1986
    %2632 = vmatpush.bf16.msra.mxu0 %v1985
    %2633 = vmatpush.bf16.msra.mxu0 %v1984
    %2634 = vmatpush.bf16.msra.mxu0 %v1983
    %2635 = vmatpush.bf16.msra.mxu0 %v1982
    %2636 = vmatpush.bf16.msra.mxu0 %v1981
    %2637 = vmatpush.bf16.msra.mxu0 %v1980
    %2638 = vmatpush.bf16.msra.mxu0 %v1979
    %2639 = vmatmul.bf16.gmra.mxu0 %v695
    %v2640 = vpop.f32.mrf.mxu0
    %v2641 = vadd.f32 %v2628, %v2640
    %v2642 = vpop.f32.mrf.mxu0
    %2643 = vdwg.mxu0
    %2644 = vmatpush.bf16.msra.mxu0 %v1994
    %2645 = vmatpush.bf16.msra.mxu0 %v1993
    %2646 = vmatpush.bf16.msra.mxu0 %v1992
    %2647 = vmatpush.bf16.msra.mxu0 %v1991
    %2648 = vmatpush.bf16.msra.mxu0 %v1990
    %2649 = vmatpush.bf16.msra.mxu0 %v1989
    %2650 = vmatpush.bf16.msra.mxu0 %v1988
    %2651 = vmatpush.bf16.msra.mxu0 %v1987
    %2652 = vmatmul.bf16.gmra.mxu0 %v696
    %v2653 = vpop.f32.mrf.mxu0
    %v2654 = vadd.f32 %v2641, %v2653
    %v2655 = vpop.f32.mrf.mxu0
    %2656 = vdwg.mxu0
    %2657 = vmatpush.bf16.msra.mxu0 %v2002
    %2658 = vmatpush.bf16.msra.mxu0 %v2001
    %2659 = vmatpush.bf16.msra.mxu0 %v2000
    %2660 = vmatpush.bf16.msra.mxu0 %v1999
    %2661 = vmatpush.bf16.msra.mxu0 %v1998
    %2662 = vmatpush.bf16.msra.mxu0 %v1997
    %2663 = vmatpush.bf16.msra.mxu0 %v1996
    %2664 = vmatpush.bf16.msra.mxu0 %v1995
    %2665 = vmatmul.bf16.gmra.mxu0 %v697
    %v2666 = vpop.f32.mrf.mxu0
    %v2667 = vadd.f32 %v2654, %v2666
    %v2668 = vpop.f32.mrf.mxu0
    %2669 = vdwg.mxu0
    %2670 = vmatpush.bf16.msra.mxu0 %v2010
    %2671 = vmatpush.bf16.msra.mxu0 %v2009
    %2672 = vmatpush.bf16.msra.mxu0 %v2008
    %2673 = vmatpush.bf16.msra.mxu0 %v2007
    %2674 = vmatpush.bf16.msra.mxu0 %v2006
    %2675 = vmatpush.bf16.msra.mxu0 %v2005
    %2676 = vmatpush.bf16.msra.mxu0 %v2004
    %2677 = vmatpush.bf16.msra.mxu0 %v2003
    %2678 = vmatmul.bf16.gmra.mxu0 %v698
    %v2679 = vpop.f32.mrf.mxu0
    %v2680 = vadd.f32 %v2667, %v2679
    %v2681 = vpop.f32.mrf.mxu0
    %2682 = vdwg.mxu0
    %v2683 = vld [vmem:[%s0] sm:$0xf]
    %v2684 = vld [vmem:[%s4] sm:$0xff]
    %v2685 = vld [vmem:[%s4 + $0x8] sm:$0xff]
    %v2686 = vld [vmem:[%s4 + $0x10] sm:$0xff]
    %v2687 = vld [vmem:[%s4 + $0x18] sm:$0xff]
    %v2688 = vld [vmem:[%s4 + $0x20] sm:$0xff]
    %v2689 = vld [vmem:[%s4 + $0x28] sm:$0xff]
    %v2690 = vld [vmem:[%s4 + $0x30] sm:$0xff]
    %v2691 = vld [vmem:[%s4 + $0x38] sm:$0xff]
    %v2692 = vld [vmem:[%s4 + $0x40] sm:$0xff]
    %v2693 = vld [vmem:[%s4 + $0x48] sm:$0xff]
    %v2694 = vld [vmem:[%s4 + $0x50] sm:$0xff]
    %v2695 = vld [vmem:[%s4 + $0x58] sm:$0xff]
    %v2696 = vld [vmem:[%s4 + $0x60] sm:$0xff]
    %v2697 = vld [vmem:[%s4 + $0x68] sm:$0xff]
    %v2698 = vld [vmem:[%s4 + $0x70] sm:$0xff]
    %v2699 = vld [vmem:[%s4 + $0x78] sm:$0xff]
    %v2700 = vld [vmem:[%s4 + $0x80] sm:$0xff]
    %v2701 = vld [vmem:[%s4 + $0x88] sm:$0xff]
    %v2702 = vld [vmem:[%s4 + $0x90] sm:$0xff]
    %v2703 = vld [vmem:[%s4 + $0x98] sm:$0xff]
    %v2704 = vld [vmem:[%s4 + $0xa0] sm:$0xff]
    %v2705 = vld [vmem:[%s4 + $0xa8] sm:$0xff]
    %v2706 = vld [vmem:[%s4 + $0xb0] sm:$0xff]
    %v2707 = vld [vmem:[%s4 + $0xb8] sm:$0xff]
    %v2708 = vld [vmem:[%s4 + $0xc0] sm:$0xff]
    %v2709 = vld [vmem:[%s4 + $0xc8] sm:$0xff]
    %v2710 = vld [vmem:[%s4 + $0xd0] sm:$0xff]
    %v2711 = vld [vmem:[%s4 + $0xd8] sm:$0xff]
    %v2712 = vld [vmem:[%s4 + $0xe0] sm:$0xff]
    %v2713 = vld [vmem:[%s4 + $0xe8] sm:$0xff]
    %v2714 = vld [vmem:[%s4 + $0xf0] sm:$0xff]
    %v2715 = vld [vmem:[%s4 + $0xf8] sm:$0xff]
    %v2716 = vld [vmem:[%s4 + $0x100] sm:$0xff]
    %v2717 = vld [vmem:[%s4 + $0x108] sm:$0xff]
    %v2718 = vld [vmem:[%s4 + $0x110] sm:$0xff]
    %v2719 = vld [vmem:[%s4 + $0x118] sm:$0xff]
    %v2720 = vld [vmem:[%s4 + $0x120] sm:$0xff]
    %v2721 = vld [vmem:[%s4 + $0x128] sm:$0xff]
    %v2722 = vld [vmem:[%s4 + $0x130] sm:$0xff]
    %v2723 = vld [vmem:[%s4 + $0x138] sm:$0xff]
    %v2724 = vld [vmem:[%s4 + $0x140] sm:$0xff]
    %v2725 = vld [vmem:[%s4 + $0x148] sm:$0xff]
    %v2726 = vld [vmem:[%s4 + $0x150] sm:$0xff]
    %v2727 = vld [vmem:[%s4 + $0x158] sm:$0xff]
    %v2728 = vld [vmem:[%s4 + $0x160] sm:$0xff]
    %v2729 = vld [vmem:[%s4 + $0x168] sm:$0xff]
    %v2730 = vld [vmem:[%s4 + $0x170] sm:$0xff]
    %v2731 = vld [vmem:[%s4 + $0x178] sm:$0xff]
    %v2732 = vld [vmem:[%s4 + $0x180] sm:$0xff]
    %v2733 = vld [vmem:[%s4 + $0x188] sm:$0xff]
    %v2734 = vld [vmem:[%s4 + $0x190] sm:$0xff]
    %v2735 = vld [vmem:[%s4 + $0x198] sm:$0xff]
    %v2736 = vld [vmem:[%s4 + $0x1a0] sm:$0xff]
    %v2737 = vld [vmem:[%s4 + $0x1a8] sm:$0xff]
    %v2738 = vld [vmem:[%s4 + $0x1b0] sm:$0xff]
    %v2739 = vld [vmem:[%s4 + $0x1b8] sm:$0xff]
    %v2740 = vld [vmem:[%s4 + $0x1c0] sm:$0xff]
    %v2741 = vld [vmem:[%s4 + $0x1c8] sm:$0xff]
    %v2742 = vld [vmem:[%s4 + $0x1d0] sm:$0xff]
    %v2743 = vld [vmem:[%s4 + $0x1d8] sm:$0xff]
    %v2744 = vld [vmem:[%s4 + $0x1e0] sm:$0xff]
    %v2745 = vld [vmem:[%s4 + $0x1e8] sm:$0xff]
    %v2746 = vld [vmem:[%s4 + $0x1f0] sm:$0xff]
    %v2747 = vld [vmem:[%s4 + $0x1f8] sm:$0xff]
    %v2748 = vpack.c.bf16 %v2680, %v2680
    %v2749 = vld [vmem:[#allocation5] sm:$0xff]
    %v2750 = vld [vmem:[#allocation5 + $0x8] sm:$0xff]
    %v2751 = vld [vmem:[#allocation5 + $0x10] sm:$0xff]
    %v2752 = vld [vmem:[#allocation5 + $0x18] sm:$0xff]
    %v2753 = vld [vmem:[#allocation5 + $0x20] sm:$0xff]
    %v2754 = vld [vmem:[#allocation5 + $0x28] sm:$0xff]
    %v2755 = vld [vmem:[#allocation5 + $0x30] sm:$0xff]
    %v2756 = vld [vmem:[#allocation5 + $0x38] sm:$0xff]
    %v2757 = vld [vmem:[#allocation5 + $0x40] sm:$0xff]
    %v2758 = vld [vmem:[#allocation5 + $0x48] sm:$0xff]
    %v2759 = vld [vmem:[#allocation5 + $0x50] sm:$0xff]
    %v2760 = vld [vmem:[#allocation5 + $0x58] sm:$0xff]
    %v2761 = vld [vmem:[#allocation5 + $0x60] sm:$0xff]
    %v2762 = vld [vmem:[#allocation5 + $0x68] sm:$0xff]
    %v2763 = vld [vmem:[#allocation5 + $0x70] sm:$0xff]
    %v2764 = vld [vmem:[#allocation5 + $0x78] sm:$0xff]
    %v2765 = vld [vmem:[#allocation5 + $0x80] sm:$0xff]
    %v2766 = vld [vmem:[#allocation5 + $0x88] sm:$0xff]
    %v2767 = vld [vmem:[#allocation5 + $0x90] sm:$0xff]
    %v2768 = vld [vmem:[#allocation5 + $0x98] sm:$0xff]
    %v2769 = vld [vmem:[#allocation5 + $0xa0] sm:$0xff]
    %v2770 = vld [vmem:[#allocation5 + $0xa8] sm:$0xff]
    %v2771 = vld [vmem:[#allocation5 + $0xb0] sm:$0xff]
    %v2772 = vld [vmem:[#allocation5 + $0xb8] sm:$0xff]
    %v2773 = vld [vmem:[#allocation5 + $0xc0] sm:$0xff]
    %v2774 = vld [vmem:[#allocation5 + $0xc8] sm:$0xff]
    %v2775 = vld [vmem:[#allocation5 + $0xd0] sm:$0xff]
    %v2776 = vld [vmem:[#allocation5 + $0xd8] sm:$0xff]
    %v2777 = vld [vmem:[#allocation5 + $0xe0] sm:$0xff]
    %v2778 = vld [vmem:[#allocation5 + $0xe8] sm:$0xff]
    %v2779 = vld [vmem:[#allocation5 + $0xf0] sm:$0xff]
    %v2780 = vld [vmem:[#allocation5 + $0xf8] sm:$0xff]
    %v2781 = vld [vmem:[#allocation5 + $0x100] sm:$0xff]
    %v2782 = vld [vmem:[#allocation5 + $0x108] sm:$0xff]
    %v2783 = vld [vmem:[#allocation5 + $0x110] sm:$0xff]
    %v2784 = vld [vmem:[#allocation5 + $0x118] sm:$0xff]
    %v2785 = vld [vmem:[#allocation5 + $0x120] sm:$0xff]
    %v2786 = vld [vmem:[#allocation5 + $0x128] sm:$0xff]
    %v2787 = vld [vmem:[#allocation5 + $0x130] sm:$0xff]
    %v2788 = vld [vmem:[#allocation5 + $0x138] sm:$0xff]
    %v2789 = vld [vmem:[#allocation5 + $0x140] sm:$0xff]
    %v2790 = vld [vmem:[#allocation5 + $0x148] sm:$0xff]
    %v2791 = vld [vmem:[#allocation5 + $0x150] sm:$0xff]
    %v2792 = vld [vmem:[#allocation5 + $0x158] sm:$0xff]
    %v2793 = vld [vmem:[#allocation5 + $0x160] sm:$0xff]
    %v2794 = vld [vmem:[#allocation5 + $0x168] sm:$0xff]
    %v2795 = vld [vmem:[#allocation5 + $0x170] sm:$0xff]
    %v2796 = vld [vmem:[#allocation5 + $0x178] sm:$0xff]
    %v2797 = vld [vmem:[#allocation5 + $0x180] sm:$0xff]
    %v2798 = vld [vmem:[#allocation5 + $0x188] sm:$0xff]
    %v2799 = vld [vmem:[#allocation5 + $0x190] sm:$0xff]
    %v2800 = vld [vmem:[#allocation5 + $0x198] sm:$0xff]
    %v2801 = vld [vmem:[#allocation5 + $0x1a0] sm:$0xff]
    %v2802 = vld [vmem:[#allocation5 + $0x1a8] sm:$0xff]
    %v2803 = vld [vmem:[#allocation5 + $0x1b0] sm:$0xff]
    %v2804 = vld [vmem:[#allocation5 + $0x1b8] sm:$0xff]
    %v2805 = vld [vmem:[#allocation5 + $0x1c0] sm:$0xff]
    %v2806 = vld [vmem:[#allocation5 + $0x1c8] sm:$0xff]
    %v2807 = vld [vmem:[#allocation5 + $0x1d0] sm:$0xff]
    %v2808 = vld [vmem:[#allocation5 + $0x1d8] sm:$0xff]
    %v2809 = vld [vmem:[#allocation5 + $0x1e0] sm:$0xff]
    %v2810 = vld [vmem:[#allocation5 + $0x1e8] sm:$0xff]
    %v2811 = vld [vmem:[#allocation5 + $0x1f0] sm:$0xff]
    %v2812 = vld [vmem:[#allocation5 + $0x1f8] sm:$0xff]
    %v2877 = vunpack.c.l.b16 %v2749
    %v2878 = vunpack.c.h.b16 %v2749
    %v2879 = vunpack.c.l.b16 %v2750
    %v2880 = vunpack.c.h.b16 %v2750
    %v2881 = vunpack.c.l.b16 %v2751
    %v2882 = vunpack.c.h.b16 %v2751
    %v2883 = vunpack.c.l.b16 %v2752
    %v2884 = vunpack.c.h.b16 %v2752
    %v2885 = vunpack.c.l.b16 %v2753
    %v2886 = vunpack.c.h.b16 %v2753
    %v2887 = vunpack.c.l.b16 %v2754
    %v2888 = vunpack.c.h.b16 %v2754
    %v2889 = vunpack.c.l.b16 %v2755
    %v2890 = vunpack.c.h.b16 %v2755
    %v2891 = vunpack.c.l.b16 %v2756
    %v2892 = vunpack.c.h.b16 %v2756
    %v2893 = vunpack.c.l.b16 %v2757
    %v2894 = vunpack.c.h.b16 %v2757
    %v2895 = vunpack.c.l.b16 %v2758
    %v2896 = vunpack.c.h.b16 %v2758
    %v2897 = vunpack.c.l.b16 %v2759
    %v2898 = vunpack.c.h.b16 %v2759
    %v2899 = vunpack.c.l.b16 %v2760
    %v2900 = vunpack.c.h.b16 %v2760
    %v2901 = vunpack.c.l.b16 %v2761
    %v2902 = vunpack.c.h.b16 %v2761
    %v2903 = vunpack.c.l.b16 %v2762
    %v2904 = vunpack.c.h.b16 %v2762
    %v2905 = vunpack.c.l.b16 %v2763
    %v2906 = vunpack.c.h.b16 %v2763
    %v2907 = vunpack.c.l.b16 %v2764
    %v2908 = vunpack.c.h.b16 %v2764
    %v2909 = vunpack.c.l.b16 %v2765
    %v2910 = vunpack.c.h.b16 %v2765
    %v2911 = vunpack.c.l.b16 %v2766
    %v2912 = vunpack.c.h.b16 %v2766
    %v2913 = vunpack.c.l.b16 %v2767
    %v2914 = vunpack.c.h.b16 %v2767
    %v2915 = vunpack.c.l.b16 %v2768
    %v2916 = vunpack.c.h.b16 %v2768
    %v2917 = vunpack.c.l.b16 %v2769
    %v2918 = vunpack.c.h.b16 %v2769
    %v2919 = vunpack.c.l.b16 %v2770
    %v2920 = vunpack.c.h.b16 %v2770
    %v2921 = vunpack.c.l.b16 %v2771
    %v2922 = vunpack.c.h.b16 %v2771
    %v2923 = vunpack.c.l.b16 %v2772
    %v2924 = vunpack.c.h.b16 %v2772
    %v2925 = vunpack.c.l.b16 %v2773
    %v2926 = vunpack.c.h.b16 %v2773
    %v2927 = vunpack.c.l.b16 %v2774
    %v2928 = vunpack.c.h.b16 %v2774
    %v2929 = vunpack.c.l.b16 %v2775
    %v2930 = vunpack.c.h.b16 %v2775
    %v2931 = vunpack.c.l.b16 %v2776
    %v2932 = vunpack.c.h.b16 %v2776
    %v2933 = vunpack.c.l.b16 %v2777
    %v2934 = vunpack.c.h.b16 %v2777
    %v2935 = vunpack.c.l.b16 %v2778
    %v2936 = vunpack.c.h.b16 %v2778
    %v2937 = vunpack.c.l.b16 %v2779
    %v2938 = vunpack.c.h.b16 %v2779
    %v2939 = vunpack.c.l.b16 %v2780
    %v2940 = vunpack.c.h.b16 %v2780
    %v2941 = vunpack.c.l.b16 %v2781
    %v2942 = vunpack.c.h.b16 %v2781
    %v2943 = vunpack.c.l.b16 %v2782
    %v2944 = vunpack.c.h.b16 %v2782
    %v2945 = vunpack.c.l.b16 %v2783
    %v2946 = vunpack.c.h.b16 %v2783
    %v2947 = vunpack.c.l.b16 %v2784
    %v2948 = vunpack.c.h.b16 %v2784
    %v2949 = vunpack.c.l.b16 %v2785
    %v2950 = vunpack.c.h.b16 %v2785
    %v2951 = vunpack.c.l.b16 %v2786
    %v2952 = vunpack.c.h.b16 %v2786
    %v2953 = vunpack.c.l.b16 %v2787
    %v2954 = vunpack.c.h.b16 %v2787
    %v2955 = vunpack.c.l.b16 %v2788
    %v2956 = vunpack.c.h.b16 %v2788
    %v2957 = vunpack.c.l.b16 %v2789
    %v2958 = vunpack.c.h.b16 %v2789
    %v2959 = vunpack.c.l.b16 %v2790
    %v2960 = vunpack.c.h.b16 %v2790
    %v2961 = vunpack.c.l.b16 %v2791
    %v2962 = vunpack.c.h.b16 %v2791
    %v2963 = vunpack.c.l.b16 %v2792
    %v2964 = vunpack.c.h.b16 %v2792
    %v2965 = vunpack.c.l.b16 %v2793
    %v2966 = vunpack.c.h.b16 %v2793
    %v2967 = vunpack.c.l.b16 %v2794
    %v2968 = vunpack.c.h.b16 %v2794
    %v2969 = vunpack.c.l.b16 %v2795
    %v2970 = vunpack.c.h.b16 %v2795
    %v2971 = vunpack.c.l.b16 %v2796
    %v2972 = vunpack.c.h.b16 %v2796
    %v2973 = vunpack.c.l.b16 %v2797
    %v2974 = vunpack.c.h.b16 %v2797
    %v2975 = vunpack.c.l.b16 %v2798
    %v2976 = vunpack.c.h.b16 %v2798
    %v2977 = vunpack.c.l.b16 %v2799
    %v2978 = vunpack.c.h.b16 %v2799
    %v2979 = vunpack.c.l.b16 %v2800
    %v2980 = vunpack.c.h.b16 %v2800
    %v2981 = vunpack.c.l.b16 %v2801
    %v2982 = vunpack.c.h.b16 %v2801
    %v2983 = vunpack.c.l.b16 %v2802
    %v2984 = vunpack.c.h.b16 %v2802
    %v2985 = vunpack.c.l.b16 %v2803
    %v2986 = vunpack.c.h.b16 %v2803
    %v2987 = vunpack.c.l.b16 %v2804
    %v2988 = vunpack.c.h.b16 %v2804
    %v2989 = vunpack.c.l.b16 %v2805
    %v2990 = vunpack.c.h.b16 %v2805
    %v2991 = vunpack.c.l.b16 %v2806
    %v2992 = vunpack.c.h.b16 %v2806
    %v2993 = vunpack.c.l.b16 %v2807
    %v2994 = vunpack.c.h.b16 %v2807
    %v2995 = vunpack.c.l.b16 %v2808
    %v2996 = vunpack.c.h.b16 %v2808
    %v2997 = vunpack.c.l.b16 %v2809
    %v2998 = vunpack.c.h.b16 %v2809
    %v2999 = vunpack.c.l.b16 %v2810
    %v3000 = vunpack.c.h.b16 %v2810
    %v3001 = vunpack.c.l.b16 %v2811
    %v3002 = vunpack.c.h.b16 %v2811
    %v3003 = vunpack.c.l.b16 %v2812
    %v3004 = vunpack.c.h.b16 %v2812
    %v3005 = vpack.c.b16 %v2885, %v2877
    %v3006 = vpack.c.b16 %v2886, %v2878
    %v3007 = vpack.c.b16 %v2887, %v2879
    %v3008 = vpack.c.b16 %v2888, %v2880
    %v3009 = vpack.c.b16 %v2889, %v2881
    %v3010 = vpack.c.b16 %v2890, %v2882
    %v3011 = vpack.c.b16 %v2891, %v2883
    %v3012 = vpack.c.b16 %v2892, %v2884
    %v3013 = vpack.c.b16 %v2901, %v2893
    %v3014 = vpack.c.b16 %v2902, %v2894
    %v3015 = vpack.c.b16 %v2903, %v2895
    %v3016 = vpack.c.b16 %v2904, %v2896
    %v3017 = vpack.c.b16 %v2905, %v2897
    %v3018 = vpack.c.b16 %v2906, %v2898
    %v3019 = vpack.c.b16 %v2907, %v2899
    %v3020 = vpack.c.b16 %v2908, %v2900
    %v3021 = vpack.c.b16 %v2917, %v2909
    %v3022 = vpack.c.b16 %v2918, %v2910
    %v3023 = vpack.c.b16 %v2919, %v2911
    %v3024 = vpack.c.b16 %v2920, %v2912
    %v3025 = vpack.c.b16 %v2921, %v2913
    %v3026 = vpack.c.b16 %v2922, %v2914
    %v3027 = vpack.c.b16 %v2923, %v2915
    %v3028 = vpack.c.b16 %v2924, %v2916
    %v3029 = vpack.c.b16 %v2933, %v2925
    %v3030 = vpack.c.b16 %v2934, %v2926
    %v3031 = vpack.c.b16 %v2935, %v2927
    %v3032 = vpack.c.b16 %v2936, %v2928
    %v3033 = vpack.c.b16 %v2937, %v2929
    %v3034 = vpack.c.b16 %v2938, %v2930
    %v3035 = vpack.c.b16 %v2939, %v2931
    %v3036 = vpack.c.b16 %v2940, %v2932
    %v3037 = vpack.c.b16 %v2949, %v2941
    %v3038 = vpack.c.b16 %v2950, %v2942
    %v3039 = vpack.c.b16 %v2951, %v2943
    %v3040 = vpack.c.b16 %v2952, %v2944
    %v3041 = vpack.c.b16 %v2953, %v2945
    %v3042 = vpack.c.b16 %v2954, %v2946
    %v3043 = vpack.c.b16 %v2955, %v2947
    %v3044 = vpack.c.b16 %v2956, %v2948
    %v3045 = vpack.c.b16 %v2965, %v2957
    %v3046 = vpack.c.b16 %v2966, %v2958
    %v3047 = vpack.c.b16 %v2967, %v2959
    %v3048 = vpack.c.b16 %v2968, %v2960
    %v3049 = vpack.c.b16 %v2969, %v2961
    %v3050 = vpack.c.b16 %v2970, %v2962
    %v3051 = vpack.c.b16 %v2971, %v2963
    %v3052 = vpack.c.b16 %v2972, %v2964
    %v3053 = vpack.c.b16 %v2981, %v2973
    %v3054 = vpack.c.b16 %v2982, %v2974
    %v3055 = vpack.c.b16 %v2983, %v2975
    %v3056 = vpack.c.b16 %v2984, %v2976
    %v3057 = vpack.c.b16 %v2985, %v2977
    %v3058 = vpack.c.b16 %v2986, %v2978
    %v3059 = vpack.c.b16 %v2987, %v2979
    %v3060 = vpack.c.b16 %v2988, %v2980
    %v3061 = vpack.c.b16 %v2997, %v2989
    %v3062 = vpack.c.b16 %v2998, %v2990
    %v3063 = vpack.c.b16 %v2999, %v2991
    %v3064 = vpack.c.b16 %v3000, %v2992
    %v3065 = vpack.c.b16 %v3001, %v2993
    %v3066 = vpack.c.b16 %v3002, %v2994
    %v3067 = vpack.c.b16 %v3003, %v2995
    %v3068 = vpack.c.b16 %v3004, %v2996
    %3133 = vmatpush.bf16.msra.mxu0 %v3061
    %3134 = vmatpush.bf16.msra.mxu0 %v3053
    %3135 = vmatpush.bf16.msra.mxu0 %v3045
    %3136 = vmatpush.bf16.msra.mxu0 %v3037
    %3137 = vmatpush.bf16.msra.mxu0 %v3029
    %3138 = vmatpush.bf16.msra.mxu0 %v3021
    %3139 = vmatpush.bf16.msra.mxu0 %v3013
    %3140 = vmatpush.bf16.msra.mxu0 %v3005
    %3141 = vmatmul.bf16.gmra.mxu0 %v2748
    %v3142 = vpop.f32.mrf.mxu0
    %v3143 = vadd.f32 0.0, %v3142
    %v3144 = vpop.f32.mrf.mxu0
    %3145 = vdwg.mxu0
    %3146 = vmatpush.bf16.msra.mxu0 %v3062
    %3147 = vmatpush.bf16.msra.mxu0 %v3054
    %3148 = vmatpush.bf16.msra.mxu0 %v3046
    %3149 = vmatpush.bf16.msra.mxu0 %v3038
    %3150 = vmatpush.bf16.msra.mxu0 %v3030
    %3151 = vmatpush.bf16.msra.mxu0 %v3022
    %3152 = vmatpush.bf16.msra.mxu0 %v3014
    %3153 = vmatpush.bf16.msra.mxu0 %v3006
    %3154 = vmatmul.bf16.gmra.mxu0 %v2748
    %v3155 = vpop.f32.mrf.mxu0
    %v3156 = vadd.f32 0.0, %v3155
    %v3157 = vpop.f32.mrf.mxu0
    %3158 = vdwg.mxu0
    %3159 = vmatpush.bf16.msra.mxu0 %v3063
    %3160 = vmatpush.bf16.msra.mxu0 %v3055
    %3161 = vmatpush.bf16.msra.mxu0 %v3047
    %3162 = vmatpush.bf16.msra.mxu0 %v3039
    %3163 = vmatpush.bf16.msra.mxu0 %v3031
    %3164 = vmatpush.bf16.msra.mxu0 %v3023
    %3165 = vmatpush.bf16.msra.mxu0 %v3015
    %3166 = vmatpush.bf16.msra.mxu0 %v3007
    %3167 = vmatmul.bf16.gmra.mxu0 %v2748
    %v3168 = vpop.f32.mrf.mxu0
    %v3169 = vadd.f32 0.0, %v3168
    %v3170 = vpop.f32.mrf.mxu0
    %3171 = vdwg.mxu0
    %3172 = vmatpush.bf16.msra.mxu0 %v3064
    %3173 = vmatpush.bf16.msra.mxu0 %v3056
    %3174 = vmatpush.bf16.msra.mxu0 %v3048
    %3175 = vmatpush.bf16.msra.mxu0 %v3040
    %3176 = vmatpush.bf16.msra.mxu0 %v3032
    %3177 = vmatpush.bf16.msra.mxu0 %v3024
    %3178 = vmatpush.bf16.msra.mxu0 %v3016
    %3179 = vmatpush.bf16.msra.mxu0 %v3008
    %3180 = vmatmul.bf16.gmra.mxu0 %v2748
    %v3181 = vpop.f32.mrf.mxu0
    %v3182 = vadd.f32 0.0, %v3181
    %v3183 = vpop.f32.mrf.mxu0
    %3184 = vdwg.mxu0
    %3185 = vmatpush.bf16.msra.mxu0 %v3065
    %3186 = vmatpush.bf16.msra.mxu0 %v3057
    %3187 = vmatpush.bf16.msra.mxu0 %v3049
    %3188 = vmatpush.bf16.msra.mxu0 %v3041
    %3189 = vmatpush.bf16.msra.mxu0 %v3033
    %3190 = vmatpush.bf16.msra.mxu0 %v3025
    %3191 = vmatpush.bf16.msra.mxu0 %v3017
    %3192 = vmatpush.bf16.msra.mxu0 %v3009
    %3193 = vmatmul.bf16.gmra.mxu0 %v2748
    %v3194 = vpop.f32.mrf.mxu0
    %v3195 = vadd.f32 0.0, %v3194
    %v3196 = vpop.f32.mrf.mxu0
    %3197 = vdwg.mxu0
    %3198 = vmatpush.bf16.msra.mxu0 %v3066
    %3199 = vmatpush.bf16.msra.mxu0 %v3058
    %3200 = vmatpush.bf16.msra.mxu0 %v3050
    %3201 = vmatpush.bf16.msra.mxu0 %v3042
    %3202 = vmatpush.bf16.msra.mxu0 %v3034
    %3203 = vmatpush.bf16.msra.mxu0 %v3026
    %3204 = vmatpush.bf16.msra.mxu0 %v3018
    %3205 = vmatpush.bf16.msra.mxu0 %v3010
    %3206 = vmatmul.bf16.gmra.mxu0 %v2748
    %v3207 = vpop.f32.mrf.mxu0
    %v3208 = vadd.f32 0.0, %v3207
    %v3209 = vpop.f32.mrf.mxu0
    %3210 = vdwg.mxu0
    %3211 = vmatpush.bf16.msra.mxu0 %v3067
    %3212 = vmatpush.bf16.msra.mxu0 %v3059
    %3213 = vmatpush.bf16.msra.mxu0 %v3051
    %3214 = vmatpush.bf16.msra.mxu0 %v3043
    %3215 = vmatpush.bf16.msra.mxu0 %v3035
    %3216 = vmatpush.bf16.msra.mxu0 %v3027
    %3217 = vmatpush.bf16.msra.mxu0 %v3019
    %3218 = vmatpush.bf16.msra.mxu0 %v3011
    %3219 = vmatmul.bf16.gmra.mxu0 %v2748
    %v3220 = vpop.f32.mrf.mxu0
    %v3221 = vadd.f32 0.0, %v3220
    %v3222 = vpop.f32.mrf.mxu0
    %3223 = vdwg.mxu0
    %3224 = vmatpush.bf16.msra.mxu0 %v3068
    %3225 = vmatpush.bf16.msra.mxu0 %v3060
    %3226 = vmatpush.bf16.msra.mxu0 %v3052
    %3227 = vmatpush.bf16.msra.mxu0 %v3044
    %3228 = vmatpush.bf16.msra.mxu0 %v3036
    %3229 = vmatpush.bf16.msra.mxu0 %v3028
    %3230 = vmatpush.bf16.msra.mxu0 %v3020
    %3231 = vmatpush.bf16.msra.mxu0 %v3012
    %3232 = vmatmul.bf16.gmra.mxu0 %v2748
    %v3233 = vpop.f32.mrf.mxu0
    %v3234 = vadd.f32 0.0, %v3233
    %v3235 = vpop.f32.mrf.mxu0
    %3236 = vdwg.mxu0
    %v3301 = vunpack.c.l.b16 %v2684
    %v3302 = vunpack.c.h.b16 %v2684
    %v3303 = vunpack.c.l.b16 %v2685
    %v3304 = vunpack.c.h.b16 %v2685
    %v3305 = vunpack.c.l.b16 %v2686
    %v3306 = vunpack.c.h.b16 %v2686
    %v3307 = vunpack.c.l.b16 %v2687
    %v3308 = vunpack.c.h.b16 %v2687
    %v3309 = vunpack.c.l.b16 %v2688
    %v3310 = vunpack.c.h.b16 %v2688
    %v3311 = vunpack.c.l.b16 %v2689
    %v3312 = vunpack.c.h.b16 %v2689
    %v3313 = vunpack.c.l.b16 %v2690
    %v3314 = vunpack.c.h.b16 %v2690
    %v3315 = vunpack.c.l.b16 %v2691
    %v3316 = vunpack.c.h.b16 %v2691
    %v3317 = vunpack.c.l.b16 %v2692
    %v3318 = vunpack.c.h.b16 %v2692
    %v3319 = vunpack.c.l.b16 %v2693
    %v3320 = vunpack.c.h.b16 %v2693
    %v3321 = vunpack.c.l.b16 %v2694
    %v3322 = vunpack.c.h.b16 %v2694
    %v3323 = vunpack.c.l.b16 %v2695
    %v3324 = vunpack.c.h.b16 %v2695
    %v3325 = vunpack.c.l.b16 %v2696
    %v3326 = vunpack.c.h.b16 %v2696
    %v3327 = vunpack.c.l.b16 %v2697
    %v3328 = vunpack.c.h.b16 %v2697
    %v3329 = vunpack.c.l.b16 %v2698
    %v3330 = vunpack.c.h.b16 %v2698
    %v3331 = vunpack.c.l.b16 %v2699
    %v3332 = vunpack.c.h.b16 %v2699
    %v3333 = vunpack.c.l.b16 %v2700
    %v3334 = vunpack.c.h.b16 %v2700
    %v3335 = vunpack.c.l.b16 %v2701
    %v3336 = vunpack.c.h.b16 %v2701
    %v3337 = vunpack.c.l.b16 %v2702
    %v3338 = vunpack.c.h.b16 %v2702
    %v3339 = vunpack.c.l.b16 %v2703
    %v3340 = vunpack.c.h.b16 %v2703
    %v3341 = vunpack.c.l.b16 %v2704
    %v3342 = vunpack.c.h.b16 %v2704
    %v3343 = vunpack.c.l.b16 %v2705
    %v3344 = vunpack.c.h.b16 %v2705
    %v3345 = vunpack.c.l.b16 %v2706
    %v3346 = vunpack.c.h.b16 %v2706
    %v3347 = vunpack.c.l.b16 %v2707
    %v3348 = vunpack.c.h.b16 %v2707
    %v3349 = vunpack.c.l.b16 %v2708
    %v3350 = vunpack.c.h.b16 %v2708
    %v3351 = vunpack.c.l.b16 %v2709
    %v3352 = vunpack.c.h.b16 %v2709
    %v3353 = vunpack.c.l.b16 %v2710
    %v3354 = vunpack.c.h.b16 %v2710
    %v3355 = vunpack.c.l.b16 %v2711
    %v3356 = vunpack.c.h.b16 %v2711
    %v3357 = vunpack.c.l.b16 %v2712
    %v3358 = vunpack.c.h.b16 %v2712
    %v3359 = vunpack.c.l.b16 %v2713
    %v3360 = vunpack.c.h.b16 %v2713
    %v3361 = vunpack.c.l.b16 %v2714
    %v3362 = vunpack.c.h.b16 %v2714
    %v3363 = vunpack.c.l.b16 %v2715
    %v3364 = vunpack.c.h.b16 %v2715
    %v3365 = vunpack.c.l.b16 %v2716
    %v3366 = vunpack.c.h.b16 %v2716
    %v3367 = vunpack.c.l.b16 %v2717
    %v3368 = vunpack.c.h.b16 %v2717
    %v3369 = vunpack.c.l.b16 %v2718
    %v3370 = vunpack.c.h.b16 %v2718
    %v3371 = vunpack.c.l.b16 %v2719
    %v3372 = vunpack.c.h.b16 %v2719
    %v3373 = vunpack.c.l.b16 %v2720
    %v3374 = vunpack.c.h.b16 %v2720
    %v3375 = vunpack.c.l.b16 %v2721
    %v3376 = vunpack.c.h.b16 %v2721
    %v3377 = vunpack.c.l.b16 %v2722
    %v3378 = vunpack.c.h.b16 %v2722
    %v3379 = vunpack.c.l.b16 %v2723
    %v3380 = vunpack.c.h.b16 %v2723
    %v3381 = vunpack.c.l.b16 %v2724
    %v3382 = vunpack.c.h.b16 %v2724
    %v3383 = vunpack.c.l.b16 %v2725
    %v3384 = vunpack.c.h.b16 %v2725
    %v3385 = vunpack.c.l.b16 %v2726
    %v3386 = vunpack.c.h.b16 %v2726
    %v3387 = vunpack.c.l.b16 %v2727
    %v3388 = vunpack.c.h.b16 %v2727
    %v3389 = vunpack.c.l.b16 %v2728
    %v3390 = vunpack.c.h.b16 %v2728
    %v3391 = vunpack.c.l.b16 %v2729
    %v3392 = vunpack.c.h.b16 %v2729
    %v3393 = vunpack.c.l.b16 %v2730
    %v3394 = vunpack.c.h.b16 %v2730
    %v3395 = vunpack.c.l.b16 %v2731
    %v3396 = vunpack.c.h.b16 %v2731
    %v3397 = vunpack.c.l.b16 %v2732
    %v3398 = vunpack.c.h.b16 %v2732
    %v3399 = vunpack.c.l.b16 %v2733
    %v3400 = vunpack.c.h.b16 %v2733
    %v3401 = vunpack.c.l.b16 %v2734
    %v3402 = vunpack.c.h.b16 %v2734
    %v3403 = vunpack.c.l.b16 %v2735
    %v3404 = vunpack.c.h.b16 %v2735
    %v3405 = vunpack.c.l.b16 %v2736
    %v3406 = vunpack.c.h.b16 %v2736
    %v3407 = vunpack.c.l.b16 %v2737
    %v3408 = vunpack.c.h.b16 %v2737
    %v3409 = vunpack.c.l.b16 %v2738
    %v3410 = vunpack.c.h.b16 %v2738
    %v3411 = vunpack.c.l.b16 %v2739
    %v3412 = vunpack.c.h.b16 %v2739
    %v3413 = vunpack.c.l.b16 %v2740
    %v3414 = vunpack.c.h.b16 %v2740
    %v3415 = vunpack.c.l.b16 %v2741
    %v3416 = vunpack.c.h.b16 %v2741
    %v3417 = vunpack.c.l.b16 %v2742
    %v3418 = vunpack.c.h.b16 %v2742
    %v3419 = vunpack.c.l.b16 %v2743
    %v3420 = vunpack.c.h.b16 %v2743
    %v3421 = vunpack.c.l.b16 %v2744
    %v3422 = vunpack.c.h.b16 %v2744
    %v3423 = vunpack.c.l.b16 %v2745
    %v3424 = vunpack.c.h.b16 %v2745
    %v3425 = vunpack.c.l.b16 %v2746
    %v3426 = vunpack.c.h.b16 %v2746
    %v3427 = vunpack.c.l.b16 %v2747
    %v3428 = vunpack.c.h.b16 %v2747
    %v3429 = vpack.c.b16 %v3309, %v3301
    %v3430 = vpack.c.b16 %v3310, %v3302
    %v3431 = vpack.c.b16 %v3311, %v3303
    %v3432 = vpack.c.b16 %v3312, %v3304
    %v3433 = vpack.c.b16 %v3313, %v3305
    %v3434 = vpack.c.b16 %v3314, %v3306
    %v3435 = vpack.c.b16 %v3315, %v3307
    %v3436 = vpack.c.b16 %v3316, %v3308
    %v3437 = vpack.c.b16 %v3325, %v3317
    %v3438 = vpack.c.b16 %v3326, %v3318
    %v3439 = vpack.c.b16 %v3327, %v3319
    %v3440 = vpack.c.b16 %v3328, %v3320
    %v3441 = vpack.c.b16 %v3329, %v3321
    %v3442 = vpack.c.b16 %v3330, %v3322
    %v3443 = vpack.c.b16 %v3331, %v3323
    %v3444 = vpack.c.b16 %v3332, %v3324
    %v3445 = vpack.c.b16 %v3341, %v3333
    %v3446 = vpack.c.b16 %v3342, %v3334
    %v3447 = vpack.c.b16 %v3343, %v3335
    %v3448 = vpack.c.b16 %v3344, %v3336
    %v3449 = vpack.c.b16 %v3345, %v3337
    %v3450 = vpack.c.b16 %v3346, %v3338
    %v3451 = vpack.c.b16 %v3347, %v3339
    %v3452 = vpack.c.b16 %v3348, %v3340
    %v3453 = vpack.c.b16 %v3357, %v3349
    %v3454 = vpack.c.b16 %v3358, %v3350
    %v3455 = vpack.c.b16 %v3359, %v3351
    %v3456 = vpack.c.b16 %v3360, %v3352
    %v3457 = vpack.c.b16 %v3361, %v3353
    %v3458 = vpack.c.b16 %v3362, %v3354
    %v3459 = vpack.c.b16 %v3363, %v3355
    %v3460 = vpack.c.b16 %v3364, %v3356
    %v3461 = vpack.c.b16 %v3373, %v3365
    %v3462 = vpack.c.b16 %v3374, %v3366
    %v3463 = vpack.c.b16 %v3375, %v3367
    %v3464 = vpack.c.b16 %v3376, %v3368
    %v3465 = vpack.c.b16 %v3377, %v3369
    %v3466 = vpack.c.b16 %v3378, %v3370
    %v3467 = vpack.c.b16 %v3379, %v3371
    %v3468 = vpack.c.b16 %v3380, %v3372
    %v3469 = vpack.c.b16 %v3389, %v3381
    %v3470 = vpack.c.b16 %v3390, %v3382
    %v3471 = vpack.c.b16 %v3391, %v3383
    %v3472 = vpack.c.b16 %v3392, %v3384
    %v3473 = vpack.c.b16 %v3393, %v3385
    %v3474 = vpack.c.b16 %v3394, %v3386
    %v3475 = vpack.c.b16 %v3395, %v3387
    %v3476 = vpack.c.b16 %v3396, %v3388
    %v3477 = vpack.c.b16 %v3405, %v3397
    %v3478 = vpack.c.b16 %v3406, %v3398
    %v3479 = vpack.c.b16 %v3407, %v3399
    %v3480 = vpack.c.b16 %v3408, %v3400
    %v3481 = vpack.c.b16 %v3409, %v3401
    %v3482 = vpack.c.b16 %v3410, %v3402
    %v3483 = vpack.c.b16 %v3411, %v3403
    %v3484 = vpack.c.b16 %v3412, %v3404
    %v3485 = vpack.c.b16 %v3421, %v3413
    %v3486 = vpack.c.b16 %v3422, %v3414
    %v3487 = vpack.c.b16 %v3423, %v3415
    %v3488 = vpack.c.b16 %v3424, %v3416
    %v3489 = vpack.c.b16 %v3425, %v3417
    %v3490 = vpack.c.b16 %v3426, %v3418
    %v3491 = vpack.c.b16 %v3427, %v3419
    %v3492 = vpack.c.b16 %v3428, %v3420
    %3557 = vmatpush.bf16.msra.mxu0 %v3485
    %3558 = vmatpush.bf16.msra.mxu0 %v3477
    %3559 = vmatpush.bf16.msra.mxu0 %v3469
    %3560 = vmatpush.bf16.msra.mxu0 %v3461
    %3561 = vmatpush.bf16.msra.mxu0 %v3453
    %3562 = vmatpush.bf16.msra.mxu0 %v3445
    %3563 = vmatpush.bf16.msra.mxu0 %v3437
    %3564 = vmatpush.bf16.msra.mxu0 %v3429
    %3565 = vmatmul.bf16.gmra.mxu0 %v2683
    %v3566 = vpop.f32.mrf.mxu0
    %v3567 = vadd.f32 %v3143, %v3566
    %v3568 = vpop.f32.mrf.mxu0
    %3569 = vdwg.mxu0
    %3570 = vmatpush.bf16.msra.mxu0 %v3486
    %3571 = vmatpush.bf16.msra.mxu0 %v3478
    %3572 = vmatpush.bf16.msra.mxu0 %v3470
    %3573 = vmatpush.bf16.msra.mxu0 %v3462
    %3574 = vmatpush.bf16.msra.mxu0 %v3454
    %3575 = vmatpush.bf16.msra.mxu0 %v3446
    %3576 = vmatpush.bf16.msra.mxu0 %v3438
    %3577 = vmatpush.bf16.msra.mxu0 %v3430
    %3578 = vmatmul.bf16.gmra.mxu0 %v2683
    %v3579 = vpop.f32.mrf.mxu0
    %v3580 = vadd.f32 %v3156, %v3579
    %v3581 = vpop.f32.mrf.mxu0
    %3582 = vdwg.mxu0
    %3583 = vmatpush.bf16.msra.mxu0 %v3487
    %3584 = vmatpush.bf16.msra.mxu0 %v3479
    %3585 = vmatpush.bf16.msra.mxu0 %v3471
    %3586 = vmatpush.bf16.msra.mxu0 %v3463
    %3587 = vmatpush.bf16.msra.mxu0 %v3455
    %3588 = vmatpush.bf16.msra.mxu0 %v3447
    %3589 = vmatpush.bf16.msra.mxu0 %v3439
    %3590 = vmatpush.bf16.msra.mxu0 %v3431
    %3591 = vmatmul.bf16.gmra.mxu0 %v2683
    %v3592 = vpop.f32.mrf.mxu0
    %v3593 = vadd.f32 %v3169, %v3592
    %v3594 = vpop.f32.mrf.mxu0
    %3595 = vdwg.mxu0
    %3596 = vmatpush.bf16.msra.mxu0 %v3488
    %3597 = vmatpush.bf16.msra.mxu0 %v3480
    %3598 = vmatpush.bf16.msra.mxu0 %v3472
    %3599 = vmatpush.bf16.msra.mxu0 %v3464
    %3600 = vmatpush.bf16.msra.mxu0 %v3456
    %3601 = vmatpush.bf16.msra.mxu0 %v3448
    %3602 = vmatpush.bf16.msra.mxu0 %v3440
    %3603 = vmatpush.bf16.msra.mxu0 %v3432
    %3604 = vmatmul.bf16.gmra.mxu0 %v2683
    %v3605 = vpop.f32.mrf.mxu0
    %v3606 = vadd.f32 %v3182, %v3605
    %v3607 = vpop.f32.mrf.mxu0
    %3608 = vdwg.mxu0
    %3609 = vmatpush.bf16.msra.mxu0 %v3489
    %3610 = vmatpush.bf16.msra.mxu0 %v3481
    %3611 = vmatpush.bf16.msra.mxu0 %v3473
    %3612 = vmatpush.bf16.msra.mxu0 %v3465
    %3613 = vmatpush.bf16.msra.mxu0 %v3457
    %3614 = vmatpush.bf16.msra.mxu0 %v3449
    %3615 = vmatpush.bf16.msra.mxu0 %v3441
    %3616 = vmatpush.bf16.msra.mxu0 %v3433
    %3617 = vmatmul.bf16.gmra.mxu0 %v2683
    %v3618 = vpop.f32.mrf.mxu0
    %v3619 = vadd.f32 %v3195, %v3618
    %v3620 = vpop.f32.mrf.mxu0
    %3621 = vdwg.mxu0
    %3622 = vmatpush.bf16.msra.mxu0 %v3490
    %3623 = vmatpush.bf16.msra.mxu0 %v3482
    %3624 = vmatpush.bf16.msra.mxu0 %v3474
    %3625 = vmatpush.bf16.msra.mxu0 %v3466
    %3626 = vmatpush.bf16.msra.mxu0 %v3458
    %3627 = vmatpush.bf16.msra.mxu0 %v3450
    %3628 = vmatpush.bf16.msra.mxu0 %v3442
    %3629 = vmatpush.bf16.msra.mxu0 %v3434
    %3630 = vmatmul.bf16.gmra.mxu0 %v2683
    %v3631 = vpop.f32.mrf.mxu0
    %v3632 = vadd.f32 %v3208, %v3631
    %v3633 = vpop.f32.mrf.mxu0
    %3634 = vdwg.mxu0
    %3635 = vmatpush.bf16.msra.mxu0 %v3491
    %3636 = vmatpush.bf16.msra.mxu0 %v3483
    %3637 = vmatpush.bf16.msra.mxu0 %v3475
    %3638 = vmatpush.bf16.msra.mxu0 %v3467
    %3639 = vmatpush.bf16.msra.mxu0 %v3459
    %3640 = vmatpush.bf16.msra.mxu0 %v3451
    %3641 = vmatpush.bf16.msra.mxu0 %v3443
    %3642 = vmatpush.bf16.msra.mxu0 %v3435
    %3643 = vmatmul.bf16.gmra.mxu0 %v2683
    %v3644 = vpop.f32.mrf.mxu0
    %v3645 = vadd.f32 %v3221, %v3644
    %v3646 = vpop.f32.mrf.mxu0
    %3647 = vdwg.mxu0
    %3648 = vmatpush.bf16.msra.mxu0 %v3492
    %3649 = vmatpush.bf16.msra.mxu0 %v3484
    %3650 = vmatpush.bf16.msra.mxu0 %v3476
    %3651 = vmatpush.bf16.msra.mxu0 %v3468
    %3652 = vmatpush.bf16.msra.mxu0 %v3460
    %3653 = vmatpush.bf16.msra.mxu0 %v3452
    %3654 = vmatpush.bf16.msra.mxu0 %v3444
    %3655 = vmatpush.bf16.msra.mxu0 %v3436
    %3656 = vmatmul.bf16.gmra.mxu0 %v2683
    %v3657 = vpop.f32.mrf.mxu0
    %v3658 = vadd.f32 %v3234, %v3657
    %v3659 = vpop.f32.mrf.mxu0
    %3660 = vdwg.mxu0
    %v3661 = vld [vmem:[%s6] sm:$0xff]
    %v3663 = vperm.slane %v3661, 0
    %v3664 = vperm.slane %v3661, 1
    %v3665 = vperm.slane %v3661, 2
    %v3666 = vperm.slane %v3661, 3
    %v3667 = vperm.slane %v3661, 4
    %v3668 = vperm.slane %v3661, 5
    %v3669 = vperm.slane %v3661, 6
    %v3670 = vperm.slane %v3661, 7
    %v3679 = vadd.f32 %v3567, %v3663
    %v3680 = vadd.f32 %v3580, %v3664
    %v3681 = vadd.f32 %v3593, %v3665
    %v3682 = vadd.f32 %v3606, %v3666
    %v3683 = vadd.f32 %v3619, %v3667
    %v3684 = vadd.f32 %v3632, %v3668
    %v3685 = vadd.f32 %v3645, %v3669
    %v3686 = vadd.f32 %v3658, %v3670
    %v3687 = vmax.f32 %v3679, 0.0
    %v3688 = vmax.f32 %v3680, 0.0
    %v3689 = vmax.f32 %v3681, 0.0
    %v3690 = vmax.f32 %v3682, 0.0
    %v3691 = vmax.f32 %v3683, 0.0
    %v3692 = vmax.f32 %v3684, 0.0
    %v3693 = vmax.f32 %v3685, 0.0
    %v3694 = vmax.f32 %v3686, 0.0
    %v3695 = vpack.c.bf16 %v3687, %v3687
    %v3696 = vpack.c.bf16 %v3688, %v3688
    %v3697 = vpack.c.bf16 %v3689, %v3689
    %v3698 = vpack.c.bf16 %v3690, %v3690
    %v3699 = vpack.c.bf16 %v3691, %v3691
    %v3700 = vpack.c.bf16 %v3692, %v3692
    %v3701 = vpack.c.bf16 %v3693, %v3693
    %v3702 = vpack.c.bf16 %v3694, %v3694
    %v3703 = vld [vmem:[#allocation7] sm:$0xff]
    %v3704 = vld [vmem:[#allocation7 + $0x8] sm:$0xff]
    %v3705 = vld [vmem:[#allocation7 + $0x10] sm:$0xff]
    %v3706 = vld [vmem:[#allocation7 + $0x18] sm:$0xff]
    %v3707 = vld [vmem:[#allocation7 + $0x20] sm:$0xff]
    %v3708 = vld [vmem:[#allocation7 + $0x28] sm:$0xff]
    %v3709 = vld [vmem:[#allocation7 + $0x30] sm:$0xff]
    %v3710 = vld [vmem:[#allocation7 + $0x38] sm:$0xff]
    %v3711 = vld [vmem:[#allocation7 + $0x40] sm:$0xff]
    %v3712 = vld [vmem:[#allocation7 + $0x48] sm:$0xff]
    %v3713 = vld [vmem:[#allocation7 + $0x50] sm:$0xff]
    %v3714 = vld [vmem:[#allocation7 + $0x58] sm:$0xff]
    %v3715 = vld [vmem:[#allocation7 + $0x60] sm:$0xff]
    %v3716 = vld [vmem:[#allocation7 + $0x68] sm:$0xff]
    %v3717 = vld [vmem:[#allocation7 + $0x70] sm:$0xff]
    %v3718 = vld [vmem:[#allocation7 + $0x78] sm:$0xff]
    %v3719 = vld [vmem:[#allocation7 + $0x80] sm:$0xff]
    %v3720 = vld [vmem:[#allocation7 + $0x88] sm:$0xff]
    %v3721 = vld [vmem:[#allocation7 + $0x90] sm:$0xff]
    %v3722 = vld [vmem:[#allocation7 + $0x98] sm:$0xff]
    %v3723 = vld [vmem:[#allocation7 + $0xa0] sm:$0xff]
    %v3724 = vld [vmem:[#allocation7 + $0xa8] sm:$0xff]
    %v3725 = vld [vmem:[#allocation7 + $0xb0] sm:$0xff]
    %v3726 = vld [vmem:[#allocation7 + $0xb8] sm:$0xff]
    %v3727 = vld [vmem:[#allocation7 + $0xc0] sm:$0xff]
    %v3728 = vld [vmem:[#allocation7 + $0xc8] sm:$0xff]
    %v3729 = vld [vmem:[#allocation7 + $0xd0] sm:$0xff]
    %v3730 = vld [vmem:[#allocation7 + $0xd8] sm:$0xff]
    %v3731 = vld [vmem:[#allocation7 + $0xe0] sm:$0xff]
    %v3732 = vld [vmem:[#allocation7 + $0xe8] sm:$0xff]
    %v3733 = vld [vmem:[#allocation7 + $0xf0] sm:$0xff]
    %v3734 = vld [vmem:[#allocation7 + $0xf8] sm:$0xff]
    %v3735 = vld [vmem:[#allocation7 + $0x100] sm:$0xff]
    %v3736 = vld [vmem:[#allocation7 + $0x108] sm:$0xff]
    %v3737 = vld [vmem:[#allocation7 + $0x110] sm:$0xff]
    %v3738 = vld [vmem:[#allocation7 + $0x118] sm:$0xff]
    %v3739 = vld [vmem:[#allocation7 + $0x120] sm:$0xff]
    %v3740 = vld [vmem:[#allocation7 + $0x128] sm:$0xff]
    %v3741 = vld [vmem:[#allocation7 + $0x130] sm:$0xff]
    %v3742 = vld [vmem:[#allocation7 + $0x138] sm:$0xff]
    %v3743 = vld [vmem:[#allocation7 + $0x140] sm:$0xff]
    %v3744 = vld [vmem:[#allocation7 + $0x148] sm:$0xff]
    %v3745 = vld [vmem:[#allocation7 + $0x150] sm:$0xff]
    %v3746 = vld [vmem:[#allocation7 + $0x158] sm:$0xff]
    %v3747 = vld [vmem:[#allocation7 + $0x160] sm:$0xff]
    %v3748 = vld [vmem:[#allocation7 + $0x168] sm:$0xff]
    %v3749 = vld [vmem:[#allocation7 + $0x170] sm:$0xff]
    %v3750 = vld [vmem:[#allocation7 + $0x178] sm:$0xff]
    %v3751 = vld [vmem:[#allocation7 + $0x180] sm:$0xff]
    %v3752 = vld [vmem:[#allocation7 + $0x188] sm:$0xff]
    %v3753 = vld [vmem:[#allocation7 + $0x190] sm:$0xff]
    %v3754 = vld [vmem:[#allocation7 + $0x198] sm:$0xff]
    %v3755 = vld [vmem:[#allocation7 + $0x1a0] sm:$0xff]
    %v3756 = vld [vmem:[#allocation7 + $0x1a8] sm:$0xff]
    %v3757 = vld [vmem:[#allocation7 + $0x1b0] sm:$0xff]
    %v3758 = vld [vmem:[#allocation7 + $0x1b8] sm:$0xff]
    %v3759 = vld [vmem:[#allocation7 + $0x1c0] sm:$0xff]
    %v3760 = vld [vmem:[#allocation7 + $0x1c8] sm:$0xff]
    %v3761 = vld [vmem:[#allocation7 + $0x1d0] sm:$0xff]
    %v3762 = vld [vmem:[#allocation7 + $0x1d8] sm:$0xff]
    %v3763 = vld [vmem:[#allocation7 + $0x1e0] sm:$0xff]
    %v3764 = vld [vmem:[#allocation7 + $0x1e8] sm:$0xff]
    %v3765 = vld [vmem:[#allocation7 + $0x1f0] sm:$0xff]
    %v3766 = vld [vmem:[#allocation7 + $0x1f8] sm:$0xff]
    %v3767 = vld [vmem:[#allocation7 + $0x200] sm:$0xff]
    %v3768 = vld [vmem:[#allocation7 + $0x208] sm:$0xff]
    %v3769 = vld [vmem:[#allocation7 + $0x210] sm:$0xff]
    %v3770 = vld [vmem:[#allocation7 + $0x218] sm:$0xff]
    %v3771 = vld [vmem:[#allocation7 + $0x220] sm:$0xff]
    %v3772 = vld [vmem:[#allocation7 + $0x228] sm:$0xff]
    %v3773 = vld [vmem:[#allocation7 + $0x230] sm:$0xff]
    %v3774 = vld [vmem:[#allocation7 + $0x238] sm:$0xff]
    %v3775 = vld [vmem:[#allocation7 + $0x240] sm:$0xff]
    %v3776 = vld [vmem:[#allocation7 + $0x248] sm:$0xff]
    %v3777 = vld [vmem:[#allocation7 + $0x250] sm:$0xff]
    %v3778 = vld [vmem:[#allocation7 + $0x258] sm:$0xff]
    %v3779 = vld [vmem:[#allocation7 + $0x260] sm:$0xff]
    %v3780 = vld [vmem:[#allocation7 + $0x268] sm:$0xff]
    %v3781 = vld [vmem:[#allocation7 + $0x270] sm:$0xff]
    %v3782 = vld [vmem:[#allocation7 + $0x278] sm:$0xff]
    %v3783 = vld [vmem:[#allocation7 + $0x280] sm:$0xff]
    %v3784 = vld [vmem:[#allocation7 + $0x288] sm:$0xff]
    %v3785 = vld [vmem:[#allocation7 + $0x290] sm:$0xff]
    %v3786 = vld [vmem:[#allocation7 + $0x298] sm:$0xff]
    %v3787 = vld [vmem:[#allocation7 + $0x2a0] sm:$0xff]
    %v3788 = vld [vmem:[#allocation7 + $0x2a8] sm:$0xff]
    %v3789 = vld [vmem:[#allocation7 + $0x2b0] sm:$0xff]
    %v3790 = vld [vmem:[#allocation7 + $0x2b8] sm:$0xff]
    %v3791 = vld [vmem:[#allocation7 + $0x2c0] sm:$0xff]
    %v3792 = vld [vmem:[#allocation7 + $0x2c8] sm:$0xff]
    %v3793 = vld [vmem:[#allocation7 + $0x2d0] sm:$0xff]
    %v3794 = vld [vmem:[#allocation7 + $0x2d8] sm:$0xff]
    %v3795 = vld [vmem:[#allocation7 + $0x2e0] sm:$0xff]
    %v3796 = vld [vmem:[#allocation7 + $0x2e8] sm:$0xff]
    %v3797 = vld [vmem:[#allocation7 + $0x2f0] sm:$0xff]
    %v3798 = vld [vmem:[#allocation7 + $0x2f8] sm:$0xff]
    %v3799 = vld [vmem:[#allocation7 + $0x300] sm:$0xff]
    %v3800 = vld [vmem:[#allocation7 + $0x308] sm:$0xff]
    %v3801 = vld [vmem:[#allocation7 + $0x310] sm:$0xff]
    %v3802 = vld [vmem:[#allocation7 + $0x318] sm:$0xff]
    %v3803 = vld [vmem:[#allocation7 + $0x320] sm:$0xff]
    %v3804 = vld [vmem:[#allocation7 + $0x328] sm:$0xff]
    %v3805 = vld [vmem:[#allocation7 + $0x330] sm:$0xff]
    %v3806 = vld [vmem:[#allocation7 + $0x338] sm:$0xff]
    %v3807 = vld [vmem:[#allocation7 + $0x340] sm:$0xff]
    %v3808 = vld [vmem:[#allocation7 + $0x348] sm:$0xff]
    %v3809 = vld [vmem:[#allocation7 + $0x350] sm:$0xff]
    %v3810 = vld [vmem:[#allocation7 + $0x358] sm:$0xff]
    %v3811 = vld [vmem:[#allocation7 + $0x360] sm:$0xff]
    %v3812 = vld [vmem:[#allocation7 + $0x368] sm:$0xff]
    %v3813 = vld [vmem:[#allocation7 + $0x370] sm:$0xff]
    %v3814 = vld [vmem:[#allocation7 + $0x378] sm:$0xff]
    %v3815 = vld [vmem:[#allocation7 + $0x380] sm:$0xff]
    %v3816 = vld [vmem:[#allocation7 + $0x388] sm:$0xff]
    %v3817 = vld [vmem:[#allocation7 + $0x390] sm:$0xff]
    %v3818 = vld [vmem:[#allocation7 + $0x398] sm:$0xff]
    %v3819 = vld [vmem:[#allocation7 + $0x3a0] sm:$0xff]
    %v3820 = vld [vmem:[#allocation7 + $0x3a8] sm:$0xff]
    %v3821 = vld [vmem:[#allocation7 + $0x3b0] sm:$0xff]
    %v3822 = vld [vmem:[#allocation7 + $0x3b8] sm:$0xff]
    %v3823 = vld [vmem:[#allocation7 + $0x3c0] sm:$0xff]
    %v3824 = vld [vmem:[#allocation7 + $0x3c8] sm:$0xff]
    %v3825 = vld [vmem:[#allocation7 + $0x3d0] sm:$0xff]
    %v3826 = vld [vmem:[#allocation7 + $0x3d8] sm:$0xff]
    %v3827 = vld [vmem:[#allocation7 + $0x3e0] sm:$0xff]
    %v3828 = vld [vmem:[#allocation7 + $0x3e8] sm:$0xff]
    %v3829 = vld [vmem:[#allocation7 + $0x3f0] sm:$0xff]
    %v3830 = vld [vmem:[#allocation7 + $0x3f8] sm:$0xff]
    %v3831 = vld [vmem:[%s8] sm:$0x3]
    %v3833 = vperm.slane %v3831, 0
    %v3834 = vperm.slane %v3831, 1
    %v3965 = vunpack.c.l.b16 %v3703
    %v3966 = vunpack.c.h.b16 %v3703
    %v3967 = vunpack.c.l.b16 %v3704
    %v3968 = vunpack.c.h.b16 %v3704
    %v3969 = vunpack.c.l.b16 %v3705
    %v3970 = vunpack.c.h.b16 %v3705
    %v3971 = vunpack.c.l.b16 %v3706
    %v3972 = vunpack.c.h.b16 %v3706
    %v3973 = vunpack.c.l.b16 %v3707
    %v3974 = vunpack.c.h.b16 %v3707
    %v3975 = vunpack.c.l.b16 %v3708
    %v3976 = vunpack.c.h.b16 %v3708
    %v3977 = vunpack.c.l.b16 %v3709
    %v3978 = vunpack.c.h.b16 %v3709
    %v3979 = vunpack.c.l.b16 %v3710
    %v3980 = vunpack.c.h.b16 %v3710
    %v3981 = vunpack.c.l.b16 %v3711
    %v3982 = vunpack.c.h.b16 %v3711
    %v3983 = vunpack.c.l.b16 %v3712
    %v3984 = vunpack.c.h.b16 %v3712
    %v3985 = vunpack.c.l.b16 %v3713
    %v3986 = vunpack.c.h.b16 %v3713
    %v3987 = vunpack.c.l.b16 %v3714
    %v3988 = vunpack.c.h.b16 %v3714
    %v3989 = vunpack.c.l.b16 %v3715
    %v3990 = vunpack.c.h.b16 %v3715
    %v3991 = vunpack.c.l.b16 %v3716
    %v3992 = vunpack.c.h.b16 %v3716
    %v3993 = vunpack.c.l.b16 %v3717
    %v3994 = vunpack.c.h.b16 %v3717
    %v3995 = vunpack.c.l.b16 %v3718
    %v3996 = vunpack.c.h.b16 %v3718
    %v3997 = vunpack.c.l.b16 %v3719
    %v3998 = vunpack.c.h.b16 %v3719
    %v3999 = vunpack.c.l.b16 %v3720
    %v4000 = vunpack.c.h.b16 %v3720
    %v4001 = vunpack.c.l.b16 %v3721
    %v4002 = vunpack.c.h.b16 %v3721
    %v4003 = vunpack.c.l.b16 %v3722
    %v4004 = vunpack.c.h.b16 %v3722
    %v4005 = vunpack.c.l.b16 %v3723
    %v4006 = vunpack.c.h.b16 %v3723
    %v4007 = vunpack.c.l.b16 %v3724
    %v4008 = vunpack.c.h.b16 %v3724
    %v4009 = vunpack.c.l.b16 %v3725
    %v4010 = vunpack.c.h.b16 %v3725
    %v4011 = vunpack.c.l.b16 %v3726
    %v4012 = vunpack.c.h.b16 %v3726
    %v4013 = vunpack.c.l.b16 %v3727
    %v4014 = vunpack.c.h.b16 %v3727
    %v4015 = vunpack.c.l.b16 %v3728
    %v4016 = vunpack.c.h.b16 %v3728
    %v4017 = vunpack.c.l.b16 %v3729
    %v4018 = vunpack.c.h.b16 %v3729
    %v4019 = vunpack.c.l.b16 %v3730
    %v4020 = vunpack.c.h.b16 %v3730
    %v4021 = vunpack.c.l.b16 %v3731
    %v4022 = vunpack.c.h.b16 %v3731
    %v4023 = vunpack.c.l.b16 %v3732
    %v4024 = vunpack.c.h.b16 %v3732
    %v4025 = vunpack.c.l.b16 %v3733
    %v4026 = vunpack.c.h.b16 %v3733
    %v4027 = vunpack.c.l.b16 %v3734
    %v4028 = vunpack.c.h.b16 %v3734
    %v4029 = vunpack.c.l.b16 %v3735
    %v4030 = vunpack.c.h.b16 %v3735
    %v4031 = vunpack.c.l.b16 %v3736
    %v4032 = vunpack.c.h.b16 %v3736
    %v4033 = vunpack.c.l.b16 %v3737
    %v4034 = vunpack.c.h.b16 %v3737
    %v4035 = vunpack.c.l.b16 %v3738
    %v4036 = vunpack.c.h.b16 %v3738
    %v4037 = vunpack.c.l.b16 %v3739
    %v4038 = vunpack.c.h.b16 %v3739
    %v4039 = vunpack.c.l.b16 %v3740
    %v4040 = vunpack.c.h.b16 %v3740
    %v4041 = vunpack.c.l.b16 %v3741
    %v4042 = vunpack.c.h.b16 %v3741
    %v4043 = vunpack.c.l.b16 %v3742
    %v4044 = vunpack.c.h.b16 %v3742
    %v4045 = vunpack.c.l.b16 %v3743
    %v4046 = vunpack.c.h.b16 %v3743
    %v4047 = vunpack.c.l.b16 %v3744
    %v4048 = vunpack.c.h.b16 %v3744
    %v4049 = vunpack.c.l.b16 %v3745
    %v4050 = vunpack.c.h.b16 %v3745
    %v4051 = vunpack.c.l.b16 %v3746
    %v4052 = vunpack.c.h.b16 %v3746
    %v4053 = vunpack.c.l.b16 %v3747
    %v4054 = vunpack.c.h.b16 %v3747
    %v4055 = vunpack.c.l.b16 %v3748
    %v4056 = vunpack.c.h.b16 %v3748
    %v4057 = vunpack.c.l.b16 %v3749
    %v4058 = vunpack.c.h.b16 %v3749
    %v4059 = vunpack.c.l.b16 %v3750
    %v4060 = vunpack.c.h.b16 %v3750
    %v4061 = vunpack.c.l.b16 %v3751
    %v4062 = vunpack.c.h.b16 %v3751
    %v4063 = vunpack.c.l.b16 %v3752
    %v4064 = vunpack.c.h.b16 %v3752
    %v4065 = vunpack.c.l.b16 %v3753
    %v4066 = vunpack.c.h.b16 %v3753
    %v4067 = vunpack.c.l.b16 %v3754
    %v4068 = vunpack.c.h.b16 %v3754
    %v4069 = vunpack.c.l.b16 %v3755
    %v4070 = vunpack.c.h.b16 %v3755
    %v4071 = vunpack.c.l.b16 %v3756
    %v4072 = vunpack.c.h.b16 %v3756
    %v4073 = vunpack.c.l.b16 %v3757
    %v4074 = vunpack.c.h.b16 %v3757
    %v4075 = vunpack.c.l.b16 %v3758
    %v4076 = vunpack.c.h.b16 %v3758
    %v4077 = vunpack.c.l.b16 %v3759
    %v4078 = vunpack.c.h.b16 %v3759
    %v4079 = vunpack.c.l.b16 %v3760
    %v4080 = vunpack.c.h.b16 %v3760
    %v4081 = vunpack.c.l.b16 %v3761
    %v4082 = vunpack.c.h.b16 %v3761
    %v4083 = vunpack.c.l.b16 %v3762
    %v4084 = vunpack.c.h.b16 %v3762
    %v4085 = vunpack.c.l.b16 %v3763
    %v4086 = vunpack.c.h.b16 %v3763
    %v4087 = vunpack.c.l.b16 %v3764
    %v4088 = vunpack.c.h.b16 %v3764
    %v4089 = vunpack.c.l.b16 %v3765
    %v4090 = vunpack.c.h.b16 %v3765
    %v4091 = vunpack.c.l.b16 %v3766
    %v4092 = vunpack.c.h.b16 %v3766
    %v4093 = vunpack.c.l.b16 %v3767
    %v4094 = vunpack.c.h.b16 %v3767
    %v4095 = vunpack.c.l.b16 %v3768
    %v4096 = vunpack.c.h.b16 %v3768
    %v4097 = vunpack.c.l.b16 %v3769
    %v4098 = vunpack.c.h.b16 %v3769
    %v4099 = vunpack.c.l.b16 %v3770
    %v4100 = vunpack.c.h.b16 %v3770
    %v4101 = vunpack.c.l.b16 %v3771
    %v4102 = vunpack.c.h.b16 %v3771
    %v4103 = vunpack.c.l.b16 %v3772
    %v4104 = vunpack.c.h.b16 %v3772
    %v4105 = vunpack.c.l.b16 %v3773
    %v4106 = vunpack.c.h.b16 %v3773
    %v4107 = vunpack.c.l.b16 %v3774
    %v4108 = vunpack.c.h.b16 %v3774
    %v4109 = vunpack.c.l.b16 %v3775
    %v4110 = vunpack.c.h.b16 %v3775
    %v4111 = vunpack.c.l.b16 %v3776
    %v4112 = vunpack.c.h.b16 %v3776
    %v4113 = vunpack.c.l.b16 %v3777
    %v4114 = vunpack.c.h.b16 %v3777
    %v4115 = vunpack.c.l.b16 %v3778
    %v4116 = vunpack.c.h.b16 %v3778
    %v4117 = vunpack.c.l.b16 %v3779
    %v4118 = vunpack.c.h.b16 %v3779
    %v4119 = vunpack.c.l.b16 %v3780
    %v4120 = vunpack.c.h.b16 %v3780
    %v4121 = vunpack.c.l.b16 %v3781
    %v4122 = vunpack.c.h.b16 %v3781
    %v4123 = vunpack.c.l.b16 %v3782
    %v4124 = vunpack.c.h.b16 %v3782
    %v4125 = vunpack.c.l.b16 %v3783
    %v4126 = vunpack.c.h.b16 %v3783
    %v4127 = vunpack.c.l.b16 %v3784
    %v4128 = vunpack.c.h.b16 %v3784
    %v4129 = vunpack.c.l.b16 %v3785
    %v4130 = vunpack.c.h.b16 %v3785
    %v4131 = vunpack.c.l.b16 %v3786
    %v4132 = vunpack.c.h.b16 %v3786
    %v4133 = vunpack.c.l.b16 %v3787
    %v4134 = vunpack.c.h.b16 %v3787
    %v4135 = vunpack.c.l.b16 %v3788
    %v4136 = vunpack.c.h.b16 %v3788
    %v4137 = vunpack.c.l.b16 %v3789
    %v4138 = vunpack.c.h.b16 %v3789
    %v4139 = vunpack.c.l.b16 %v3790
    %v4140 = vunpack.c.h.b16 %v3790
    %v4141 = vunpack.c.l.b16 %v3791
    %v4142 = vunpack.c.h.b16 %v3791
    %v4143 = vunpack.c.l.b16 %v3792
    %v4144 = vunpack.c.h.b16 %v3792
    %v4145 = vunpack.c.l.b16 %v3793
    %v4146 = vunpack.c.h.b16 %v3793
    %v4147 = vunpack.c.l.b16 %v3794
    %v4148 = vunpack.c.h.b16 %v3794
    %v4149 = vunpack.c.l.b16 %v3795
    %v4150 = vunpack.c.h.b16 %v3795
    %v4151 = vunpack.c.l.b16 %v3796
    %v4152 = vunpack.c.h.b16 %v3796
    %v4153 = vunpack.c.l.b16 %v3797
    %v4154 = vunpack.c.h.b16 %v3797
    %v4155 = vunpack.c.l.b16 %v3798
    %v4156 = vunpack.c.h.b16 %v3798
    %v4157 = vunpack.c.l.b16 %v3799
    %v4158 = vunpack.c.h.b16 %v3799
    %v4159 = vunpack.c.l.b16 %v3800
    %v4160 = vunpack.c.h.b16 %v3800
    %v4161 = vunpack.c.l.b16 %v3801
    %v4162 = vunpack.c.h.b16 %v3801
    %v4163 = vunpack.c.l.b16 %v3802
    %v4164 = vunpack.c.h.b16 %v3802
    %v4165 = vunpack.c.l.b16 %v3803
    %v4166 = vunpack.c.h.b16 %v3803
    %v4167 = vunpack.c.l.b16 %v3804
    %v4168 = vunpack.c.h.b16 %v3804
    %v4169 = vunpack.c.l.b16 %v3805
    %v4170 = vunpack.c.h.b16 %v3805
    %v4171 = vunpack.c.l.b16 %v3806
    %v4172 = vunpack.c.h.b16 %v3806
    %v4173 = vunpack.c.l.b16 %v3807
    %v4174 = vunpack.c.h.b16 %v3807
    %v4175 = vunpack.c.l.b16 %v3808
    %v4176 = vunpack.c.h.b16 %v3808
    %v4177 = vunpack.c.l.b16 %v3809
    %v4178 = vunpack.c.h.b16 %v3809
    %v4179 = vunpack.c.l.b16 %v3810
    %v4180 = vunpack.c.h.b16 %v3810
    %v4181 = vunpack.c.l.b16 %v3811
    %v4182 = vunpack.c.h.b16 %v3811
    %v4183 = vunpack.c.l.b16 %v3812
    %v4184 = vunpack.c.h.b16 %v3812
    %v4185 = vunpack.c.l.b16 %v3813
    %v4186 = vunpack.c.h.b16 %v3813
    %v4187 = vunpack.c.l.b16 %v3814
    %v4188 = vunpack.c.h.b16 %v3814
    %v4189 = vunpack.c.l.b16 %v3815
    %v4190 = vunpack.c.h.b16 %v3815
    %v4191 = vunpack.c.l.b16 %v3816
    %v4192 = vunpack.c.h.b16 %v3816
    %v4193 = vunpack.c.l.b16 %v3817
    %v4194 = vunpack.c.h.b16 %v3817
    %v4195 = vunpack.c.l.b16 %v3818
    %v4196 = vunpack.c.h.b16 %v3818
    %v4197 = vunpack.c.l.b16 %v3819
    %v4198 = vunpack.c.h.b16 %v3819
    %v4199 = vunpack.c.l.b16 %v3820
    %v4200 = vunpack.c.h.b16 %v3820
    %v4201 = vunpack.c.l.b16 %v3821
    %v4202 = vunpack.c.h.b16 %v3821
    %v4203 = vunpack.c.l.b16 %v3822
    %v4204 = vunpack.c.h.b16 %v3822
    %v4205 = vunpack.c.l.b16 %v3823
    %v4206 = vunpack.c.h.b16 %v3823
    %v4207 = vunpack.c.l.b16 %v3824
    %v4208 = vunpack.c.h.b16 %v3824
    %v4209 = vunpack.c.l.b16 %v3825
    %v4210 = vunpack.c.h.b16 %v3825
    %v4211 = vunpack.c.l.b16 %v3826
    %v4212 = vunpack.c.h.b16 %v3826
    %v4213 = vunpack.c.l.b16 %v3827
    %v4214 = vunpack.c.h.b16 %v3827
    %v4215 = vunpack.c.l.b16 %v3828
    %v4216 = vunpack.c.h.b16 %v3828
    %v4217 = vunpack.c.l.b16 %v3829
    %v4218 = vunpack.c.h.b16 %v3829
    %v4219 = vunpack.c.l.b16 %v3830
    %v4220 = vunpack.c.h.b16 %v3830
    %v4221 = vpack.c.b16 %v3967, %v3965
    %v4222 = vpack.c.b16 %v3968, %v3966
    %v4223 = vpack.c.b16 %v3971, %v3969
    %v4224 = vpack.c.b16 %v3972, %v3970
    %v4225 = vpack.c.b16 %v3975, %v3973
    %v4226 = vpack.c.b16 %v3976, %v3974
    %v4227 = vpack.c.b16 %v3979, %v3977
    %v4228 = vpack.c.b16 %v3980, %v3978
    %v4229 = vpack.c.b16 %v3983, %v3981
    %v4230 = vpack.c.b16 %v3984, %v3982
    %v4231 = vpack.c.b16 %v3987, %v3985
    %v4232 = vpack.c.b16 %v3988, %v3986
    %v4233 = vpack.c.b16 %v3991, %v3989
    %v4234 = vpack.c.b16 %v3992, %v3990
    %v4235 = vpack.c.b16 %v3995, %v3993
    %v4236 = vpack.c.b16 %v3996, %v3994
    %v4237 = vpack.c.b16 %v3999, %v3997
    %v4238 = vpack.c.b16 %v4000, %v3998
    %v4239 = vpack.c.b16 %v4003, %v4001
    %v4240 = vpack.c.b16 %v4004, %v4002
    %v4241 = vpack.c.b16 %v4007, %v4005
    %v4242 = vpack.c.b16 %v4008, %v4006
    %v4243 = vpack.c.b16 %v4011, %v4009
    %v4244 = vpack.c.b16 %v4012, %v4010
    %v4245 = vpack.c.b16 %v4015, %v4013
    %v4246 = vpack.c.b16 %v4016, %v4014
    %v4247 = vpack.c.b16 %v4019, %v4017
    %v4248 = vpack.c.b16 %v4020, %v4018
    %v4249 = vpack.c.b16 %v4023, %v4021
    %v4250 = vpack.c.b16 %v4024, %v4022
    %v4251 = vpack.c.b16 %v4027, %v4025
    %v4252 = vpack.c.b16 %v4028, %v4026
    %v4253 = vpack.c.b16 %v4031, %v4029
    %v4254 = vpack.c.b16 %v4032, %v4030
    %v4255 = vpack.c.b16 %v4035, %v4033
    %v4256 = vpack.c.b16 %v4036, %v4034
    %v4257 = vpack.c.b16 %v4039, %v4037
    %v4258 = vpack.c.b16 %v4040, %v4038
    %v4259 = vpack.c.b16 %v4043, %v4041
    %v4260 = vpack.c.b16 %v4044, %v4042
    %v4261 = vpack.c.b16 %v4047, %v4045
    %v4262 = vpack.c.b16 %v4048, %v4046
    %v4263 = vpack.c.b16 %v4051, %v4049
    %v4264 = vpack.c.b16 %v4052, %v4050
    %v4265 = vpack.c.b16 %v4055, %v4053
    %v4266 = vpack.c.b16 %v4056, %v4054
    %v4267 = vpack.c.b16 %v4059, %v4057
    %v4268 = vpack.c.b16 %v4060, %v4058
    %v4269 = vpack.c.b16 %v4063, %v4061
    %v4270 = vpack.c.b16 %v4064, %v4062
    %v4271 = vpack.c.b16 %v4067, %v4065
    %v4272 = vpack.c.b16 %v4068, %v4066
    %v4273 = vpack.c.b16 %v4071, %v4069
    %v4274 = vpack.c.b16 %v4072, %v4070
    %v4275 = vpack.c.b16 %v4075, %v4073
    %v4276 = vpack.c.b16 %v4076, %v4074
    %v4277 = vpack.c.b16 %v4079, %v4077
    %v4278 = vpack.c.b16 %v4080, %v4078
    %v4279 = vpack.c.b16 %v4083, %v4081
    %v4280 = vpack.c.b16 %v4084, %v4082
    %v4281 = vpack.c.b16 %v4087, %v4085
    %v4282 = vpack.c.b16 %v4088, %v4086
    %v4283 = vpack.c.b16 %v4091, %v4089
    %v4284 = vpack.c.b16 %v4092, %v4090
    %v4285 = vpack.c.b16 %v4095, %v4093
    %v4286 = vpack.c.b16 %v4096, %v4094
    %v4287 = vpack.c.b16 %v4099, %v4097
    %v4288 = vpack.c.b16 %v4100, %v4098
    %v4289 = vpack.c.b16 %v4103, %v4101
    %v4290 = vpack.c.b16 %v4104, %v4102
    %v4291 = vpack.c.b16 %v4107, %v4105
    %v4292 = vpack.c.b16 %v4108, %v4106
    %v4293 = vpack.c.b16 %v4111, %v4109
    %v4294 = vpack.c.b16 %v4112, %v4110
    %v4295 = vpack.c.b16 %v4115, %v4113
    %v4296 = vpack.c.b16 %v4116, %v4114
    %v4297 = vpack.c.b16 %v4119, %v4117
    %v4298 = vpack.c.b16 %v4120, %v4118
    %v4299 = vpack.c.b16 %v4123, %v4121
    %v4300 = vpack.c.b16 %v4124, %v4122
    %v4301 = vpack.c.b16 %v4127, %v4125
    %v4302 = vpack.c.b16 %v4128, %v4126
    %v4303 = vpack.c.b16 %v4131, %v4129
    %v4304 = vpack.c.b16 %v4132, %v4130
    %v4305 = vpack.c.b16 %v4135, %v4133
    %v4306 = vpack.c.b16 %v4136, %v4134
    %v4307 = vpack.c.b16 %v4139, %v4137
    %v4308 = vpack.c.b16 %v4140, %v4138
    %v4309 = vpack.c.b16 %v4143, %v4141
    %v4310 = vpack.c.b16 %v4144, %v4142
    %v4311 = vpack.c.b16 %v4147, %v4145
    %v4312 = vpack.c.b16 %v4148, %v4146
    %v4313 = vpack.c.b16 %v4151, %v4149
    %v4314 = vpack.c.b16 %v4152, %v4150
    %v4315 = vpack.c.b16 %v4155, %v4153
    %v4316 = vpack.c.b16 %v4156, %v4154
    %v4317 = vpack.c.b16 %v4159, %v4157
    %v4318 = vpack.c.b16 %v4160, %v4158
    %v4319 = vpack.c.b16 %v4163, %v4161
    %v4320 = vpack.c.b16 %v4164, %v4162
    %v4321 = vpack.c.b16 %v4167, %v4165
    %v4322 = vpack.c.b16 %v4168, %v4166
    %v4323 = vpack.c.b16 %v4171, %v4169
    %v4324 = vpack.c.b16 %v4172, %v4170
    %v4325 = vpack.c.b16 %v4175, %v4173
    %v4326 = vpack.c.b16 %v4176, %v4174
    %v4327 = vpack.c.b16 %v4179, %v4177
    %v4328 = vpack.c.b16 %v4180, %v4178
    %v4329 = vpack.c.b16 %v4183, %v4181
    %v4330 = vpack.c.b16 %v4184, %v4182
    %v4331 = vpack.c.b16 %v4187, %v4185
    %v4332 = vpack.c.b16 %v4188, %v4186
    %v4333 = vpack.c.b16 %v4191, %v4189
    %v4334 = vpack.c.b16 %v4192, %v4190
    %v4335 = vpack.c.b16 %v4195, %v4193
    %v4336 = vpack.c.b16 %v4196, %v4194
    %v4337 = vpack.c.b16 %v4199, %v4197
    %v4338 = vpack.c.b16 %v4200, %v4198
    %v4339 = vpack.c.b16 %v4203, %v4201
    %v4340 = vpack.c.b16 %v4204, %v4202
    %v4341 = vpack.c.b16 %v4207, %v4205
    %v4342 = vpack.c.b16 %v4208, %v4206
    %v4343 = vpack.c.b16 %v4211, %v4209
    %v4344 = vpack.c.b16 %v4212, %v4210
    %v4345 = vpack.c.b16 %v4215, %v4213
    %v4346 = vpack.c.b16 %v4216, %v4214
    %v4347 = vpack.c.b16 %v4219, %v4217
    %v4348 = vpack.c.b16 %v4220, %v4218
    %4477 = vmatpush.bf16.msra.mxu0 %v4235
    %4478 = vmatpush.bf16.msra.mxu0 %v4233
    %4479 = vmatpush.bf16.msra.mxu0 %v4231
    %4480 = vmatpush.bf16.msra.mxu0 %v4229
    %4481 = vmatpush.bf16.msra.mxu0 %v4227
    %4482 = vmatpush.bf16.msra.mxu0 %v4225
    %4483 = vmatpush.bf16.msra.mxu0 %v4223
    %4484 = vmatpush.bf16.msra.mxu0 %v4221
    %4485 = vmatmul.bf16.gmra.mxu0 %v3695
    %v4486 = vpop.f32.mrf.mxu0
    %v4487 = vadd.f32 %v3833, %v4486
    %v4488 = vpop.f32.mrf.mxu0
    %4489 = vdwg.mxu0
    %4490 = vmatpush.bf16.msra.mxu0 %v4251
    %4491 = vmatpush.bf16.msra.mxu0 %v4249
    %4492 = vmatpush.bf16.msra.mxu0 %v4247
    %4493 = vmatpush.bf16.msra.mxu0 %v4245
    %4494 = vmatpush.bf16.msra.mxu0 %v4243
    %4495 = vmatpush.bf16.msra.mxu0 %v4241
    %4496 = vmatpush.bf16.msra.mxu0 %v4239
    %4497 = vmatpush.bf16.msra.mxu0 %v4237
    %4498 = vmatmul.bf16.gmra.mxu0 %v3696
    %v4499 = vpop.f32.mrf.mxu0
    %v4500 = vadd.f32 %v4487, %v4499
    %v4501 = vpop.f32.mrf.mxu0
    %4502 = vdwg.mxu0
    %4503 = vmatpush.bf16.msra.mxu0 %v4267
    %4504 = vmatpush.bf16.msra.mxu0 %v4265
    %4505 = vmatpush.bf16.msra.mxu0 %v4263
    %4506 = vmatpush.bf16.msra.mxu0 %v4261
    %4507 = vmatpush.bf16.msra.mxu0 %v4259
    %4508 = vmatpush.bf16.msra.mxu0 %v4257
    %4509 = vmatpush.bf16.msra.mxu0 %v4255
    %4510 = vmatpush.bf16.msra.mxu0 %v4253
    %4511 = vmatmul.bf16.gmra.mxu0 %v3697
    %v4512 = vpop.f32.mrf.mxu0
    %v4513 = vadd.f32 %v4500, %v4512
    %v4514 = vpop.f32.mrf.mxu0
    %4515 = vdwg.mxu0
    %4516 = vmatpush.bf16.msra.mxu0 %v4283
    %4517 = vmatpush.bf16.msra.mxu0 %v4281
    %4518 = vmatpush.bf16.msra.mxu0 %v4279
    %4519 = vmatpush.bf16.msra.mxu0 %v4277
    %4520 = vmatpush.bf16.msra.mxu0 %v4275
    %4521 = vmatpush.bf16.msra.mxu0 %v4273
    %4522 = vmatpush.bf16.msra.mxu0 %v4271
    %4523 = vmatpush.bf16.msra.mxu0 %v4269
    %4524 = vmatmul.bf16.gmra.mxu0 %v3698
    %v4525 = vpop.f32.mrf.mxu0
    %v4526 = vadd.f32 %v4513, %v4525
    %v4527 = vpop.f32.mrf.mxu0
    %4528 = vdwg.mxu0
    %4529 = vmatpush.bf16.msra.mxu0 %v4299
    %4530 = vmatpush.bf16.msra.mxu0 %v4297
    %4531 = vmatpush.bf16.msra.mxu0 %v4295
    %4532 = vmatpush.bf16.msra.mxu0 %v4293
    %4533 = vmatpush.bf16.msra.mxu0 %v4291
    %4534 = vmatpush.bf16.msra.mxu0 %v4289
    %4535 = vmatpush.bf16.msra.mxu0 %v4287
    %4536 = vmatpush.bf16.msra.mxu0 %v4285
    %4537 = vmatmul.bf16.gmra.mxu0 %v3699
    %v4538 = vpop.f32.mrf.mxu0
    %v4539 = vadd.f32 %v4526, %v4538
    %v4540 = vpop.f32.mrf.mxu0
    %4541 = vdwg.mxu0
    %4542 = vmatpush.bf16.msra.mxu0 %v4315
    %4543 = vmatpush.bf16.msra.mxu0 %v4313
    %4544 = vmatpush.bf16.msra.mxu0 %v4311
    %4545 = vmatpush.bf16.msra.mxu0 %v4309
    %4546 = vmatpush.bf16.msra.mxu0 %v4307
    %4547 = vmatpush.bf16.msra.mxu0 %v4305
    %4548 = vmatpush.bf16.msra.mxu0 %v4303
    %4549 = vmatpush.bf16.msra.mxu0 %v4301
    %4550 = vmatmul.bf16.gmra.mxu0 %v3700
    %v4551 = vpop.f32.mrf.mxu0
    %v4552 = vadd.f32 %v4539, %v4551
    %v4553 = vpop.f32.mrf.mxu0
    %4554 = vdwg.mxu0
    %4555 = vmatpush.bf16.msra.mxu0 %v4331
    %4556 = vmatpush.bf16.msra.mxu0 %v4329
    %4557 = vmatpush.bf16.msra.mxu0 %v4327
    %4558 = vmatpush.bf16.msra.mxu0 %v4325
    %4559 = vmatpush.bf16.msra.mxu0 %v4323
    %4560 = vmatpush.bf16.msra.mxu0 %v4321
    %4561 = vmatpush.bf16.msra.mxu0 %v4319
    %4562 = vmatpush.bf16.msra.mxu0 %v4317
    %4563 = vmatmul.bf16.gmra.mxu0 %v3701
    %v4564 = vpop.f32.mrf.mxu0
    %v4565 = vadd.f32 %v4552, %v4564
    %v4566 = vpop.f32.mrf.mxu0
    %4567 = vdwg.mxu0
    %4568 = vmatpush.bf16.msra.mxu0 %v4347
    %4569 = vmatpush.bf16.msra.mxu0 %v4345
    %4570 = vmatpush.bf16.msra.mxu0 %v4343
    %4571 = vmatpush.bf16.msra.mxu0 %v4341
    %4572 = vmatpush.bf16.msra.mxu0 %v4339
    %4573 = vmatpush.bf16.msra.mxu0 %v4337
    %4574 = vmatpush.bf16.msra.mxu0 %v4335
    %4575 = vmatpush.bf16.msra.mxu0 %v4333
    %4576 = vmatmul.bf16.gmra.mxu0 %v3702
    %v4577 = vpop.f32.mrf.mxu0
    %v4578 = vadd.f32 %v4565, %v4577
    %v4579 = vpop.f32.mrf.mxu0
    %4580 = vdwg.mxu0
    %4581 = vmatpush.bf16.msra.mxu0 %v4236
    %4582 = vmatpush.bf16.msra.mxu0 %v4234
    %4583 = vmatpush.bf16.msra.mxu0 %v4232
    %4584 = vmatpush.bf16.msra.mxu0 %v4230
    %4585 = vmatpush.bf16.msra.mxu0 %v4228
    %4586 = vmatpush.bf16.msra.mxu0 %v4226
    %4587 = vmatpush.bf16.msra.mxu0 %v4224
    %4588 = vmatpush.bf16.msra.mxu0 %v4222
    %4589 = vmatmul.bf16.gmra.mxu0 %v3695
    %v4590 = vpop.f32.mrf.mxu0
    %v4591 = vadd.f32 %v3834, %v4590
    %v4592 = vpop.f32.mrf.mxu0
    %4593 = vdwg.mxu0
    %4594 = vmatpush.bf16.msra.mxu0 %v4252
    %4595 = vmatpush.bf16.msra.mxu0 %v4250
    %4596 = vmatpush.bf16.msra.mxu0 %v4248
    %4597 = vmatpush.bf16.msra.mxu0 %v4246
    %4598 = vmatpush.bf16.msra.mxu0 %v4244
    %4599 = vmatpush.bf16.msra.mxu0 %v4242
    %4600 = vmatpush.bf16.msra.mxu0 %v4240
    %4601 = vmatpush.bf16.msra.mxu0 %v4238
    %4602 = vmatmul.bf16.gmra.mxu0 %v3696
    %v4603 = vpop.f32.mrf.mxu0
    %v4604 = vadd.f32 %v4591, %v4603
    %v4605 = vpop.f32.mrf.mxu0
    %4606 = vdwg.mxu0
    %4607 = vmatpush.bf16.msra.mxu0 %v4268
    %4608 = vmatpush.bf16.msra.mxu0 %v4266
    %4609 = vmatpush.bf16.msra.mxu0 %v4264
    %4610 = vmatpush.bf16.msra.mxu0 %v4262
    %4611 = vmatpush.bf16.msra.mxu0 %v4260
    %4612 = vmatpush.bf16.msra.mxu0 %v4258
    %4613 = vmatpush.bf16.msra.mxu0 %v4256
    %4614 = vmatpush.bf16.msra.mxu0 %v4254
    %4615 = vmatmul.bf16.gmra.mxu0 %v3697
    %v4616 = vpop.f32.mrf.mxu0
    %v4617 = vadd.f32 %v4604, %v4616
    %v4618 = vpop.f32.mrf.mxu0
    %4619 = vdwg.mxu0
    %4620 = vmatpush.bf16.msra.mxu0 %v4284
    %4621 = vmatpush.bf16.msra.mxu0 %v4282
    %4622 = vmatpush.bf16.msra.mxu0 %v4280
    %4623 = vmatpush.bf16.msra.mxu0 %v4278
    %4624 = vmatpush.bf16.msra.mxu0 %v4276
    %4625 = vmatpush.bf16.msra.mxu0 %v4274
    %4626 = vmatpush.bf16.msra.mxu0 %v4272
    %4627 = vmatpush.bf16.msra.mxu0 %v4270
    %4628 = vmatmul.bf16.gmra.mxu0 %v3698
    %v4629 = vpop.f32.mrf.mxu0
    %v4630 = vadd.f32 %v4617, %v4629
    %v4631 = vpop.f32.mrf.mxu0
    %4632 = vdwg.mxu0
    %4633 = vmatpush.bf16.msra.mxu0 %v4300
    %4634 = vmatpush.bf16.msra.mxu0 %v4298
    %4635 = vmatpush.bf16.msra.mxu0 %v4296
    %4636 = vmatpush.bf16.msra.mxu0 %v4294
    %4637 = vmatpush.bf16.msra.mxu0 %v4292
    %4638 = vmatpush.bf16.msra.mxu0 %v4290
    %4639 = vmatpush.bf16.msra.mxu0 %v4288
    %4640 = vmatpush.bf16.msra.mxu0 %v4286
    %4641 = vmatmul.bf16.gmra.mxu0 %v3699
    %v4642 = vpop.f32.mrf.mxu0
    %v4643 = vadd.f32 %v4630, %v4642
    %v4644 = vpop.f32.mrf.mxu0
    %4645 = vdwg.mxu0
    %4646 = vmatpush.bf16.msra.mxu0 %v4316
    %4647 = vmatpush.bf16.msra.mxu0 %v4314
    %4648 = vmatpush.bf16.msra.mxu0 %v4312
    %4649 = vmatpush.bf16.msra.mxu0 %v4310
    %4650 = vmatpush.bf16.msra.mxu0 %v4308
    %4651 = vmatpush.bf16.msra.mxu0 %v4306
    %4652 = vmatpush.bf16.msra.mxu0 %v4304
    %4653 = vmatpush.bf16.msra.mxu0 %v4302
    %4654 = vmatmul.bf16.gmra.mxu0 %v3700
    %v4655 = vpop.f32.mrf.mxu0
    %v4656 = vadd.f32 %v4643, %v4655
    %v4657 = vpop.f32.mrf.mxu0
    %4658 = vdwg.mxu0
    %4659 = vmatpush.bf16.msra.mxu0 %v4332
    %4660 = vmatpush.bf16.msra.mxu0 %v4330
    %4661 = vmatpush.bf16.msra.mxu0 %v4328
    %4662 = vmatpush.bf16.msra.mxu0 %v4326
    %4663 = vmatpush.bf16.msra.mxu0 %v4324
    %4664 = vmatpush.bf16.msra.mxu0 %v4322
    %4665 = vmatpush.bf16.msra.mxu0 %v4320
    %4666 = vmatpush.bf16.msra.mxu0 %v4318
    %4667 = vmatmul.bf16.gmra.mxu0 %v3701
    %v4668 = vpop.f32.mrf.mxu0
    %v4669 = vadd.f32 %v4656, %v4668
    %v4670 = vpop.f32.mrf.mxu0
    %4671 = vdwg.mxu0
    %4672 = vmatpush.bf16.msra.mxu0 %v4348
    %4673 = vmatpush.bf16.msra.mxu0 %v4346
    %4674 = vmatpush.bf16.msra.mxu0 %v4344
    %4675 = vmatpush.bf16.msra.mxu0 %v4342
    %4676 = vmatpush.bf16.msra.mxu0 %v4340
    %4677 = vmatpush.bf16.msra.mxu0 %v4338
    %4678 = vmatpush.bf16.msra.mxu0 %v4336
    %4679 = vmatpush.bf16.msra.mxu0 %v4334
    %4680 = vmatmul.bf16.gmra.mxu0 %v3702
    %v4681 = vpop.f32.mrf.mxu0
    %v4682 = vadd.f32 %v4669, %v4681
    %v4683 = vpop.f32.mrf.mxu0
    %4684 = vdwg.mxu0
    %v4685 = vmax.f32 %v4578, 0.0
    %v4686 = vmax.f32 %v4682, 0.0
    %v4687 = vld [vmem:[%s9] sm:$0x3]
    %v4688 = vunpack.c.l.bf16 %v4687
    %v4690 = vperm.slane %v4688, 0
    %v4691 = vperm.slane %v4688, 2
    %v4694 = vperm.slane %v4690, 0
    %v4695 = vperm.slane %v4691, 0
    %v4696 = vmul.f32 %v4685, %v4694
    %v4697 = vmul.f32 %v4686, %v4695
    %v4698 = vadd.f32 %v4696, %v4697
    %4699 = vadd.xlane.f32.xlu0 %v4698
    %v4700 = vpop.xlane.xlu0 %4699
    %v4701 = vld [vmem:[#allocation2] sm:$0x1]
    %v4703 = vperm.slane %v4701, 0
    %v4705 = vadd.f32 %v4700, %v4703
    %vm4706 = vcmask 7168
    %4707 = vst.msk [vmem:[%s11] sm:$0xff] %vm4706, %v4705
    // Predicated region
    $region58: #{gin_convnet_forward.5} parent=1 // pred_check
      _
    $region59: #{gin_convnet_forward.5} parent=1 // pred_check_branch
      %4709 = sbr.rel (0) target = $region61
    $region60: #{gin_convnet_forward.5} parent=1 // pred_region
      _
    $region61: #{gin_convnet_forward.5} parent=1 // pred_fallthru
      _
    // Predicated region
    $region62: #{gin_convnet_forward.5} parent=1 // pred_check
      _
    $region63: #{gin_convnet_forward.5} parent=1 // pred_check_branch
      %4711 = sbr.rel (0) target = $region65
    $region64: #{gin_convnet_forward.5} parent=1 // pred_region
      _
    $region65: #{gin_convnet_forward.5} parent=1 // pred_fallthru
      _
    %4712 = vsyncpa [#allocation4], 1
    %4713 = vsyncpa [#allocation6], 1

</llo_original>
